<compile_context>
chip_gen: v7x
topology: tpu7x:2x2x1
jax: 0.10.0
libtpu: 0.0.40
codegen_flags: <defaults>
</compile_context>

<pallas_src>
import math
from functools import partial

import jax
import jax.numpy as jnp
from jax.experimental import pallas as pl
from jax.experimental.pallas import tpu as pltpu

_VMEM_LIMIT = 32 * 1024 * 1024  # safe on v5e/v6e/v7x; working sets here are far smaller


def _spike(x):
    # MultiSpike: round(clamp(x, 0, 4)) / 4   (round-half-even matches torch.round)
    return jnp.round(jnp.clip(x, 0.0, 4.0)) * 0.25


# --------------------- fused spike -> 1x1 conv (matmul) -> BN affine kernel ---------------------
def _pw_bn_kernel(x_ref, w_ref, s_ref, b_ref, o_ref, *, pre_spike):
    x = x_ref[...]
    if pre_spike:
        # spiked activations are exact in bf16 -> lossless cast onto the MXU fast path
        x = _spike(x).astype(jnp.bfloat16)
    y = jnp.dot(x, w_ref[...], preferred_element_type=jnp.float32)
    o_ref[...] = y * s_ref[...] + b_ref[...]      # folded eval-mode BatchNorm affine


def _choose_tile_m(M, target=512):
    """Largest row tile <= target that is a multiple of 8 and divides M (or M itself)."""
    if M <= target:
        return M
    tm = (target // 8) * 8
    while tm >= 8:
        if M % tm == 0:
            return tm
        tm -= 8
    return M


def pw_bn_op(x, w_bf16, scale, bias, pre_spike=True, tile_m=512):
    M, Cin = x.shape
    Cout = w_bf16.shape[1]
    tm = _choose_tile_m(M, tile_m)
    return pl.pallas_call(
        partial(_pw_bn_kernel, pre_spike=pre_spike),
        out_shape=jax.ShapeDtypeStruct((M, Cout), jnp.float32),
        grid=(pl.cdiv(M, tm),),
        in_specs=[
            pl.BlockSpec((tm, Cin), lambda i: (i, 0)),      # token tile
            pl.BlockSpec((Cin, Cout), lambda i: (0, 0)),    # whole weight, resident
            pl.BlockSpec((1, Cout), lambda i: (0, 0)),      # BN scale
            pl.BlockSpec((1, Cout), lambda i: (0, 0)),      # BN bias
        ],
        out_specs=pl.BlockSpec((tm, Cout), lambda i: (i, 0)),
        compiler_params=pltpu.CompilerParams(
            dimension_semantics=("parallel",),
            vmem_limit_bytes=_VMEM_LIMIT),
    )(x, w_bf16, scale, bias)


# --------------- fused spike -> KxK depthwise conv (zero pad in-kernel) -> BN kernel ---------------
def _dwconv_bn_kernel(x_ref, w_ref, s_ref, b_ref, o_ref, xpad_ref, *, K, P):
    H, W, C = x_ref.shape
    Ho, Wo, _ = o_ref.shape
    # Build the zero-padded, spiked image in VMEM scratch (spike(0)=0, so padding
    # after the spike is equivalent to the reference padding before the conv).
    xpad_ref[...] = jnp.zeros_like(xpad_ref)
    xpad_ref[P:P + H, P:P + W, :] = _spike(x_ref[...])          # spike2
    xp = xpad_ref[...]
    w = w_ref[...]                                              # (K, K, C)
    acc = jnp.zeros((Ho, Wo, C), jnp.float32)
    for dy in range(K):                                         # K*K VPU multiply-adds
        for dx in range(K):
            acc = acc + xp[dy:dy + Ho, dx:dx + Wo, :] * w[dy:dy + 1, dx:dx + 1, :]
    o_ref[...] = acc * s_ref[...] + b_ref[...]                  # folded BatchNorm affine


def dwconv_bn_op(x, w, scale, bias, padding):
    # TODO(synk): for large feature maps, additionally tile H with a halo; per-batch
    # whole-image blocks are fine at these sizes and fit v7x's 64 MiB VMEM easily.
    B, H, W, C = x.shape
    K = w.shape[0]
    Ho = H + 2 * padding - K + 1
    Wo = W + 2 * padding - K + 1
    return pl.pallas_call(
        partial(_dwconv_bn_kernel, K=K, P=padding),
        out_shape=jax.ShapeDtypeStruct((B, Ho, Wo, C), jnp.float32),
        grid=(B,),
        in_specs=[
            pl.BlockSpec((None, H, W, C), lambda b: (b, 0, 0, 0)),
            pl.BlockSpec((K, K, C), lambda b: (0, 0, 0)),
            pl.BlockSpec((1, 1, C), lambda b: (0, 0, 0)),
            pl.BlockSpec((1, 1, C), lambda b: (0, 0, 0)),
        ],
        out_specs=pl.BlockSpec((None, Ho, Wo, C), lambda b: (b, 0, 0, 0)),
        scratch_shapes=[pltpu.VMEM((H + 2 * padding, W + 2 * padding, C), jnp.float32)],
        compiler_params=pltpu.CompilerParams(
            dimension_semantics=("parallel",),
            vmem_limit_bytes=_VMEM_LIMIT),
    )(x, w, scale, bias)


# ------------------------------------ parameters ------------------------------------
def init_params(key, dim, expansion_ratio=2, kernel_size=7):
    med = int(expansion_ratio * dim)
    eps = 1e-5
    keys = iter(jax.random.split(key, 16))

    def nrm(shape, s=0.1):
        return (s * jax.random.normal(next(keys), shape)).astype(jnp.float32)

    def uni(shape, lo, hi):
        return jax.random.uniform(next(keys), shape, jnp.float32, lo, hi)

    def bn_fold(c):
        # TODO(synk): BatchNorm implemented in eval mode (running stats folded into a
        # per-channel affine); train-mode batch statistics are not reproduced.
        gamma, beta = uni((c,), 0.5, 1.5), nrm((c,))
        mean, var = nrm((c,)), uni((c,), 0.5, 1.5)
        s = gamma / jnp.sqrt(var + eps)
        return s, beta - mean * s

    p = {}
    # pwconv1: Conv2d(dim, med, 1, bias=False) + BN(med)   (weights stored bf16 for the MXU)
    p["w_pw1"] = nrm((dim, med)).astype(jnp.bfloat16)
    s1, b1 = bn_fold(med)
    p["bn1_s"], p["bn1_b"] = s1.reshape(1, med), b1.reshape(1, med)
    # dwconv: Conv2d(med, med, K, padding=K//2, groups=med, bias=False) + BN(med)
    p["w_dw"] = nrm((kernel_size, kernel_size, med))
    s2, b2 = bn_fold(med)
    p["bn2_s"], p["bn2_b"] = s2.reshape(1, 1, med), b2.reshape(1, 1, med)
    # pwconv2: Conv2d(med, dim, 1, bias=False) + BN(dim)
    p["w_pw2"] = nrm((med, dim)).astype(jnp.bfloat16)
    s3, b3 = bn_fold(dim)
    p["bn3_s"], p["bn3_b"] = s3.reshape(1, dim), b3.reshape(1, dim)
    return p


# ------------------------------------ full forward ------------------------------------
def sepconv_spike_forward(x_nchw, p, padding=3):
    B, C, H, W = x_nchw.shape
    med = p["w_pw1"].shape[1]
    x = jnp.transpose(x_nchw, (0, 2, 3, 1)).astype(jnp.float32)          # NHWC
    # spike1 -> pwconv1 -> BN
    h1 = pw_bn_op(x.reshape(B * H * W, C), p["w_pw1"], p["bn1_s"], p["bn1_b"])
    # spike2 -> depthwise KxK conv (zero pad in-kernel) -> BN
    h2 = dwconv_bn_op(h1.reshape(B, H, W, med), p["w_dw"], p["bn2_s"], p["bn2_b"],
                      padding=padding)
    Ho, Wo = h2.shape[1], h2.shape[2]
    # spike3 -> pwconv2 -> BN
    h3 = pw_bn_op(h2.reshape(B * Ho * Wo, med), p["w_pw2"], p["bn3_s"], p["bn3_b"])
    return jnp.transpose(h3.reshape(B, Ho, Wo, C), (0, 3, 1, 2))          # back to NCHW


if __name__ == "__main__":
    B, C, H, W = 2, 16, 16, 16
    x = jax.random.normal(jax.random.PRNGKey(0), (B, C, H, W), jnp.float32)
    params = init_params(jax.random.PRNGKey(0), dim=C, expansion_ratio=2, kernel_size=7)
    fwd = jax.jit(sepconv_spike_forward)
    out = fwd(x, params)
    jax.block_until_ready(out)
    assert out.shape == (B, C, H, W) and out.dtype == jnp.float32
    assert bool(jnp.all(jnp.isfinite(out)))
    print("KERNEL_OK")
</pallas_src>

<mosaic_0001>
module attributes {stable_mosaic.version = 11 : i64} {
  func.func @_pw_bn_kernel(%arg0: i32, %arg1: memref<512x16xf32, #tpu.memory_space<vmem>>, %arg2: memref<16x32xbf16, #tpu.memory_space<vmem>>, %arg3: memref<1x32xf32, #tpu.memory_space<vmem>>, %arg4: memref<1x32xf32, #tpu.memory_space<vmem>>, %arg5: memref<512x32xf32, #tpu.memory_space<vmem>>) attributes {dimension_semantics = [#tpu.dimension_semantics<parallel>], iteration_bounds = array<i64: 1>, scalar_prefetch = 0 : i64, scratch_operands = 0 : i64, tpu.core_type = #tpu.core_type<tc>, window_params = [{transform_indices = @transform_0, window_bounds = array<i64: 512, 16>}, {pipeline_mode = #tpu.pipeline_mode<synchronous>, transform_indices = @transform_1, window_bounds = array<i64: 16, 32>}, {pipeline_mode = #tpu.pipeline_mode<synchronous>, transform_indices = @transform_2, window_bounds = array<i64: 1, 32>}, {pipeline_mode = #tpu.pipeline_mode<synchronous>, transform_indices = @transform_3, window_bounds = array<i64: 1, 32>}, {transform_indices = @transform_4, window_bounds = array<i64: 512, 32>}]} {
    %c0 = arith.constant 0 : index
    %c0_0 = arith.constant 0 : index
    %0 = vector.load %arg1[%c0, %c0_0] : memref<512x16xf32, #tpu.memory_space<vmem>>, vector<512x16xf32>
    %cst = arith.constant 0.000000e+00 : f32
    %cst_1 = arith.constant 4.000000e+00 : f32
    %1 = vector.broadcast %cst : f32 to vector<512x16xf32>
    %2 = arith.maximumf %1, %0 : vector<512x16xf32>
    %3 = vector.broadcast %cst_1 : f32 to vector<512x16xf32>
    %4 = arith.minimumf %3, %2 : vector<512x16xf32>
    %5 = math.roundeven %4 : vector<512x16xf32>
    %cst_2 = arith.constant 2.500000e-01 : f32
    %6 = vector.broadcast %cst_2 : f32 to vector<512x16xf32>
    %7 = arith.mulf %5, %6 : vector<512x16xf32>
    %8 = arith.truncf %7 : vector<512x16xf32> to vector<512x16xbf16>
    %c0_3 = arith.constant 0 : index
    %c0_4 = arith.constant 0 : index
    %9 = vector.load %arg2[%c0_3, %c0_4] : memref<16x32xbf16, #tpu.memory_space<vmem>>, vector<16x32xbf16>
    %cst_5 = arith.constant dense<0.000000e+00> : vector<512x32xf32>
    %10 = tpu.matmul %8, %9, %cst_5 {dimension_numbers = #tpu.dot_dimension_numbers<[1], [0], [0], [1], [0, 0, 1, 1], [], []>} : vector<512x16xbf16>, vector<16x32xbf16>, vector<512x32xf32> -> vector<512x32xf32>
    %c0_6 = arith.constant 0 : index
    %c0_7 = arith.constant 0 : index
    %11 = vector.load %arg3[%c0_6, %c0_7] : memref<1x32xf32, #tpu.memory_space<vmem>>, vector<1x32xf32>
    %12 = vector.broadcast %11 : vector<1x32xf32> to vector<512x32xf32>
    %13 = arith.mulf %10, %12 : vector<512x32xf32>
    %c0_8 = arith.constant 0 : index
    %c0_9 = arith.constant 0 : index
    %14 = vector.load %arg4[%c0_8, %c0_9] : memref<1x32xf32, #tpu.memory_space<vmem>>, vector<1x32xf32>
    %15 = vector.broadcast %14 : vector<1x32xf32> to vector<512x32xf32>
    %16 = arith.addf %13, %15 : vector<512x32xf32>
    %c0_10 = arith.constant 0 : index
    %c0_11 = arith.constant 0 : index
    %17 = vector.load %arg5[%c0_10, %c0_11] : memref<512x32xf32, #tpu.memory_space<vmem>>, vector<512x32xf32>
    tpu.vector_store %arg5[%c0_10, %c0_11], %16 {strides = array<i32>} : memref<512x32xf32, #tpu.memory_space<vmem>>, vector<512x32xf32>,
    return
  }
  func.func @transform_0(%arg0: i32) -> (i32, i32) {
    %c0_i32 = arith.constant 0 : i32
    %c0_i32_0 = arith.constant 0 : i32
    return %arg0, %c0_i32 : i32, i32
  }
  func.func @transform_1(%arg0: i32) -> (i32, i32) {
    %c0_i32 = arith.constant 0 : i32
    %c0_i32_0 = arith.constant 0 : i32
    %c0_i32_1 = arith.constant 0 : i32
    return %c0_i32, %c0_i32_0 : i32, i32
  }
  func.func @transform_2(%arg0: i32) -> (i32, i32) {
    %c0_i32 = arith.constant 0 : i32
    %c0_i32_0 = arith.constant 0 : i32
    %c0_i32_1 = arith.constant 0 : i32
    return %c0_i32, %c0_i32_0 : i32, i32
  }
  func.func @transform_3(%arg0: i32) -> (i32, i32) {
    %c0_i32 = arith.constant 0 : i32
    %c0_i32_0 = arith.constant 0 : i32
    %c0_i32_1 = arith.constant 0 : i32
    return %c0_i32, %c0_i32_0 : i32, i32
  }
  func.func @transform_4(%arg0: i32) -> (i32, i32) {
    %c0_i32 = arith.constant 0 : i32
    %c0_i32_0 = arith.constant 0 : i32
    return %arg0, %c0_i32 : i32, i32
  }
}

module attributes {stable_mosaic.version = 11 : i64} {
  func.func @_dwconv_bn_kernel(%arg0: i32, %arg1: memref<1x16x16x32xf32, #tpu.memory_space<vmem>>, %arg2: memref<7x7x32xf32, #tpu.memory_space<vmem>>, %arg3: memref<1x1x32xf32, #tpu.memory_space<vmem>>, %arg4: memref<1x1x32xf32, #tpu.memory_space<vmem>>, %arg5: memref<1x16x16x32xf32, #tpu.memory_space<vmem>>, %arg6: memref<22x22x32xf32, #tpu.memory_space<vmem>>) attributes {dimension_semantics = [#tpu.dimension_semantics<parallel>], iteration_bounds = array<i64: 2>, scalar_prefetch = 0 : i64, scratch_operands = 1 : i64, tpu.core_type = #tpu.core_type<tc>, window_params = [{transform_indices = @transform_0, window_bounds = array<i64: 1, 16, 16, 32>}, {pipeline_mode = #tpu.pipeline_mode<synchronous>, transform_indices = @transform_1, window_bounds = array<i64: 7, 7, 32>}, {pipeline_mode = #tpu.pipeline_mode<synchronous>, transform_indices = @transform_2, window_bounds = array<i64: 1, 1, 32>}, {pipeline_mode = #tpu.pipeline_mode<synchronous>, transform_indices = @transform_3, window_bounds = array<i64: 1, 1, 32>}, {transform_indices = @transform_4, window_bounds = array<i64: 1, 16, 16, 32>}]} {
    %cst = arith.constant 0.000000e+00 : f32
    %0 = vector.broadcast %cst : f32 to vector<22x22x32xf32>
    %c0 = arith.constant 0 : index
    %c0_0 = arith.constant 0 : index
    %c0_1 = arith.constant 0 : index
    %1 = vector.load %arg6[%c0, %c0_0, %c0_1] : memref<22x22x32xf32, #tpu.memory_space<vmem>>, vector<22x22x32xf32>
    tpu.vector_store %arg6[%c0, %c0_0, %c0_1], %0 {strides = array<i32>} : memref<22x22x32xf32, #tpu.memory_space<vmem>>, vector<22x22x32xf32>,
    %c0_2 = arith.constant 0 : index
    %c0_3 = arith.constant 0 : index
    %c0_4 = arith.constant 0 : index
    %c0_5 = arith.constant 0 : index
    %2 = vector.load %arg1[%c0_2, %c0_3, %c0_4, %c0_5] : memref<1x16x16x32xf32, #tpu.memory_space<vmem>>, vector<1x16x16x32xf32>
    %3 = vector.shape_cast %2 : vector<1x16x16x32xf32> to vector<16x16x32xf32>
    %cst_6 = arith.constant 0.000000e+00 : f32
    %cst_7 = arith.constant 4.000000e+00 : f32
    %4 = vector.broadcast %cst_6 : f32 to vector<16x16x32xf32>
    %5 = arith.maximumf %4, %3 : vector<16x16x32xf32>
    %6 = vector.broadcast %cst_7 : f32 to vector<16x16x32xf32>
    %7 = arith.minimumf %6, %5 : vector<16x16x32xf32>
    %8 = math.roundeven %7 : vector<16x16x32xf32>
    %cst_8 = arith.constant 2.500000e-01 : f32
    %9 = vector.broadcast %cst_8 : f32 to vector<16x16x32xf32>
    %10 = arith.mulf %8, %9 : vector<16x16x32xf32>
    %c3 = arith.constant 3 : index
    %c3_9 = arith.constant 3 : index
    %c0_10 = arith.constant 0 : index
    %11 = vector.load %arg6[%c3, %c3_9, %c0_10] : memref<22x22x32xf32, #tpu.memory_space<vmem>>, vector<16x16x32xf32>
    tpu.vector_store %arg6[%c3, %c3_9, %c0_10], %10 {strides = array<i32>} : memref<22x22x32xf32, #tpu.memory_space<vmem>>, vector<16x16x32xf32>,
    %c0_11 = arith.constant 0 : index
    %c0_12 = arith.constant 0 : index
    %c0_13 = arith.constant 0 : index
    %12 = vector.load %arg6[%c0_11, %c0_12, %c0_13] : memref<22x22x32xf32, #tpu.memory_space<vmem>>, vector<22x22x32xf32>
    %c0_14 = arith.constant 0 : index
    %c0_15 = arith.constant 0 : index
    %c0_16 = arith.constant 0 : index
    %13 = vector.load %arg2[%c0_14, %c0_15, %c0_16] : memref<7x7x32xf32, #tpu.memory_space<vmem>>, vector<7x7x32xf32>
    %cst_17 = arith.constant 0.000000e+00 : f32
    %14 = vector.broadcast %cst_17 : f32 to vector<16x16x32xf32>
    %15 = vector.extract_strided_slice %12 {offsets = [0, 0, 0], sizes = [16, 16, 32], strides = [1, 1, 1]} : vector<22x22x32xf32> to vector<16x16x32xf32>
    %16 = vector.extract_strided_slice %13 {offsets = [0, 0, 0], sizes = [1, 1, 32], strides = [1, 1, 1]} : vector<7x7x32xf32> to vector<1x1x32xf32>
    %17 = vector.broadcast %16 : vector<1x1x32xf32> to vector<16x16x32xf32>
    %18 = arith.mulf %15, %17 : vector<16x16x32xf32>
    %19 = arith.addf %14, %18 : vector<16x16x32xf32>
    %20 = vector.extract_strided_slice %12 {offsets = [0, 1, 0], sizes = [16, 16, 32], strides = [1, 1, 1]} : vector<22x22x32xf32> to vector<16x16x32xf32>
    %21 = vector.extract_strided_slice %13 {offsets = [0, 1, 0], sizes = [1, 1, 32], strides = [1, 1, 1]} : vector<7x7x32xf32> to vector<1x1x32xf32>
    %22 = vector.broadcast %21 : vector<1x1x32xf32> to vector<16x16x32xf32>
    %23 = arith.mulf %20, %22 : vector<16x16x32xf32>
    %24 = arith.addf %19, %23 : vector<16x16x32xf32>
    %25 = vector.extract_strided_slice %12 {offsets = [0, 2, 0], sizes = [16, 16, 32], strides = [1, 1, 1]} : vector<22x22x32xf32> to vector<16x16x32xf32>
    %26 = vector.extract_strided_slice %13 {offsets = [0, 2, 0], sizes = [1, 1, 32], strides = [1, 1, 1]} : vector<7x7x32xf32> to vector<1x1x32xf32>
    %27 = vector.broadcast %26 : vector<1x1x32xf32> to vector<16x16x32xf32>
    %28 = arith.mulf %25, %27 : vector<16x16x32xf32>
    %29 = arith.addf %24, %28 : vector<16x16x32xf32>
    %30 = vector.extract_strided_slice %12 {offsets = [0, 3, 0], sizes = [16, 16, 32], strides = [1, 1, 1]} : vector<22x22x32xf32> to vector<16x16x32xf32>
    %31 = vector.extract_strided_slice %13 {offsets = [0, 3, 0], sizes = [1, 1, 32], strides = [1, 1, 1]} : vector<7x7x32xf32> to vector<1x1x32xf32>
    %32 = vector.broadcast %31 : vector<1x1x32xf32> to vector<16x16x32xf32>
    %33 = arith.mulf %30, %32 : vector<16x16x32xf32>
    %34 = arith.addf %29, %33 : vector<16x16x32xf32>
    %35 = vector.extract_strided_slice %12 {offsets = [0, 4, 0], sizes = [16, 16, 32], strides = [1, 1, 1]} : vector<22x22x32xf32> to vector<16x16x32xf32>
    %36 = vector.extract_strided_slice %13 {offsets = [0, 4, 0], sizes = [1, 1, 32], strides = [1, 1, 1]} : vector<7x7x32xf32> to vector<1x1x32xf32>
    %37 = vector.broadcast %36 : vector<1x1x32xf32> to vector<16x16x32xf32>
    %38 = arith.mulf %35, %37 : vector<16x16x32xf32>
    %39 = arith.addf %34, %38 : vector<16x16x32xf32>
    %40 = vector.extract_strided_slice %12 {offsets = [0, 5, 0], sizes = [16, 16, 32], strides = [1, 1, 1]} : vector<22x22x32xf32> to vector<16x16x32xf32>
    %41 = vector.extract_strided_slice %13 {offsets = [0, 5, 0], sizes = [1, 1, 32], strides = [1, 1, 1]} : vector<7x7x32xf32> to vector<1x1x32xf32>
    %42 = vector.broadcast %41 : vector<1x1x32xf32> to vector<16x16x32xf32>
    %43 = arith.mulf %40, %42 : vector<16x16x32xf32>
    %44 = arith.addf %39, %43 : vector<16x16x32xf32>
    %45 = vector.extract_strided_slice %12 {offsets = [0, 6, 0], sizes = [16, 16, 32], strides = [1, 1, 1]} : vector<22x22x32xf32> to vector<16x16x32xf32>
    %46 = vector.extract_strided_slice %13 {offsets = [0, 6, 0], sizes = [1, 1, 32], strides = [1, 1, 1]} : vector<7x7x32xf32> to vector<1x1x32xf32>
    %47 = vector.broadcast %46 : vector<1x1x32xf32> to vector<16x16x32xf32>
    %48 = arith.mulf %45, %47 : vector<16x16x32xf32>
    %49 = arith.addf %44, %48 : vector<16x16x32xf32>
    %50 = vector.extract_strided_slice %12 {offsets = [1, 0, 0], sizes = [16, 16, 32], strides = [1, 1, 1]} : vector<22x22x32xf32> to vector<16x16x32xf32>
    %51 = vector.extract_strided_slice %13 {offsets = [1, 0, 0], sizes = [1, 1, 32], strides = [1, 1, 1]} : vector<7x7x32xf32> to vector<1x1x32xf32>
    %52 = vector.broadcast %51 : vector<1x1x32xf32> to vector<16x16x32xf32>
    %53 = arith.mulf %50, %52 : vector<16x16x32xf32>
    %54 = arith.addf %49, %53 : vector<16x16x32xf32>
    %55 = vector.extract_strided_slice %12 {offsets = [1, 1, 0], sizes = [16, 16, 32], strides = [1, 1, 1]} : vector<22x22x32xf32> to vector<16x16x32xf32>
    %56 = vector.extract_strided_slice %13 {offsets = [1, 1, 0], sizes = [1, 1, 32], strides = [1, 1, 1]} : vector<7x7x32xf32> to vector<1x1x32xf32>
    %57 = vector.broadcast %56 : vector<1x1x32xf32> to vector<16x16x32xf32>
    %58 = arith.mulf %55, %57 : vector<16x16x32xf32>
    %59 = arith.addf %54, %58 : vector<16x16x32xf32>
    %60 = vector.extract_strided_slice %12 {offsets = [1, 2, 0], sizes = [16, 16, 32], strides = [1, 1, 1]} : vector<22x22x32xf32> to vector<16x16x32xf32>
    %61 = vector.extract_strided_slice %13 {offsets = [1, 2, 0], sizes = [1, 1, 32], strides = [1, 1, 1]} : vector<7x7x32xf32> to vector<1x1x32xf32>
    %62 = vector.broadcast %61 : vector<1x1x32xf32> to vector<16x16x32xf32>
    %63 = arith.mulf %60, %62 : vector<16x16x32xf32>
    %64 = arith.addf %59, %63 : vector<16x16x32xf32>
    %65 = vector.extract_strided_slice %12 {offsets = [1, 3, 0], sizes = [16, 16, 32], strides = [1, 1, 1]} : vector<22x22x32xf32> to vector<16x16x32xf32>
    %66 = vector.extract_strided_slice %13 {offsets = [1, 3, 0], sizes = [1, 1, 32], strides = [1, 1, 1]} : vector<7x7x32xf32> to vector<1x1x32xf32>
    %67 = vector.broadcast %66 : vector<1x1x32xf32> to vector<16x16x32xf32>
    %68 = arith.mulf %65, %67 : vector<16x16x32xf32>
    %69 = arith.addf %64, %68 : vector<16x16x32xf32>
    %70 = vector.extract_strided_slice %12 {offsets = [1, 4, 0], sizes = [16, 16, 32], strides = [1, 1, 1]} : vector<22x22x32xf32> to vector<16x16x32xf32>
    %71 = vector.extract_strided_slice %13 {offsets = [1, 4, 0], sizes = [1, 1, 32], strides = [1, 1, 1]} : vector<7x7x32xf32> to vector<1x1x32xf32>
    %72 = vector.broadcast %71 : vector<1x1x32xf32> to vector<16x16x32xf32>
    %73 = arith.mulf %70, %72 : vector<16x16x32xf32>
    %74 = arith.addf %69, %73 : vector<16x16x32xf32>
    %75 = vector.extract_strided_slice %12 {offsets = [1, 5, 0], sizes = [16, 16, 32], strides = [1, 1, 1]} : vector<22x22x32xf32> to vector<16x16x32xf32>
    %76 = vector.extract_strided_slice %13 {offsets = [1, 5, 0], sizes = [1, 1, 32], strides = [1, 1, 1]} : vector<7x7x32xf32> to vector<1x1x32xf32>
    %77 = vector.broadcast %76 : vector<1x1x32xf32> to vector<16x16x32xf32>
    %78 = arith.mulf %75, %77 : vector<16x16x32xf32>
    %79 = arith.addf %74, %78 : vector<16x16x32xf32>
    %80 = vector.extract_strided_slice %12 {offsets = [1, 6, 0], sizes = [16, 16, 32], strides = [1, 1, 1]} : vector<22x22x32xf32> to vector<16x16x32xf32>
    %81 = vector.extract_strided_slice %13 {offsets = [1, 6, 0], sizes = [1, 1, 32], strides = [1, 1, 1]} : vector<7x7x32xf32> to vector<1x1x32xf32>
    %82 = vector.broadcast %81 : vector<1x1x32xf32> to vector<16x16x32xf32>
    %83 = arith.mulf %80, %82 : vector<16x16x32xf32>
    %84 = arith.addf %79, %83 : vector<16x16x32xf32>
    %85 = vector.extract_strided_slice %12 {offsets = [2, 0, 0], sizes = [16, 16, 32], strides = [1, 1, 1]} : vector<22x22x32xf32> to vector<16x16x32xf32>
    %86 = vector.extract_strided_slice %13 {offsets = [2, 0, 0], sizes = [1, 1, 32], strides = [1, 1, 1]} : vector<7x7x32xf32> to vector<1x1x32xf32>
    %87 = vector.broadcast %86 : vector<1x1x32xf32> to vector<16x16x32xf32>
    %88 = arith.mulf %85, %87 : vector<16x16x32xf32>
    %89 = arith.addf %84, %88 : vector<16x16x32xf32>
    %90 = vector.extract_strided_slice %12 {offsets = [2, 1, 0], sizes = [16, 16, 32], strides = [1, 1, 1]} : vector<22x22x32xf32> to vector<16x16x32xf32>
    %91 = vector.extract_strided_slice %13 {offsets = [2, 1, 0], sizes = [1, 1, 32], strides = [1, 1, 1]} : vector<7x7x32xf32> to vector<1x1x32xf32>
    %92 = vector.broadcast %91 : vector<1x1x32xf32> to vector<16x16x32xf32>
    %93 = arith.mulf %90, %92 : vector<16x16x32xf32>
    %94 = arith.addf %89, %93 : vector<16x16x32xf32>
    %95 = vector.extract_strided_slice %12 {offsets = [2, 2, 0], sizes = [16, 16, 32], strides = [1, 1, 1]} : vector<22x22x32xf32> to vector<16x16x32xf32>
    %96 = vector.extract_strided_slice %13 {offsets = [2, 2, 0], sizes = [1, 1, 32], strides = [1, 1, 1]} : vector<7x7x32xf32> to vector<1x1x32xf32>
    %97 = vector.broadcast %96 : vector<1x1x32xf32> to vector<16x16x32xf32>
    %98 = arith.mulf %95, %97 : vector<16x16x32xf32>
    %99 = arith.addf %94, %98 : vector<16x16x32xf32>
    %100 = vector.extract_strided_slice %12 {offsets = [2, 3, 0], sizes = [16, 16, 32], strides = [1, 1, 1]} : vector<22x22x32xf32> to vector<16x16x32xf32>
    %101 = vector.extract_strided_slice %13 {offsets = [2, 3, 0], sizes = [1, 1, 32], strides = [1, 1, 1]} : vector<7x7x32xf32> to vector<1x1x32xf32>
    %102 = vector.broadcast %101 : vector<1x1x32xf32> to vector<16x16x32xf32>
    %103 = arith.mulf %100, %102 : vector<16x16x32xf32>
    %104 = arith.addf %99, %103 : vector<16x16x32xf32>
    %105 = vector.extract_strided_slice %12 {offsets = [2, 4, 0], sizes = [16, 16, 32], strides = [1, 1, 1]} : vector<22x22x32xf32> to vector<16x16x32xf32>
    %106 = vector.extract_strided_slice %13 {offsets = [2, 4, 0], sizes = [1, 1, 32], strides = [1, 1, 1]} : vector<7x7x32xf32> to vector<1x1x32xf32>
    %107 = vector.broadcast %106 : vector<1x1x32xf32> to vector<16x16x32xf32>
    %108 = arith.mulf %105, %107 : vector<16x16x32xf32>
    %109 = arith.addf %104, %108 : vector<16x16x32xf32>
    %110 = vector.extract_strided_slice %12 {offsets = [2, 5, 0], sizes = [16, 16, 32], strides = [1, 1, 1]} : vector<22x22x32xf32> to vector<16x16x32xf32>
    %111 = vector.extract_strided_slice %13 {offsets = [2, 5, 0], sizes = [1, 1, 32], strides = [1, 1, 1]} : vector<7x7x32xf32> to vector<1x1x32xf32>
    %112 = vector.broadcast %111 : vector<1x1x32xf32> to vector<16x16x32xf32>
    %113 = arith.mulf %110, %112 : vector<16x16x32xf32>
    %114 = arith.addf %109, %113 : vector<16x16x32xf32>
    %115 = vector.extract_strided_slice %12 {offsets = [2, 6, 0], sizes = [16, 16, 32], strides = [1, 1, 1]} : vector<22x22x32xf32> to vector<16x16x32xf32>
    %116 = vector.extract_strided_slice %13 {offsets = [2, 6, 0], sizes = [1, 1, 32], strides = [1, 1, 1]} : vector<7x7x32xf32> to vector<1x1x32xf32>
    %117 = vector.broadcast %116 : vector<1x1x32xf32> to vector<16x16x32xf32>
    %118 = arith.mulf %115, %117 : vector<16x16x32xf32>
    %119 = arith.addf %114, %118 : vector<16x16x32xf32>
    %120 = vector.extract_strided_slice %12 {offsets = [3, 0, 0], sizes = [16, 16, 32], strides = [1, 1, 1]} : vector<22x22x32xf32> to vector<16x16x32xf32>
    %121 = vector.extract_strided_slice %13 {offsets = [3, 0, 0], sizes = [1, 1, 32], strides = [1, 1, 1]} : vector<7x7x32xf32> to vector<1x1x32xf32>
    %122 = vector.broadcast %121 : vector<1x1x32xf32> to vector<16x16x32xf32>
    %123 = arith.mulf %120, %122 : vector<16x16x32xf32>
    %124 = arith.addf %119, %123 : vector<16x16x32xf32>
    %125 = vector.extract_strided_slice %12 {offsets = [3, 1, 0], sizes = [16, 16, 32], strides = [1, 1, 1]} : vector<22x22x32xf32> to vector<16x16x32xf32>
    %126 = vector.extract_strided_slice %13 {offsets = [3, 1, 0], sizes = [1, 1, 32], strides = [1, 1, 1]} : vector<7x7x32xf32> to vector<1x1x32xf32>
    %127 = vector.broadcast %126 : vector<1x1x32xf32> to vector<16x16x32xf32>
    %128 = arith.mulf %125, %127 : vector<16x16x32xf32>
    %129 = arith.addf %124, %128 : vector<16x16x32xf32>
    %130 = vector.extract_strided_slice %12 {offsets = [3, 2, 0], sizes = [16, 16, 32], strides = [1, 1, 1]} : vector<22x22x32xf32> to vector<16x16x32xf32>
    %131 = vector.extract_strided_slice %13 {offsets = [3, 2, 0], sizes = [1, 1, 32], strides = [1, 1, 1]} : vector<7x7x32xf32> to vector<1x1x32xf32>
    %132 = vector.broadcast %131 : vector<1x1x32xf32> to vector<16x16x32xf32>
    %133 = arith.mulf %130, %132 : vector<16x16x32xf32>
    %134 = arith.addf %129, %133 : vector<16x16x32xf32>
    %135 = vector.extract_strided_slice %12 {offsets = [3, 3, 0], sizes = [16, 16, 32], strides = [1, 1, 1]} : vector<22x22x32xf32> to vector<16x16x32xf32>
    %136 = vector.extract_strided_slice %13 {offsets = [3, 3, 0], sizes = [1, 1, 32], strides = [1, 1, 1]} : vector<7x7x32xf32> to vector<1x1x32xf32>
    %137 = vector.broadcast %136 : vector<1x1x32xf32> to vector<16x16x32xf32>
    %138 = arith.mulf %135, %137 : vector<16x16x32xf32>
    %139 = arith.addf %134, %138 : vector<16x16x32xf32>
    %140 = vector.extract_strided_slice %12 {offsets = [3, 4, 0], sizes = [16, 16, 32], strides = [1, 1, 1]} : vector<22x22x32xf32> to vector<16x16x32xf32>
    %141 = vector.extract_strided_slice %13 {offsets = [3, 4, 0], sizes = [1, 1, 32], strides = [1, 1, 1]} : vector<7x7x32xf32> to vector<1x1x32xf32>
    %142 = vector.broadcast %141 : vector<1x1x32xf32> to vector<16x16x32xf32>
    %143 = arith.mulf %140, %142 : vector<16x16x32xf32>
    %144 = arith.addf %139, %143 : vector<16x16x32xf32>
    %145 = vector.extract_strided_slice %12 {offsets = [3, 5, 0], sizes = [16, 16, 32], strides = [1, 1, 1]} : vector<22x22x32xf32> to vector<16x16x32xf32>
    %146 = vector.extract_strided_slice %13 {offsets = [3, 5, 0], sizes = [1, 1, 32], strides = [1, 1, 1]} : vector<7x7x32xf32> to vector<1x1x32xf32>
    %147 = vector.broadcast %146 : vector<1x1x32xf32> to vector<16x16x32xf32>
    %148 = arith.mulf %145, %147 : vector<16x16x32xf32>
    %149 = arith.addf %144, %148 : vector<16x16x32xf32>
    %150 = vector.extract_strided_slice %12 {offsets = [3, 6, 0], sizes = [16, 16, 32], strides = [1, 1, 1]} : vector<22x22x32xf32> to vector<16x16x32xf32>
    %151 = vector.extract_strided_slice %13 {offsets = [3, 6, 0], sizes = [1, 1, 32], strides = [1, 1, 1]} : vector<7x7x32xf32> to vector<1x1x32xf32>
    %152 = vector.broadcast %151 : vector<1x1x32xf32> to vector<16x16x32xf32>
    %153 = arith.mulf %150, %152 : vector<16x16x32xf32>
    %154 = arith.addf %149, %153 : vector<16x16x32xf32>
    %155 = vector.extract_strided_slice %12 {offsets = [4, 0, 0], sizes = [16, 16, 32], strides = [1, 1, 1]} : vector<22x22x32xf32> to vector<16x16x32xf32>
    %156 = vector.extract_strided_slice %13 {offsets = [4, 0, 0], sizes = [1, 1, 32], strides = [1, 1, 1]} : vector<7x7x32xf32> to vector<1x1x32xf32>
    %157 = vector.broadcast %156 : vector<1x1x32xf32> to vector<16x16x32xf32>
    %158 = arith.mulf %155, %157 : vector<16x16x32xf32>
    %159 = arith.addf %154, %158 : vector<16x16x32xf32>
    %160 = vector.extract_strided_slice %12 {offsets = [4, 1, 0], sizes = [16, 16, 32], strides = [1, 1, 1]} : vector<22x22x32xf32> to vector<16x16x32xf32>
    %161 = vector.extract_strided_slice %13 {offsets = [4, 1, 0], sizes = [1, 1, 32], strides = [1, 1, 1]} : vector<7x7x32xf32> to vector<1x1x32xf32>
    %162 = vector.broadcast %161 : vector<1x1x32xf32> to vector<16x16x32xf32>
    %163 = arith.mulf %160, %162 : vector<16x16x32xf32>
    %164 = arith.addf %159, %163 : vector<16x16x32xf32>
    %165 = vector.extract_strided_slice %12 {offsets = [4, 2, 0], sizes = [16, 16, 32], strides = [1, 1, 1]} : vector<22x22x32xf32> to vector<16x16x32xf32>
    %166 = vector.extract_strided_slice %13 {offsets = [4, 2, 0], sizes = [1, 1, 32], strides = [1, 1, 1]} : vector<7x7x32xf32> to vector<1x1x32xf32>
    %167 = vector.broadcast %166 : vector<1x1x32xf32> to vector<16x16x32xf32>
    %168 = arith.mulf %165, %167 : vector<16x16x32xf32>
    %169 = arith.addf %164, %168 : vector<16x16x32xf32>
    %170 = vector.extract_strided_slice %12 {offsets = [4, 3, 0], sizes = [16, 16, 32], strides = [1, 1, 1]} : vector<22x22x32xf32> to vector<16x16x32xf32>
    %171 = vector.extract_strided_slice %13 {offsets = [4, 3, 0], sizes = [1, 1, 32], strides = [1, 1, 1]} : vector<7x7x32xf32> to vector<1x1x32xf32>
    %172 = vector.broadcast %171 : vector<1x1x32xf32> to vector<16x16x32xf32>
    %173 = arith.mulf %170, %172 : vector<16x16x32xf32>
    %174 = arith.addf %169, %173 : vector<16x16x32xf32>
    %175 = vector.extract_strided_slice %12 {offsets = [4, 4, 0], sizes = [16, 16, 32], strides = [1, 1, 1]} : vector<22x22x32xf32> to vector<16x16x32xf32>
    %176 = vector.extract_strided_slice %13 {offsets = [4, 4, 0], sizes = [1, 1, 32], strides = [1, 1, 1]} : vector<7x7x32xf32> to vector<1x1x32xf32>
    %177 = vector.broadcast %176 : vector<1x1x32xf32> to vector<16x16x32xf32>
    %178 = arith.mulf %175, %177 : vector<16x16x32xf32>
    %179 = arith.addf %174, %178 : vector<16x16x32xf32>
    %180 = vector.extract_strided_slice %12 {offsets = [4, 5, 0], sizes = [16, 16, 32], strides = [1, 1, 1]} : vector<22x22x32xf32> to vector<16x16x32xf32>
    %181 = vector.extract_strided_slice %13 {offsets = [4, 5, 0], sizes = [1, 1, 32], strides = [1, 1, 1]} : vector<7x7x32xf32> to vector<1x1x32xf32>
    %182 = vector.broadcast %181 : vector<1x1x32xf32> to vector<16x16x32xf32>
    %183 = arith.mulf %180, %182 : vector<16x16x32xf32>
    %184 = arith.addf %179, %183 : vector<16x16x32xf32>
    %185 = vector.extract_strided_slice %12 {offsets = [4, 6, 0], sizes = [16, 16, 32], strides = [1, 1, 1]} : vector<22x22x32xf32> to vector<16x16x32xf32>
    %186 = vector.extract_strided_slice %13 {offsets = [4, 6, 0], sizes = [1, 1, 32], strides = [1, 1, 1]} : vector<7x7x32xf32> to vector<1x1x32xf32>
    %187 = vector.broadcast %186 : vector<1x1x32xf32> to vector<16x16x32xf32>
    %188 = arith.mulf %185, %187 : vector<16x16x32xf32>
    %189 = arith.addf %184, %188 : vector<16x16x32xf32>
    %190 = vector.extract_strided_slice %12 {offsets = [5, 0, 0], sizes = [16, 16, 32], strides = [1, 1, 1]} : vector<22x22x32xf32> to vector<16x16x32xf32>
    %191 = vector.extract_strided_slice %13 {offsets = [5, 0, 0], sizes = [1, 1, 32], strides = [1, 1, 1]} : vector<7x7x32xf32> to vector<1x1x32xf32>
    %192 = vector.broadcast %191 : vector<1x1x32xf32> to vector<16x16x32xf32>
    %193 = arith.mulf %190, %192 : vector<16x16x32xf32>
    %194 = arith.addf %189, %193 : vector<16x16x32xf32>
    %195 = vector.extract_strided_slice %12 {offsets = [5, 1, 0], sizes = [16, 16, 32], strides = [1, 1, 1]} : vector<22x22x32xf32> to vector<16x16x32xf32>
    %196 = vector.extract_strided_slice %13 {offsets = [5, 1, 0], sizes = [1, 1, 32], strides = [1, 1, 1]} : vector<7x7x32xf32> to vector<1x1x32xf32>
    %197 = vector.broadcast %196 : vector<1x1x32xf32> to vector<16x16x32xf32>
    %198 = arith.mulf %195, %197 : vector<16x16x32xf32>
    %199 = arith.addf %194, %198 : vector<16x16x32xf32>
    %200 = vector.extract_strided_slice %12 {offsets = [5, 2, 0], sizes = [16, 16, 32], strides = [1, 1, 1]} : vector<22x22x32xf32> to vector<16x16x32xf32>
    %201 = vector.extract_strided_slice %13 {offsets = [5, 2, 0], sizes = [1, 1, 32], strides = [1, 1, 1]} : vector<7x7x32xf32> to vector<1x1x32xf32>
    %202 = vector.broadcast %201 : vector<1x1x32xf32> to vector<16x16x32xf32>
    %203 = arith.mulf %200, %202 : vector<16x16x32xf32>
    %204 = arith.addf %199, %203 : vector<16x16x32xf32>
    %205 = vector.extract_strided_slice %12 {offsets = [5, 3, 0], sizes = [16, 16, 32], strides = [1, 1, 1]} : vector<22x22x32xf32> to vector<16x16x32xf32>
    %206 = vector.extract_strided_slice %13 {offsets = [5, 3, 0], sizes = [1, 1, 32], strides = [1, 1, 1]} : vector<7x7x32xf32> to vector<1x1x32xf32>
    %207 = vector.broadcast %206 : vector<1x1x32xf32> to vector<16x16x32xf32>
    %208 = arith.mulf %205, %207 : vector<16x16x32xf32>
    %209 = arith.addf %204, %208 : vector<16x16x32xf32>
    %210 = vector.extract_strided_slice %12 {offsets = [5, 4, 0], sizes = [16, 16, 32], strides = [1, 1, 1]} : vector<22x22x32xf32> to vector<16x16x32xf32>
    %211 = vector.extract_strided_slice %13 {offsets = [5, 4, 0], sizes = [1, 1, 32], strides = [1, 1, 1]} : vector<7x7x32xf32> to vector<1x1x32xf32>
    %212 = vector.broadcast %211 : vector<1x1x32xf32> to vector<16x16x32xf32>
    %213 = arith.mulf %210, %212 : vector<16x16x32xf32>
    %214 = arith.addf %209, %213 : vector<16x16x32xf32>
    %215 = vector.extract_strided_slice %12 {offsets = [5, 5, 0], sizes = [16, 16, 32], strides = [1, 1, 1]} : vector<22x22x32xf32> to vector<16x16x32xf32>
    %216 = vector.extract_strided_slice %13 {offsets = [5, 5, 0], sizes = [1, 1, 32], strides = [1, 1, 1]} : vector<7x7x32xf32> to vector<1x1x32xf32>
    %217 = vector.broadcast %216 : vector<1x1x32xf32> to vector<16x16x32xf32>
    %218 = arith.mulf %215, %217 : vector<16x16x32xf32>
    %219 = arith.addf %214, %218 : vector<16x16x32xf32>
    %220 = vector.extract_strided_slice %12 {offsets = [5, 6, 0], sizes = [16, 16, 32], strides = [1, 1, 1]} : vector<22x22x32xf32> to vector<16x16x32xf32>
    %221 = vector.extract_strided_slice %13 {offsets = [5, 6, 0], sizes = [1, 1, 32], strides = [1, 1, 1]} : vector<7x7x32xf32> to vector<1x1x32xf32>
    %222 = vector.broadcast %221 : vector<1x1x32xf32> to vector<16x16x32xf32>
    %223 = arith.mulf %220, %222 : vector<16x16x32xf32>
    %224 = arith.addf %219, %223 : vector<16x16x32xf32>
    %225 = vector.extract_strided_slice %12 {offsets = [6, 0, 0], sizes = [16, 16, 32], strides = [1, 1, 1]} : vector<22x22x32xf32> to vector<16x16x32xf32>
    %226 = vector.extract_strided_slice %13 {offsets = [6, 0, 0], sizes = [1, 1, 32], strides = [1, 1, 1]} : vector<7x7x32xf32> to vector<1x1x32xf32>
    %227 = vector.broadcast %226 : vector<1x1x32xf32> to vector<16x16x32xf32>
    %228 = arith.mulf %225, %227 : vector<16x16x32xf32>
    %229 = arith.addf %224, %228 : vector<16x16x32xf32>
    %230 = vector.extract_strided_slice %12 {offsets = [6, 1, 0], sizes = [16, 16, 32], strides = [1, 1, 1]} : vector<22x22x32xf32> to vector<16x16x32xf32>
    %231 = vector.extract_strided_slice %13 {offsets = [6, 1, 0], sizes = [1, 1, 32], strides = [1, 1, 1]} : vector<7x7x32xf32> to vector<1x1x32xf32>
    %232 = vector.broadcast %231 : vector<1x1x32xf32> to vector<16x16x32xf32>
    %233 = arith.mulf %230, %232 : vector<16x16x32xf32>
    %234 = arith.addf %229, %233 : vector<16x16x32xf32>
    %235 = vector.extract_strided_slice %12 {offsets = [6, 2, 0], sizes = [16, 16, 32], strides = [1, 1, 1]} : vector<22x22x32xf32> to vector<16x16x32xf32>
    %236 = vector.extract_strided_slice %13 {offsets = [6, 2, 0], sizes = [1, 1, 32], strides = [1, 1, 1]} : vector<7x7x32xf32> to vector<1x1x32xf32>
    %237 = vector.broadcast %236 : vector<1x1x32xf32> to vector<16x16x32xf32>
    %238 = arith.mulf %235, %237 : vector<16x16x32xf32>
    %239 = arith.addf %234, %238 : vector<16x16x32xf32>
    %240 = vector.extract_strided_slice %12 {offsets = [6, 3, 0], sizes = [16, 16, 32], strides = [1, 1, 1]} : vector<22x22x32xf32> to vector<16x16x32xf32>
    %241 = vector.extract_strided_slice %13 {offsets = [6, 3, 0], sizes = [1, 1, 32], strides = [1, 1, 1]} : vector<7x7x32xf32> to vector<1x1x32xf32>
    %242 = vector.broadcast %241 : vector<1x1x32xf32> to vector<16x16x32xf32>
    %243 = arith.mulf %240, %242 : vector<16x16x32xf32>
    %244 = arith.addf %239, %243 : vector<16x16x32xf32>
    %245 = vector.extract_strided_slice %12 {offsets = [6, 4, 0], sizes = [16, 16, 32], strides = [1, 1, 1]} : vector<22x22x32xf32> to vector<16x16x32xf32>
    %246 = vector.extract_strided_slice %13 {offsets = [6, 4, 0], sizes = [1, 1, 32], strides = [1, 1, 1]} : vector<7x7x32xf32> to vector<1x1x32xf32>
    %247 = vector.broadcast %246 : vector<1x1x32xf32> to vector<16x16x32xf32>
    %248 = arith.mulf %245, %247 : vector<16x16x32xf32>
    %249 = arith.addf %244, %248 : vector<16x16x32xf32>
    %250 = vector.extract_strided_slice %12 {offsets = [6, 5, 0], sizes = [16, 16, 32], strides = [1, 1, 1]} : vector<22x22x32xf32> to vector<16x16x32xf32>
    %251 = vector.extract_strided_slice %13 {offsets = [6, 5, 0], sizes = [1, 1, 32], strides = [1, 1, 1]} : vector<7x7x32xf32> to vector<1x1x32xf32>
    %252 = vector.broadcast %251 : vector<1x1x32xf32> to vector<16x16x32xf32>
    %253 = arith.mulf %250, %252 : vector<16x16x32xf32>
    %254 = arith.addf %249, %253 : vector<16x16x32xf32>
    %255 = vector.extract_strided_slice %12 {offsets = [6, 6, 0], sizes = [16, 16, 32], strides = [1, 1, 1]} : vector<22x22x32xf32> to vector<16x16x32xf32>
    %256 = vector.extract_strided_slice %13 {offsets = [6, 6, 0], sizes = [1, 1, 32], strides = [1, 1, 1]} : vector<7x7x32xf32> to vector<1x1x32xf32>
    %257 = vector.broadcast %256 : vector<1x1x32xf32> to vector<16x16x32xf32>
    %258 = arith.mulf %255, %257 : vector<16x16x32xf32>
    %259 = arith.addf %254, %258 : vector<16x16x32xf32>
    %c0_18 = arith.constant 0 : index
    %c0_19 = arith.constant 0 : index
    %c0_20 = arith.constant 0 : index
    %260 = vector.load %arg3[%c0_18, %c0_19, %c0_20] : memref<1x1x32xf32, #tpu.memory_space<vmem>>, vector<1x1x32xf32>
    %261 = vector.broadcast %260 : vector<1x1x32xf32> to vector<16x16x32xf32>
    %262 = arith.mulf %259, %261 : vector<16x16x32xf32>
    %c0_21 = arith.constant 0 : index
    %c0_22 = arith.constant 0 : index
    %c0_23 = arith.constant 0 : index
    %263 = vector.load %arg4[%c0_21, %c0_22, %c0_23] : memref<1x1x32xf32, #tpu.memory_space<vmem>>, vector<1x1x32xf32>
    %264 = vector.broadcast %263 : vector<1x1x32xf32> to vector<16x16x32xf32>
    %265 = arith.addf %262, %264 : vector<16x16x32xf32>
    %c0_24 = arith.constant 0 : index
    %c0_25 = arith.constant 0 : index
    %c0_26 = arith.constant 0 : index
    %c0_27 = arith.constant 0 : index
    %266 = vector.load %arg5[%c0_24, %c0_25, %c0_26, %c0_27] : memref<1x16x16x32xf32, #tpu.memory_space<vmem>>, vector<1x16x16x32xf32>
    %267 = vector.shape_cast %266 : vector<1x16x16x32xf32> to vector<16x16x32xf32>
    %268 = vector.shape_cast %265 : vector<16x16x32xf32> to vector<1x16x16x32xf32>
    tpu.vector_store %arg5[%c0_24, %c0_25, %c0_26, %c0_27], %268 {strides = array<i32>} : memref<1x16x16x32xf32, #tpu.memory_space<vmem>>, vector<1x16x16x32xf32>,
    return
  }
  func.func @transform_0(%arg0: i32) -> (i32, i32, i32, i32) {
    %c0_i32 = arith.constant 0 : i32
    %c0_i32_0 = arith.constant 0 : i32
    %c0_i32_1 = arith.constant 0 : i32
    %c0_i32_2 = arith.constant 0 : i32
    return %arg0, %c0_i32, %c0_i32_0, %c0_i32_1 : i32, i32, i32, i32
  }
  func.func @transform_1(%arg0: i32) -> (i32, i32, i32) {
    %c0_i32 = arith.constant 0 : i32
    %c0_i32_0 = arith.constant 0 : i32
    %c0_i32_1 = arith.constant 0 : i32
    %c0_i32_2 = arith.constant 0 : i32
    return %c0_i32, %c0_i32_0, %c0_i32_1 : i32, i32, i32
  }
  func.func @transform_2(%arg0: i32) -> (i32, i32, i32) {
    %c0_i32 = arith.constant 0 : i32
    %c0_i32_0 = arith.constant 0 : i32
    %c0_i32_1 = arith.constant 0 : i32
    %c0_i32_2 = arith.constant 0 : i32
    return %c0_i32, %c0_i32_0, %c0_i32_1 : i32, i32, i32
  }
  func.func @transform_3(%arg0: i32) -> (i32, i32, i32) {
    %c0_i32 = arith.constant 0 : i32
    %c0_i32_0 = arith.constant 0 : i32
    %c0_i32_1 = arith.constant 0 : i32
    %c0_i32_2 = arith.constant 0 : i32
    return %c0_i32, %c0_i32_0, %c0_i32_1 : i32, i32, i32
  }
  func.func @transform_4(%arg0: i32) -> (i32, i32, i32, i32) {
    %c0_i32 = arith.constant 0 : i32
    %c0_i32_0 = arith.constant 0 : i32
    %c0_i32_1 = arith.constant 0 : i32
    %c0_i32_2 = arith.constant 0 : i32
    return %arg0, %c0_i32, %c0_i32_0, %c0_i32_1 : i32, i32, i32, i32
  }
}

module attributes {stable_mosaic.version = 11 : i64} {
  func.func @_pw_bn_kernel(%arg0: i32, %arg1: memref<512x32xf32, #tpu.memory_space<vmem>>, %arg2: memref<32x16xbf16, #tpu.memory_space<vmem>>, %arg3: memref<1x16xf32, #tpu.memory_space<vmem>>, %arg4: memref<1x16xf32, #tpu.memory_space<vmem>>, %arg5: memref<512x16xf32, #tpu.memory_space<vmem>>) attributes {dimension_semantics = [#tpu.dimension_semantics<parallel>], iteration_bounds = array<i64: 1>, scalar_prefetch = 0 : i64, scratch_operands = 0 : i64, tpu.core_type = #tpu.core_type<tc>, window_params = [{transform_indices = @transform_0, window_bounds = array<i64: 512, 32>}, {pipeline_mode = #tpu.pipeline_mode<synchronous>, transform_indices = @transform_1, window_bounds = array<i64: 32, 16>}, {pipeline_mode = #tpu.pipeline_mode<synchronous>, transform_indices = @transform_2, window_bounds = array<i64: 1, 16>}, {pipeline_mode = #tpu.pipeline_mode<synchronous>, transform_indices = @transform_3, window_bounds = array<i64: 1, 16>}, {transform_indices = @transform_4, window_bounds = array<i64: 512, 16>}]} {
    %c0 = arith.constant 0 : index
    %c0_0 = arith.constant 0 : index
    %0 = vector.load %arg1[%c0, %c0_0] : memref<512x32xf32, #tpu.memory_space<vmem>>, vector<512x32xf32>
    %cst = arith.constant 0.000000e+00 : f32
    %cst_1 = arith.constant 4.000000e+00 : f32
    %1 = vector.broadcast %cst : f32 to vector<512x32xf32>
    %2 = arith.maximumf %1, %0 : vector<512x32xf32>
    %3 = vector.broadcast %cst_1 : f32 to vector<512x32xf32>
    %4 = arith.minimumf %3, %2 : vector<512x32xf32>
    %5 = math.roundeven %4 : vector<512x32xf32>
    %cst_2 = arith.constant 2.500000e-01 : f32
    %6 = vector.broadcast %cst_2 : f32 to vector<512x32xf32>
    %7 = arith.mulf %5, %6 : vector<512x32xf32>
    %8 = arith.truncf %7 : vector<512x32xf32> to vector<512x32xbf16>
    %c0_3 = arith.constant 0 : index
    %c0_4 = arith.constant 0 : index
    %9 = vector.load %arg2[%c0_3, %c0_4] : memref<32x16xbf16, #tpu.memory_space<vmem>>, vector<32x16xbf16>
    %cst_5 = arith.constant dense<0.000000e+00> : vector<512x16xf32>
    %10 = tpu.matmul %8, %9, %cst_5 {dimension_numbers = #tpu.dot_dimension_numbers<[1], [0], [0], [1], [0, 0, 1, 1], [], []>} : vector<512x32xbf16>, vector<32x16xbf16>, vector<512x16xf32> -> vector<512x16xf32>
    %c0_6 = arith.constant 0 : index
    %c0_7 = arith.constant 0 : index
    %11 = vector.load %arg3[%c0_6, %c0_7] : memref<1x16xf32, #tpu.memory_space<vmem>>, vector<1x16xf32>
    %12 = vector.broadcast %11 : vector<1x16xf32> to vector<512x16xf32>
    %13 = arith.mulf %10, %12 : vector<512x16xf32>
    %c0_8 = arith.constant 0 : index
    %c0_9 = arith.constant 0 : index
    %14 = vector.load %arg4[%c0_8, %c0_9] : memref<1x16xf32, #tpu.memory_space<vmem>>, vector<1x16xf32>
    %15 = vector.broadcast %14 : vector<1x16xf32> to vector<512x16xf32>
    %16 = arith.addf %13, %15 : vector<512x16xf32>
    %c0_10 = arith.constant 0 : index
    %c0_11 = arith.constant 0 : index
    %17 = vector.load %arg5[%c0_10, %c0_11] : memref<512x16xf32, #tpu.memory_space<vmem>>, vector<512x16xf32>
    tpu.vector_store %arg5[%c0_10, %c0_11], %16 {strides = array<i32>} : memref<512x16xf32, #tpu.memory_space<vmem>>, vector<512x16xf32>,
    return
  }
  func.func @transform_0(%arg0: i32) -> (i32, i32) {
    %c0_i32 = arith.constant 0 : i32
    %c0_i32_0 = arith.constant 0 : i32
    return %arg0, %c0_i32 : i32, i32
  }
  func.func @transform_1(%arg0: i32) -> (i32, i32) {
    %c0_i32 = arith.constant 0 : i32
    %c0_i32_0 = arith.constant 0 : i32
    %c0_i32_1 = arith.constant 0 : i32
    return %c0_i32, %c0_i32_0 : i32, i32
  }
  func.func @transform_2(%arg0: i32) -> (i32, i32) {
    %c0_i32 = arith.constant 0 : i32
    %c0_i32_0 = arith.constant 0 : i32
    %c0_i32_1 = arith.constant 0 : i32
    return %c0_i32, %c0_i32_0 : i32, i32
  }
  func.func @transform_3(%arg0: i32) -> (i32, i32) {
    %c0_i32 = arith.constant 0 : i32
    %c0_i32_0 = arith.constant 0 : i32
    %c0_i32_1 = arith.constant 0 : i32
    return %c0_i32, %c0_i32_0 : i32, i32
  }
  func.func @transform_4(%arg0: i32) -> (i32, i32) {
    %c0_i32 = arith.constant 0 : i32
    %c0_i32_0 = arith.constant 0 : i32
    return %arg0, %c0_i32 : i32, i32
  }
}

</mosaic_0001>

<llo_original>
// kernel: sepconv_spike_forward.5
$region0: #{sepconv_spike_forward.5}
  #allocation0 [shape = 'u32[]', space=smem, size = 0x4, offset = 0x4, fixed_abs, tag = 'smem constant byte address 0x4 - core index']
  #allocation1 [shape = 'u32[144,128]{1,0:T(1,128)}', space=vmem, size = 0x12000, scoped, tag = 'internal scratch']
  %s0 = inlined_call_operand.vmem [shape: f32[512,32], index: 0, kind: input, shape index: {}]
  %s1 = inlined_call_operand.vmem [shape: bf16[32,16], index: 1, kind: input, shape index: {}]
  %s2 = inlined_call_operand.vmem [shape: f32[1,16], index: 2, kind: input, shape index: {}]
  %s3 = inlined_call_operand.vmem [shape: f32[1,16], index: 3, kind: input, shape index: {}]
  %s4 = inlined_call_operand.vmem [shape: f32[512,16], index: 4, kind: output, shape index: {}]
  %s5 = sld [smem:[#allocation0]]
  $region26: #{sepconv_spike_forward.5} parent=0
    _
  %s7 = ssub.s32 1, %s5
  %s8 = scalar_select 0, %s7, %s5
  // Predicated region
  $region2: #{sepconv_spike_forward.5} parent=0 // pred_check
    _
  $region3: #{sepconv_spike_forward.5} parent=0 // pred_check_branch
    %10 = sbr.rel (0) target = $region5
  $region4: #{sepconv_spike_forward.5} parent=0 // pred_region
    _
  $region5: #{sepconv_spike_forward.5} parent=0 // pred_fallthru
    _
  // Predicated region
  $region6: #{sepconv_spike_forward.5} parent=0 // pred_check
    _
  $region7: #{sepconv_spike_forward.5} parent=0 // pred_check_branch
    %12 = sbr.rel (0) target = $region9
  $region8: #{sepconv_spike_forward.5} parent=0 // pred_region
    _
  $region9: #{sepconv_spike_forward.5} parent=0 // pred_fallthru
    _
  // Predicated region
  $region10: #{sepconv_spike_forward.5} parent=0 // pred_check
    _
  $region11: #{sepconv_spike_forward.5} parent=0 // pred_check_branch
    %14 = sbr.rel (0) target = $region13
  $region12: #{sepconv_spike_forward.5} parent=0 // pred_region
    _
  $region13: #{sepconv_spike_forward.5} parent=0 // pred_fallthru
    _
  // Predicated region
  $region14: #{sepconv_spike_forward.5} parent=0 // pred_check
    _
  $region15: #{sepconv_spike_forward.5} parent=0 // pred_check_branch
    %16 = sbr.rel (0) target = $region17
  $region16: #{sepconv_spike_forward.5} parent=0 // pred_region
    _
  $region17: #{sepconv_spike_forward.5} parent=0 // pred_fallthru
    _
  %v18 = vld [vmem:[%s0] sm:$0xff]
  %v19 = vld [vmem:[%s0 + $0x8] sm:$0xff]
  %v20 = vld [vmem:[%s0 + $0x10] sm:$0xff]
  %v21 = vld [vmem:[%s0 + $0x18] sm:$0xff]
  %v22 = vld [vmem:[%s0 + $0x20] sm:$0xff]
  %v23 = vld [vmem:[%s0 + $0x28] sm:$0xff]
  %v24 = vld [vmem:[%s0 + $0x30] sm:$0xff]
  %v25 = vld [vmem:[%s0 + $0x38] sm:$0xff]
  %v26 = vld [vmem:[%s0 + $0x40] sm:$0xff]
  %v27 = vld [vmem:[%s0 + $0x48] sm:$0xff]
  %v28 = vld [vmem:[%s0 + $0x50] sm:$0xff]
  %v29 = vld [vmem:[%s0 + $0x58] sm:$0xff]
  %v30 = vld [vmem:[%s0 + $0x60] sm:$0xff]
  %v31 = vld [vmem:[%s0 + $0x68] sm:$0xff]
  %v32 = vld [vmem:[%s0 + $0x70] sm:$0xff]
  %v33 = vld [vmem:[%s0 + $0x78] sm:$0xff]
  %v34 = vld [vmem:[%s0 + $0x80] sm:$0xff]
  %v35 = vld [vmem:[%s0 + $0x88] sm:$0xff]
  %v36 = vld [vmem:[%s0 + $0x90] sm:$0xff]
  %v37 = vld [vmem:[%s0 + $0x98] sm:$0xff]
  %v38 = vld [vmem:[%s0 + $0xa0] sm:$0xff]
  %v39 = vld [vmem:[%s0 + $0xa8] sm:$0xff]
  %v40 = vld [vmem:[%s0 + $0xb0] sm:$0xff]
  %v41 = vld [vmem:[%s0 + $0xb8] sm:$0xff]
  %v42 = vld [vmem:[%s0 + $0xc0] sm:$0xff]
  %v43 = vld [vmem:[%s0 + $0xc8] sm:$0xff]
  %v44 = vld [vmem:[%s0 + $0xd0] sm:$0xff]
  %v45 = vld [vmem:[%s0 + $0xd8] sm:$0xff]
  %v46 = vld [vmem:[%s0 + $0xe0] sm:$0xff]
  %v47 = vld [vmem:[%s0 + $0xe8] sm:$0xff]
  %v48 = vld [vmem:[%s0 + $0xf0] sm:$0xff]
  %v49 = vld [vmem:[%s0 + $0xf8] sm:$0xff]
  %v50 = vld [vmem:[%s0 + $0x100] sm:$0xff]
  %v51 = vld [vmem:[%s0 + $0x108] sm:$0xff]
  %v52 = vld [vmem:[%s0 + $0x110] sm:$0xff]
  %v53 = vld [vmem:[%s0 + $0x118] sm:$0xff]
  %v54 = vld [vmem:[%s0 + $0x120] sm:$0xff]
  %v55 = vld [vmem:[%s0 + $0x128] sm:$0xff]
  %v56 = vld [vmem:[%s0 + $0x130] sm:$0xff]
  %v57 = vld [vmem:[%s0 + $0x138] sm:$0xff]
  %v58 = vld [vmem:[%s0 + $0x140] sm:$0xff]
  %v59 = vld [vmem:[%s0 + $0x148] sm:$0xff]
  %v60 = vld [vmem:[%s0 + $0x150] sm:$0xff]
  %v61 = vld [vmem:[%s0 + $0x158] sm:$0xff]
  %v62 = vld [vmem:[%s0 + $0x160] sm:$0xff]
  %v63 = vld [vmem:[%s0 + $0x168] sm:$0xff]
  %v64 = vld [vmem:[%s0 + $0x170] sm:$0xff]
  %v65 = vld [vmem:[%s0 + $0x178] sm:$0xff]
  %v66 = vld [vmem:[%s0 + $0x180] sm:$0xff]
  %v67 = vld [vmem:[%s0 + $0x188] sm:$0xff]
  %v68 = vld [vmem:[%s0 + $0x190] sm:$0xff]
  %v69 = vld [vmem:[%s0 + $0x198] sm:$0xff]
  %v70 = vld [vmem:[%s0 + $0x1a0] sm:$0xff]
  %v71 = vld [vmem:[%s0 + $0x1a8] sm:$0xff]
  %v72 = vld [vmem:[%s0 + $0x1b0] sm:$0xff]
  %v73 = vld [vmem:[%s0 + $0x1b8] sm:$0xff]
  %v74 = vld [vmem:[%s0 + $0x1c0] sm:$0xff]
  %v75 = vld [vmem:[%s0 + $0x1c8] sm:$0xff]
  %v76 = vld [vmem:[%s0 + $0x1d0] sm:$0xff]
  %v77 = vld [vmem:[%s0 + $0x1d8] sm:$0xff]
  %v78 = vld [vmem:[%s0 + $0x1e0] sm:$0xff]
  %v79 = vld [vmem:[%s0 + $0x1e8] sm:$0xff]
  %v80 = vld [vmem:[%s0 + $0x1f0] sm:$0xff]
  %v81 = vld [vmem:[%s0 + $0x1f8] sm:$0xff]
  %v82 = vmax.f32 %v18, 0.0
  %v83 = vmax.f32 %v19, 0.0
  %v84 = vmax.f32 %v20, 0.0
  %v85 = vmax.f32 %v21, 0.0
  %v86 = vmax.f32 %v22, 0.0
  %v87 = vmax.f32 %v23, 0.0
  %v88 = vmax.f32 %v24, 0.0
  %v89 = vmax.f32 %v25, 0.0
  %v90 = vmax.f32 %v26, 0.0
  %v91 = vmax.f32 %v27, 0.0
  %v92 = vmax.f32 %v28, 0.0
  %v93 = vmax.f32 %v29, 0.0
  %v94 = vmax.f32 %v30, 0.0
  %v95 = vmax.f32 %v31, 0.0
  %v96 = vmax.f32 %v32, 0.0
  %v97 = vmax.f32 %v33, 0.0
  %v98 = vmax.f32 %v34, 0.0
  %v99 = vmax.f32 %v35, 0.0
  %v100 = vmax.f32 %v36, 0.0
  %v101 = vmax.f32 %v37, 0.0
  %v102 = vmax.f32 %v38, 0.0
  %v103 = vmax.f32 %v39, 0.0
  %v104 = vmax.f32 %v40, 0.0
  %v105 = vmax.f32 %v41, 0.0
  %v106 = vmax.f32 %v42, 0.0
  %v107 = vmax.f32 %v43, 0.0
  %v108 = vmax.f32 %v44, 0.0
  %v109 = vmax.f32 %v45, 0.0
  %v110 = vmax.f32 %v46, 0.0
  %v111 = vmax.f32 %v47, 0.0
  %v112 = vmax.f32 %v48, 0.0
  %v113 = vmax.f32 %v49, 0.0
  %v114 = vmax.f32 %v50, 0.0
  %v115 = vmax.f32 %v51, 0.0
  %v116 = vmax.f32 %v52, 0.0
  %v117 = vmax.f32 %v53, 0.0
  %v118 = vmax.f32 %v54, 0.0
  %v119 = vmax.f32 %v55, 0.0
  %v120 = vmax.f32 %v56, 0.0
  %v121 = vmax.f32 %v57, 0.0
  %v122 = vmax.f32 %v58, 0.0
  %v123 = vmax.f32 %v59, 0.0
  %v124 = vmax.f32 %v60, 0.0
  %v125 = vmax.f32 %v61, 0.0
  %v126 = vmax.f32 %v62, 0.0
  %v127 = vmax.f32 %v63, 0.0
  %v128 = vmax.f32 %v64, 0.0
  %v129 = vmax.f32 %v65, 0.0
  %v130 = vmax.f32 %v66, 0.0
  %v131 = vmax.f32 %v67, 0.0
  %v132 = vmax.f32 %v68, 0.0
  %v133 = vmax.f32 %v69, 0.0
  %v134 = vmax.f32 %v70, 0.0
  %v135 = vmax.f32 %v71, 0.0
  %v136 = vmax.f32 %v72, 0.0
  %v137 = vmax.f32 %v73, 0.0
  %v138 = vmax.f32 %v74, 0.0
  %v139 = vmax.f32 %v75, 0.0
  %v140 = vmax.f32 %v76, 0.0
  %v141 = vmax.f32 %v77, 0.0
  %v142 = vmax.f32 %v78, 0.0
  %v143 = vmax.f32 %v79, 0.0
  %v144 = vmax.f32 %v80, 0.0
  %v145 = vmax.f32 %v81, 0.0
  %v146 = vmin.f32 %v82, 4.0
  %v147 = vmin.f32 %v83, 4.0
  %v148 = vmin.f32 %v84, 4.0
  %v149 = vmin.f32 %v85, 4.0
  %v150 = vmin.f32 %v86, 4.0
  %v151 = vmin.f32 %v87, 4.0
  %v152 = vmin.f32 %v88, 4.0
  %v153 = vmin.f32 %v89, 4.0
  %v154 = vmin.f32 %v90, 4.0
  %v155 = vmin.f32 %v91, 4.0
  %v156 = vmin.f32 %v92, 4.0
  %v157 = vmin.f32 %v93, 4.0
  %v158 = vmin.f32 %v94, 4.0
  %v159 = vmin.f32 %v95, 4.0
  %v160 = vmin.f32 %v96, 4.0
  %v161 = vmin.f32 %v97, 4.0
  %v162 = vmin.f32 %v98, 4.0
  %v163 = vmin.f32 %v99, 4.0
  %v164 = vmin.f32 %v100, 4.0
  %v165 = vmin.f32 %v101, 4.0
  %v166 = vmin.f32 %v102, 4.0
  %v167 = vmin.f32 %v103, 4.0
  %v168 = vmin.f32 %v104, 4.0
  %v169 = vmin.f32 %v105, 4.0
  %v170 = vmin.f32 %v106, 4.0
  %v171 = vmin.f32 %v107, 4.0
  %v172 = vmin.f32 %v108, 4.0
  %v173 = vmin.f32 %v109, 4.0
  %v174 = vmin.f32 %v110, 4.0
  %v175 = vmin.f32 %v111, 4.0
  %v176 = vmin.f32 %v112, 4.0
  %v177 = vmin.f32 %v113, 4.0
  %v178 = vmin.f32 %v114, 4.0
  %v179 = vmin.f32 %v115, 4.0
  %v180 = vmin.f32 %v116, 4.0
  %v181 = vmin.f32 %v117, 4.0
  %v182 = vmin.f32 %v118, 4.0
  %v183 = vmin.f32 %v119, 4.0
  %v184 = vmin.f32 %v120, 4.0
  %v185 = vmin.f32 %v121, 4.0
  %v186 = vmin.f32 %v122, 4.0
  %v187 = vmin.f32 %v123, 4.0
  %v188 = vmin.f32 %v124, 4.0
  %v189 = vmin.f32 %v125, 4.0
  %v190 = vmin.f32 %v126, 4.0
  %v191 = vmin.f32 %v127, 4.0
  %v192 = vmin.f32 %v128, 4.0
  %v193 = vmin.f32 %v129, 4.0
  %v194 = vmin.f32 %v130, 4.0
  %v195 = vmin.f32 %v131, 4.0
  %v196 = vmin.f32 %v132, 4.0
  %v197 = vmin.f32 %v133, 4.0
  %v198 = vmin.f32 %v134, 4.0
  %v199 = vmin.f32 %v135, 4.0
  %v200 = vmin.f32 %v136, 4.0
  %v201 = vmin.f32 %v137, 4.0
  %v202 = vmin.f32 %v138, 4.0
  %v203 = vmin.f32 %v139, 4.0
  %v204 = vmin.f32 %v140, 4.0
  %v205 = vmin.f32 %v141, 4.0
  %v206 = vmin.f32 %v142, 4.0
  %v207 = vmin.f32 %v143, 4.0
  %v208 = vmin.f32 %v144, 4.0
  %v209 = vmin.f32 %v145, 4.0
  %v210 = vround.ne.pseudo %v146
  %v211 = vround.ne.pseudo %v147
  %v212 = vround.ne.pseudo %v148
  %v213 = vround.ne.pseudo %v149
  %v214 = vround.ne.pseudo %v150
  %v215 = vround.ne.pseudo %v151
  %v216 = vround.ne.pseudo %v152
  %v217 = vround.ne.pseudo %v153
  %v218 = vround.ne.pseudo %v154
  %v219 = vround.ne.pseudo %v155
  %v220 = vround.ne.pseudo %v156
  %v221 = vround.ne.pseudo %v157
  %v222 = vround.ne.pseudo %v158
  %v223 = vround.ne.pseudo %v159
  %v224 = vround.ne.pseudo %v160
  %v225 = vround.ne.pseudo %v161
  %v226 = vround.ne.pseudo %v162
  %v227 = vround.ne.pseudo %v163
  %v228 = vround.ne.pseudo %v164
  %v229 = vround.ne.pseudo %v165
  %v230 = vround.ne.pseudo %v166
  %v231 = vround.ne.pseudo %v167
  %v232 = vround.ne.pseudo %v168
  %v233 = vround.ne.pseudo %v169
  %v234 = vround.ne.pseudo %v170
  %v235 = vround.ne.pseudo %v171
  %v236 = vround.ne.pseudo %v172
  %v237 = vround.ne.pseudo %v173
  %v238 = vround.ne.pseudo %v174
  %v239 = vround.ne.pseudo %v175
  %v240 = vround.ne.pseudo %v176
  %v241 = vround.ne.pseudo %v177
  %v242 = vround.ne.pseudo %v178
  %v243 = vround.ne.pseudo %v179
  %v244 = vround.ne.pseudo %v180
  %v245 = vround.ne.pseudo %v181
  %v246 = vround.ne.pseudo %v182
  %v247 = vround.ne.pseudo %v183
  %v248 = vround.ne.pseudo %v184
  %v249 = vround.ne.pseudo %v185
  %v250 = vround.ne.pseudo %v186
  %v251 = vround.ne.pseudo %v187
  %v252 = vround.ne.pseudo %v188
  %v253 = vround.ne.pseudo %v189
  %v254 = vround.ne.pseudo %v190
  %v255 = vround.ne.pseudo %v191
  %v256 = vround.ne.pseudo %v192
  %v257 = vround.ne.pseudo %v193
  %v258 = vround.ne.pseudo %v194
  %v259 = vround.ne.pseudo %v195
  %v260 = vround.ne.pseudo %v196
  %v261 = vround.ne.pseudo %v197
  %v262 = vround.ne.pseudo %v198
  %v263 = vround.ne.pseudo %v199
  %v264 = vround.ne.pseudo %v200
  %v265 = vround.ne.pseudo %v201
  %v266 = vround.ne.pseudo %v202
  %v267 = vround.ne.pseudo %v203
  %v268 = vround.ne.pseudo %v204
  %v269 = vround.ne.pseudo %v205
  %v270 = vround.ne.pseudo %v206
  %v271 = vround.ne.pseudo %v207
  %v272 = vround.ne.pseudo %v208
  %v273 = vround.ne.pseudo %v209
  %v274 = vmul.f32 %v210, 0.25
  %v275 = vmul.f32 %v211, 0.25
  %v276 = vmul.f32 %v212, 0.25
  %v277 = vmul.f32 %v213, 0.25
  %v278 = vmul.f32 %v214, 0.25
  %v279 = vmul.f32 %v215, 0.25
  %v280 = vmul.f32 %v216, 0.25
  %v281 = vmul.f32 %v217, 0.25
  %v282 = vmul.f32 %v218, 0.25
  %v283 = vmul.f32 %v219, 0.25
  %v284 = vmul.f32 %v220, 0.25
  %v285 = vmul.f32 %v221, 0.25
  %v286 = vmul.f32 %v222, 0.25
  %v287 = vmul.f32 %v223, 0.25
  %v288 = vmul.f32 %v224, 0.25
  %v289 = vmul.f32 %v225, 0.25
  %v290 = vmul.f32 %v226, 0.25
  %v291 = vmul.f32 %v227, 0.25
  %v292 = vmul.f32 %v228, 0.25
  %v293 = vmul.f32 %v229, 0.25
  %v294 = vmul.f32 %v230, 0.25
  %v295 = vmul.f32 %v231, 0.25
  %v296 = vmul.f32 %v232, 0.25
  %v297 = vmul.f32 %v233, 0.25
  %v298 = vmul.f32 %v234, 0.25
  %v299 = vmul.f32 %v235, 0.25
  %v300 = vmul.f32 %v236, 0.25
  %v301 = vmul.f32 %v237, 0.25
  %v302 = vmul.f32 %v238, 0.25
  %v303 = vmul.f32 %v239, 0.25
  %v304 = vmul.f32 %v240, 0.25
  %v305 = vmul.f32 %v241, 0.25
  %v306 = vmul.f32 %v242, 0.25
  %v307 = vmul.f32 %v243, 0.25
  %v308 = vmul.f32 %v244, 0.25
  %v309 = vmul.f32 %v245, 0.25
  %v310 = vmul.f32 %v246, 0.25
  %v311 = vmul.f32 %v247, 0.25
  %v312 = vmul.f32 %v248, 0.25
  %v313 = vmul.f32 %v249, 0.25
  %v314 = vmul.f32 %v250, 0.25
  %v315 = vmul.f32 %v251, 0.25
  %v316 = vmul.f32 %v252, 0.25
  %v317 = vmul.f32 %v253, 0.25
  %v318 = vmul.f32 %v254, 0.25
  %v319 = vmul.f32 %v255, 0.25
  %v320 = vmul.f32 %v256, 0.25
  %v321 = vmul.f32 %v257, 0.25
  %v322 = vmul.f32 %v258, 0.25
  %v323 = vmul.f32 %v259, 0.25
  %v324 = vmul.f32 %v260, 0.25
  %v325 = vmul.f32 %v261, 0.25
  %v326 = vmul.f32 %v262, 0.25
  %v327 = vmul.f32 %v263, 0.25
  %v328 = vmul.f32 %v264, 0.25
  %v329 = vmul.f32 %v265, 0.25
  %v330 = vmul.f32 %v266, 0.25
  %v331 = vmul.f32 %v267, 0.25
  %v332 = vmul.f32 %v268, 0.25
  %v333 = vmul.f32 %v269, 0.25
  %v334 = vmul.f32 %v270, 0.25
  %v335 = vmul.f32 %v271, 0.25
  %v336 = vmul.f32 %v272, 0.25
  %v337 = vmul.f32 %v273, 0.25
  %v338 = vpack.c.bf16 %v275, %v274
  %v339 = vpack.c.bf16 %v277, %v276
  %v340 = vpack.c.bf16 %v279, %v278
  %v341 = vpack.c.bf16 %v281, %v280
  %v342 = vpack.c.bf16 %v283, %v282
  %v343 = vpack.c.bf16 %v285, %v284
  %v344 = vpack.c.bf16 %v287, %v286
  %v345 = vpack.c.bf16 %v289, %v288
  %v346 = vpack.c.bf16 %v291, %v290
  %v347 = vpack.c.bf16 %v293, %v292
  %v348 = vpack.c.bf16 %v295, %v294
  %v349 = vpack.c.bf16 %v297, %v296
  %v350 = vpack.c.bf16 %v299, %v298
  %v351 = vpack.c.bf16 %v301, %v300
  %v352 = vpack.c.bf16 %v303, %v302
  %v353 = vpack.c.bf16 %v305, %v304
  %v354 = vpack.c.bf16 %v307, %v306
  %v355 = vpack.c.bf16 %v309, %v308
  %v356 = vpack.c.bf16 %v311, %v310
  %v357 = vpack.c.bf16 %v313, %v312
  %v358 = vpack.c.bf16 %v315, %v314
  %v359 = vpack.c.bf16 %v317, %v316
  %v360 = vpack.c.bf16 %v319, %v318
  %v361 = vpack.c.bf16 %v321, %v320
  %v362 = vpack.c.bf16 %v323, %v322
  %v363 = vpack.c.bf16 %v325, %v324
  %v364 = vpack.c.bf16 %v327, %v326
  %v365 = vpack.c.bf16 %v329, %v328
  %v366 = vpack.c.bf16 %v331, %v330
  %v367 = vpack.c.bf16 %v333, %v332
  %v368 = vpack.c.bf16 %v335, %v334
  %v369 = vpack.c.bf16 %v337, %v336
  %v370 = vld [vmem:[%s1] sm:$0xf]
  %v371 = vld [vmem:[%s1 + $0x4] sm:$0xf]
  %v372 = vld [vmem:[%s1 + $0x8] sm:$0xf]
  %v373 = vld [vmem:[%s1 + $0xc] sm:$0xf]
  %v378 = vunpack.c.l.b16 %v370
  %v379 = vunpack.c.l.b16 %v371
  %v380 = vunpack.c.l.b16 %v372
  %v381 = vunpack.c.l.b16 %v373
  %v382 = vpack.c.b16 %v379, %v378
  %v383 = vpack.c.b16 %v381, %v380
  %vm386 = vcmask 261120
  %v388 = vsel %vm386, %v338, 0
  %v391 = vsel %vm386, %v339, 0
  %v394 = vsel %vm386, %v340, 0
  %v397 = vsel %vm386, %v341, 0
  %v400 = vsel %vm386, %v342, 0
  %v403 = vsel %vm386, %v343, 0
  %v406 = vsel %vm386, %v344, 0
  %v409 = vsel %vm386, %v345, 0
  %v412 = vsel %vm386, %v346, 0
  %v415 = vsel %vm386, %v347, 0
  %v418 = vsel %vm386, %v348, 0
  %v421 = vsel %vm386, %v349, 0
  %v424 = vsel %vm386, %v350, 0
  %v427 = vsel %vm386, %v351, 0
  %v430 = vsel %vm386, %v352, 0
  %v433 = vsel %vm386, %v353, 0
  %v436 = vsel %vm386, %v354, 0
  %v439 = vsel %vm386, %v355, 0
  %v442 = vsel %vm386, %v356, 0
  %v445 = vsel %vm386, %v357, 0
  %v448 = vsel %vm386, %v358, 0
  %v451 = vsel %vm386, %v359, 0
  %v454 = vsel %vm386, %v360, 0
  %v457 = vsel %vm386, %v361, 0
  %v460 = vsel %vm386, %v362, 0
  %v463 = vsel %vm386, %v363, 0
  %v466 = vsel %vm386, %v364, 0
  %v469 = vsel %vm386, %v365, 0
  %v472 = vsel %vm386, %v366, 0
  %v475 = vsel %vm386, %v367, 0
  %v478 = vsel %vm386, %v368, 0
  %v481 = vsel %vm386, %v369, 0
  %483 = vmatprep.subr.bf16.mxu0 0
  %484 = vmatpush1.bf16.msra.mxu0 %v382
  %485 = vmatprep.subr.bf16.mxu0 0
  %486 = vmatpush1.bf16.msra.mxu0 %v383
  %487 = vmatprep.subr.bf16.mxu0 0
  %488 = vmatpush1.bf16.msra.mxu0 0
  %489 = vmatprep.subr.bf16.mxu0 0
  %490 = vmatpush1.bf16.msra.mxu0 0
  %491 = vmatprep.subr.bf16.mxu0 0
  %492 = vmatpush1.bf16.msra.mxu0 0
  %493 = vmatprep.subr.bf16.mxu0 0
  %494 = vmatpush1.bf16.msra.mxu0 0
  %495 = vmatprep.subr.bf16.mxu0 0
  %496 = vmatpush1.bf16.msra.mxu0 0
  %497 = vmatprep.subr.bf16.mxu0 0
  %498 = vmatpush1.bf16.msra.mxu0 0
  %499 = vmatprep.subr.bf16.mxu0 0
  %500 = vmatpush1.bf16.msra.mxu0 0
  %501 = vmatprep.subr.bf16.mxu0 0
  %502 = vmatpush1.bf16.msra.mxu0 0
  %503 = vmatprep.subr.bf16.mxu0 0
  %504 = vmatpush1.bf16.msra.mxu0 0
  %505 = vmatprep.subr.bf16.mxu0 0
  %506 = vmatpush1.bf16.msra.mxu0 0
  %507 = vmatprep.subr.bf16.mxu0 0
  %508 = vmatpush1.bf16.msra.mxu0 0
  %509 = vmatprep.subr.bf16.mxu0 0
  %510 = vmatpush1.bf16.msra.mxu0 0
  %511 = vmatprep.subr.bf16.mxu0 0
  %512 = vmatpush1.bf16.msra.mxu0 0
  %513 = vmatprep.subr.bf16.mxu0 0
  %514 = vmatpush1.bf16.msra.mxu0 0
  %515 = vmatprep.mubr.bf16.mxu0 0
  %516 = vmatmul.mubr.bf16.gmra.mrb[0].mxu0 %v388
  %v517 = vpop.f32.mrb[0].mxu0
  %v518 = vadd.f32 0.0, %v517
  %v519 = vpop.f32.mrb[0].mxu0
  %v520 = vpop.f32.mrb[0].mxu0
  %v521 = vadd.f32 0.0, %v520
  %v522 = vpop.f32.mrb[0].mxu0
  %523 = vmatprep.mubr.bf16.mxu0 0
  %524 = vmatmul.mubr.bf16.gmra.mrb[0].mxu0 %v391
  %v525 = vpop.f32.mrb[0].mxu0
  %v526 = vadd.f32 0.0, %v525
  %v527 = vpop.f32.mrb[0].mxu0
  %v528 = vpop.f32.mrb[0].mxu0
  %v529 = vadd.f32 0.0, %v528
  %v530 = vpop.f32.mrb[0].mxu0
  %531 = vmatprep.mubr.bf16.mxu0 0
  %532 = vmatmul.mubr.bf16.gmra.mrb[0].mxu0 %v394
  %v533 = vpop.f32.mrb[0].mxu0
  %v534 = vadd.f32 0.0, %v533
  %v535 = vpop.f32.mrb[0].mxu0
  %v536 = vpop.f32.mrb[0].mxu0
  %v537 = vadd.f32 0.0, %v536
  %v538 = vpop.f32.mrb[0].mxu0
  %539 = vmatprep.mubr.bf16.mxu0 0
  %540 = vmatmul.mubr.bf16.gmra.mrb[0].mxu0 %v397
  %v541 = vpop.f32.mrb[0].mxu0
  %v542 = vadd.f32 0.0, %v541
  %v543 = vpop.f32.mrb[0].mxu0
  %v544 = vpop.f32.mrb[0].mxu0
  %v545 = vadd.f32 0.0, %v544
  %v546 = vpop.f32.mrb[0].mxu0
  %547 = vmatprep.mubr.bf16.mxu0 0
  %548 = vmatmul.mubr.bf16.gmra.mrb[0].mxu0 %v400
  %v549 = vpop.f32.mrb[0].mxu0
  %v550 = vadd.f32 0.0, %v549
  %v551 = vpop.f32.mrb[0].mxu0
  %v552 = vpop.f32.mrb[0].mxu0
  %v553 = vadd.f32 0.0, %v552
  %v554 = vpop.f32.mrb[0].mxu0
  %555 = vmatprep.mubr.bf16.mxu0 0
  %556 = vmatmul.mubr.bf16.gmra.mrb[0].mxu0 %v403
  %v557 = vpop.f32.mrb[0].mxu0
  %v558 = vadd.f32 0.0, %v557
  %v559 = vpop.f32.mrb[0].mxu0
  %v560 = vpop.f32.mrb[0].mxu0
  %v561 = vadd.f32 0.0, %v560
  %v562 = vpop.f32.mrb[0].mxu0
  %563 = vmatprep.mubr.bf16.mxu0 0
  %564 = vmatmul.mubr.bf16.gmra.mrb[0].mxu0 %v406
  %v565 = vpop.f32.mrb[0].mxu0
  %v566 = vadd.f32 0.0, %v565
  %v567 = vpop.f32.mrb[0].mxu0
  %v568 = vpop.f32.mrb[0].mxu0
  %v569 = vadd.f32 0.0, %v568
  %v570 = vpop.f32.mrb[0].mxu0
  %571 = vmatprep.mubr.bf16.mxu0 0
  %572 = vmatmul.mubr.bf16.gmra.mrb[0].mxu0 %v409
  %v573 = vpop.f32.mrb[0].mxu0
  %v574 = vadd.f32 0.0, %v573
  %v575 = vpop.f32.mrb[0].mxu0
  %v576 = vpop.f32.mrb[0].mxu0
  %v577 = vadd.f32 0.0, %v576
  %v578 = vpop.f32.mrb[0].mxu0
  %579 = vmatprep.mubr.bf16.mxu0 0
  %580 = vmatmul.mubr.bf16.gmra.mrb[0].mxu0 %v412
  %v581 = vpop.f32.mrb[0].mxu0
  %v582 = vadd.f32 0.0, %v581
  %v583 = vpop.f32.mrb[0].mxu0
  %v584 = vpop.f32.mrb[0].mxu0
  %v585 = vadd.f32 0.0, %v584
  %v586 = vpop.f32.mrb[0].mxu0
  %587 = vmatprep.mubr.bf16.mxu0 0
  %588 = vmatmul.mubr.bf16.gmra.mrb[0].mxu0 %v415
  %v589 = vpop.f32.mrb[0].mxu0
  %v590 = vadd.f32 0.0, %v589
  %v591 = vpop.f32.mrb[0].mxu0
  %v592 = vpop.f32.mrb[0].mxu0
  %v593 = vadd.f32 0.0, %v592
  %v594 = vpop.f32.mrb[0].mxu0
  %595 = vmatprep.mubr.bf16.mxu0 0
  %596 = vmatmul.mubr.bf16.gmra.mrb[0].mxu0 %v418
  %v597 = vpop.f32.mrb[0].mxu0
  %v598 = vadd.f32 0.0, %v597
  %v599 = vpop.f32.mrb[0].mxu0
  %v600 = vpop.f32.mrb[0].mxu0
  %v601 = vadd.f32 0.0, %v600
  %v602 = vpop.f32.mrb[0].mxu0
  %603 = vmatprep.mubr.bf16.mxu0 0
  %604 = vmatmul.mubr.bf16.gmra.mrb[0].mxu0 %v421
  %v605 = vpop.f32.mrb[0].mxu0
  %v606 = vadd.f32 0.0, %v605
  %v607 = vpop.f32.mrb[0].mxu0
  %v608 = vpop.f32.mrb[0].mxu0
  %v609 = vadd.f32 0.0, %v608
  %v610 = vpop.f32.mrb[0].mxu0
  %611 = vmatprep.mubr.bf16.mxu0 0
  %612 = vmatmul.mubr.bf16.gmra.mrb[0].mxu0 %v424
  %v613 = vpop.f32.mrb[0].mxu0
  %v614 = vadd.f32 0.0, %v613
  %v615 = vpop.f32.mrb[0].mxu0
  %v616 = vpop.f32.mrb[0].mxu0
  %v617 = vadd.f32 0.0, %v616
  %v618 = vpop.f32.mrb[0].mxu0
  %619 = vmatprep.mubr.bf16.mxu0 0
  %620 = vmatmul.mubr.bf16.gmra.mrb[0].mxu0 %v427
  %v621 = vpop.f32.mrb[0].mxu0
  %v622 = vadd.f32 0.0, %v621
  %v623 = vpop.f32.mrb[0].mxu0
  %v624 = vpop.f32.mrb[0].mxu0
  %v625 = vadd.f32 0.0, %v624
  %v626 = vpop.f32.mrb[0].mxu0
  %627 = vmatprep.mubr.bf16.mxu0 0
  %628 = vmatmul.mubr.bf16.gmra.mrb[0].mxu0 %v430
  %v629 = vpop.f32.mrb[0].mxu0
  %v630 = vadd.f32 0.0, %v629
  %v631 = vpop.f32.mrb[0].mxu0
  %v632 = vpop.f32.mrb[0].mxu0
  %v633 = vadd.f32 0.0, %v632
  %v634 = vpop.f32.mrb[0].mxu0
  %635 = vmatprep.mubr.bf16.mxu0 0
  %636 = vmatmul.mubr.bf16.gmra.mrb[0].mxu0 %v433
  %v637 = vpop.f32.mrb[0].mxu0
  %v638 = vadd.f32 0.0, %v637
  %v639 = vpop.f32.mrb[0].mxu0
  %v640 = vpop.f32.mrb[0].mxu0
  %v641 = vadd.f32 0.0, %v640
  %v642 = vpop.f32.mrb[0].mxu0
  %643 = vmatprep.mubr.bf16.mxu0 0
  %644 = vmatmul.mubr.bf16.gmra.mrb[0].mxu0 %v436
  %v645 = vpop.f32.mrb[0].mxu0
  %v646 = vadd.f32 0.0, %v645
  %v647 = vpop.f32.mrb[0].mxu0
  %v648 = vpop.f32.mrb[0].mxu0
  %v649 = vadd.f32 0.0, %v648
  %v650 = vpop.f32.mrb[0].mxu0
  %651 = vmatprep.mubr.bf16.mxu0 0
  %652 = vmatmul.mubr.bf16.gmra.mrb[0].mxu0 %v439
  %v653 = vpop.f32.mrb[0].mxu0
  %v654 = vadd.f32 0.0, %v653
  %v655 = vpop.f32.mrb[0].mxu0
  %v656 = vpop.f32.mrb[0].mxu0
  %v657 = vadd.f32 0.0, %v656
  %v658 = vpop.f32.mrb[0].mxu0
  %659 = vmatprep.mubr.bf16.mxu0 0
  %660 = vmatmul.mubr.bf16.gmra.mrb[0].mxu0 %v442
  %v661 = vpop.f32.mrb[0].mxu0
  %v662 = vadd.f32 0.0, %v661
  %v663 = vpop.f32.mrb[0].mxu0
  %v664 = vpop.f32.mrb[0].mxu0
  %v665 = vadd.f32 0.0, %v664
  %v666 = vpop.f32.mrb[0].mxu0
  %667 = vmatprep.mubr.bf16.mxu0 0
  %668 = vmatmul.mubr.bf16.gmra.mrb[0].mxu0 %v445
  %v669 = vpop.f32.mrb[0].mxu0
  %v670 = vadd.f32 0.0, %v669
  %v671 = vpop.f32.mrb[0].mxu0
  %v672 = vpop.f32.mrb[0].mxu0
  %v673 = vadd.f32 0.0, %v672
  %v674 = vpop.f32.mrb[0].mxu0
  %675 = vmatprep.mubr.bf16.mxu0 0
  %676 = vmatmul.mubr.bf16.gmra.mrb[0].mxu0 %v448
  %v677 = vpop.f32.mrb[0].mxu0
  %v678 = vadd.f32 0.0, %v677
  %v679 = vpop.f32.mrb[0].mxu0
  %v680 = vpop.f32.mrb[0].mxu0
  %v681 = vadd.f32 0.0, %v680
  %v682 = vpop.f32.mrb[0].mxu0
  %683 = vmatprep.mubr.bf16.mxu0 0
  %684 = vmatmul.mubr.bf16.gmra.mrb[0].mxu0 %v451
  %v685 = vpop.f32.mrb[0].mxu0
  %v686 = vadd.f32 0.0, %v685
  %v687 = vpop.f32.mrb[0].mxu0
  %v688 = vpop.f32.mrb[0].mxu0
  %v689 = vadd.f32 0.0, %v688
  %v690 = vpop.f32.mrb[0].mxu0
  %691 = vmatprep.mubr.bf16.mxu0 0
  %692 = vmatmul.mubr.bf16.gmra.mrb[0].mxu0 %v454
  %v693 = vpop.f32.mrb[0].mxu0
  %v694 = vadd.f32 0.0, %v693
  %v695 = vpop.f32.mrb[0].mxu0
  %v696 = vpop.f32.mrb[0].mxu0
  %v697 = vadd.f32 0.0, %v696
  %v698 = vpop.f32.mrb[0].mxu0
  %699 = vmatprep.mubr.bf16.mxu0 0
  %700 = vmatmul.mubr.bf16.gmra.mrb[0].mxu0 %v457
  %v701 = vpop.f32.mrb[0].mxu0
  %v702 = vadd.f32 0.0, %v701
  %v703 = vpop.f32.mrb[0].mxu0
  %v704 = vpop.f32.mrb[0].mxu0
  %v705 = vadd.f32 0.0, %v704
  %v706 = vpop.f32.mrb[0].mxu0
  %707 = vmatprep.mubr.bf16.mxu0 0
  %708 = vmatmul.mubr.bf16.gmra.mrb[0].mxu0 %v460
  %v709 = vpop.f32.mrb[0].mxu0
  %v710 = vadd.f32 0.0, %v709
  %v711 = vpop.f32.mrb[0].mxu0
  %v712 = vpop.f32.mrb[0].mxu0
  %v713 = vadd.f32 0.0, %v712
  %v714 = vpop.f32.mrb[0].mxu0
  %715 = vmatprep.mubr.bf16.mxu0 0
  %716 = vmatmul.mubr.bf16.gmra.mrb[0].mxu0 %v463
  %v717 = vpop.f32.mrb[0].mxu0
  %v718 = vadd.f32 0.0, %v717
  %v719 = vpop.f32.mrb[0].mxu0
  %v720 = vpop.f32.mrb[0].mxu0
  %v721 = vadd.f32 0.0, %v720
  %v722 = vpop.f32.mrb[0].mxu0
  %723 = vmatprep.mubr.bf16.mxu0 0
  %724 = vmatmul.mubr.bf16.gmra.mrb[0].mxu0 %v466
  %v725 = vpop.f32.mrb[0].mxu0
  %v726 = vadd.f32 0.0, %v725
  %v727 = vpop.f32.mrb[0].mxu0
  %v728 = vpop.f32.mrb[0].mxu0
  %v729 = vadd.f32 0.0, %v728
  %v730 = vpop.f32.mrb[0].mxu0
  %731 = vmatprep.mubr.bf16.mxu0 0
  %732 = vmatmul.mubr.bf16.gmra.mrb[0].mxu0 %v469
  %v733 = vpop.f32.mrb[0].mxu0
  %v734 = vadd.f32 0.0, %v733
  %v735 = vpop.f32.mrb[0].mxu0
  %v736 = vpop.f32.mrb[0].mxu0
  %v737 = vadd.f32 0.0, %v736
  %v738 = vpop.f32.mrb[0].mxu0
  %739 = vmatprep.mubr.bf16.mxu0 0
  %740 = vmatmul.mubr.bf16.gmra.mrb[0].mxu0 %v472
  %v741 = vpop.f32.mrb[0].mxu0
  %v742 = vadd.f32 0.0, %v741
  %v743 = vpop.f32.mrb[0].mxu0
  %v744 = vpop.f32.mrb[0].mxu0
  %v745 = vadd.f32 0.0, %v744
  %v746 = vpop.f32.mrb[0].mxu0
  %747 = vmatprep.mubr.bf16.mxu0 0
  %748 = vmatmul.mubr.bf16.gmra.mrb[0].mxu0 %v475
  %v749 = vpop.f32.mrb[0].mxu0
  %v750 = vadd.f32 0.0, %v749
  %v751 = vpop.f32.mrb[0].mxu0
  %v752 = vpop.f32.mrb[0].mxu0
  %v753 = vadd.f32 0.0, %v752
  %v754 = vpop.f32.mrb[0].mxu0
  %755 = vmatprep.mubr.bf16.mxu0 0
  %756 = vmatmul.mubr.bf16.gmra.mrb[0].mxu0 %v478
  %v757 = vpop.f32.mrb[0].mxu0
  %v758 = vadd.f32 0.0, %v757
  %v759 = vpop.f32.mrb[0].mxu0
  %v760 = vpop.f32.mrb[0].mxu0
  %v761 = vadd.f32 0.0, %v760
  %v762 = vpop.f32.mrb[0].mxu0
  %763 = vmatprep.mubr.bf16.mxu0 0
  %764 = vmatmul.mubr.bf16.gmra.mrb[0].mxu0 %v481
  %v765 = vpop.f32.mrb[0].mxu0
  %v766 = vadd.f32 0.0, %v765
  %v767 = vpop.f32.mrb[0].mxu0
  %v768 = vpop.f32.mrb[0].mxu0
  %v769 = vadd.f32 0.0, %v768
  %v770 = vpop.f32.mrb[0].mxu0
  %771 = vdwg.mxu0
  %v772 = vld [vmem:[%s2] sm:$0x1]
  %v774 = vlaneseq
  %v775 = vshrl.u32 %v774, 7
  %v776 = vsub.s32 0, %v775
  %v777 = vrot.slane %v772, %v776
  %v779 = vmul.f32 %v518, %v777
  %v780 = vmul.f32 %v521, %v777
  %v781 = vmul.f32 %v526, %v777
  %v782 = vmul.f32 %v529, %v777
  %v783 = vmul.f32 %v534, %v777
  %v784 = vmul.f32 %v537, %v777
  %v785 = vmul.f32 %v542, %v777
  %v786 = vmul.f32 %v545, %v777
  %v787 = vmul.f32 %v550, %v777
  %v788 = vmul.f32 %v553, %v777
  %v789 = vmul.f32 %v558, %v777
  %v790 = vmul.f32 %v561, %v777
  %v791 = vmul.f32 %v566, %v777
  %v792 = vmul.f32 %v569, %v777
  %v793 = vmul.f32 %v574, %v777
  %v794 = vmul.f32 %v577, %v777
  %v795 = vmul.f32 %v582, %v777
  %v796 = vmul.f32 %v585, %v777
  %v797 = vmul.f32 %v590, %v777
  %v798 = vmul.f32 %v593, %v777
  %v799 = vmul.f32 %v598, %v777
  %v800 = vmul.f32 %v601, %v777
  %v801 = vmul.f32 %v606, %v777
  %v802 = vmul.f32 %v609, %v777
  %v803 = vmul.f32 %v614, %v777
  %v804 = vmul.f32 %v617, %v777
  %v805 = vmul.f32 %v622, %v777
  %v806 = vmul.f32 %v625, %v777
  %v807 = vmul.f32 %v630, %v777
  %v808 = vmul.f32 %v633, %v777
  %v809 = vmul.f32 %v638, %v777
  %v810 = vmul.f32 %v641, %v777
  %v811 = vmul.f32 %v646, %v777
  %v812 = vmul.f32 %v649, %v777
  %v813 = vmul.f32 %v654, %v777
  %v814 = vmul.f32 %v657, %v777
  %v815 = vmul.f32 %v662, %v777
  %v816 = vmul.f32 %v665, %v777
  %v817 = vmul.f32 %v670, %v777
  %v818 = vmul.f32 %v673, %v777
  %v819 = vmul.f32 %v678, %v777
  %v820 = vmul.f32 %v681, %v777
  %v821 = vmul.f32 %v686, %v777
  %v822 = vmul.f32 %v689, %v777
  %v823 = vmul.f32 %v694, %v777
  %v824 = vmul.f32 %v697, %v777
  %v825 = vmul.f32 %v702, %v777
  %v826 = vmul.f32 %v705, %v777
  %v827 = vmul.f32 %v710, %v777
  %v828 = vmul.f32 %v713, %v777
  %v829 = vmul.f32 %v718, %v777
  %v830 = vmul.f32 %v721, %v777
  %v831 = vmul.f32 %v726, %v777
  %v832 = vmul.f32 %v729, %v777
  %v833 = vmul.f32 %v734, %v777
  %v834 = vmul.f32 %v737, %v777
  %v835 = vmul.f32 %v742, %v777
  %v836 = vmul.f32 %v745, %v777
  %v837 = vmul.f32 %v750, %v777
  %v838 = vmul.f32 %v753, %v777
  %v839 = vmul.f32 %v758, %v777
  %v840 = vmul.f32 %v761, %v777
  %v841 = vmul.f32 %v766, %v777
  %v842 = vmul.f32 %v769, %v777
  %v843 = vld [vmem:[%s3] sm:$0x1]
  %v845 = vlaneseq
  %v846 = vshrl.u32 %v845, 7
  %v847 = vsub.s32 0, %v846
  %v848 = vrot.slane %v843, %v847
  %v850 = vadd.f32 %v779, %v848
  %v851 = vadd.f32 %v780, %v848
  %v852 = vadd.f32 %v781, %v848
  %v853 = vadd.f32 %v782, %v848
  %v854 = vadd.f32 %v783, %v848
  %v855 = vadd.f32 %v784, %v848
  %v856 = vadd.f32 %v785, %v848
  %v857 = vadd.f32 %v786, %v848
  %v858 = vadd.f32 %v787, %v848
  %v859 = vadd.f32 %v788, %v848
  %v860 = vadd.f32 %v789, %v848
  %v861 = vadd.f32 %v790, %v848
  %v862 = vadd.f32 %v791, %v848
  %v863 = vadd.f32 %v792, %v848
  %v864 = vadd.f32 %v793, %v848
  %v865 = vadd.f32 %v794, %v848
  %v866 = vadd.f32 %v795, %v848
  %v867 = vadd.f32 %v796, %v848
  %v868 = vadd.f32 %v797, %v848
  %v869 = vadd.f32 %v798, %v848
  %v870 = vadd.f32 %v799, %v848
  %v871 = vadd.f32 %v800, %v848
  %v872 = vadd.f32 %v801, %v848
  %v873 = vadd.f32 %v802, %v848
  %v874 = vadd.f32 %v803, %v848
  %v875 = vadd.f32 %v804, %v848
  %v876 = vadd.f32 %v805, %v848
  %v877 = vadd.f32 %v806, %v848
  %v878 = vadd.f32 %v807, %v848
  %v879 = vadd.f32 %v808, %v848
  %v880 = vadd.f32 %v809, %v848
  %v881 = vadd.f32 %v810, %v848
  %v882 = vadd.f32 %v811, %v848
  %v883 = vadd.f32 %v812, %v848
  %v884 = vadd.f32 %v813, %v848
  %v885 = vadd.f32 %v814, %v848
  %v886 = vadd.f32 %v815, %v848
  %v887 = vadd.f32 %v816, %v848
  %v888 = vadd.f32 %v817, %v848
  %v889 = vadd.f32 %v818, %v848
  %v890 = vadd.f32 %v819, %v848
  %v891 = vadd.f32 %v820, %v848
  %v892 = vadd.f32 %v821, %v848
  %v893 = vadd.f32 %v822, %v848
  %v894 = vadd.f32 %v823, %v848
  %v895 = vadd.f32 %v824, %v848
  %v896 = vadd.f32 %v825, %v848
  %v897 = vadd.f32 %v826, %v848
  %v898 = vadd.f32 %v827, %v848
  %v899 = vadd.f32 %v828, %v848
  %v900 = vadd.f32 %v829, %v848
  %v901 = vadd.f32 %v830, %v848
  %v902 = vadd.f32 %v831, %v848
  %v903 = vadd.f32 %v832, %v848
  %v904 = vadd.f32 %v833, %v848
  %v905 = vadd.f32 %v834, %v848
  %v906 = vadd.f32 %v835, %v848
  %v907 = vadd.f32 %v836, %v848
  %v908 = vadd.f32 %v837, %v848
  %v909 = vadd.f32 %v838, %v848
  %v910 = vadd.f32 %v839, %v848
  %v911 = vadd.f32 %v840, %v848
  %v912 = vadd.f32 %v841, %v848
  %v913 = vadd.f32 %v842, %v848
  %vm914 = vcmask 130048
  %915 = vst.msk [vmem:[%s4] sm:$0xff] %vm914, %v850
  %916 = vst.msk [vmem:[%s4 + $0x8] sm:$0xff] %vm914, %v851
  %917 = vst.msk [vmem:[%s4 + $0x10] sm:$0xff] %vm914, %v852
  %918 = vst.msk [vmem:[%s4 + $0x18] sm:$0xff] %vm914, %v853
  %919 = vst.msk [vmem:[%s4 + $0x20] sm:$0xff] %vm914, %v854
  %920 = vst.msk [vmem:[%s4 + $0x28] sm:$0xff] %vm914, %v855
  %921 = vst.msk [vmem:[%s4 + $0x30] sm:$0xff] %vm914, %v856
  %922 = vst.msk [vmem:[%s4 + $0x38] sm:$0xff] %vm914, %v857
  %923 = vst.msk [vmem:[%s4 + $0x40] sm:$0xff] %vm914, %v858
  %924 = vst.msk [vmem:[%s4 + $0x48] sm:$0xff] %vm914, %v859
  %925 = vst.msk [vmem:[%s4 + $0x50] sm:$0xff] %vm914, %v860
  %926 = vst.msk [vmem:[%s4 + $0x58] sm:$0xff] %vm914, %v861
  %927 = vst.msk [vmem:[%s4 + $0x60] sm:$0xff] %vm914, %v862
  %928 = vst.msk [vmem:[%s4 + $0x68] sm:$0xff] %vm914, %v863
  %929 = vst.msk [vmem:[%s4 + $0x70] sm:$0xff] %vm914, %v864
  %930 = vst.msk [vmem:[%s4 + $0x78] sm:$0xff] %vm914, %v865
  %931 = vst.msk [vmem:[%s4 + $0x80] sm:$0xff] %vm914, %v866
  %932 = vst.msk [vmem:[%s4 + $0x88] sm:$0xff] %vm914, %v867
  %933 = vst.msk [vmem:[%s4 + $0x90] sm:$0xff] %vm914, %v868
  %934 = vst.msk [vmem:[%s4 + $0x98] sm:$0xff] %vm914, %v869
  %935 = vst.msk [vmem:[%s4 + $0xa0] sm:$0xff] %vm914, %v870
  %936 = vst.msk [vmem:[%s4 + $0xa8] sm:$0xff] %vm914, %v871
  %937 = vst.msk [vmem:[%s4 + $0xb0] sm:$0xff] %vm914, %v872
  %938 = vst.msk [vmem:[%s4 + $0xb8] sm:$0xff] %vm914, %v873
  %939 = vst.msk [vmem:[%s4 + $0xc0] sm:$0xff] %vm914, %v874
  %940 = vst.msk [vmem:[%s4 + $0xc8] sm:$0xff] %vm914, %v875
  %941 = vst.msk [vmem:[%s4 + $0xd0] sm:$0xff] %vm914, %v876
  %942 = vst.msk [vmem:[%s4 + $0xd8] sm:$0xff] %vm914, %v877
  %943 = vst.msk [vmem:[%s4 + $0xe0] sm:$0xff] %vm914, %v878
  %944 = vst.msk [vmem:[%s4 + $0xe8] sm:$0xff] %vm914, %v879
  %945 = vst.msk [vmem:[%s4 + $0xf0] sm:$0xff] %vm914, %v880
  %946 = vst.msk [vmem:[%s4 + $0xf8] sm:$0xff] %vm914, %v881
  %947 = vst.msk [vmem:[%s4 + $0x100] sm:$0xff] %vm914, %v882
  %948 = vst.msk [vmem:[%s4 + $0x108] sm:$0xff] %vm914, %v883
  %949 = vst.msk [vmem:[%s4 + $0x110] sm:$0xff] %vm914, %v884
  %950 = vst.msk [vmem:[%s4 + $0x118] sm:$0xff] %vm914, %v885
  %951 = vst.msk [vmem:[%s4 + $0x120] sm:$0xff] %vm914, %v886
  %952 = vst.msk [vmem:[%s4 + $0x128] sm:$0xff] %vm914, %v887
  %953 = vst.msk [vmem:[%s4 + $0x130] sm:$0xff] %vm914, %v888
  %954 = vst.msk [vmem:[%s4 + $0x138] sm:$0xff] %vm914, %v889
  %955 = vst.msk [vmem:[%s4 + $0x140] sm:$0xff] %vm914, %v890
  %956 = vst.msk [vmem:[%s4 + $0x148] sm:$0xff] %vm914, %v891
  %957 = vst.msk [vmem:[%s4 + $0x150] sm:$0xff] %vm914, %v892
  %958 = vst.msk [vmem:[%s4 + $0x158] sm:$0xff] %vm914, %v893
  %959 = vst.msk [vmem:[%s4 + $0x160] sm:$0xff] %vm914, %v894
  %960 = vst.msk [vmem:[%s4 + $0x168] sm:$0xff] %vm914, %v895
  %961 = vst.msk [vmem:[%s4 + $0x170] sm:$0xff] %vm914, %v896
  %962 = vst.msk [vmem:[%s4 + $0x178] sm:$0xff] %vm914, %v897
  %963 = vst.msk [vmem:[%s4 + $0x180] sm:$0xff] %vm914, %v898
  %964 = vst.msk [vmem:[%s4 + $0x188] sm:$0xff] %vm914, %v899
  %965 = vst.msk [vmem:[%s4 + $0x190] sm:$0xff] %vm914, %v900
  %966 = vst.msk [vmem:[%s4 + $0x198] sm:$0xff] %vm914, %v901
  %967 = vst.msk [vmem:[%s4 + $0x1a0] sm:$0xff] %vm914, %v902
  %968 = vst.msk [vmem:[%s4 + $0x1a8] sm:$0xff] %vm914, %v903
  %969 = vst.msk [vmem:[%s4 + $0x1b0] sm:$0xff] %vm914, %v904
  %970 = vst.msk [vmem:[%s4 + $0x1b8] sm:$0xff] %vm914, %v905
  %971 = vst.msk [vmem:[%s4 + $0x1c0] sm:$0xff] %vm914, %v906
  %972 = vst.msk [vmem:[%s4 + $0x1c8] sm:$0xff] %vm914, %v907
  %973 = vst.msk [vmem:[%s4 + $0x1d0] sm:$0xff] %vm914, %v908
  %974 = vst.msk [vmem:[%s4 + $0x1d8] sm:$0xff] %vm914, %v909
  %975 = vst.msk [vmem:[%s4 + $0x1e0] sm:$0xff] %vm914, %v910
  %976 = vst.msk [vmem:[%s4 + $0x1e8] sm:$0xff] %vm914, %v911
  %977 = vst.msk [vmem:[%s4 + $0x1f0] sm:$0xff] %vm914, %v912
  %978 = vst.msk [vmem:[%s4 + $0x1f8] sm:$0xff] %vm914, %v913
  // Predicated region
  $region18: #{sepconv_spike_forward.5} parent=0 // pred_check
    _
  $region19: #{sepconv_spike_forward.5} parent=0 // pred_check_branch
    %980 = sbr.rel (0) target = $region21
  $region20: #{sepconv_spike_forward.5} parent=0 // pred_region
    _
  $region21: #{sepconv_spike_forward.5} parent=0 // pred_fallthru
    _
  // Predicated region
  $region22: #{sepconv_spike_forward.5} parent=0 // pred_check
    _
  $region23: #{sepconv_spike_forward.5} parent=0 // pred_check_branch
    %982 = sbr.rel (0) target = $region25
  $region24: #{sepconv_spike_forward.5} parent=0 // pred_region
    _
  $region25: #{sepconv_spike_forward.5} parent=0 // pred_fallthru
    _

// kernel: sepconv_spike_forward.3
$region0: #{sepconv_spike_forward.3}
  #allocation0 [shape = 'u32[]', space=smem, size = 0x4, offset = 0x4, fixed_abs, tag = 'smem constant byte address 0x4 - core index']
  #allocation1 [shape = 'u32[144,128]{1,0:T(1,128)}', space=vmem, size = 0x12000, scoped, tag = 'internal scratch']
  %s0 = inlined_call_operand.vmem [shape: f32[512,16], index: 0, kind: input, shape index: {}]
  %s1 = inlined_call_operand.vmem [shape: bf16[16,32], index: 1, kind: input, shape index: {}]
  %s2 = inlined_call_operand.vmem [shape: f32[1,32], index: 2, kind: input, shape index: {}]
  %s3 = inlined_call_operand.vmem [shape: f32[1,32], index: 3, kind: input, shape index: {}]
  %s4 = inlined_call_operand.vmem [shape: f32[512,32], index: 4, kind: output, shape index: {}]
  %s5 = sld [smem:[#allocation0]]
  $region26: #{sepconv_spike_forward.3} parent=0
    _
  %s7 = ssub.s32 1, %s5
  %s8 = scalar_select 0, %s7, %s5
  // Predicated region
  $region2: #{sepconv_spike_forward.3} parent=0 // pred_check
    _
  $region3: #{sepconv_spike_forward.3} parent=0 // pred_check_branch
    %10 = sbr.rel (0) target = $region5
  $region4: #{sepconv_spike_forward.3} parent=0 // pred_region
    _
  $region5: #{sepconv_spike_forward.3} parent=0 // pred_fallthru
    _
  // Predicated region
  $region6: #{sepconv_spike_forward.3} parent=0 // pred_check
    _
  $region7: #{sepconv_spike_forward.3} parent=0 // pred_check_branch
    %12 = sbr.rel (0) target = $region9
  $region8: #{sepconv_spike_forward.3} parent=0 // pred_region
    _
  $region9: #{sepconv_spike_forward.3} parent=0 // pred_fallthru
    _
  // Predicated region
  $region10: #{sepconv_spike_forward.3} parent=0 // pred_check
    _
  $region11: #{sepconv_spike_forward.3} parent=0 // pred_check_branch
    %14 = sbr.rel (0) target = $region13
  $region12: #{sepconv_spike_forward.3} parent=0 // pred_region
    _
  $region13: #{sepconv_spike_forward.3} parent=0 // pred_fallthru
    _
  // Predicated region
  $region14: #{sepconv_spike_forward.3} parent=0 // pred_check
    _
  $region15: #{sepconv_spike_forward.3} parent=0 // pred_check_branch
    %16 = sbr.rel (0) target = $region17
  $region16: #{sepconv_spike_forward.3} parent=0 // pred_region
    _
  $region17: #{sepconv_spike_forward.3} parent=0 // pred_fallthru
    _
  %v18 = vld [vmem:[%s0] sm:$0xff]
  %v19 = vld [vmem:[%s0 + $0x8] sm:$0xff]
  %v20 = vld [vmem:[%s0 + $0x10] sm:$0xff]
  %v21 = vld [vmem:[%s0 + $0x18] sm:$0xff]
  %v22 = vld [vmem:[%s0 + $0x20] sm:$0xff]
  %v23 = vld [vmem:[%s0 + $0x28] sm:$0xff]
  %v24 = vld [vmem:[%s0 + $0x30] sm:$0xff]
  %v25 = vld [vmem:[%s0 + $0x38] sm:$0xff]
  %v26 = vld [vmem:[%s0 + $0x40] sm:$0xff]
  %v27 = vld [vmem:[%s0 + $0x48] sm:$0xff]
  %v28 = vld [vmem:[%s0 + $0x50] sm:$0xff]
  %v29 = vld [vmem:[%s0 + $0x58] sm:$0xff]
  %v30 = vld [vmem:[%s0 + $0x60] sm:$0xff]
  %v31 = vld [vmem:[%s0 + $0x68] sm:$0xff]
  %v32 = vld [vmem:[%s0 + $0x70] sm:$0xff]
  %v33 = vld [vmem:[%s0 + $0x78] sm:$0xff]
  %v34 = vld [vmem:[%s0 + $0x80] sm:$0xff]
  %v35 = vld [vmem:[%s0 + $0x88] sm:$0xff]
  %v36 = vld [vmem:[%s0 + $0x90] sm:$0xff]
  %v37 = vld [vmem:[%s0 + $0x98] sm:$0xff]
  %v38 = vld [vmem:[%s0 + $0xa0] sm:$0xff]
  %v39 = vld [vmem:[%s0 + $0xa8] sm:$0xff]
  %v40 = vld [vmem:[%s0 + $0xb0] sm:$0xff]
  %v41 = vld [vmem:[%s0 + $0xb8] sm:$0xff]
  %v42 = vld [vmem:[%s0 + $0xc0] sm:$0xff]
  %v43 = vld [vmem:[%s0 + $0xc8] sm:$0xff]
  %v44 = vld [vmem:[%s0 + $0xd0] sm:$0xff]
  %v45 = vld [vmem:[%s0 + $0xd8] sm:$0xff]
  %v46 = vld [vmem:[%s0 + $0xe0] sm:$0xff]
  %v47 = vld [vmem:[%s0 + $0xe8] sm:$0xff]
  %v48 = vld [vmem:[%s0 + $0xf0] sm:$0xff]
  %v49 = vld [vmem:[%s0 + $0xf8] sm:$0xff]
  %v50 = vld [vmem:[%s0 + $0x100] sm:$0xff]
  %v51 = vld [vmem:[%s0 + $0x108] sm:$0xff]
  %v52 = vld [vmem:[%s0 + $0x110] sm:$0xff]
  %v53 = vld [vmem:[%s0 + $0x118] sm:$0xff]
  %v54 = vld [vmem:[%s0 + $0x120] sm:$0xff]
  %v55 = vld [vmem:[%s0 + $0x128] sm:$0xff]
  %v56 = vld [vmem:[%s0 + $0x130] sm:$0xff]
  %v57 = vld [vmem:[%s0 + $0x138] sm:$0xff]
  %v58 = vld [vmem:[%s0 + $0x140] sm:$0xff]
  %v59 = vld [vmem:[%s0 + $0x148] sm:$0xff]
  %v60 = vld [vmem:[%s0 + $0x150] sm:$0xff]
  %v61 = vld [vmem:[%s0 + $0x158] sm:$0xff]
  %v62 = vld [vmem:[%s0 + $0x160] sm:$0xff]
  %v63 = vld [vmem:[%s0 + $0x168] sm:$0xff]
  %v64 = vld [vmem:[%s0 + $0x170] sm:$0xff]
  %v65 = vld [vmem:[%s0 + $0x178] sm:$0xff]
  %v66 = vld [vmem:[%s0 + $0x180] sm:$0xff]
  %v67 = vld [vmem:[%s0 + $0x188] sm:$0xff]
  %v68 = vld [vmem:[%s0 + $0x190] sm:$0xff]
  %v69 = vld [vmem:[%s0 + $0x198] sm:$0xff]
  %v70 = vld [vmem:[%s0 + $0x1a0] sm:$0xff]
  %v71 = vld [vmem:[%s0 + $0x1a8] sm:$0xff]
  %v72 = vld [vmem:[%s0 + $0x1b0] sm:$0xff]
  %v73 = vld [vmem:[%s0 + $0x1b8] sm:$0xff]
  %v74 = vld [vmem:[%s0 + $0x1c0] sm:$0xff]
  %v75 = vld [vmem:[%s0 + $0x1c8] sm:$0xff]
  %v76 = vld [vmem:[%s0 + $0x1d0] sm:$0xff]
  %v77 = vld [vmem:[%s0 + $0x1d8] sm:$0xff]
  %v78 = vld [vmem:[%s0 + $0x1e0] sm:$0xff]
  %v79 = vld [vmem:[%s0 + $0x1e8] sm:$0xff]
  %v80 = vld [vmem:[%s0 + $0x1f0] sm:$0xff]
  %v81 = vld [vmem:[%s0 + $0x1f8] sm:$0xff]
  %v82 = vmax.f32 %v18, 0.0
  %v83 = vmax.f32 %v19, 0.0
  %v84 = vmax.f32 %v20, 0.0
  %v85 = vmax.f32 %v21, 0.0
  %v86 = vmax.f32 %v22, 0.0
  %v87 = vmax.f32 %v23, 0.0
  %v88 = vmax.f32 %v24, 0.0
  %v89 = vmax.f32 %v25, 0.0
  %v90 = vmax.f32 %v26, 0.0
  %v91 = vmax.f32 %v27, 0.0
  %v92 = vmax.f32 %v28, 0.0
  %v93 = vmax.f32 %v29, 0.0
  %v94 = vmax.f32 %v30, 0.0
  %v95 = vmax.f32 %v31, 0.0
  %v96 = vmax.f32 %v32, 0.0
  %v97 = vmax.f32 %v33, 0.0
  %v98 = vmax.f32 %v34, 0.0
  %v99 = vmax.f32 %v35, 0.0
  %v100 = vmax.f32 %v36, 0.0
  %v101 = vmax.f32 %v37, 0.0
  %v102 = vmax.f32 %v38, 0.0
  %v103 = vmax.f32 %v39, 0.0
  %v104 = vmax.f32 %v40, 0.0
  %v105 = vmax.f32 %v41, 0.0
  %v106 = vmax.f32 %v42, 0.0
  %v107 = vmax.f32 %v43, 0.0
  %v108 = vmax.f32 %v44, 0.0
  %v109 = vmax.f32 %v45, 0.0
  %v110 = vmax.f32 %v46, 0.0
  %v111 = vmax.f32 %v47, 0.0
  %v112 = vmax.f32 %v48, 0.0
  %v113 = vmax.f32 %v49, 0.0
  %v114 = vmax.f32 %v50, 0.0
  %v115 = vmax.f32 %v51, 0.0
  %v116 = vmax.f32 %v52, 0.0
  %v117 = vmax.f32 %v53, 0.0
  %v118 = vmax.f32 %v54, 0.0
  %v119 = vmax.f32 %v55, 0.0
  %v120 = vmax.f32 %v56, 0.0
  %v121 = vmax.f32 %v57, 0.0
  %v122 = vmax.f32 %v58, 0.0
  %v123 = vmax.f32 %v59, 0.0
  %v124 = vmax.f32 %v60, 0.0
  %v125 = vmax.f32 %v61, 0.0
  %v126 = vmax.f32 %v62, 0.0
  %v127 = vmax.f32 %v63, 0.0
  %v128 = vmax.f32 %v64, 0.0
  %v129 = vmax.f32 %v65, 0.0
  %v130 = vmax.f32 %v66, 0.0
  %v131 = vmax.f32 %v67, 0.0
  %v132 = vmax.f32 %v68, 0.0
  %v133 = vmax.f32 %v69, 0.0
  %v134 = vmax.f32 %v70, 0.0
  %v135 = vmax.f32 %v71, 0.0
  %v136 = vmax.f32 %v72, 0.0
  %v137 = vmax.f32 %v73, 0.0
  %v138 = vmax.f32 %v74, 0.0
  %v139 = vmax.f32 %v75, 0.0
  %v140 = vmax.f32 %v76, 0.0
  %v141 = vmax.f32 %v77, 0.0
  %v142 = vmax.f32 %v78, 0.0
  %v143 = vmax.f32 %v79, 0.0
  %v144 = vmax.f32 %v80, 0.0
  %v145 = vmax.f32 %v81, 0.0
  %v146 = vmin.f32 %v82, 4.0
  %v147 = vmin.f32 %v83, 4.0
  %v148 = vmin.f32 %v84, 4.0
  %v149 = vmin.f32 %v85, 4.0
  %v150 = vmin.f32 %v86, 4.0
  %v151 = vmin.f32 %v87, 4.0
  %v152 = vmin.f32 %v88, 4.0
  %v153 = vmin.f32 %v89, 4.0
  %v154 = vmin.f32 %v90, 4.0
  %v155 = vmin.f32 %v91, 4.0
  %v156 = vmin.f32 %v92, 4.0
  %v157 = vmin.f32 %v93, 4.0
  %v158 = vmin.f32 %v94, 4.0
  %v159 = vmin.f32 %v95, 4.0
  %v160 = vmin.f32 %v96, 4.0
  %v161 = vmin.f32 %v97, 4.0
  %v162 = vmin.f32 %v98, 4.0
  %v163 = vmin.f32 %v99, 4.0
  %v164 = vmin.f32 %v100, 4.0
  %v165 = vmin.f32 %v101, 4.0
  %v166 = vmin.f32 %v102, 4.0
  %v167 = vmin.f32 %v103, 4.0
  %v168 = vmin.f32 %v104, 4.0
  %v169 = vmin.f32 %v105, 4.0
  %v170 = vmin.f32 %v106, 4.0
  %v171 = vmin.f32 %v107, 4.0
  %v172 = vmin.f32 %v108, 4.0
  %v173 = vmin.f32 %v109, 4.0
  %v174 = vmin.f32 %v110, 4.0
  %v175 = vmin.f32 %v111, 4.0
  %v176 = vmin.f32 %v112, 4.0
  %v177 = vmin.f32 %v113, 4.0
  %v178 = vmin.f32 %v114, 4.0
  %v179 = vmin.f32 %v115, 4.0
  %v180 = vmin.f32 %v116, 4.0
  %v181 = vmin.f32 %v117, 4.0
  %v182 = vmin.f32 %v118, 4.0
  %v183 = vmin.f32 %v119, 4.0
  %v184 = vmin.f32 %v120, 4.0
  %v185 = vmin.f32 %v121, 4.0
  %v186 = vmin.f32 %v122, 4.0
  %v187 = vmin.f32 %v123, 4.0
  %v188 = vmin.f32 %v124, 4.0
  %v189 = vmin.f32 %v125, 4.0
  %v190 = vmin.f32 %v126, 4.0
  %v191 = vmin.f32 %v127, 4.0
  %v192 = vmin.f32 %v128, 4.0
  %v193 = vmin.f32 %v129, 4.0
  %v194 = vmin.f32 %v130, 4.0
  %v195 = vmin.f32 %v131, 4.0
  %v196 = vmin.f32 %v132, 4.0
  %v197 = vmin.f32 %v133, 4.0
  %v198 = vmin.f32 %v134, 4.0
  %v199 = vmin.f32 %v135, 4.0
  %v200 = vmin.f32 %v136, 4.0
  %v201 = vmin.f32 %v137, 4.0
  %v202 = vmin.f32 %v138, 4.0
  %v203 = vmin.f32 %v139, 4.0
  %v204 = vmin.f32 %v140, 4.0
  %v205 = vmin.f32 %v141, 4.0
  %v206 = vmin.f32 %v142, 4.0
  %v207 = vmin.f32 %v143, 4.0
  %v208 = vmin.f32 %v144, 4.0
  %v209 = vmin.f32 %v145, 4.0
  %v210 = vround.ne.pseudo %v146
  %v211 = vround.ne.pseudo %v147
  %v212 = vround.ne.pseudo %v148
  %v213 = vround.ne.pseudo %v149
  %v214 = vround.ne.pseudo %v150
  %v215 = vround.ne.pseudo %v151
  %v216 = vround.ne.pseudo %v152
  %v217 = vround.ne.pseudo %v153
  %v218 = vround.ne.pseudo %v154
  %v219 = vround.ne.pseudo %v155
  %v220 = vround.ne.pseudo %v156
  %v221 = vround.ne.pseudo %v157
  %v222 = vround.ne.pseudo %v158
  %v223 = vround.ne.pseudo %v159
  %v224 = vround.ne.pseudo %v160
  %v225 = vround.ne.pseudo %v161
  %v226 = vround.ne.pseudo %v162
  %v227 = vround.ne.pseudo %v163
  %v228 = vround.ne.pseudo %v164
  %v229 = vround.ne.pseudo %v165
  %v230 = vround.ne.pseudo %v166
  %v231 = vround.ne.pseudo %v167
  %v232 = vround.ne.pseudo %v168
  %v233 = vround.ne.pseudo %v169
  %v234 = vround.ne.pseudo %v170
  %v235 = vround.ne.pseudo %v171
  %v236 = vround.ne.pseudo %v172
  %v237 = vround.ne.pseudo %v173
  %v238 = vround.ne.pseudo %v174
  %v239 = vround.ne.pseudo %v175
  %v240 = vround.ne.pseudo %v176
  %v241 = vround.ne.pseudo %v177
  %v242 = vround.ne.pseudo %v178
  %v243 = vround.ne.pseudo %v179
  %v244 = vround.ne.pseudo %v180
  %v245 = vround.ne.pseudo %v181
  %v246 = vround.ne.pseudo %v182
  %v247 = vround.ne.pseudo %v183
  %v248 = vround.ne.pseudo %v184
  %v249 = vround.ne.pseudo %v185
  %v250 = vround.ne.pseudo %v186
  %v251 = vround.ne.pseudo %v187
  %v252 = vround.ne.pseudo %v188
  %v253 = vround.ne.pseudo %v189
  %v254 = vround.ne.pseudo %v190
  %v255 = vround.ne.pseudo %v191
  %v256 = vround.ne.pseudo %v192
  %v257 = vround.ne.pseudo %v193
  %v258 = vround.ne.pseudo %v194
  %v259 = vround.ne.pseudo %v195
  %v260 = vround.ne.pseudo %v196
  %v261 = vround.ne.pseudo %v197
  %v262 = vround.ne.pseudo %v198
  %v263 = vround.ne.pseudo %v199
  %v264 = vround.ne.pseudo %v200
  %v265 = vround.ne.pseudo %v201
  %v266 = vround.ne.pseudo %v202
  %v267 = vround.ne.pseudo %v203
  %v268 = vround.ne.pseudo %v204
  %v269 = vround.ne.pseudo %v205
  %v270 = vround.ne.pseudo %v206
  %v271 = vround.ne.pseudo %v207
  %v272 = vround.ne.pseudo %v208
  %v273 = vround.ne.pseudo %v209
  %v274 = vmul.f32 %v210, 0.25
  %v275 = vmul.f32 %v211, 0.25
  %v276 = vmul.f32 %v212, 0.25
  %v277 = vmul.f32 %v213, 0.25
  %v278 = vmul.f32 %v214, 0.25
  %v279 = vmul.f32 %v215, 0.25
  %v280 = vmul.f32 %v216, 0.25
  %v281 = vmul.f32 %v217, 0.25
  %v282 = vmul.f32 %v218, 0.25
  %v283 = vmul.f32 %v219, 0.25
  %v284 = vmul.f32 %v220, 0.25
  %v285 = vmul.f32 %v221, 0.25
  %v286 = vmul.f32 %v222, 0.25
  %v287 = vmul.f32 %v223, 0.25
  %v288 = vmul.f32 %v224, 0.25
  %v289 = vmul.f32 %v225, 0.25
  %v290 = vmul.f32 %v226, 0.25
  %v291 = vmul.f32 %v227, 0.25
  %v292 = vmul.f32 %v228, 0.25
  %v293 = vmul.f32 %v229, 0.25
  %v294 = vmul.f32 %v230, 0.25
  %v295 = vmul.f32 %v231, 0.25
  %v296 = vmul.f32 %v232, 0.25
  %v297 = vmul.f32 %v233, 0.25
  %v298 = vmul.f32 %v234, 0.25
  %v299 = vmul.f32 %v235, 0.25
  %v300 = vmul.f32 %v236, 0.25
  %v301 = vmul.f32 %v237, 0.25
  %v302 = vmul.f32 %v238, 0.25
  %v303 = vmul.f32 %v239, 0.25
  %v304 = vmul.f32 %v240, 0.25
  %v305 = vmul.f32 %v241, 0.25
  %v306 = vmul.f32 %v242, 0.25
  %v307 = vmul.f32 %v243, 0.25
  %v308 = vmul.f32 %v244, 0.25
  %v309 = vmul.f32 %v245, 0.25
  %v310 = vmul.f32 %v246, 0.25
  %v311 = vmul.f32 %v247, 0.25
  %v312 = vmul.f32 %v248, 0.25
  %v313 = vmul.f32 %v249, 0.25
  %v314 = vmul.f32 %v250, 0.25
  %v315 = vmul.f32 %v251, 0.25
  %v316 = vmul.f32 %v252, 0.25
  %v317 = vmul.f32 %v253, 0.25
  %v318 = vmul.f32 %v254, 0.25
  %v319 = vmul.f32 %v255, 0.25
  %v320 = vmul.f32 %v256, 0.25
  %v321 = vmul.f32 %v257, 0.25
  %v322 = vmul.f32 %v258, 0.25
  %v323 = vmul.f32 %v259, 0.25
  %v324 = vmul.f32 %v260, 0.25
  %v325 = vmul.f32 %v261, 0.25
  %v326 = vmul.f32 %v262, 0.25
  %v327 = vmul.f32 %v263, 0.25
  %v328 = vmul.f32 %v264, 0.25
  %v329 = vmul.f32 %v265, 0.25
  %v330 = vmul.f32 %v266, 0.25
  %v331 = vmul.f32 %v267, 0.25
  %v332 = vmul.f32 %v268, 0.25
  %v333 = vmul.f32 %v269, 0.25
  %v334 = vmul.f32 %v270, 0.25
  %v335 = vmul.f32 %v271, 0.25
  %v336 = vmul.f32 %v272, 0.25
  %v337 = vmul.f32 %v273, 0.25
  %v338 = vpack.c.bf16 %v275, %v274
  %v339 = vpack.c.bf16 %v277, %v276
  %v340 = vpack.c.bf16 %v279, %v278
  %v341 = vpack.c.bf16 %v281, %v280
  %v342 = vpack.c.bf16 %v283, %v282
  %v343 = vpack.c.bf16 %v285, %v284
  %v344 = vpack.c.bf16 %v287, %v286
  %v345 = vpack.c.bf16 %v289, %v288
  %v346 = vpack.c.bf16 %v291, %v290
  %v347 = vpack.c.bf16 %v293, %v292
  %v348 = vpack.c.bf16 %v295, %v294
  %v349 = vpack.c.bf16 %v297, %v296
  %v350 = vpack.c.bf16 %v299, %v298
  %v351 = vpack.c.bf16 %v301, %v300
  %v352 = vpack.c.bf16 %v303, %v302
  %v353 = vpack.c.bf16 %v305, %v304
  %v354 = vpack.c.bf16 %v307, %v306
  %v355 = vpack.c.bf16 %v309, %v308
  %v356 = vpack.c.bf16 %v311, %v310
  %v357 = vpack.c.bf16 %v313, %v312
  %v358 = vpack.c.bf16 %v315, %v314
  %v359 = vpack.c.bf16 %v317, %v316
  %v360 = vpack.c.bf16 %v319, %v318
  %v361 = vpack.c.bf16 %v321, %v320
  %v362 = vpack.c.bf16 %v323, %v322
  %v363 = vpack.c.bf16 %v325, %v324
  %v364 = vpack.c.bf16 %v327, %v326
  %v365 = vpack.c.bf16 %v329, %v328
  %v366 = vpack.c.bf16 %v331, %v330
  %v367 = vpack.c.bf16 %v333, %v332
  %v368 = vpack.c.bf16 %v335, %v334
  %v369 = vpack.c.bf16 %v337, %v336
  %v370 = vld [vmem:[%s1] sm:$0xf]
  %v371 = vld [vmem:[%s1 + $0x4] sm:$0xf]
  %v374 = vunpack.c.l.b16 %v370
  %v375 = vunpack.c.l.b16 %v371
  %v376 = vpack.c.b16 %v375, %v374
  %vm378 = vcmask 130048
  %v380 = vsel %vm378, %v338, 0
  %v383 = vsel %vm378, %v339, 0
  %v386 = vsel %vm378, %v340, 0
  %v389 = vsel %vm378, %v341, 0
  %v392 = vsel %vm378, %v342, 0
  %v395 = vsel %vm378, %v343, 0
  %v398 = vsel %vm378, %v344, 0
  %v401 = vsel %vm378, %v345, 0
  %v404 = vsel %vm378, %v346, 0
  %v407 = vsel %vm378, %v347, 0
  %v410 = vsel %vm378, %v348, 0
  %v413 = vsel %vm378, %v349, 0
  %v416 = vsel %vm378, %v350, 0
  %v419 = vsel %vm378, %v351, 0
  %v422 = vsel %vm378, %v352, 0
  %v425 = vsel %vm378, %v353, 0
  %v428 = vsel %vm378, %v354, 0
  %v431 = vsel %vm378, %v355, 0
  %v434 = vsel %vm378, %v356, 0
  %v437 = vsel %vm378, %v357, 0
  %v440 = vsel %vm378, %v358, 0
  %v443 = vsel %vm378, %v359, 0
  %v446 = vsel %vm378, %v360, 0
  %v449 = vsel %vm378, %v361, 0
  %v452 = vsel %vm378, %v362, 0
  %v455 = vsel %vm378, %v363, 0
  %v458 = vsel %vm378, %v364, 0
  %v461 = vsel %vm378, %v365, 0
  %v464 = vsel %vm378, %v366, 0
  %v467 = vsel %vm378, %v367, 0
  %v470 = vsel %vm378, %v368, 0
  %v473 = vsel %vm378, %v369, 0
  %475 = vmatprep.subr.bf16.mxu0 0
  %476 = vmatpush1.bf16.msra.mxu0 %v376
  %477 = vmatprep.subr.bf16.mxu0 0
  %478 = vmatpush1.bf16.msra.mxu0 0
  %479 = vmatprep.subr.bf16.mxu0 0
  %480 = vmatpush1.bf16.msra.mxu0 0
  %481 = vmatprep.subr.bf16.mxu0 0
  %482 = vmatpush1.bf16.msra.mxu0 0
  %483 = vmatprep.subr.bf16.mxu0 0
  %484 = vmatpush1.bf16.msra.mxu0 0
  %485 = vmatprep.subr.bf16.mxu0 0
  %486 = vmatpush1.bf16.msra.mxu0 0
  %487 = vmatprep.subr.bf16.mxu0 0
  %488 = vmatpush1.bf16.msra.mxu0 0
  %489 = vmatprep.subr.bf16.mxu0 0
  %490 = vmatpush1.bf16.msra.mxu0 0
  %491 = vmatprep.subr.bf16.mxu0 0
  %492 = vmatpush1.bf16.msra.mxu0 0
  %493 = vmatprep.subr.bf16.mxu0 0
  %494 = vmatpush1.bf16.msra.mxu0 0
  %495 = vmatprep.subr.bf16.mxu0 0
  %496 = vmatpush1.bf16.msra.mxu0 0
  %497 = vmatprep.subr.bf16.mxu0 0
  %498 = vmatpush1.bf16.msra.mxu0 0
  %499 = vmatprep.subr.bf16.mxu0 0
  %500 = vmatpush1.bf16.msra.mxu0 0
  %501 = vmatprep.subr.bf16.mxu0 0
  %502 = vmatpush1.bf16.msra.mxu0 0
  %503 = vmatprep.subr.bf16.mxu0 0
  %504 = vmatpush1.bf16.msra.mxu0 0
  %505 = vmatprep.subr.bf16.mxu0 0
  %506 = vmatpush1.bf16.msra.mxu0 0
  %507 = vmatprep.mubr.bf16.mxu0 0
  %508 = vmatmul.mubr.bf16.gmra.mrb[0].mxu0 %v380
  %v509 = vpop.f32.mrb[0].mxu0
  %v510 = vadd.f32 0.0, %v509
  %v511 = vpop.f32.mrb[0].mxu0
  %v512 = vpop.f32.mrb[0].mxu0
  %v513 = vadd.f32 0.0, %v512
  %v514 = vpop.f32.mrb[0].mxu0
  %515 = vmatprep.mubr.bf16.mxu0 0
  %516 = vmatmul.mubr.bf16.gmra.mrb[0].mxu0 %v383
  %v517 = vpop.f32.mrb[0].mxu0
  %v518 = vadd.f32 0.0, %v517
  %v519 = vpop.f32.mrb[0].mxu0
  %v520 = vpop.f32.mrb[0].mxu0
  %v521 = vadd.f32 0.0, %v520
  %v522 = vpop.f32.mrb[0].mxu0
  %523 = vmatprep.mubr.bf16.mxu0 0
  %524 = vmatmul.mubr.bf16.gmra.mrb[0].mxu0 %v386
  %v525 = vpop.f32.mrb[0].mxu0
  %v526 = vadd.f32 0.0, %v525
  %v527 = vpop.f32.mrb[0].mxu0
  %v528 = vpop.f32.mrb[0].mxu0
  %v529 = vadd.f32 0.0, %v528
  %v530 = vpop.f32.mrb[0].mxu0
  %531 = vmatprep.mubr.bf16.mxu0 0
  %532 = vmatmul.mubr.bf16.gmra.mrb[0].mxu0 %v389
  %v533 = vpop.f32.mrb[0].mxu0
  %v534 = vadd.f32 0.0, %v533
  %v535 = vpop.f32.mrb[0].mxu0
  %v536 = vpop.f32.mrb[0].mxu0
  %v537 = vadd.f32 0.0, %v536
  %v538 = vpop.f32.mrb[0].mxu0
  %539 = vmatprep.mubr.bf16.mxu0 0
  %540 = vmatmul.mubr.bf16.gmra.mrb[0].mxu0 %v392
  %v541 = vpop.f32.mrb[0].mxu0
  %v542 = vadd.f32 0.0, %v541
  %v543 = vpop.f32.mrb[0].mxu0
  %v544 = vpop.f32.mrb[0].mxu0
  %v545 = vadd.f32 0.0, %v544
  %v546 = vpop.f32.mrb[0].mxu0
  %547 = vmatprep.mubr.bf16.mxu0 0
  %548 = vmatmul.mubr.bf16.gmra.mrb[0].mxu0 %v395
  %v549 = vpop.f32.mrb[0].mxu0
  %v550 = vadd.f32 0.0, %v549
  %v551 = vpop.f32.mrb[0].mxu0
  %v552 = vpop.f32.mrb[0].mxu0
  %v553 = vadd.f32 0.0, %v552
  %v554 = vpop.f32.mrb[0].mxu0
  %555 = vmatprep.mubr.bf16.mxu0 0
  %556 = vmatmul.mubr.bf16.gmra.mrb[0].mxu0 %v398
  %v557 = vpop.f32.mrb[0].mxu0
  %v558 = vadd.f32 0.0, %v557
  %v559 = vpop.f32.mrb[0].mxu0
  %v560 = vpop.f32.mrb[0].mxu0
  %v561 = vadd.f32 0.0, %v560
  %v562 = vpop.f32.mrb[0].mxu0
  %563 = vmatprep.mubr.bf16.mxu0 0
  %564 = vmatmul.mubr.bf16.gmra.mrb[0].mxu0 %v401
  %v565 = vpop.f32.mrb[0].mxu0
  %v566 = vadd.f32 0.0, %v565
  %v567 = vpop.f32.mrb[0].mxu0
  %v568 = vpop.f32.mrb[0].mxu0
  %v569 = vadd.f32 0.0, %v568
  %v570 = vpop.f32.mrb[0].mxu0
  %571 = vmatprep.mubr.bf16.mxu0 0
  %572 = vmatmul.mubr.bf16.gmra.mrb[0].mxu0 %v404
  %v573 = vpop.f32.mrb[0].mxu0
  %v574 = vadd.f32 0.0, %v573
  %v575 = vpop.f32.mrb[0].mxu0
  %v576 = vpop.f32.mrb[0].mxu0
  %v577 = vadd.f32 0.0, %v576
  %v578 = vpop.f32.mrb[0].mxu0
  %579 = vmatprep.mubr.bf16.mxu0 0
  %580 = vmatmul.mubr.bf16.gmra.mrb[0].mxu0 %v407
  %v581 = vpop.f32.mrb[0].mxu0
  %v582 = vadd.f32 0.0, %v581
  %v583 = vpop.f32.mrb[0].mxu0
  %v584 = vpop.f32.mrb[0].mxu0
  %v585 = vadd.f32 0.0, %v584
  %v586 = vpop.f32.mrb[0].mxu0
  %587 = vmatprep.mubr.bf16.mxu0 0
  %588 = vmatmul.mubr.bf16.gmra.mrb[0].mxu0 %v410
  %v589 = vpop.f32.mrb[0].mxu0
  %v590 = vadd.f32 0.0, %v589
  %v591 = vpop.f32.mrb[0].mxu0
  %v592 = vpop.f32.mrb[0].mxu0
  %v593 = vadd.f32 0.0, %v592
  %v594 = vpop.f32.mrb[0].mxu0
  %595 = vmatprep.mubr.bf16.mxu0 0
  %596 = vmatmul.mubr.bf16.gmra.mrb[0].mxu0 %v413
  %v597 = vpop.f32.mrb[0].mxu0
  %v598 = vadd.f32 0.0, %v597
  %v599 = vpop.f32.mrb[0].mxu0
  %v600 = vpop.f32.mrb[0].mxu0
  %v601 = vadd.f32 0.0, %v600
  %v602 = vpop.f32.mrb[0].mxu0
  %603 = vmatprep.mubr.bf16.mxu0 0
  %604 = vmatmul.mubr.bf16.gmra.mrb[0].mxu0 %v416
  %v605 = vpop.f32.mrb[0].mxu0
  %v606 = vadd.f32 0.0, %v605
  %v607 = vpop.f32.mrb[0].mxu0
  %v608 = vpop.f32.mrb[0].mxu0
  %v609 = vadd.f32 0.0, %v608
  %v610 = vpop.f32.mrb[0].mxu0
  %611 = vmatprep.mubr.bf16.mxu0 0
  %612 = vmatmul.mubr.bf16.gmra.mrb[0].mxu0 %v419
  %v613 = vpop.f32.mrb[0].mxu0
  %v614 = vadd.f32 0.0, %v613
  %v615 = vpop.f32.mrb[0].mxu0
  %v616 = vpop.f32.mrb[0].mxu0
  %v617 = vadd.f32 0.0, %v616
  %v618 = vpop.f32.mrb[0].mxu0
  %619 = vmatprep.mubr.bf16.mxu0 0
  %620 = vmatmul.mubr.bf16.gmra.mrb[0].mxu0 %v422
  %v621 = vpop.f32.mrb[0].mxu0
  %v622 = vadd.f32 0.0, %v621
  %v623 = vpop.f32.mrb[0].mxu0
  %v624 = vpop.f32.mrb[0].mxu0
  %v625 = vadd.f32 0.0, %v624
  %v626 = vpop.f32.mrb[0].mxu0
  %627 = vmatprep.mubr.bf16.mxu0 0
  %628 = vmatmul.mubr.bf16.gmra.mrb[0].mxu0 %v425
  %v629 = vpop.f32.mrb[0].mxu0
  %v630 = vadd.f32 0.0, %v629
  %v631 = vpop.f32.mrb[0].mxu0
  %v632 = vpop.f32.mrb[0].mxu0
  %v633 = vadd.f32 0.0, %v632
  %v634 = vpop.f32.mrb[0].mxu0
  %635 = vmatprep.mubr.bf16.mxu0 0
  %636 = vmatmul.mubr.bf16.gmra.mrb[0].mxu0 %v428
  %v637 = vpop.f32.mrb[0].mxu0
  %v638 = vadd.f32 0.0, %v637
  %v639 = vpop.f32.mrb[0].mxu0
  %v640 = vpop.f32.mrb[0].mxu0
  %v641 = vadd.f32 0.0, %v640
  %v642 = vpop.f32.mrb[0].mxu0
  %643 = vmatprep.mubr.bf16.mxu0 0
  %644 = vmatmul.mubr.bf16.gmra.mrb[0].mxu0 %v431
  %v645 = vpop.f32.mrb[0].mxu0
  %v646 = vadd.f32 0.0, %v645
  %v647 = vpop.f32.mrb[0].mxu0
  %v648 = vpop.f32.mrb[0].mxu0
  %v649 = vadd.f32 0.0, %v648
  %v650 = vpop.f32.mrb[0].mxu0
  %651 = vmatprep.mubr.bf16.mxu0 0
  %652 = vmatmul.mubr.bf16.gmra.mrb[0].mxu0 %v434
  %v653 = vpop.f32.mrb[0].mxu0
  %v654 = vadd.f32 0.0, %v653
  %v655 = vpop.f32.mrb[0].mxu0
  %v656 = vpop.f32.mrb[0].mxu0
  %v657 = vadd.f32 0.0, %v656
  %v658 = vpop.f32.mrb[0].mxu0
  %659 = vmatprep.mubr.bf16.mxu0 0
  %660 = vmatmul.mubr.bf16.gmra.mrb[0].mxu0 %v437
  %v661 = vpop.f32.mrb[0].mxu0
  %v662 = vadd.f32 0.0, %v661
  %v663 = vpop.f32.mrb[0].mxu0
  %v664 = vpop.f32.mrb[0].mxu0
  %v665 = vadd.f32 0.0, %v664
  %v666 = vpop.f32.mrb[0].mxu0
  %667 = vmatprep.mubr.bf16.mxu0 0
  %668 = vmatmul.mubr.bf16.gmra.mrb[0].mxu0 %v440
  %v669 = vpop.f32.mrb[0].mxu0
  %v670 = vadd.f32 0.0, %v669
  %v671 = vpop.f32.mrb[0].mxu0
  %v672 = vpop.f32.mrb[0].mxu0
  %v673 = vadd.f32 0.0, %v672
  %v674 = vpop.f32.mrb[0].mxu0
  %675 = vmatprep.mubr.bf16.mxu0 0
  %676 = vmatmul.mubr.bf16.gmra.mrb[0].mxu0 %v443
  %v677 = vpop.f32.mrb[0].mxu0
  %v678 = vadd.f32 0.0, %v677
  %v679 = vpop.f32.mrb[0].mxu0
  %v680 = vpop.f32.mrb[0].mxu0
  %v681 = vadd.f32 0.0, %v680
  %v682 = vpop.f32.mrb[0].mxu0
  %683 = vmatprep.mubr.bf16.mxu0 0
  %684 = vmatmul.mubr.bf16.gmra.mrb[0].mxu0 %v446
  %v685 = vpop.f32.mrb[0].mxu0
  %v686 = vadd.f32 0.0, %v685
  %v687 = vpop.f32.mrb[0].mxu0
  %v688 = vpop.f32.mrb[0].mxu0
  %v689 = vadd.f32 0.0, %v688
  %v690 = vpop.f32.mrb[0].mxu0
  %691 = vmatprep.mubr.bf16.mxu0 0
  %692 = vmatmul.mubr.bf16.gmra.mrb[0].mxu0 %v449
  %v693 = vpop.f32.mrb[0].mxu0
  %v694 = vadd.f32 0.0, %v693
  %v695 = vpop.f32.mrb[0].mxu0
  %v696 = vpop.f32.mrb[0].mxu0
  %v697 = vadd.f32 0.0, %v696
  %v698 = vpop.f32.mrb[0].mxu0
  %699 = vmatprep.mubr.bf16.mxu0 0
  %700 = vmatmul.mubr.bf16.gmra.mrb[0].mxu0 %v452
  %v701 = vpop.f32.mrb[0].mxu0
  %v702 = vadd.f32 0.0, %v701
  %v703 = vpop.f32.mrb[0].mxu0
  %v704 = vpop.f32.mrb[0].mxu0
  %v705 = vadd.f32 0.0, %v704
  %v706 = vpop.f32.mrb[0].mxu0
  %707 = vmatprep.mubr.bf16.mxu0 0
  %708 = vmatmul.mubr.bf16.gmra.mrb[0].mxu0 %v455
  %v709 = vpop.f32.mrb[0].mxu0
  %v710 = vadd.f32 0.0, %v709
  %v711 = vpop.f32.mrb[0].mxu0
  %v712 = vpop.f32.mrb[0].mxu0
  %v713 = vadd.f32 0.0, %v712
  %v714 = vpop.f32.mrb[0].mxu0
  %715 = vmatprep.mubr.bf16.mxu0 0
  %716 = vmatmul.mubr.bf16.gmra.mrb[0].mxu0 %v458
  %v717 = vpop.f32.mrb[0].mxu0
  %v718 = vadd.f32 0.0, %v717
  %v719 = vpop.f32.mrb[0].mxu0
  %v720 = vpop.f32.mrb[0].mxu0
  %v721 = vadd.f32 0.0, %v720
  %v722 = vpop.f32.mrb[0].mxu0
  %723 = vmatprep.mubr.bf16.mxu0 0
  %724 = vmatmul.mubr.bf16.gmra.mrb[0].mxu0 %v461
  %v725 = vpop.f32.mrb[0].mxu0
  %v726 = vadd.f32 0.0, %v725
  %v727 = vpop.f32.mrb[0].mxu0
  %v728 = vpop.f32.mrb[0].mxu0
  %v729 = vadd.f32 0.0, %v728
  %v730 = vpop.f32.mrb[0].mxu0
  %731 = vmatprep.mubr.bf16.mxu0 0
  %732 = vmatmul.mubr.bf16.gmra.mrb[0].mxu0 %v464
  %v733 = vpop.f32.mrb[0].mxu0
  %v734 = vadd.f32 0.0, %v733
  %v735 = vpop.f32.mrb[0].mxu0
  %v736 = vpop.f32.mrb[0].mxu0
  %v737 = vadd.f32 0.0, %v736
  %v738 = vpop.f32.mrb[0].mxu0
  %739 = vmatprep.mubr.bf16.mxu0 0
  %740 = vmatmul.mubr.bf16.gmra.mrb[0].mxu0 %v467
  %v741 = vpop.f32.mrb[0].mxu0
  %v742 = vadd.f32 0.0, %v741
  %v743 = vpop.f32.mrb[0].mxu0
  %v744 = vpop.f32.mrb[0].mxu0
  %v745 = vadd.f32 0.0, %v744
  %v746 = vpop.f32.mrb[0].mxu0
  %747 = vmatprep.mubr.bf16.mxu0 0
  %748 = vmatmul.mubr.bf16.gmra.mrb[0].mxu0 %v470
  %v749 = vpop.f32.mrb[0].mxu0
  %v750 = vadd.f32 0.0, %v749
  %v751 = vpop.f32.mrb[0].mxu0
  %v752 = vpop.f32.mrb[0].mxu0
  %v753 = vadd.f32 0.0, %v752
  %v754 = vpop.f32.mrb[0].mxu0
  %755 = vmatprep.mubr.bf16.mxu0 0
  %756 = vmatmul.mubr.bf16.gmra.mrb[0].mxu0 %v473
  %v757 = vpop.f32.mrb[0].mxu0
  %v758 = vadd.f32 0.0, %v757
  %v759 = vpop.f32.mrb[0].mxu0
  %v760 = vpop.f32.mrb[0].mxu0
  %v761 = vadd.f32 0.0, %v760
  %v762 = vpop.f32.mrb[0].mxu0
  %763 = vdwg.mxu0
  %v764 = vld [vmem:[%s2] sm:$0x1]
  %v766 = vlaneseq
  %v767 = vshrl.u32 %v766, 7
  %v768 = vsub.s32 0, %v767
  %v769 = vrot.slane %v764, %v768
  %v771 = vmul.f32 %v510, %v769
  %v772 = vmul.f32 %v513, %v769
  %v773 = vmul.f32 %v518, %v769
  %v774 = vmul.f32 %v521, %v769
  %v775 = vmul.f32 %v526, %v769
  %v776 = vmul.f32 %v529, %v769
  %v777 = vmul.f32 %v534, %v769
  %v778 = vmul.f32 %v537, %v769
  %v779 = vmul.f32 %v542, %v769
  %v780 = vmul.f32 %v545, %v769
  %v781 = vmul.f32 %v550, %v769
  %v782 = vmul.f32 %v553, %v769
  %v783 = vmul.f32 %v558, %v769
  %v784 = vmul.f32 %v561, %v769
  %v785 = vmul.f32 %v566, %v769
  %v786 = vmul.f32 %v569, %v769
  %v787 = vmul.f32 %v574, %v769
  %v788 = vmul.f32 %v577, %v769
  %v789 = vmul.f32 %v582, %v769
  %v790 = vmul.f32 %v585, %v769
  %v791 = vmul.f32 %v590, %v769
  %v792 = vmul.f32 %v593, %v769
  %v793 = vmul.f32 %v598, %v769
  %v794 = vmul.f32 %v601, %v769
  %v795 = vmul.f32 %v606, %v769
  %v796 = vmul.f32 %v609, %v769
  %v797 = vmul.f32 %v614, %v769
  %v798 = vmul.f32 %v617, %v769
  %v799 = vmul.f32 %v622, %v769
  %v800 = vmul.f32 %v625, %v769
  %v801 = vmul.f32 %v630, %v769
  %v802 = vmul.f32 %v633, %v769
  %v803 = vmul.f32 %v638, %v769
  %v804 = vmul.f32 %v641, %v769
  %v805 = vmul.f32 %v646, %v769
  %v806 = vmul.f32 %v649, %v769
  %v807 = vmul.f32 %v654, %v769
  %v808 = vmul.f32 %v657, %v769
  %v809 = vmul.f32 %v662, %v769
  %v810 = vmul.f32 %v665, %v769
  %v811 = vmul.f32 %v670, %v769
  %v812 = vmul.f32 %v673, %v769
  %v813 = vmul.f32 %v678, %v769
  %v814 = vmul.f32 %v681, %v769
  %v815 = vmul.f32 %v686, %v769
  %v816 = vmul.f32 %v689, %v769
  %v817 = vmul.f32 %v694, %v769
  %v818 = vmul.f32 %v697, %v769
  %v819 = vmul.f32 %v702, %v769
  %v820 = vmul.f32 %v705, %v769
  %v821 = vmul.f32 %v710, %v769
  %v822 = vmul.f32 %v713, %v769
  %v823 = vmul.f32 %v718, %v769
  %v824 = vmul.f32 %v721, %v769
  %v825 = vmul.f32 %v726, %v769
  %v826 = vmul.f32 %v729, %v769
  %v827 = vmul.f32 %v734, %v769
  %v828 = vmul.f32 %v737, %v769
  %v829 = vmul.f32 %v742, %v769
  %v830 = vmul.f32 %v745, %v769
  %v831 = vmul.f32 %v750, %v769
  %v832 = vmul.f32 %v753, %v769
  %v833 = vmul.f32 %v758, %v769
  %v834 = vmul.f32 %v761, %v769
  %v835 = vld [vmem:[%s3] sm:$0x1]
  %v837 = vlaneseq
  %v838 = vshrl.u32 %v837, 7
  %v839 = vsub.s32 0, %v838
  %v840 = vrot.slane %v835, %v839
  %v842 = vadd.f32 %v771, %v840
  %v843 = vadd.f32 %v772, %v840
  %v844 = vadd.f32 %v773, %v840
  %v845 = vadd.f32 %v774, %v840
  %v846 = vadd.f32 %v775, %v840
  %v847 = vadd.f32 %v776, %v840
  %v848 = vadd.f32 %v777, %v840
  %v849 = vadd.f32 %v778, %v840
  %v850 = vadd.f32 %v779, %v840
  %v851 = vadd.f32 %v780, %v840
  %v852 = vadd.f32 %v781, %v840
  %v853 = vadd.f32 %v782, %v840
  %v854 = vadd.f32 %v783, %v840
  %v855 = vadd.f32 %v784, %v840
  %v856 = vadd.f32 %v785, %v840
  %v857 = vadd.f32 %v786, %v840
  %v858 = vadd.f32 %v787, %v840
  %v859 = vadd.f32 %v788, %v840
  %v860 = vadd.f32 %v789, %v840
  %v861 = vadd.f32 %v790, %v840
  %v862 = vadd.f32 %v791, %v840
  %v863 = vadd.f32 %v792, %v840
  %v864 = vadd.f32 %v793, %v840
  %v865 = vadd.f32 %v794, %v840
  %v866 = vadd.f32 %v795, %v840
  %v867 = vadd.f32 %v796, %v840
  %v868 = vadd.f32 %v797, %v840
  %v869 = vadd.f32 %v798, %v840
  %v870 = vadd.f32 %v799, %v840
  %v871 = vadd.f32 %v800, %v840
  %v872 = vadd.f32 %v801, %v840
  %v873 = vadd.f32 %v802, %v840
  %v874 = vadd.f32 %v803, %v840
  %v875 = vadd.f32 %v804, %v840
  %v876 = vadd.f32 %v805, %v840
  %v877 = vadd.f32 %v806, %v840
  %v878 = vadd.f32 %v807, %v840
  %v879 = vadd.f32 %v808, %v840
  %v880 = vadd.f32 %v809, %v840
  %v881 = vadd.f32 %v810, %v840
  %v882 = vadd.f32 %v811, %v840
  %v883 = vadd.f32 %v812, %v840
  %v884 = vadd.f32 %v813, %v840
  %v885 = vadd.f32 %v814, %v840
  %v886 = vadd.f32 %v815, %v840
  %v887 = vadd.f32 %v816, %v840
  %v888 = vadd.f32 %v817, %v840
  %v889 = vadd.f32 %v818, %v840
  %v890 = vadd.f32 %v819, %v840
  %v891 = vadd.f32 %v820, %v840
  %v892 = vadd.f32 %v821, %v840
  %v893 = vadd.f32 %v822, %v840
  %v894 = vadd.f32 %v823, %v840
  %v895 = vadd.f32 %v824, %v840
  %v896 = vadd.f32 %v825, %v840
  %v897 = vadd.f32 %v826, %v840
  %v898 = vadd.f32 %v827, %v840
  %v899 = vadd.f32 %v828, %v840
  %v900 = vadd.f32 %v829, %v840
  %v901 = vadd.f32 %v830, %v840
  %v902 = vadd.f32 %v831, %v840
  %v903 = vadd.f32 %v832, %v840
  %v904 = vadd.f32 %v833, %v840
  %v905 = vadd.f32 %v834, %v840
  %vm906 = vcmask 261120
  %907 = vst.msk [vmem:[%s4] sm:$0xff] %vm906, %v842
  %908 = vst.msk [vmem:[%s4 + $0x8] sm:$0xff] %vm906, %v843
  %909 = vst.msk [vmem:[%s4 + $0x10] sm:$0xff] %vm906, %v844
  %910 = vst.msk [vmem:[%s4 + $0x18] sm:$0xff] %vm906, %v845
  %911 = vst.msk [vmem:[%s4 + $0x20] sm:$0xff] %vm906, %v846
  %912 = vst.msk [vmem:[%s4 + $0x28] sm:$0xff] %vm906, %v847
  %913 = vst.msk [vmem:[%s4 + $0x30] sm:$0xff] %vm906, %v848
  %914 = vst.msk [vmem:[%s4 + $0x38] sm:$0xff] %vm906, %v849
  %915 = vst.msk [vmem:[%s4 + $0x40] sm:$0xff] %vm906, %v850
  %916 = vst.msk [vmem:[%s4 + $0x48] sm:$0xff] %vm906, %v851
  %917 = vst.msk [vmem:[%s4 + $0x50] sm:$0xff] %vm906, %v852
  %918 = vst.msk [vmem:[%s4 + $0x58] sm:$0xff] %vm906, %v853
  %919 = vst.msk [vmem:[%s4 + $0x60] sm:$0xff] %vm906, %v854
  %920 = vst.msk [vmem:[%s4 + $0x68] sm:$0xff] %vm906, %v855
  %921 = vst.msk [vmem:[%s4 + $0x70] sm:$0xff] %vm906, %v856
  %922 = vst.msk [vmem:[%s4 + $0x78] sm:$0xff] %vm906, %v857
  %923 = vst.msk [vmem:[%s4 + $0x80] sm:$0xff] %vm906, %v858
  %924 = vst.msk [vmem:[%s4 + $0x88] sm:$0xff] %vm906, %v859
  %925 = vst.msk [vmem:[%s4 + $0x90] sm:$0xff] %vm906, %v860
  %926 = vst.msk [vmem:[%s4 + $0x98] sm:$0xff] %vm906, %v861
  %927 = vst.msk [vmem:[%s4 + $0xa0] sm:$0xff] %vm906, %v862
  %928 = vst.msk [vmem:[%s4 + $0xa8] sm:$0xff] %vm906, %v863
  %929 = vst.msk [vmem:[%s4 + $0xb0] sm:$0xff] %vm906, %v864
  %930 = vst.msk [vmem:[%s4 + $0xb8] sm:$0xff] %vm906, %v865
  %931 = vst.msk [vmem:[%s4 + $0xc0] sm:$0xff] %vm906, %v866
  %932 = vst.msk [vmem:[%s4 + $0xc8] sm:$0xff] %vm906, %v867
  %933 = vst.msk [vmem:[%s4 + $0xd0] sm:$0xff] %vm906, %v868
  %934 = vst.msk [vmem:[%s4 + $0xd8] sm:$0xff] %vm906, %v869
  %935 = vst.msk [vmem:[%s4 + $0xe0] sm:$0xff] %vm906, %v870
  %936 = vst.msk [vmem:[%s4 + $0xe8] sm:$0xff] %vm906, %v871
  %937 = vst.msk [vmem:[%s4 + $0xf0] sm:$0xff] %vm906, %v872
  %938 = vst.msk [vmem:[%s4 + $0xf8] sm:$0xff] %vm906, %v873
  %939 = vst.msk [vmem:[%s4 + $0x100] sm:$0xff] %vm906, %v874
  %940 = vst.msk [vmem:[%s4 + $0x108] sm:$0xff] %vm906, %v875
  %941 = vst.msk [vmem:[%s4 + $0x110] sm:$0xff] %vm906, %v876
  %942 = vst.msk [vmem:[%s4 + $0x118] sm:$0xff] %vm906, %v877
  %943 = vst.msk [vmem:[%s4 + $0x120] sm:$0xff] %vm906, %v878
  %944 = vst.msk [vmem:[%s4 + $0x128] sm:$0xff] %vm906, %v879
  %945 = vst.msk [vmem:[%s4 + $0x130] sm:$0xff] %vm906, %v880
  %946 = vst.msk [vmem:[%s4 + $0x138] sm:$0xff] %vm906, %v881
  %947 = vst.msk [vmem:[%s4 + $0x140] sm:$0xff] %vm906, %v882
  %948 = vst.msk [vmem:[%s4 + $0x148] sm:$0xff] %vm906, %v883
  %949 = vst.msk [vmem:[%s4 + $0x150] sm:$0xff] %vm906, %v884
  %950 = vst.msk [vmem:[%s4 + $0x158] sm:$0xff] %vm906, %v885
  %951 = vst.msk [vmem:[%s4 + $0x160] sm:$0xff] %vm906, %v886
  %952 = vst.msk [vmem:[%s4 + $0x168] sm:$0xff] %vm906, %v887
  %953 = vst.msk [vmem:[%s4 + $0x170] sm:$0xff] %vm906, %v888
  %954 = vst.msk [vmem:[%s4 + $0x178] sm:$0xff] %vm906, %v889
  %955 = vst.msk [vmem:[%s4 + $0x180] sm:$0xff] %vm906, %v890
  %956 = vst.msk [vmem:[%s4 + $0x188] sm:$0xff] %vm906, %v891
  %957 = vst.msk [vmem:[%s4 + $0x190] sm:$0xff] %vm906, %v892
  %958 = vst.msk [vmem:[%s4 + $0x198] sm:$0xff] %vm906, %v893
  %959 = vst.msk [vmem:[%s4 + $0x1a0] sm:$0xff] %vm906, %v894
  %960 = vst.msk [vmem:[%s4 + $0x1a8] sm:$0xff] %vm906, %v895
  %961 = vst.msk [vmem:[%s4 + $0x1b0] sm:$0xff] %vm906, %v896
  %962 = vst.msk [vmem:[%s4 + $0x1b8] sm:$0xff] %vm906, %v897
  %963 = vst.msk [vmem:[%s4 + $0x1c0] sm:$0xff] %vm906, %v898
  %964 = vst.msk [vmem:[%s4 + $0x1c8] sm:$0xff] %vm906, %v899
  %965 = vst.msk [vmem:[%s4 + $0x1d0] sm:$0xff] %vm906, %v900
  %966 = vst.msk [vmem:[%s4 + $0x1d8] sm:$0xff] %vm906, %v901
  %967 = vst.msk [vmem:[%s4 + $0x1e0] sm:$0xff] %vm906, %v902
  %968 = vst.msk [vmem:[%s4 + $0x1e8] sm:$0xff] %vm906, %v903
  %969 = vst.msk [vmem:[%s4 + $0x1f0] sm:$0xff] %vm906, %v904
  %970 = vst.msk [vmem:[%s4 + $0x1f8] sm:$0xff] %vm906, %v905
  // Predicated region
  $region18: #{sepconv_spike_forward.3} parent=0 // pred_check
    _
  $region19: #{sepconv_spike_forward.3} parent=0 // pred_check_branch
    %972 = sbr.rel (0) target = $region21
  $region20: #{sepconv_spike_forward.3} parent=0 // pred_region
    _
  $region21: #{sepconv_spike_forward.3} parent=0 // pred_fallthru
    _
  // Predicated region
  $region22: #{sepconv_spike_forward.3} parent=0 // pred_check
    _
  $region23: #{sepconv_spike_forward.3} parent=0 // pred_check_branch
    %974 = sbr.rel (0) target = $region25
  $region24: #{sepconv_spike_forward.3} parent=0 // pred_region
    _
  $region25: #{sepconv_spike_forward.3} parent=0 // pred_fallthru
    _

// kernel: sepconv_spike_forward.4
$region0: #{sepconv_spike_forward.4}
  #allocation0 [shape = 'u32[]', space=smem, size = 0x4, offset = 0x4, fixed_abs, tag = 'smem constant byte address 0x4 - core index']
  #allocation1 [shape = 'u32[144,128]{1,0:T(1,128)}', space=vmem, size = 0x12000, scoped, tag = 'internal scratch']
  #allocation2 [shape = 'f32[22,22,32]{2,1,0:T(8,128)}', space=vmem, size = 0x42000, scoped, tag = 'scratch operand']
  %s0 = inlined_call_operand.vmem [shape: f32[2,16,16,32], index: 0, kind: input, shape index: {}]
  %s1 = inlined_call_operand.vmem [shape: f32[7,7,32], index: 1, kind: input, shape index: {}]
  %s2 = inlined_call_operand.vmem [shape: f32[1,1,32], index: 2, kind: input, shape index: {}]
  %s3 = inlined_call_operand.vmem [shape: f32[1,1,32], index: 3, kind: input, shape index: {}]
  %s4 = inlined_call_operand.vmem [shape: f32[2,16,16,32], index: 4, kind: output, shape index: {}]
  %s5 = sld [smem:[#allocation0]]
  $region49: #{sepconv_spike_forward.4} parent=0
    _
  %s7 = ssub.s32 1, %s5
  %s8 = scalar_select 0, %s7, %s5
  loop: start=0, step=1, limit=4
  $region2: #{sepconv_spike_forward.4} parent=0 // loop_pre_header
    _
  $region3: #{sepconv_spike_forward.4} parent=0 // loop_header
    %s10 = sphi 0, %s14
    %p11 = scmp.ge.s32.totalorder %s10, 4
    %s20 = sphi 0, %s22
    %s23 = sphi 0, %s20
    %s24 = sphi 0, %s23
    %s40 = sphi 0, %s24
    %s44 = sphi 0, %s44
    %s46 = sphi 0, %s44
    %s47 = sphi 0, %s46
    %s61 = sphi 0, %s47
    %s65 = sphi 0, %s65
    %s67 = sphi 0, %s65
    %s68 = sphi 0, %s67
    %s82 = sphi 0, %s68
    %s86 = sphi 0, %s86
    %s88 = sphi 0, %s86
    %s89 = sphi 0, %s88
    %s103 = sphi 0, %s89
    %s109 = sphi 0, %s111
    %s112 = sphi 0, %s109
    %s113 = sphi 0, %s112
    %s129 = sphi 0, %s113
  $region4: #{sepconv_spike_forward.4} parent=0 // loop_header_branch
    %13 = sbr.rel (%p11) target = $region8
  $region5: #{sepconv_spike_forward.4} parent=0 // loop_body
    %s15 = ssub.s32 %s10, 1
    %s16 = ssub.s32 %s10, 2
    %s17 = sadd.s32 %s10, 1
    %s18 = ssub.s32 %s10, %s17
    %p19 = scmp.eq.s32.totalorder %s18, 0
    %s21 = sadd.s32 %s20, 1
    %s22 = scalar_select %p19, %s20, %s21
    %p25 = pneg %p19
    %p26 = scmp.eq.s32.totalorder %s10, 1
    %p27 = por %p25, %p26
    %p28 = scmp.ne.s32.totalorder %s20, %s23
    %p29 = scmp.eq.s32.totalorder %s10, 0
    %p30 = por %p28, %p29
    %p31 = scmp.ne.s32.totalorder %s20, %s23
    %p32 = scmp.eq.s32.totalorder %s15, 1
    %p33 = por %p31, %p32
    %p34 = scmp.ne.s32.totalorder %s23, %s24
    %p35 = scmp.eq.s32.totalorder %s15, 0
    %p36 = por %p34, %p35
    %p37 = scmp.ne.s32.totalorder %s23, %s24
    %p38 = scmp.eq.s32.totalorder %s16, 1
    %p39 = por %p37, %p38
    %p41 = scmp.ne.s32.totalorder %s24, %s40
    %p42 = scmp.eq.s32.totalorder %s16, 0
    %p43 = por %p41, %p42
    %s45 = sadd.s32 %s44, 1
    %p48 = scmp.eq.s32.totalorder %s10, 1
    %p49 = scmp.ne.s32.totalorder %s44, %s46
    %p50 = scmp.eq.s32.totalorder %s10, 0
    %p51 = por %p49, %p50
    %p52 = scmp.ne.s32.totalorder %s44, %s46
    %p53 = scmp.eq.s32.totalorder %s15, 1
    %p54 = por %p52, %p53
    %p55 = scmp.ne.s32.totalorder %s46, %s47
    %p56 = scmp.eq.s32.totalorder %s15, 0
    %p57 = por %p55, %p56
    %p58 = scmp.ne.s32.totalorder %s46, %s47
    %p59 = scmp.eq.s32.totalorder %s16, 1
    %p60 = por %p58, %p59
    %p62 = scmp.ne.s32.totalorder %s47, %s61
    %p63 = scmp.eq.s32.totalorder %s16, 0
    %p64 = por %p62, %p63
    %s66 = sadd.s32 %s65, 1
    %p69 = scmp.eq.s32.totalorder %s10, 1
    %p70 = scmp.ne.s32.totalorder %s65, %s67
    %p71 = scmp.eq.s32.totalorder %s10, 0
    %p72 = por %p70, %p71
    %p73 = scmp.ne.s32.totalorder %s65, %s67
    %p74 = scmp.eq.s32.totalorder %s15, 1
    %p75 = por %p73, %p74
    %p76 = scmp.ne.s32.totalorder %s67, %s68
    %p77 = scmp.eq.s32.totalorder %s15, 0
    %p78 = por %p76, %p77
    %p79 = scmp.ne.s32.totalorder %s67, %s68
    %p80 = scmp.eq.s32.totalorder %s16, 1
    %p81 = por %p79, %p80
    %p83 = scmp.ne.s32.totalorder %s68, %s82
    %p84 = scmp.eq.s32.totalorder %s16, 0
    %p85 = por %p83, %p84
    %s87 = sadd.s32 %s86, 1
    %p90 = scmp.eq.s32.totalorder %s10, 1
    %p91 = scmp.ne.s32.totalorder %s86, %s88
    %p92 = scmp.eq.s32.totalorder %s10, 0
    %p93 = por %p91, %p92
    %p94 = scmp.ne.s32.totalorder %s86, %s88
    %p95 = scmp.eq.s32.totalorder %s15, 1
    %p96 = por %p94, %p95
    %p97 = scmp.ne.s32.totalorder %s88, %s89
    %p98 = scmp.eq.s32.totalorder %s15, 0
    %p99 = por %p97, %p98
    %p100 = scmp.ne.s32.totalorder %s88, %s89
    %p101 = scmp.eq.s32.totalorder %s16, 1
    %p102 = por %p100, %p101
    %p104 = scmp.ne.s32.totalorder %s89, %s103
    %p105 = scmp.eq.s32.totalorder %s16, 0
    %p106 = por %p104, %p105
    %s107 = ssub.s32 %s10, %s17
    %p108 = scmp.eq.s32.totalorder %s107, 0
    %s110 = sadd.s32 %s109, 1
    %s111 = scalar_select %p108, %s109, %s110
    %p114 = pneg %p108
    %p115 = scmp.eq.s32.totalorder %s10, 1
    %p116 = por %p114, %p115
    %p117 = scmp.ne.s32.totalorder %s109, %s112
    %p118 = scmp.eq.s32.totalorder %s10, 0
    %p119 = por %p117, %p118
    %p120 = scmp.ne.s32.totalorder %s109, %s112
    %p121 = scmp.eq.s32.totalorder %s15, 1
    %p122 = por %p120, %p121
    %p123 = scmp.ne.s32.totalorder %s112, %s113
    %p124 = scmp.eq.s32.totalorder %s15, 0
    %p125 = por %p123, %p124
    %p126 = scmp.ne.s32.totalorder %s112, %s113
    %p127 = scmp.eq.s32.totalorder %s16, 1
    %p128 = por %p126, %p127
    %p130 = scmp.ne.s32.totalorder %s113, %s129
    %p131 = scmp.eq.s32.totalorder %s16, 0
    %p132 = por %p130, %p131
    %p133 = scmp.le.s32.totalorder 1, %s10
    %p134 = scmp.lt.s32.totalorder %s10, 3
    %p135 = pnand %p133, %p134
    %p136 = pneg %p135
    // Predicated region
    $region9: #{sepconv_spike_forward.4} parent=5 // pred_check
      _
    $region10: #{sepconv_spike_forward.4} parent=5 // pred_check_branch
      %138 = sbr.rel (%p135) target = $region12
    $region11: #{sepconv_spike_forward.4} parent=5 // pred_region
      %s139 = ssub.s32 %s10, 1
      // Predicated region
      $region13: #{sepconv_spike_forward.4} parent=11 // pred_check
        %p140 = pneg %p57
      $region14: #{sepconv_spike_forward.4} parent=11 // pred_check_branch
        %142 = sbr.rel (%p140) target = $region16
      $region15: #{sepconv_spike_forward.4} parent=11 // pred_region
        _
      $region16: #{sepconv_spike_forward.4} parent=11 // pred_fallthru
        _
      // Predicated region
      $region17: #{sepconv_spike_forward.4} parent=11 // pred_check
        %p143 = pneg %p78
      $region18: #{sepconv_spike_forward.4} parent=11 // pred_check_branch
        %145 = sbr.rel (%p143) target = $region20
      $region19: #{sepconv_spike_forward.4} parent=11 // pred_region
        _
      $region20: #{sepconv_spike_forward.4} parent=11 // pred_fallthru
        _
      // Predicated region
      $region21: #{sepconv_spike_forward.4} parent=11 // pred_check
        %p146 = pneg %p99
      $region22: #{sepconv_spike_forward.4} parent=11 // pred_check_branch
        %148 = sbr.rel (%p146) target = $region24
      $region23: #{sepconv_spike_forward.4} parent=11 // pred_region
        _
      $region24: #{sepconv_spike_forward.4} parent=11 // pred_fallthru
        _
    $region12: #{sepconv_spike_forward.4} parent=5 // pred_fallthru
      _
    %p149 = scmp.lt.s32.totalorder %s10, 2
    // Predicated region
    $region25: #{sepconv_spike_forward.4} parent=5 // pred_check
      %p150 = pneg %p149
    $region26: #{sepconv_spike_forward.4} parent=5 // pred_check_branch
      %152 = sbr.rel (%p150) target = $region28
    $region27: #{sepconv_spike_forward.4} parent=5 // pred_region
      // Predicated region
      $region29: #{sepconv_spike_forward.4} parent=27 // pred_check
        %p153 = pneg %p30
      $region30: #{sepconv_spike_forward.4} parent=27 // pred_check_branch
        %155 = sbr.rel (%p153) target = $region32
      $region31: #{sepconv_spike_forward.4} parent=27 // pred_region
        %p156 = scmp.lt.s32.totalorder %s10, 1
        %s157 = scalar_select %p156, %s10, 1
        %s158 = smul.addr %s157, 32
        %s159 = smul.addr %s158, 8
        %s160 = scalar_lea.vmem %s0, %s159
      $region32: #{sepconv_spike_forward.4} parent=27 // pred_fallthru
        _
    $region28: #{sepconv_spike_forward.4} parent=5 // pred_fallthru
      _
    %p161 = scmp.le.s32.totalorder 1, %s10
    %p162 = scmp.lt.s32.totalorder %s10, 3
    %p163 = pnand %p161, %p162
    %p164 = pneg %p163
    // Predicated region
    $region33: #{sepconv_spike_forward.4} parent=5 // pred_check
      _
    $region34: #{sepconv_spike_forward.4} parent=5 // pred_check_branch
      %166 = sbr.rel (%p163) target = $region36
    $region35: #{sepconv_spike_forward.4} parent=5 // pred_region
      %s167 = ssub.s32 %s10, 1
      %p168 = scmp.lt.s32.totalorder %s15, 1
      %s169 = scalar_select %p168, %s15, 1
      %s170 = smul.addr %s169, 32
      %s171 = smul.addr %s170, 8
      %s172 = scalar_lea.vmem %s0, %s171
      %p173 = pneg %p36
      %p174 = pneg %p33
      %p175 = pneg %p57
      %p176 = pneg %p54
      %p177 = pneg %p78
      %p178 = pneg %p75
      %p179 = pneg %p99
      %p180 = pneg %p96
      %p181 = pneg %p125
      %p182 = pneg %p122
      %p183 = scmp.lt.s32.totalorder %s15, 1
      %s184 = scalar_select %p183, %s15, 1
      %s185 = smul.addr %s184, 32
      %s186 = smul.addr %s185, 8
      %s187 = scalar_lea.vmem %s4, %s186
      %p188 = scmp.lt.s32.totalorder %s15, 1
      %s189 = scalar_select %p188, %s15, 1
      %s190 = smul.addr %s189, 32
      %s191 = smul.addr %s190, 8
      %s192 = scalar_lea.vmem %s0, %s191
      %p193 = scmp.lt.s32.totalorder %s15, 1
      %s194 = scalar_select %p193, %s15, 1
      %s195 = smul.addr %s194, 32
      %s196 = smul.addr %s195, 8
      %s197 = scalar_lea.vmem %s4, %s196
      %vm198 = vcmask 261120
      %199 = vst.msk [vmem:[#allocation2] sm:$0xff] %vm198, 0.0
      %200 = vst.msk [vmem:[#allocation2 + $0x8] sm:$0xff] %vm198, 0.0
      %vm201 = vcmask 259072
      %202 = vst.msk [vmem:[#allocation2 + $0x10] sm:$0x3f] %vm201, 0.0
      %203 = vst.msk [vmem:[#allocation2 + $0x18] sm:$0xff] %vm198, 0.0
      %204 = vst.msk [vmem:[#allocation2 + $0x20] sm:$0xff] %vm198, 0.0
      %205 = vst.msk [vmem:[#allocation2 + $0x28] sm:$0x3f] %vm201, 0.0
      %206 = vst.msk [vmem:[#allocation2 + $0x30] sm:$0xff] %vm198, 0.0
      %207 = vst.msk [vmem:[#allocation2 + $0x38] sm:$0xff] %vm198, 0.0
      %208 = vst.msk [vmem:[#allocation2 + $0x40] sm:$0x3f] %vm201, 0.0
      %209 = vst.msk [vmem:[#allocation2 + $0x48] sm:$0xff] %vm198, 0.0
      %210 = vst.msk [vmem:[#allocation2 + $0x50] sm:$0xff] %vm198, 0.0
      %211 = vst.msk [vmem:[#allocation2 + $0x58] sm:$0x3f] %vm201, 0.0
      %212 = vst.msk [vmem:[#allocation2 + $0x60] sm:$0xff] %vm198, 0.0
      %213 = vst.msk [vmem:[#allocation2 + $0x68] sm:$0xff] %vm198, 0.0
      %214 = vst.msk [vmem:[#allocation2 + $0x70] sm:$0x3f] %vm201, 0.0
      %215 = vst.msk [vmem:[#allocation2 + $0x78] sm:$0xff] %vm198, 0.0
      %216 = vst.msk [vmem:[#allocation2 + $0x80] sm:$0xff] %vm198, 0.0
      %217 = vst.msk [vmem:[#allocation2 + $0x88] sm:$0x3f] %vm201, 0.0
      %218 = vst.msk [vmem:[#allocation2 + $0x90] sm:$0xff] %vm198, 0.0
      %219 = vst.msk [vmem:[#allocation2 + $0x98] sm:$0xff] %vm198, 0.0
      %220 = vst.msk [vmem:[#allocation2 + $0xa0] sm:$0x3f] %vm201, 0.0
      %221 = vst.msk [vmem:[#allocation2 + $0xa8] sm:$0xff] %vm198, 0.0
      %222 = vst.msk [vmem:[#allocation2 + $0xb0] sm:$0xff] %vm198, 0.0
      %223 = vst.msk [vmem:[#allocation2 + $0xb8] sm:$0x3f] %vm201, 0.0
      %224 = vst.msk [vmem:[#allocation2 + $0xc0] sm:$0xff] %vm198, 0.0
      %225 = vst.msk [vmem:[#allocation2 + $0xc8] sm:$0xff] %vm198, 0.0
      %226 = vst.msk [vmem:[#allocation2 + $0xd0] sm:$0x3f] %vm201, 0.0
      %227 = vst.msk [vmem:[#allocation2 + $0xd8] sm:$0xff] %vm198, 0.0
      %228 = vst.msk [vmem:[#allocation2 + $0xe0] sm:$0xff] %vm198, 0.0
      %229 = vst.msk [vmem:[#allocation2 + $0xe8] sm:$0x3f] %vm201, 0.0
      %230 = vst.msk [vmem:[#allocation2 + $0xf0] sm:$0xff] %vm198, 0.0
      %231 = vst.msk [vmem:[#allocation2 + $0xf8] sm:$0xff] %vm198, 0.0
      %232 = vst.msk [vmem:[#allocation2 + $0x100] sm:$0x3f] %vm201, 0.0
      %233 = vst.msk [vmem:[#allocation2 + $0x108] sm:$0xff] %vm198, 0.0
      %234 = vst.msk [vmem:[#allocation2 + $0x110] sm:$0xff] %vm198, 0.0
      %235 = vst.msk [vmem:[#allocation2 + $0x118] sm:$0x3f] %vm201, 0.0
      %236 = vst.msk [vmem:[#allocation2 + $0x120] sm:$0xff] %vm198, 0.0
      %237 = vst.msk [vmem:[#allocation2 + $0x128] sm:$0xff] %vm198, 0.0
      %238 = vst.msk [vmem:[#allocation2 + $0x130] sm:$0x3f] %vm201, 0.0
      %239 = vst.msk [vmem:[#allocation2 + $0x138] sm:$0xff] %vm198, 0.0
      %240 = vst.msk [vmem:[#allocation2 + $0x140] sm:$0xff] %vm198, 0.0
      %241 = vst.msk [vmem:[#allocation2 + $0x148] sm:$0x3f] %vm201, 0.0
      %242 = vst.msk [vmem:[#allocation2 + $0x150] sm:$0xff] %vm198, 0.0
      %243 = vst.msk [vmem:[#allocation2 + $0x158] sm:$0xff] %vm198, 0.0
      %244 = vst.msk [vmem:[#allocation2 + $0x160] sm:$0x3f] %vm201, 0.0
      %245 = vst.msk [vmem:[#allocation2 + $0x168] sm:$0xff] %vm198, 0.0
      %246 = vst.msk [vmem:[#allocation2 + $0x170] sm:$0xff] %vm198, 0.0
      %247 = vst.msk [vmem:[#allocation2 + $0x178] sm:$0x3f] %vm201, 0.0
      %248 = vst.msk [vmem:[#allocation2 + $0x180] sm:$0xff] %vm198, 0.0
      %249 = vst.msk [vmem:[#allocation2 + $0x188] sm:$0xff] %vm198, 0.0
      %250 = vst.msk [vmem:[#allocation2 + $0x190] sm:$0x3f] %vm201, 0.0
      %251 = vst.msk [vmem:[#allocation2 + $0x198] sm:$0xff] %vm198, 0.0
      %252 = vst.msk [vmem:[#allocation2 + $0x1a0] sm:$0xff] %vm198, 0.0
      %253 = vst.msk [vmem:[#allocation2 + $0x1a8] sm:$0x3f] %vm201, 0.0
      %254 = vst.msk [vmem:[#allocation2 + $0x1b0] sm:$0xff] %vm198, 0.0
      %255 = vst.msk [vmem:[#allocation2 + $0x1b8] sm:$0xff] %vm198, 0.0
      %256 = vst.msk [vmem:[#allocation2 + $0x1c0] sm:$0x3f] %vm201, 0.0
      %257 = vst.msk [vmem:[#allocation2 + $0x1c8] sm:$0xff] %vm198, 0.0
      %258 = vst.msk [vmem:[#allocation2 + $0x1d0] sm:$0xff] %vm198, 0.0
      %259 = vst.msk [vmem:[#allocation2 + $0x1d8] sm:$0x3f] %vm201, 0.0
      %260 = vst.msk [vmem:[#allocation2 + $0x1e0] sm:$0xff] %vm198, 0.0
      %261 = vst.msk [vmem:[#allocation2 + $0x1e8] sm:$0xff] %vm198, 0.0
      %262 = vst.msk [vmem:[#allocation2 + $0x1f0] sm:$0x3f] %vm201, 0.0
      %263 = vst.msk [vmem:[#allocation2 + $0x1f8] sm:$0xff] %vm198, 0.0
      %264 = vst.msk [vmem:[#allocation2 + $0x200] sm:$0xff] %vm198, 0.0
      %265 = vst.msk [vmem:[#allocation2 + $0x208] sm:$0x3f] %vm201, 0.0
      %v266 = vld [vmem:[%s192] sm:$0xff]
      %v267 = vld [vmem:[%s192 + $0x8] sm:$0xff]
      %v268 = vld [vmem:[%s192 + $0x10] sm:$0xff]
      %v269 = vld [vmem:[%s192 + $0x18] sm:$0xff]
      %v270 = vld [vmem:[%s192 + $0x20] sm:$0xff]
      %v271 = vld [vmem:[%s192 + $0x28] sm:$0xff]
      %v272 = vld [vmem:[%s192 + $0x30] sm:$0xff]
      %v273 = vld [vmem:[%s192 + $0x38] sm:$0xff]
      %v274 = vld [vmem:[%s192 + $0x40] sm:$0xff]
      %v275 = vld [vmem:[%s192 + $0x48] sm:$0xff]
      %v276 = vld [vmem:[%s192 + $0x50] sm:$0xff]
      %v277 = vld [vmem:[%s192 + $0x58] sm:$0xff]
      %v278 = vld [vmem:[%s192 + $0x60] sm:$0xff]
      %v279 = vld [vmem:[%s192 + $0x68] sm:$0xff]
      %v280 = vld [vmem:[%s192 + $0x70] sm:$0xff]
      %v281 = vld [vmem:[%s192 + $0x78] sm:$0xff]
      %v282 = vld [vmem:[%s192 + $0x80] sm:$0xff]
      %v283 = vld [vmem:[%s192 + $0x88] sm:$0xff]
      %v284 = vld [vmem:[%s192 + $0x90] sm:$0xff]
      %v285 = vld [vmem:[%s192 + $0x98] sm:$0xff]
      %v286 = vld [vmem:[%s192 + $0xa0] sm:$0xff]
      %v287 = vld [vmem:[%s192 + $0xa8] sm:$0xff]
      %v288 = vld [vmem:[%s192 + $0xb0] sm:$0xff]
      %v289 = vld [vmem:[%s192 + $0xb8] sm:$0xff]
      %v290 = vld [vmem:[%s192 + $0xc0] sm:$0xff]
      %v291 = vld [vmem:[%s192 + $0xc8] sm:$0xff]
      %v292 = vld [vmem:[%s192 + $0xd0] sm:$0xff]
      %v293 = vld [vmem:[%s192 + $0xd8] sm:$0xff]
      %v294 = vld [vmem:[%s192 + $0xe0] sm:$0xff]
      %v295 = vld [vmem:[%s192 + $0xe8] sm:$0xff]
      %v296 = vld [vmem:[%s192 + $0xf0] sm:$0xff]
      %v297 = vld [vmem:[%s192 + $0xf8] sm:$0xff]
      %v298 = vmax.f32 %v266, 0.0
      %v299 = vmax.f32 %v267, 0.0
      %v300 = vmax.f32 %v268, 0.0
      %v301 = vmax.f32 %v269, 0.0
      %v302 = vmax.f32 %v270, 0.0
      %v303 = vmax.f32 %v271, 0.0
      %v304 = vmax.f32 %v272, 0.0
      %v305 = vmax.f32 %v273, 0.0
      %v306 = vmax.f32 %v274, 0.0
      %v307 = vmax.f32 %v275, 0.0
      %v308 = vmax.f32 %v276, 0.0
      %v309 = vmax.f32 %v277, 0.0
      %v310 = vmax.f32 %v278, 0.0
      %v311 = vmax.f32 %v279, 0.0
      %v312 = vmax.f32 %v280, 0.0
      %v313 = vmax.f32 %v281, 0.0
      %v314 = vmax.f32 %v282, 0.0
      %v315 = vmax.f32 %v283, 0.0
      %v316 = vmax.f32 %v284, 0.0
      %v317 = vmax.f32 %v285, 0.0
      %v318 = vmax.f32 %v286, 0.0
      %v319 = vmax.f32 %v287, 0.0
      %v320 = vmax.f32 %v288, 0.0
      %v321 = vmax.f32 %v289, 0.0
      %v322 = vmax.f32 %v290, 0.0
      %v323 = vmax.f32 %v291, 0.0
      %v324 = vmax.f32 %v292, 0.0
      %v325 = vmax.f32 %v293, 0.0
      %v326 = vmax.f32 %v294, 0.0
      %v327 = vmax.f32 %v295, 0.0
      %v328 = vmax.f32 %v296, 0.0
      %v329 = vmax.f32 %v297, 0.0
      %v330 = vmin.f32 %v298, 4.0
      %v331 = vmin.f32 %v299, 4.0
      %v332 = vmin.f32 %v300, 4.0
      %v333 = vmin.f32 %v301, 4.0
      %v334 = vmin.f32 %v302, 4.0
      %v335 = vmin.f32 %v303, 4.0
      %v336 = vmin.f32 %v304, 4.0
      %v337 = vmin.f32 %v305, 4.0
      %v338 = vmin.f32 %v306, 4.0
      %v339 = vmin.f32 %v307, 4.0
      %v340 = vmin.f32 %v308, 4.0
      %v341 = vmin.f32 %v309, 4.0
      %v342 = vmin.f32 %v310, 4.0
      %v343 = vmin.f32 %v311, 4.0
      %v344 = vmin.f32 %v312, 4.0
      %v345 = vmin.f32 %v313, 4.0
      %v346 = vmin.f32 %v314, 4.0
      %v347 = vmin.f32 %v315, 4.0
      %v348 = vmin.f32 %v316, 4.0
      %v349 = vmin.f32 %v317, 4.0
      %v350 = vmin.f32 %v318, 4.0
      %v351 = vmin.f32 %v319, 4.0
      %v352 = vmin.f32 %v320, 4.0
      %v353 = vmin.f32 %v321, 4.0
      %v354 = vmin.f32 %v322, 4.0
      %v355 = vmin.f32 %v323, 4.0
      %v356 = vmin.f32 %v324, 4.0
      %v357 = vmin.f32 %v325, 4.0
      %v358 = vmin.f32 %v326, 4.0
      %v359 = vmin.f32 %v327, 4.0
      %v360 = vmin.f32 %v328, 4.0
      %v361 = vmin.f32 %v329, 4.0
      %v362 = vround.ne.pseudo %v330
      %v363 = vround.ne.pseudo %v331
      %v364 = vround.ne.pseudo %v332
      %v365 = vround.ne.pseudo %v333
      %v366 = vround.ne.pseudo %v334
      %v367 = vround.ne.pseudo %v335
      %v368 = vround.ne.pseudo %v336
      %v369 = vround.ne.pseudo %v337
      %v370 = vround.ne.pseudo %v338
      %v371 = vround.ne.pseudo %v339
      %v372 = vround.ne.pseudo %v340
      %v373 = vround.ne.pseudo %v341
      %v374 = vround.ne.pseudo %v342
      %v375 = vround.ne.pseudo %v343
      %v376 = vround.ne.pseudo %v344
      %v377 = vround.ne.pseudo %v345
      %v378 = vround.ne.pseudo %v346
      %v379 = vround.ne.pseudo %v347
      %v380 = vround.ne.pseudo %v348
      %v381 = vround.ne.pseudo %v349
      %v382 = vround.ne.pseudo %v350
      %v383 = vround.ne.pseudo %v351
      %v384 = vround.ne.pseudo %v352
      %v385 = vround.ne.pseudo %v353
      %v386 = vround.ne.pseudo %v354
      %v387 = vround.ne.pseudo %v355
      %v388 = vround.ne.pseudo %v356
      %v389 = vround.ne.pseudo %v357
      %v390 = vround.ne.pseudo %v358
      %v391 = vround.ne.pseudo %v359
      %v392 = vround.ne.pseudo %v360
      %v393 = vround.ne.pseudo %v361
      %v394 = vmul.f32 %v362, 0.25
      %v395 = vmul.f32 %v363, 0.25
      %v396 = vmul.f32 %v364, 0.25
      %v397 = vmul.f32 %v365, 0.25
      %v398 = vmul.f32 %v366, 0.25
      %v399 = vmul.f32 %v367, 0.25
      %v400 = vmul.f32 %v368, 0.25
      %v401 = vmul.f32 %v369, 0.25
      %v402 = vmul.f32 %v370, 0.25
      %v403 = vmul.f32 %v371, 0.25
      %v404 = vmul.f32 %v372, 0.25
      %v405 = vmul.f32 %v373, 0.25
      %v406 = vmul.f32 %v374, 0.25
      %v407 = vmul.f32 %v375, 0.25
      %v408 = vmul.f32 %v376, 0.25
      %v409 = vmul.f32 %v377, 0.25
      %v410 = vmul.f32 %v378, 0.25
      %v411 = vmul.f32 %v379, 0.25
      %v412 = vmul.f32 %v380, 0.25
      %v413 = vmul.f32 %v381, 0.25
      %v414 = vmul.f32 %v382, 0.25
      %v415 = vmul.f32 %v383, 0.25
      %v416 = vmul.f32 %v384, 0.25
      %v417 = vmul.f32 %v385, 0.25
      %v418 = vmul.f32 %v386, 0.25
      %v419 = vmul.f32 %v387, 0.25
      %v420 = vmul.f32 %v388, 0.25
      %v421 = vmul.f32 %v389, 0.25
      %v422 = vmul.f32 %v390, 0.25
      %v423 = vmul.f32 %v391, 0.25
      %v424 = vmul.f32 %v392, 0.25
      %v425 = vmul.f32 %v393, 0.25
      %s426 = scalar_lea.vmem [#allocation2], 72
      %427 = vst.msk [vmem:[%s426 + $0x3] sm:$0xff] %vm198, %v394
      %428 = vst.msk [vmem:[%s426 + $0xb] sm:$0xff] %vm198, %v395
      %429 = vst.msk [vmem:[%s426 + $0x1b] sm:$0xff] %vm198, %v396
      %430 = vst.msk [vmem:[%s426 + $0x23] sm:$0xff] %vm198, %v397
      %431 = vst.msk [vmem:[%s426 + $0x33] sm:$0xff] %vm198, %v398
      %432 = vst.msk [vmem:[%s426 + $0x3b] sm:$0xff] %vm198, %v399
      %433 = vst.msk [vmem:[%s426 + $0x4b] sm:$0xff] %vm198, %v400
      %434 = vst.msk [vmem:[%s426 + $0x53] sm:$0xff] %vm198, %v401
      %435 = vst.msk [vmem:[%s426 + $0x63] sm:$0xff] %vm198, %v402
      %436 = vst.msk [vmem:[%s426 + $0x6b] sm:$0xff] %vm198, %v403
      %437 = vst.msk [vmem:[%s426 + $0x7b] sm:$0xff] %vm198, %v404
      %438 = vst.msk [vmem:[%s426 + $0x83] sm:$0xff] %vm198, %v405
      %439 = vst.msk [vmem:[%s426 + $0x93] sm:$0xff] %vm198, %v406
      %440 = vst.msk [vmem:[%s426 + $0x9b] sm:$0xff] %vm198, %v407
      %441 = vst.msk [vmem:[%s426 + $0xab] sm:$0xff] %vm198, %v408
      %442 = vst.msk [vmem:[%s426 + $0xb3] sm:$0xff] %vm198, %v409
      %443 = vst.msk [vmem:[%s426 + $0xc3] sm:$0xff] %vm198, %v410
      %444 = vst.msk [vmem:[%s426 + $0xcb] sm:$0xff] %vm198, %v411
      %445 = vst.msk [vmem:[%s426 + $0xdb] sm:$0xff] %vm198, %v412
      %446 = vst.msk [vmem:[%s426 + $0xe3] sm:$0xff] %vm198, %v413
      %447 = vst.msk [vmem:[%s426 + $0xf3] sm:$0xff] %vm198, %v414
      %448 = vst.msk [vmem:[%s426 + $0xfb] sm:$0xff] %vm198, %v415
      %449 = vst.msk [vmem:[%s426 + $0x10b] sm:$0xff] %vm198, %v416
      %450 = vst.msk [vmem:[%s426 + $0x113] sm:$0xff] %vm198, %v417
      %451 = vst.msk [vmem:[%s426 + $0x123] sm:$0xff] %vm198, %v418
      %452 = vst.msk [vmem:[%s426 + $0x12b] sm:$0xff] %vm198, %v419
      %453 = vst.msk [vmem:[%s426 + $0x13b] sm:$0xff] %vm198, %v420
      %454 = vst.msk [vmem:[%s426 + $0x143] sm:$0xff] %vm198, %v421
      %455 = vst.msk [vmem:[%s426 + $0x153] sm:$0xff] %vm198, %v422
      %456 = vst.msk [vmem:[%s426 + $0x15b] sm:$0xff] %vm198, %v423
      %457 = vst.msk [vmem:[%s426 + $0x16b] sm:$0xff] %vm198, %v424
      %458 = vst.msk [vmem:[%s426 + $0x173] sm:$0xff] %vm198, %v425
      %v459 = vld [vmem:[#allocation2] sm:$0xff]
      %v460 = vld [vmem:[#allocation2 + $0x8] sm:$0xff]
      %v461 = vld [vmem:[#allocation2 + $0x10] sm:$0x3f]
      %v462 = vld [vmem:[#allocation2 + $0x18] sm:$0xff]
      %v463 = vld [vmem:[#allocation2 + $0x20] sm:$0xff]
      %v464 = vld [vmem:[#allocation2 + $0x28] sm:$0x3f]
      %v465 = vld [vmem:[#allocation2 + $0x30] sm:$0xff]
      %v466 = vld [vmem:[#allocation2 + $0x38] sm:$0xff]
      %v467 = vld [vmem:[#allocation2 + $0x40] sm:$0x3f]
      %v468 = vld [vmem:[#allocation2 + $0x48] sm:$0xff]
      %v469 = vld [vmem:[#allocation2 + $0x50] sm:$0xff]
      %v470 = vld [vmem:[#allocation2 + $0x58] sm:$0x3f]
      %v471 = vld [vmem:[#allocation2 + $0x60] sm:$0xff]
      %v472 = vld [vmem:[#allocation2 + $0x68] sm:$0xff]
      %v473 = vld [vmem:[#allocation2 + $0x70] sm:$0x3f]
      %v474 = vld [vmem:[#allocation2 + $0x78] sm:$0xff]
      %v475 = vld [vmem:[#allocation2 + $0x80] sm:$0xff]
      %v476 = vld [vmem:[#allocation2 + $0x88] sm:$0x3f]
      %v477 = vld [vmem:[#allocation2 + $0x90] sm:$0xff]
      %v478 = vld [vmem:[#allocation2 + $0x98] sm:$0xff]
      %v479 = vld [vmem:[#allocation2 + $0xa0] sm:$0x3f]
      %v480 = vld [vmem:[#allocation2 + $0xa8] sm:$0xff]
      %v481 = vld [vmem:[#allocation2 + $0xb0] sm:$0xff]
      %v482 = vld [vmem:[#allocation2 + $0xb8] sm:$0x3f]
      %v483 = vld [vmem:[#allocation2 + $0xc0] sm:$0xff]
      %v484 = vld [vmem:[#allocation2 + $0xc8] sm:$0xff]
      %v485 = vld [vmem:[#allocation2 + $0xd0] sm:$0x3f]
      %v486 = vld [vmem:[#allocation2 + $0xd8] sm:$0xff]
      %v487 = vld [vmem:[#allocation2 + $0xe0] sm:$0xff]
      %v488 = vld [vmem:[#allocation2 + $0xe8] sm:$0x3f]
      %v489 = vld [vmem:[#allocation2 + $0xf0] sm:$0xff]
      %v490 = vld [vmem:[#allocation2 + $0xf8] sm:$0xff]
      %v491 = vld [vmem:[#allocation2 + $0x100] sm:$0x3f]
      %v492 = vld [vmem:[#allocation2 + $0x108] sm:$0xff]
      %v493 = vld [vmem:[#allocation2 + $0x110] sm:$0xff]
      %v494 = vld [vmem:[#allocation2 + $0x118] sm:$0x3f]
      %v495 = vld [vmem:[#allocation2 + $0x120] sm:$0xff]
      %v496 = vld [vmem:[#allocation2 + $0x128] sm:$0xff]
      %v497 = vld [vmem:[#allocation2 + $0x130] sm:$0x3f]
      %v498 = vld [vmem:[#allocation2 + $0x138] sm:$0xff]
      %v499 = vld [vmem:[#allocation2 + $0x140] sm:$0xff]
      %v500 = vld [vmem:[#allocation2 + $0x148] sm:$0x3f]
      %v501 = vld [vmem:[#allocation2 + $0x150] sm:$0xff]
      %v502 = vld [vmem:[#allocation2 + $0x158] sm:$0xff]
      %v503 = vld [vmem:[#allocation2 + $0x160] sm:$0x3f]
      %v504 = vld [vmem:[#allocation2 + $0x168] sm:$0xff]
      %v505 = vld [vmem:[#allocation2 + $0x170] sm:$0xff]
      %v506 = vld [vmem:[#allocation2 + $0x178] sm:$0x3f]
      %v507 = vld [vmem:[#allocation2 + $0x180] sm:$0xff]
      %v508 = vld [vmem:[#allocation2 + $0x188] sm:$0xff]
      %v509 = vld [vmem:[#allocation2 + $0x190] sm:$0x3f]
      %v510 = vld [vmem:[#allocation2 + $0x198] sm:$0xff]
      %v511 = vld [vmem:[#allocation2 + $0x1a0] sm:$0xff]
      %v512 = vld [vmem:[#allocation2 + $0x1a8] sm:$0x3f]
      %v513 = vld [vmem:[#allocation2 + $0x1b0] sm:$0xff]
      %v514 = vld [vmem:[#allocation2 + $0x1b8] sm:$0xff]
      %v515 = vld [vmem:[#allocation2 + $0x1c0] sm:$0x3f]
      %v516 = vld [vmem:[#allocation2 + $0x1c8] sm:$0xff]
      %v517 = vld [vmem:[#allocation2 + $0x1d0] sm:$0xff]
      %v518 = vld [vmem:[#allocation2 + $0x1d8] sm:$0x3f]
      %v519 = vld [vmem:[#allocation2 + $0x1e0] sm:$0xff]
      %v520 = vld [vmem:[#allocation2 + $0x1e8] sm:$0xff]
      %v521 = vld [vmem:[#allocation2 + $0x1f0] sm:$0x3f]
      %v522 = vld [vmem:[#allocation2 + $0x1f8] sm:$0xff]
      %v523 = vld [vmem:[#allocation2 + $0x200] sm:$0xff]
      %v524 = vld [vmem:[#allocation2 + $0x208] sm:$0x3f]
      %v525 = vld [vmem:[%s1] sm:$0x7f]
      %v526 = vld [vmem:[%s1 + $0x8] sm:$0x7f]
      %v527 = vld [vmem:[%s1 + $0x10] sm:$0x7f]
      %v528 = vld [vmem:[%s1 + $0x18] sm:$0x7f]
      %v529 = vld [vmem:[%s1 + $0x20] sm:$0x7f]
      %v530 = vld [vmem:[%s1 + $0x28] sm:$0x7f]
      %v531 = vld [vmem:[%s1 + $0x30] sm:$0x7f]
      %v532 = vlaneseq
      %v533 = vshrl.u32 %v532, 7
      %v534 = vsub.s32 0, %v533
      %v535 = vrot.slane %v525, %v534
      %v536 = vmul.f32 %v459, %v535
      %v537 = vmul.f32 %v460, %v535
      %v538 = vmul.f32 %v462, %v535
      %v539 = vmul.f32 %v463, %v535
      %v540 = vmul.f32 %v465, %v535
      %v541 = vmul.f32 %v466, %v535
      %v542 = vmul.f32 %v468, %v535
      %v543 = vmul.f32 %v469, %v535
      %v544 = vmul.f32 %v471, %v535
      %v545 = vmul.f32 %v472, %v535
      %v546 = vmul.f32 %v474, %v535
      %v547 = vmul.f32 %v475, %v535
      %v548 = vmul.f32 %v477, %v535
      %v549 = vmul.f32 %v478, %v535
      %v550 = vmul.f32 %v480, %v535
      %v551 = vmul.f32 %v481, %v535
      %v552 = vmul.f32 %v483, %v535
      %v553 = vmul.f32 %v484, %v535
      %v554 = vmul.f32 %v486, %v535
      %v555 = vmul.f32 %v487, %v535
      %v556 = vmul.f32 %v489, %v535
      %v557 = vmul.f32 %v490, %v535
      %v558 = vmul.f32 %v492, %v535
      %v559 = vmul.f32 %v493, %v535
      %v560 = vmul.f32 %v495, %v535
      %v561 = vmul.f32 %v496, %v535
      %v562 = vmul.f32 %v498, %v535
      %v563 = vmul.f32 %v499, %v535
      %v564 = vmul.f32 %v501, %v535
      %v565 = vmul.f32 %v502, %v535
      %v566 = vmul.f32 %v504, %v535
      %v567 = vmul.f32 %v505, %v535
      %v568 = vadd.f32 %v536, 0.0
      %v569 = vadd.f32 %v537, 0.0
      %v570 = vadd.f32 %v538, 0.0
      %v571 = vadd.f32 %v539, 0.0
      %v572 = vadd.f32 %v540, 0.0
      %v573 = vadd.f32 %v541, 0.0
      %v574 = vadd.f32 %v542, 0.0
      %v575 = vadd.f32 %v543, 0.0
      %v576 = vadd.f32 %v544, 0.0
      %v577 = vadd.f32 %v545, 0.0
      %v578 = vadd.f32 %v546, 0.0
      %v579 = vadd.f32 %v547, 0.0
      %v580 = vadd.f32 %v548, 0.0
      %v581 = vadd.f32 %v549, 0.0
      %v582 = vadd.f32 %v550, 0.0
      %v583 = vadd.f32 %v551, 0.0
      %v584 = vadd.f32 %v552, 0.0
      %v585 = vadd.f32 %v553, 0.0
      %v586 = vadd.f32 %v554, 0.0
      %v587 = vadd.f32 %v555, 0.0
      %v588 = vadd.f32 %v556, 0.0
      %v589 = vadd.f32 %v557, 0.0
      %v590 = vadd.f32 %v558, 0.0
      %v591 = vadd.f32 %v559, 0.0
      %v592 = vadd.f32 %v560, 0.0
      %v593 = vadd.f32 %v561, 0.0
      %v594 = vadd.f32 %v562, 0.0
      %v595 = vadd.f32 %v563, 0.0
      %v596 = vadd.f32 %v564, 0.0
      %v597 = vadd.f32 %v565, 0.0
      %v598 = vadd.f32 %v566, 0.0
      %v599 = vadd.f32 %v567, 0.0
      %v600 = vlaneseq
      %v601 = vshrl.u32 %v600, 7
      %v602 = vsub.s32 1, %v601
      %v603 = vrot.slane %v525, %v602
      %v604 = vmul.f32 %v459, %v603
      %v605 = vmul.f32 %v460, %v603
      %v606 = vmul.f32 %v461, %v603
      %v607 = vmul.f32 %v462, %v603
      %v608 = vmul.f32 %v463, %v603
      %v609 = vmul.f32 %v464, %v603
      %v610 = vmul.f32 %v465, %v603
      %v611 = vmul.f32 %v466, %v603
      %v612 = vmul.f32 %v467, %v603
      %v613 = vmul.f32 %v468, %v603
      %v614 = vmul.f32 %v469, %v603
      %v615 = vmul.f32 %v470, %v603
      %v616 = vmul.f32 %v471, %v603
      %v617 = vmul.f32 %v472, %v603
      %v618 = vmul.f32 %v473, %v603
      %v619 = vmul.f32 %v474, %v603
      %v620 = vmul.f32 %v475, %v603
      %v621 = vmul.f32 %v476, %v603
      %v622 = vmul.f32 %v477, %v603
      %v623 = vmul.f32 %v478, %v603
      %v624 = vmul.f32 %v479, %v603
      %v625 = vmul.f32 %v480, %v603
      %v626 = vmul.f32 %v481, %v603
      %v627 = vmul.f32 %v482, %v603
      %v628 = vmul.f32 %v483, %v603
      %v629 = vmul.f32 %v484, %v603
      %v630 = vmul.f32 %v485, %v603
      %v631 = vmul.f32 %v486, %v603
      %v632 = vmul.f32 %v487, %v603
      %v633 = vmul.f32 %v488, %v603
      %v634 = vmul.f32 %v489, %v603
      %v635 = vmul.f32 %v490, %v603
      %v636 = vmul.f32 %v491, %v603
      %v637 = vmul.f32 %v492, %v603
      %v638 = vmul.f32 %v493, %v603
      %v639 = vmul.f32 %v494, %v603
      %v640 = vmul.f32 %v495, %v603
      %v641 = vmul.f32 %v496, %v603
      %v642 = vmul.f32 %v497, %v603
      %v643 = vmul.f32 %v498, %v603
      %v644 = vmul.f32 %v499, %v603
      %v645 = vmul.f32 %v500, %v603
      %v646 = vmul.f32 %v501, %v603
      %v647 = vmul.f32 %v502, %v603
      %v648 = vmul.f32 %v503, %v603
      %v649 = vmul.f32 %v504, %v603
      %v650 = vmul.f32 %v505, %v603
      %v651 = vmul.f32 %v506, %v603
      %vm700 = vcmask 1046528
      %v701 = vrot.slane %v604, 1
      %v702 = vrot.slane %v605, 1
      %v703 = vsel %vm700, %v701, %v702
      %v704 = vrot.slane %v606, 1
      %v705 = vsel %vm700, %v702, %v704
      %v706 = vrot.slane %v607, 1
      %v707 = vrot.slane %v608, 1
      %v708 = vsel %vm700, %v706, %v707
      %v709 = vrot.slane %v609, 1
      %v710 = vsel %vm700, %v707, %v709
      %v711 = vrot.slane %v610, 1
      %v712 = vrot.slane %v611, 1
      %v713 = vsel %vm700, %v711, %v712
      %v714 = vrot.slane %v612, 1
      %v715 = vsel %vm700, %v712, %v714
      %v716 = vrot.slane %v613, 1
      %v717 = vrot.slane %v614, 1
      %v718 = vsel %vm700, %v716, %v717
      %v719 = vrot.slane %v615, 1
      %v720 = vsel %vm700, %v717, %v719
      %v721 = vrot.slane %v616, 1
      %v722 = vrot.slane %v617, 1
      %v723 = vsel %vm700, %v721, %v722
      %v724 = vrot.slane %v618, 1
      %v725 = vsel %vm700, %v722, %v724
      %v726 = vrot.slane %v619, 1
      %v727 = vrot.slane %v620, 1
      %v728 = vsel %vm700, %v726, %v727
      %v729 = vrot.slane %v621, 1
      %v730 = vsel %vm700, %v727, %v729
      %v731 = vrot.slane %v622, 1
      %v732 = vrot.slane %v623, 1
      %v733 = vsel %vm700, %v731, %v732
      %v734 = vrot.slane %v624, 1
      %v735 = vsel %vm700, %v732, %v734
      %v736 = vrot.slane %v625, 1
      %v737 = vrot.slane %v626, 1
      %v738 = vsel %vm700, %v736, %v737
      %v739 = vrot.slane %v627, 1
      %v740 = vsel %vm700, %v737, %v739
      %v741 = vrot.slane %v628, 1
      %v742 = vrot.slane %v629, 1
      %v743 = vsel %vm700, %v741, %v742
      %v744 = vrot.slane %v630, 1
      %v745 = vsel %vm700, %v742, %v744
      %v746 = vrot.slane %v631, 1
      %v747 = vrot.slane %v632, 1
      %v748 = vsel %vm700, %v746, %v747
      %v749 = vrot.slane %v633, 1
      %v750 = vsel %vm700, %v747, %v749
      %v751 = vrot.slane %v634, 1
      %v752 = vrot.slane %v635, 1
      %v753 = vsel %vm700, %v751, %v752
      %v754 = vrot.slane %v636, 1
      %v755 = vsel %vm700, %v752, %v754
      %v756 = vrot.slane %v637, 1
      %v757 = vrot.slane %v638, 1
      %v758 = vsel %vm700, %v756, %v757
      %v759 = vrot.slane %v639, 1
      %v760 = vsel %vm700, %v757, %v759
      %v761 = vrot.slane %v640, 1
      %v762 = vrot.slane %v641, 1
      %v763 = vsel %vm700, %v761, %v762
      %v764 = vrot.slane %v642, 1
      %v765 = vsel %vm700, %v762, %v764
      %v766 = vrot.slane %v643, 1
      %v767 = vrot.slane %v644, 1
      %v768 = vsel %vm700, %v766, %v767
      %v769 = vrot.slane %v645, 1
      %v770 = vsel %vm700, %v767, %v769
      %v771 = vrot.slane %v646, 1
      %v772 = vrot.slane %v647, 1
      %v773 = vsel %vm700, %v771, %v772
      %v774 = vrot.slane %v648, 1
      %v775 = vsel %vm700, %v772, %v774
      %v776 = vrot.slane %v649, 1
      %v777 = vrot.slane %v650, 1
      %v778 = vsel %vm700, %v776, %v777
      %v779 = vrot.slane %v651, 1
      %v780 = vsel %vm700, %v777, %v779
      %v813 = vadd.f32 %v568, %v703
      %v814 = vadd.f32 %v569, %v705
      %v815 = vadd.f32 %v570, %v708
      %v816 = vadd.f32 %v571, %v710
      %v817 = vadd.f32 %v572, %v713
      %v818 = vadd.f32 %v573, %v715
      %v819 = vadd.f32 %v574, %v718
      %v820 = vadd.f32 %v575, %v720
      %v821 = vadd.f32 %v576, %v723
      %v822 = vadd.f32 %v577, %v725
      %v823 = vadd.f32 %v578, %v728
      %v824 = vadd.f32 %v579, %v730
      %v825 = vadd.f32 %v580, %v733
      %v826 = vadd.f32 %v581, %v735
      %v827 = vadd.f32 %v582, %v738
      %v828 = vadd.f32 %v583, %v740
      %v829 = vadd.f32 %v584, %v743
      %v830 = vadd.f32 %v585, %v745
      %v831 = vadd.f32 %v586, %v748
      %v832 = vadd.f32 %v587, %v750
      %v833 = vadd.f32 %v588, %v753
      %v834 = vadd.f32 %v589, %v755
      %v835 = vadd.f32 %v590, %v758
      %v836 = vadd.f32 %v591, %v760
      %v837 = vadd.f32 %v592, %v763
      %v838 = vadd.f32 %v593, %v765
      %v839 = vadd.f32 %v594, %v768
      %v840 = vadd.f32 %v595, %v770
      %v841 = vadd.f32 %v596, %v773
      %v842 = vadd.f32 %v597, %v775
      %v843 = vadd.f32 %v598, %v778
      %v844 = vadd.f32 %v599, %v780
      %v845 = vlaneseq
      %v846 = vshrl.u32 %v845, 7
      %v847 = vsub.s32 2, %v846
      %v848 = vrot.slane %v525, %v847
      %v849 = vmul.f32 %v459, %v848
      %v850 = vmul.f32 %v460, %v848
      %v851 = vmul.f32 %v461, %v848
      %v852 = vmul.f32 %v462, %v848
      %v853 = vmul.f32 %v463, %v848
      %v854 = vmul.f32 %v464, %v848
      %v855 = vmul.f32 %v465, %v848
      %v856 = vmul.f32 %v466, %v848
      %v857 = vmul.f32 %v467, %v848
      %v858 = vmul.f32 %v468, %v848
      %v859 = vmul.f32 %v469, %v848
      %v860 = vmul.f32 %v470, %v848
      %v861 = vmul.f32 %v471, %v848
      %v862 = vmul.f32 %v472, %v848
      %v863 = vmul.f32 %v473, %v848
      %v864 = vmul.f32 %v474, %v848
      %v865 = vmul.f32 %v475, %v848
      %v866 = vmul.f32 %v476, %v848
      %v867 = vmul.f32 %v477, %v848
      %v868 = vmul.f32 %v478, %v848
      %v869 = vmul.f32 %v479, %v848
      %v870 = vmul.f32 %v480, %v848
      %v871 = vmul.f32 %v481, %v848
      %v872 = vmul.f32 %v482, %v848
      %v873 = vmul.f32 %v483, %v848
      %v874 = vmul.f32 %v484, %v848
      %v875 = vmul.f32 %v485, %v848
      %v876 = vmul.f32 %v486, %v848
      %v877 = vmul.f32 %v487, %v848
      %v878 = vmul.f32 %v488, %v848
      %v879 = vmul.f32 %v489, %v848
      %v880 = vmul.f32 %v490, %v848
      %v881 = vmul.f32 %v491, %v848
      %v882 = vmul.f32 %v492, %v848
      %v883 = vmul.f32 %v493, %v848
      %v884 = vmul.f32 %v494, %v848
      %v885 = vmul.f32 %v495, %v848
      %v886 = vmul.f32 %v496, %v848
      %v887 = vmul.f32 %v497, %v848
      %v888 = vmul.f32 %v498, %v848
      %v889 = vmul.f32 %v499, %v848
      %v890 = vmul.f32 %v500, %v848
      %v891 = vmul.f32 %v501, %v848
      %v892 = vmul.f32 %v502, %v848
      %v893 = vmul.f32 %v503, %v848
      %v894 = vmul.f32 %v504, %v848
      %v895 = vmul.f32 %v505, %v848
      %v896 = vmul.f32 %v506, %v848
      %vm945 = vcmask 1045504
      %v946 = vrot.slane %v849, 2
      %v947 = vrot.slane %v850, 2
      %v948 = vsel %vm945, %v946, %v947
      %v949 = vrot.slane %v851, 2
      %v950 = vsel %vm945, %v947, %v949
      %v951 = vrot.slane %v852, 2
      %v952 = vrot.slane %v853, 2
      %v953 = vsel %vm945, %v951, %v952
      %v954 = vrot.slane %v854, 2
      %v955 = vsel %vm945, %v952, %v954
      %v956 = vrot.slane %v855, 2
      %v957 = vrot.slane %v856, 2
      %v958 = vsel %vm945, %v956, %v957
      %v959 = vrot.slane %v857, 2
      %v960 = vsel %vm945, %v957, %v959
      %v961 = vrot.slane %v858, 2
      %v962 = vrot.slane %v859, 2
      %v963 = vsel %vm945, %v961, %v962
      %v964 = vrot.slane %v860, 2
      %v965 = vsel %vm945, %v962, %v964
      %v966 = vrot.slane %v861, 2
      %v967 = vrot.slane %v862, 2
      %v968 = vsel %vm945, %v966, %v967
      %v969 = vrot.slane %v863, 2
      %v970 = vsel %vm945, %v967, %v969
      %v971 = vrot.slane %v864, 2
      %v972 = vrot.slane %v865, 2
      %v973 = vsel %vm945, %v971, %v972
      %v974 = vrot.slane %v866, 2
      %v975 = vsel %vm945, %v972, %v974
      %v976 = vrot.slane %v867, 2
      %v977 = vrot.slane %v868, 2
      %v978 = vsel %vm945, %v976, %v977
      %v979 = vrot.slane %v869, 2
      %v980 = vsel %vm945, %v977, %v979
      %v981 = vrot.slane %v870, 2
      %v982 = vrot.slane %v871, 2
      %v983 = vsel %vm945, %v981, %v982
      %v984 = vrot.slane %v872, 2
      %v985 = vsel %vm945, %v982, %v984
      %v986 = vrot.slane %v873, 2
      %v987 = vrot.slane %v874, 2
      %v988 = vsel %vm945, %v986, %v987
      %v989 = vrot.slane %v875, 2
      %v990 = vsel %vm945, %v987, %v989
      %v991 = vrot.slane %v876, 2
      %v992 = vrot.slane %v877, 2
      %v993 = vsel %vm945, %v991, %v992
      %v994 = vrot.slane %v878, 2
      %v995 = vsel %vm945, %v992, %v994
      %v996 = vrot.slane %v879, 2
      %v997 = vrot.slane %v880, 2
      %v998 = vsel %vm945, %v996, %v997
      %v999 = vrot.slane %v881, 2
      %v1000 = vsel %vm945, %v997, %v999
      %v1001 = vrot.slane %v882, 2
      %v1002 = vrot.slane %v883, 2
      %v1003 = vsel %vm945, %v1001, %v1002
      %v1004 = vrot.slane %v884, 2
      %v1005 = vsel %vm945, %v1002, %v1004
      %v1006 = vrot.slane %v885, 2
      %v1007 = vrot.slane %v886, 2
      %v1008 = vsel %vm945, %v1006, %v1007
      %v1009 = vrot.slane %v887, 2
      %v1010 = vsel %vm945, %v1007, %v1009
      %v1011 = vrot.slane %v888, 2
      %v1012 = vrot.slane %v889, 2
      %v1013 = vsel %vm945, %v1011, %v1012
      %v1014 = vrot.slane %v890, 2
      %v1015 = vsel %vm945, %v1012, %v1014
      %v1016 = vrot.slane %v891, 2
      %v1017 = vrot.slane %v892, 2
      %v1018 = vsel %vm945, %v1016, %v1017
      %v1019 = vrot.slane %v893, 2
      %v1020 = vsel %vm945, %v1017, %v1019
      %v1021 = vrot.slane %v894, 2
      %v1022 = vrot.slane %v895, 2
      %v1023 = vsel %vm945, %v1021, %v1022
      %v1024 = vrot.slane %v896, 2
      %v1025 = vsel %vm945, %v1022, %v1024
      %v1058 = vadd.f32 %v813, %v948
      %v1059 = vadd.f32 %v814, %v950
      %v1060 = vadd.f32 %v815, %v953
      %v1061 = vadd.f32 %v816, %v955
      %v1062 = vadd.f32 %v817, %v958
      %v1063 = vadd.f32 %v818, %v960
      %v1064 = vadd.f32 %v819, %v963
      %v1065 = vadd.f32 %v820, %v965
      %v1066 = vadd.f32 %v821, %v968
      %v1067 = vadd.f32 %v822, %v970
      %v1068 = vadd.f32 %v823, %v973
      %v1069 = vadd.f32 %v824, %v975
      %v1070 = vadd.f32 %v825, %v978
      %v1071 = vadd.f32 %v826, %v980
      %v1072 = vadd.f32 %v827, %v983
      %v1073 = vadd.f32 %v828, %v985
      %v1074 = vadd.f32 %v829, %v988
      %v1075 = vadd.f32 %v830, %v990
      %v1076 = vadd.f32 %v831, %v993
      %v1077 = vadd.f32 %v832, %v995
      %v1078 = vadd.f32 %v833, %v998
      %v1079 = vadd.f32 %v834, %v1000
      %v1080 = vadd.f32 %v835, %v1003
      %v1081 = vadd.f32 %v836, %v1005
      %v1082 = vadd.f32 %v837, %v1008
      %v1083 = vadd.f32 %v838, %v1010
      %v1084 = vadd.f32 %v839, %v1013
      %v1085 = vadd.f32 %v840, %v1015
      %v1086 = vadd.f32 %v841, %v1018
      %v1087 = vadd.f32 %v842, %v1020
      %v1088 = vadd.f32 %v843, %v1023
      %v1089 = vadd.f32 %v844, %v1025
      %v1090 = vlaneseq
      %v1091 = vshrl.u32 %v1090, 7
      %v1092 = vsub.s32 3, %v1091
      %v1093 = vrot.slane %v525, %v1092
      %v1094 = vmul.f32 %v459, %v1093
      %v1095 = vmul.f32 %v460, %v1093
      %v1096 = vmul.f32 %v461, %v1093
      %v1097 = vmul.f32 %v462, %v1093
      %v1098 = vmul.f32 %v463, %v1093
      %v1099 = vmul.f32 %v464, %v1093
      %v1100 = vmul.f32 %v465, %v1093
      %v1101 = vmul.f32 %v466, %v1093
      %v1102 = vmul.f32 %v467, %v1093
      %v1103 = vmul.f32 %v468, %v1093
      %v1104 = vmul.f32 %v469, %v1093
      %v1105 = vmul.f32 %v470, %v1093
      %v1106 = vmul.f32 %v471, %v1093
      %v1107 = vmul.f32 %v472, %v1093
      %v1108 = vmul.f32 %v473, %v1093
      %v1109 = vmul.f32 %v474, %v1093
      %v1110 = vmul.f32 %v475, %v1093
      %v1111 = vmul.f32 %v476, %v1093
      %v1112 = vmul.f32 %v477, %v1093
      %v1113 = vmul.f32 %v478, %v1093
      %v1114 = vmul.f32 %v479, %v1093
      %v1115 = vmul.f32 %v480, %v1093
      %v1116 = vmul.f32 %v481, %v1093
      %v1117 = vmul.f32 %v482, %v1093
      %v1118 = vmul.f32 %v483, %v1093
      %v1119 = vmul.f32 %v484, %v1093
      %v1120 = vmul.f32 %v485, %v1093
      %v1121 = vmul.f32 %v486, %v1093
      %v1122 = vmul.f32 %v487, %v1093
      %v1123 = vmul.f32 %v488, %v1093
      %v1124 = vmul.f32 %v489, %v1093
      %v1125 = vmul.f32 %v490, %v1093
      %v1126 = vmul.f32 %v491, %v1093
      %v1127 = vmul.f32 %v492, %v1093
      %v1128 = vmul.f32 %v493, %v1093
      %v1129 = vmul.f32 %v494, %v1093
      %v1130 = vmul.f32 %v495, %v1093
      %v1131 = vmul.f32 %v496, %v1093
      %v1132 = vmul.f32 %v497, %v1093
      %v1133 = vmul.f32 %v498, %v1093
      %v1134 = vmul.f32 %v499, %v1093
      %v1135 = vmul.f32 %v500, %v1093
      %v1136 = vmul.f32 %v501, %v1093
      %v1137 = vmul.f32 %v502, %v1093
      %v1138 = vmul.f32 %v503, %v1093
      %v1139 = vmul.f32 %v504, %v1093
      %v1140 = vmul.f32 %v505, %v1093
      %v1141 = vmul.f32 %v506, %v1093
      %vm1190 = vcmask 1044480
      %v1191 = vrot.slane %v1094, 3
      %v1192 = vrot.slane %v1095, 3
      %v1193 = vsel %vm1190, %v1191, %v1192
      %v1194 = vrot.slane %v1096, 3
      %v1195 = vsel %vm1190, %v1192, %v1194
      %v1196 = vrot.slane %v1097, 3
      %v1197 = vrot.slane %v1098, 3
      %v1198 = vsel %vm1190, %v1196, %v1197
      %v1199 = vrot.slane %v1099, 3
      %v1200 = vsel %vm1190, %v1197, %v1199
      %v1201 = vrot.slane %v1100, 3
      %v1202 = vrot.slane %v1101, 3
      %v1203 = vsel %vm1190, %v1201, %v1202
      %v1204 = vrot.slane %v1102, 3
      %v1205 = vsel %vm1190, %v1202, %v1204
      %v1206 = vrot.slane %v1103, 3
      %v1207 = vrot.slane %v1104, 3
      %v1208 = vsel %vm1190, %v1206, %v1207
      %v1209 = vrot.slane %v1105, 3
      %v1210 = vsel %vm1190, %v1207, %v1209
      %v1211 = vrot.slane %v1106, 3
      %v1212 = vrot.slane %v1107, 3
      %v1213 = vsel %vm1190, %v1211, %v1212
      %v1214 = vrot.slane %v1108, 3
      %v1215 = vsel %vm1190, %v1212, %v1214
      %v1216 = vrot.slane %v1109, 3
      %v1217 = vrot.slane %v1110, 3
      %v1218 = vsel %vm1190, %v1216, %v1217
      %v1219 = vrot.slane %v1111, 3
      %v1220 = vsel %vm1190, %v1217, %v1219
      %v1221 = vrot.slane %v1112, 3
      %v1222 = vrot.slane %v1113, 3
      %v1223 = vsel %vm1190, %v1221, %v1222
      %v1224 = vrot.slane %v1114, 3
      %v1225 = vsel %vm1190, %v1222, %v1224
      %v1226 = vrot.slane %v1115, 3
      %v1227 = vrot.slane %v1116, 3
      %v1228 = vsel %vm1190, %v1226, %v1227
      %v1229 = vrot.slane %v1117, 3
      %v1230 = vsel %vm1190, %v1227, %v1229
      %v1231 = vrot.slane %v1118, 3
      %v1232 = vrot.slane %v1119, 3
      %v1233 = vsel %vm1190, %v1231, %v1232
      %v1234 = vrot.slane %v1120, 3
      %v1235 = vsel %vm1190, %v1232, %v1234
      %v1236 = vrot.slane %v1121, 3
      %v1237 = vrot.slane %v1122, 3
      %v1238 = vsel %vm1190, %v1236, %v1237
      %v1239 = vrot.slane %v1123, 3
      %v1240 = vsel %vm1190, %v1237, %v1239
      %v1241 = vrot.slane %v1124, 3
      %v1242 = vrot.slane %v1125, 3
      %v1243 = vsel %vm1190, %v1241, %v1242
      %v1244 = vrot.slane %v1126, 3
      %v1245 = vsel %vm1190, %v1242, %v1244
      %v1246 = vrot.slane %v1127, 3
      %v1247 = vrot.slane %v1128, 3
      %v1248 = vsel %vm1190, %v1246, %v1247
      %v1249 = vrot.slane %v1129, 3
      %v1250 = vsel %vm1190, %v1247, %v1249
      %v1251 = vrot.slane %v1130, 3
      %v1252 = vrot.slane %v1131, 3
      %v1253 = vsel %vm1190, %v1251, %v1252
      %v1254 = vrot.slane %v1132, 3
      %v1255 = vsel %vm1190, %v1252, %v1254
      %v1256 = vrot.slane %v1133, 3
      %v1257 = vrot.slane %v1134, 3
      %v1258 = vsel %vm1190, %v1256, %v1257
      %v1259 = vrot.slane %v1135, 3
      %v1260 = vsel %vm1190, %v1257, %v1259
      %v1261 = vrot.slane %v1136, 3
      %v1262 = vrot.slane %v1137, 3
      %v1263 = vsel %vm1190, %v1261, %v1262
      %v1264 = vrot.slane %v1138, 3
      %v1265 = vsel %vm1190, %v1262, %v1264
      %v1266 = vrot.slane %v1139, 3
      %v1267 = vrot.slane %v1140, 3
      %v1268 = vsel %vm1190, %v1266, %v1267
      %v1269 = vrot.slane %v1141, 3
      %v1270 = vsel %vm1190, %v1267, %v1269
      %v1303 = vadd.f32 %v1058, %v1193
      %v1304 = vadd.f32 %v1059, %v1195
      %v1305 = vadd.f32 %v1060, %v1198
      %v1306 = vadd.f32 %v1061, %v1200
      %v1307 = vadd.f32 %v1062, %v1203
      %v1308 = vadd.f32 %v1063, %v1205
      %v1309 = vadd.f32 %v1064, %v1208
      %v1310 = vadd.f32 %v1065, %v1210
      %v1311 = vadd.f32 %v1066, %v1213
      %v1312 = vadd.f32 %v1067, %v1215
      %v1313 = vadd.f32 %v1068, %v1218
      %v1314 = vadd.f32 %v1069, %v1220
      %v1315 = vadd.f32 %v1070, %v1223
      %v1316 = vadd.f32 %v1071, %v1225
      %v1317 = vadd.f32 %v1072, %v1228
      %v1318 = vadd.f32 %v1073, %v1230
      %v1319 = vadd.f32 %v1074, %v1233
      %v1320 = vadd.f32 %v1075, %v1235
      %v1321 = vadd.f32 %v1076, %v1238
      %v1322 = vadd.f32 %v1077, %v1240
      %v1323 = vadd.f32 %v1078, %v1243
      %v1324 = vadd.f32 %v1079, %v1245
      %v1325 = vadd.f32 %v1080, %v1248
      %v1326 = vadd.f32 %v1081, %v1250
      %v1327 = vadd.f32 %v1082, %v1253
      %v1328 = vadd.f32 %v1083, %v1255
      %v1329 = vadd.f32 %v1084, %v1258
      %v1330 = vadd.f32 %v1085, %v1260
      %v1331 = vadd.f32 %v1086, %v1263
      %v1332 = vadd.f32 %v1087, %v1265
      %v1333 = vadd.f32 %v1088, %v1268
      %v1334 = vadd.f32 %v1089, %v1270
      %v1335 = vlaneseq
      %v1336 = vshrl.u32 %v1335, 7
      %v1337 = vsub.s32 4, %v1336
      %v1338 = vrot.slane %v525, %v1337
      %v1339 = vmul.f32 %v459, %v1338
      %v1340 = vmul.f32 %v460, %v1338
      %v1341 = vmul.f32 %v461, %v1338
      %v1342 = vmul.f32 %v462, %v1338
      %v1343 = vmul.f32 %v463, %v1338
      %v1344 = vmul.f32 %v464, %v1338
      %v1345 = vmul.f32 %v465, %v1338
      %v1346 = vmul.f32 %v466, %v1338
      %v1347 = vmul.f32 %v467, %v1338
      %v1348 = vmul.f32 %v468, %v1338
      %v1349 = vmul.f32 %v469, %v1338
      %v1350 = vmul.f32 %v470, %v1338
      %v1351 = vmul.f32 %v471, %v1338
      %v1352 = vmul.f32 %v472, %v1338
      %v1353 = vmul.f32 %v473, %v1338
      %v1354 = vmul.f32 %v474, %v1338
      %v1355 = vmul.f32 %v475, %v1338
      %v1356 = vmul.f32 %v476, %v1338
      %v1357 = vmul.f32 %v477, %v1338
      %v1358 = vmul.f32 %v478, %v1338
      %v1359 = vmul.f32 %v479, %v1338
      %v1360 = vmul.f32 %v480, %v1338
      %v1361 = vmul.f32 %v481, %v1338
      %v1362 = vmul.f32 %v482, %v1338
      %v1363 = vmul.f32 %v483, %v1338
      %v1364 = vmul.f32 %v484, %v1338
      %v1365 = vmul.f32 %v485, %v1338
      %v1366 = vmul.f32 %v486, %v1338
      %v1367 = vmul.f32 %v487, %v1338
      %v1368 = vmul.f32 %v488, %v1338
      %v1369 = vmul.f32 %v489, %v1338
      %v1370 = vmul.f32 %v490, %v1338
      %v1371 = vmul.f32 %v491, %v1338
      %v1372 = vmul.f32 %v492, %v1338
      %v1373 = vmul.f32 %v493, %v1338
      %v1374 = vmul.f32 %v494, %v1338
      %v1375 = vmul.f32 %v495, %v1338
      %v1376 = vmul.f32 %v496, %v1338
      %v1377 = vmul.f32 %v497, %v1338
      %v1378 = vmul.f32 %v498, %v1338
      %v1379 = vmul.f32 %v499, %v1338
      %v1380 = vmul.f32 %v500, %v1338
      %v1381 = vmul.f32 %v501, %v1338
      %v1382 = vmul.f32 %v502, %v1338
      %v1383 = vmul.f32 %v503, %v1338
      %v1384 = vmul.f32 %v504, %v1338
      %v1385 = vmul.f32 %v505, %v1338
      %v1386 = vmul.f32 %v506, %v1338
      %vm1435 = vcmask 1043456
      %v1436 = vrot.slane %v1339, 4
      %v1437 = vrot.slane %v1340, 4
      %v1438 = vsel %vm1435, %v1436, %v1437
      %v1439 = vrot.slane %v1341, 4
      %v1440 = vsel %vm1435, %v1437, %v1439
      %v1441 = vrot.slane %v1342, 4
      %v1442 = vrot.slane %v1343, 4
      %v1443 = vsel %vm1435, %v1441, %v1442
      %v1444 = vrot.slane %v1344, 4
      %v1445 = vsel %vm1435, %v1442, %v1444
      %v1446 = vrot.slane %v1345, 4
      %v1447 = vrot.slane %v1346, 4
      %v1448 = vsel %vm1435, %v1446, %v1447
      %v1449 = vrot.slane %v1347, 4
      %v1450 = vsel %vm1435, %v1447, %v1449
      %v1451 = vrot.slane %v1348, 4
      %v1452 = vrot.slane %v1349, 4
      %v1453 = vsel %vm1435, %v1451, %v1452
      %v1454 = vrot.slane %v1350, 4
      %v1455 = vsel %vm1435, %v1452, %v1454
      %v1456 = vrot.slane %v1351, 4
      %v1457 = vrot.slane %v1352, 4
      %v1458 = vsel %vm1435, %v1456, %v1457
      %v1459 = vrot.slane %v1353, 4
      %v1460 = vsel %vm1435, %v1457, %v1459
      %v1461 = vrot.slane %v1354, 4
      %v1462 = vrot.slane %v1355, 4
      %v1463 = vsel %vm1435, %v1461, %v1462
      %v1464 = vrot.slane %v1356, 4
      %v1465 = vsel %vm1435, %v1462, %v1464
      %v1466 = vrot.slane %v1357, 4
      %v1467 = vrot.slane %v1358, 4
      %v1468 = vsel %vm1435, %v1466, %v1467
      %v1469 = vrot.slane %v1359, 4
      %v1470 = vsel %vm1435, %v1467, %v1469
      %v1471 = vrot.slane %v1360, 4
      %v1472 = vrot.slane %v1361, 4
      %v1473 = vsel %vm1435, %v1471, %v1472
      %v1474 = vrot.slane %v1362, 4
      %v1475 = vsel %vm1435, %v1472, %v1474
      %v1476 = vrot.slane %v1363, 4
      %v1477 = vrot.slane %v1364, 4
      %v1478 = vsel %vm1435, %v1476, %v1477
      %v1479 = vrot.slane %v1365, 4
      %v1480 = vsel %vm1435, %v1477, %v1479
      %v1481 = vrot.slane %v1366, 4
      %v1482 = vrot.slane %v1367, 4
      %v1483 = vsel %vm1435, %v1481, %v1482
      %v1484 = vrot.slane %v1368, 4
      %v1485 = vsel %vm1435, %v1482, %v1484
      %v1486 = vrot.slane %v1369, 4
      %v1487 = vrot.slane %v1370, 4
      %v1488 = vsel %vm1435, %v1486, %v1487
      %v1489 = vrot.slane %v1371, 4
      %v1490 = vsel %vm1435, %v1487, %v1489
      %v1491 = vrot.slane %v1372, 4
      %v1492 = vrot.slane %v1373, 4
      %v1493 = vsel %vm1435, %v1491, %v1492
      %v1494 = vrot.slane %v1374, 4
      %v1495 = vsel %vm1435, %v1492, %v1494
      %v1496 = vrot.slane %v1375, 4
      %v1497 = vrot.slane %v1376, 4
      %v1498 = vsel %vm1435, %v1496, %v1497
      %v1499 = vrot.slane %v1377, 4
      %v1500 = vsel %vm1435, %v1497, %v1499
      %v1501 = vrot.slane %v1378, 4
      %v1502 = vrot.slane %v1379, 4
      %v1503 = vsel %vm1435, %v1501, %v1502
      %v1504 = vrot.slane %v1380, 4
      %v1505 = vsel %vm1435, %v1502, %v1504
      %v1506 = vrot.slane %v1381, 4
      %v1507 = vrot.slane %v1382, 4
      %v1508 = vsel %vm1435, %v1506, %v1507
      %v1509 = vrot.slane %v1383, 4
      %v1510 = vsel %vm1435, %v1507, %v1509
      %v1511 = vrot.slane %v1384, 4
      %v1512 = vrot.slane %v1385, 4
      %v1513 = vsel %vm1435, %v1511, %v1512
      %v1514 = vrot.slane %v1386, 4
      %v1515 = vsel %vm1435, %v1512, %v1514
      %v1548 = vadd.f32 %v1303, %v1438
      %v1549 = vadd.f32 %v1304, %v1440
      %v1550 = vadd.f32 %v1305, %v1443
      %v1551 = vadd.f32 %v1306, %v1445
      %v1552 = vadd.f32 %v1307, %v1448
      %v1553 = vadd.f32 %v1308, %v1450
      %v1554 = vadd.f32 %v1309, %v1453
      %v1555 = vadd.f32 %v1310, %v1455
      %v1556 = vadd.f32 %v1311, %v1458
      %v1557 = vadd.f32 %v1312, %v1460
      %v1558 = vadd.f32 %v1313, %v1463
      %v1559 = vadd.f32 %v1314, %v1465
      %v1560 = vadd.f32 %v1315, %v1468
      %v1561 = vadd.f32 %v1316, %v1470
      %v1562 = vadd.f32 %v1317, %v1473
      %v1563 = vadd.f32 %v1318, %v1475
      %v1564 = vadd.f32 %v1319, %v1478
      %v1565 = vadd.f32 %v1320, %v1480
      %v1566 = vadd.f32 %v1321, %v1483
      %v1567 = vadd.f32 %v1322, %v1485
      %v1568 = vadd.f32 %v1323, %v1488
      %v1569 = vadd.f32 %v1324, %v1490
      %v1570 = vadd.f32 %v1325, %v1493
      %v1571 = vadd.f32 %v1326, %v1495
      %v1572 = vadd.f32 %v1327, %v1498
      %v1573 = vadd.f32 %v1328, %v1500
      %v1574 = vadd.f32 %v1329, %v1503
      %v1575 = vadd.f32 %v1330, %v1505
      %v1576 = vadd.f32 %v1331, %v1508
      %v1577 = vadd.f32 %v1332, %v1510
      %v1578 = vadd.f32 %v1333, %v1513
      %v1579 = vadd.f32 %v1334, %v1515
      %v1580 = vlaneseq
      %v1581 = vshrl.u32 %v1580, 7
      %v1582 = vsub.s32 5, %v1581
      %v1583 = vrot.slane %v525, %v1582
      %v1584 = vmul.f32 %v459, %v1583
      %v1585 = vmul.f32 %v460, %v1583
      %v1586 = vmul.f32 %v461, %v1583
      %v1587 = vmul.f32 %v462, %v1583
      %v1588 = vmul.f32 %v463, %v1583
      %v1589 = vmul.f32 %v464, %v1583
      %v1590 = vmul.f32 %v465, %v1583
      %v1591 = vmul.f32 %v466, %v1583
      %v1592 = vmul.f32 %v467, %v1583
      %v1593 = vmul.f32 %v468, %v1583
      %v1594 = vmul.f32 %v469, %v1583
      %v1595 = vmul.f32 %v470, %v1583
      %v1596 = vmul.f32 %v471, %v1583
      %v1597 = vmul.f32 %v472, %v1583
      %v1598 = vmul.f32 %v473, %v1583
      %v1599 = vmul.f32 %v474, %v1583
      %v1600 = vmul.f32 %v475, %v1583
      %v1601 = vmul.f32 %v476, %v1583
      %v1602 = vmul.f32 %v477, %v1583
      %v1603 = vmul.f32 %v478, %v1583
      %v1604 = vmul.f32 %v479, %v1583
      %v1605 = vmul.f32 %v480, %v1583
      %v1606 = vmul.f32 %v481, %v1583
      %v1607 = vmul.f32 %v482, %v1583
      %v1608 = vmul.f32 %v483, %v1583
      %v1609 = vmul.f32 %v484, %v1583
      %v1610 = vmul.f32 %v485, %v1583
      %v1611 = vmul.f32 %v486, %v1583
      %v1612 = vmul.f32 %v487, %v1583
      %v1613 = vmul.f32 %v488, %v1583
      %v1614 = vmul.f32 %v489, %v1583
      %v1615 = vmul.f32 %v490, %v1583
      %v1616 = vmul.f32 %v491, %v1583
      %v1617 = vmul.f32 %v492, %v1583
      %v1618 = vmul.f32 %v493, %v1583
      %v1619 = vmul.f32 %v494, %v1583
      %v1620 = vmul.f32 %v495, %v1583
      %v1621 = vmul.f32 %v496, %v1583
      %v1622 = vmul.f32 %v497, %v1583
      %v1623 = vmul.f32 %v498, %v1583
      %v1624 = vmul.f32 %v499, %v1583
      %v1625 = vmul.f32 %v500, %v1583
      %v1626 = vmul.f32 %v501, %v1583
      %v1627 = vmul.f32 %v502, %v1583
      %v1628 = vmul.f32 %v503, %v1583
      %v1629 = vmul.f32 %v504, %v1583
      %v1630 = vmul.f32 %v505, %v1583
      %v1631 = vmul.f32 %v506, %v1583
      %vm1680 = vcmask 1042432
      %v1681 = vrot.slane %v1584, 5
      %v1682 = vrot.slane %v1585, 5
      %v1683 = vsel %vm1680, %v1681, %v1682
      %v1684 = vrot.slane %v1586, 5
      %v1685 = vsel %vm1680, %v1682, %v1684
      %v1686 = vrot.slane %v1587, 5
      %v1687 = vrot.slane %v1588, 5
      %v1688 = vsel %vm1680, %v1686, %v1687
      %v1689 = vrot.slane %v1589, 5
      %v1690 = vsel %vm1680, %v1687, %v1689
      %v1691 = vrot.slane %v1590, 5
      %v1692 = vrot.slane %v1591, 5
      %v1693 = vsel %vm1680, %v1691, %v1692
      %v1694 = vrot.slane %v1592, 5
      %v1695 = vsel %vm1680, %v1692, %v1694
      %v1696 = vrot.slane %v1593, 5
      %v1697 = vrot.slane %v1594, 5
      %v1698 = vsel %vm1680, %v1696, %v1697
      %v1699 = vrot.slane %v1595, 5
      %v1700 = vsel %vm1680, %v1697, %v1699
      %v1701 = vrot.slane %v1596, 5
      %v1702 = vrot.slane %v1597, 5
      %v1703 = vsel %vm1680, %v1701, %v1702
      %v1704 = vrot.slane %v1598, 5
      %v1705 = vsel %vm1680, %v1702, %v1704
      %v1706 = vrot.slane %v1599, 5
      %v1707 = vrot.slane %v1600, 5
      %v1708 = vsel %vm1680, %v1706, %v1707
      %v1709 = vrot.slane %v1601, 5
      %v1710 = vsel %vm1680, %v1707, %v1709
      %v1711 = vrot.slane %v1602, 5
      %v1712 = vrot.slane %v1603, 5
      %v1713 = vsel %vm1680, %v1711, %v1712
      %v1714 = vrot.slane %v1604, 5
      %v1715 = vsel %vm1680, %v1712, %v1714
      %v1716 = vrot.slane %v1605, 5
      %v1717 = vrot.slane %v1606, 5
      %v1718 = vsel %vm1680, %v1716, %v1717
      %v1719 = vrot.slane %v1607, 5
      %v1720 = vsel %vm1680, %v1717, %v1719
      %v1721 = vrot.slane %v1608, 5
      %v1722 = vrot.slane %v1609, 5
      %v1723 = vsel %vm1680, %v1721, %v1722
      %v1724 = vrot.slane %v1610, 5
      %v1725 = vsel %vm1680, %v1722, %v1724
      %v1726 = vrot.slane %v1611, 5
      %v1727 = vrot.slane %v1612, 5
      %v1728 = vsel %vm1680, %v1726, %v1727
      %v1729 = vrot.slane %v1613, 5
      %v1730 = vsel %vm1680, %v1727, %v1729
      %v1731 = vrot.slane %v1614, 5
      %v1732 = vrot.slane %v1615, 5
      %v1733 = vsel %vm1680, %v1731, %v1732
      %v1734 = vrot.slane %v1616, 5
      %v1735 = vsel %vm1680, %v1732, %v1734
      %v1736 = vrot.slane %v1617, 5
      %v1737 = vrot.slane %v1618, 5
      %v1738 = vsel %vm1680, %v1736, %v1737
      %v1739 = vrot.slane %v1619, 5
      %v1740 = vsel %vm1680, %v1737, %v1739
      %v1741 = vrot.slane %v1620, 5
      %v1742 = vrot.slane %v1621, 5
      %v1743 = vsel %vm1680, %v1741, %v1742
      %v1744 = vrot.slane %v1622, 5
      %v1745 = vsel %vm1680, %v1742, %v1744
      %v1746 = vrot.slane %v1623, 5
      %v1747 = vrot.slane %v1624, 5
      %v1748 = vsel %vm1680, %v1746, %v1747
      %v1749 = vrot.slane %v1625, 5
      %v1750 = vsel %vm1680, %v1747, %v1749
      %v1751 = vrot.slane %v1626, 5
      %v1752 = vrot.slane %v1627, 5
      %v1753 = vsel %vm1680, %v1751, %v1752
      %v1754 = vrot.slane %v1628, 5
      %v1755 = vsel %vm1680, %v1752, %v1754
      %v1756 = vrot.slane %v1629, 5
      %v1757 = vrot.slane %v1630, 5
      %v1758 = vsel %vm1680, %v1756, %v1757
      %v1759 = vrot.slane %v1631, 5
      %v1760 = vsel %vm1680, %v1757, %v1759
      %v1793 = vadd.f32 %v1548, %v1683
      %v1794 = vadd.f32 %v1549, %v1685
      %v1795 = vadd.f32 %v1550, %v1688
      %v1796 = vadd.f32 %v1551, %v1690
      %v1797 = vadd.f32 %v1552, %v1693
      %v1798 = vadd.f32 %v1553, %v1695
      %v1799 = vadd.f32 %v1554, %v1698
      %v1800 = vadd.f32 %v1555, %v1700
      %v1801 = vadd.f32 %v1556, %v1703
      %v1802 = vadd.f32 %v1557, %v1705
      %v1803 = vadd.f32 %v1558, %v1708
      %v1804 = vadd.f32 %v1559, %v1710
      %v1805 = vadd.f32 %v1560, %v1713
      %v1806 = vadd.f32 %v1561, %v1715
      %v1807 = vadd.f32 %v1562, %v1718
      %v1808 = vadd.f32 %v1563, %v1720
      %v1809 = vadd.f32 %v1564, %v1723
      %v1810 = vadd.f32 %v1565, %v1725
      %v1811 = vadd.f32 %v1566, %v1728
      %v1812 = vadd.f32 %v1567, %v1730
      %v1813 = vadd.f32 %v1568, %v1733
      %v1814 = vadd.f32 %v1569, %v1735
      %v1815 = vadd.f32 %v1570, %v1738
      %v1816 = vadd.f32 %v1571, %v1740
      %v1817 = vadd.f32 %v1572, %v1743
      %v1818 = vadd.f32 %v1573, %v1745
      %v1819 = vadd.f32 %v1574, %v1748
      %v1820 = vadd.f32 %v1575, %v1750
      %v1821 = vadd.f32 %v1576, %v1753
      %v1822 = vadd.f32 %v1577, %v1755
      %v1823 = vadd.f32 %v1578, %v1758
      %v1824 = vadd.f32 %v1579, %v1760
      %v1825 = vlaneseq
      %v1826 = vshrl.u32 %v1825, 7
      %v1827 = vsub.s32 6, %v1826
      %v1828 = vrot.slane %v525, %v1827
      %v1829 = vmul.f32 %v459, %v1828
      %v1830 = vmul.f32 %v460, %v1828
      %v1831 = vmul.f32 %v461, %v1828
      %v1832 = vmul.f32 %v462, %v1828
      %v1833 = vmul.f32 %v463, %v1828
      %v1834 = vmul.f32 %v464, %v1828
      %v1835 = vmul.f32 %v465, %v1828
      %v1836 = vmul.f32 %v466, %v1828
      %v1837 = vmul.f32 %v467, %v1828
      %v1838 = vmul.f32 %v468, %v1828
      %v1839 = vmul.f32 %v469, %v1828
      %v1840 = vmul.f32 %v470, %v1828
      %v1841 = vmul.f32 %v471, %v1828
      %v1842 = vmul.f32 %v472, %v1828
      %v1843 = vmul.f32 %v473, %v1828
      %v1844 = vmul.f32 %v474, %v1828
      %v1845 = vmul.f32 %v475, %v1828
      %v1846 = vmul.f32 %v476, %v1828
      %v1847 = vmul.f32 %v477, %v1828
      %v1848 = vmul.f32 %v478, %v1828
      %v1849 = vmul.f32 %v479, %v1828
      %v1850 = vmul.f32 %v480, %v1828
      %v1851 = vmul.f32 %v481, %v1828
      %v1852 = vmul.f32 %v482, %v1828
      %v1853 = vmul.f32 %v483, %v1828
      %v1854 = vmul.f32 %v484, %v1828
      %v1855 = vmul.f32 %v485, %v1828
      %v1856 = vmul.f32 %v486, %v1828
      %v1857 = vmul.f32 %v487, %v1828
      %v1858 = vmul.f32 %v488, %v1828
      %v1859 = vmul.f32 %v489, %v1828
      %v1860 = vmul.f32 %v490, %v1828
      %v1861 = vmul.f32 %v491, %v1828
      %v1862 = vmul.f32 %v492, %v1828
      %v1863 = vmul.f32 %v493, %v1828
      %v1864 = vmul.f32 %v494, %v1828
      %v1865 = vmul.f32 %v495, %v1828
      %v1866 = vmul.f32 %v496, %v1828
      %v1867 = vmul.f32 %v497, %v1828
      %v1868 = vmul.f32 %v498, %v1828
      %v1869 = vmul.f32 %v499, %v1828
      %v1870 = vmul.f32 %v500, %v1828
      %v1871 = vmul.f32 %v501, %v1828
      %v1872 = vmul.f32 %v502, %v1828
      %v1873 = vmul.f32 %v503, %v1828
      %v1874 = vmul.f32 %v504, %v1828
      %v1875 = vmul.f32 %v505, %v1828
      %v1876 = vmul.f32 %v506, %v1828
      %vm1925 = vcmask 1041408
      %v1926 = vrot.slane %v1829, 6
      %v1927 = vrot.slane %v1830, 6
      %v1928 = vsel %vm1925, %v1926, %v1927
      %v1929 = vrot.slane %v1831, 6
      %v1930 = vsel %vm1925, %v1927, %v1929
      %v1931 = vrot.slane %v1832, 6
      %v1932 = vrot.slane %v1833, 6
      %v1933 = vsel %vm1925, %v1931, %v1932
      %v1934 = vrot.slane %v1834, 6
      %v1935 = vsel %vm1925, %v1932, %v1934
      %v1936 = vrot.slane %v1835, 6
      %v1937 = vrot.slane %v1836, 6
      %v1938 = vsel %vm1925, %v1936, %v1937
      %v1939 = vrot.slane %v1837, 6
      %v1940 = vsel %vm1925, %v1937, %v1939
      %v1941 = vrot.slane %v1838, 6
      %v1942 = vrot.slane %v1839, 6
      %v1943 = vsel %vm1925, %v1941, %v1942
      %v1944 = vrot.slane %v1840, 6
      %v1945 = vsel %vm1925, %v1942, %v1944
      %v1946 = vrot.slane %v1841, 6
      %v1947 = vrot.slane %v1842, 6
      %v1948 = vsel %vm1925, %v1946, %v1947
      %v1949 = vrot.slane %v1843, 6
      %v1950 = vsel %vm1925, %v1947, %v1949
      %v1951 = vrot.slane %v1844, 6
      %v1952 = vrot.slane %v1845, 6
      %v1953 = vsel %vm1925, %v1951, %v1952
      %v1954 = vrot.slane %v1846, 6
      %v1955 = vsel %vm1925, %v1952, %v1954
      %v1956 = vrot.slane %v1847, 6
      %v1957 = vrot.slane %v1848, 6
      %v1958 = vsel %vm1925, %v1956, %v1957
      %v1959 = vrot.slane %v1849, 6
      %v1960 = vsel %vm1925, %v1957, %v1959
      %v1961 = vrot.slane %v1850, 6
      %v1962 = vrot.slane %v1851, 6
      %v1963 = vsel %vm1925, %v1961, %v1962
      %v1964 = vrot.slane %v1852, 6
      %v1965 = vsel %vm1925, %v1962, %v1964
      %v1966 = vrot.slane %v1853, 6
      %v1967 = vrot.slane %v1854, 6
      %v1968 = vsel %vm1925, %v1966, %v1967
      %v1969 = vrot.slane %v1855, 6
      %v1970 = vsel %vm1925, %v1967, %v1969
      %v1971 = vrot.slane %v1856, 6
      %v1972 = vrot.slane %v1857, 6
      %v1973 = vsel %vm1925, %v1971, %v1972
      %v1974 = vrot.slane %v1858, 6
      %v1975 = vsel %vm1925, %v1972, %v1974
      %v1976 = vrot.slane %v1859, 6
      %v1977 = vrot.slane %v1860, 6
      %v1978 = vsel %vm1925, %v1976, %v1977
      %v1979 = vrot.slane %v1861, 6
      %v1980 = vsel %vm1925, %v1977, %v1979
      %v1981 = vrot.slane %v1862, 6
      %v1982 = vrot.slane %v1863, 6
      %v1983 = vsel %vm1925, %v1981, %v1982
      %v1984 = vrot.slane %v1864, 6
      %v1985 = vsel %vm1925, %v1982, %v1984
      %v1986 = vrot.slane %v1865, 6
      %v1987 = vrot.slane %v1866, 6
      %v1988 = vsel %vm1925, %v1986, %v1987
      %v1989 = vrot.slane %v1867, 6
      %v1990 = vsel %vm1925, %v1987, %v1989
      %v1991 = vrot.slane %v1868, 6
      %v1992 = vrot.slane %v1869, 6
      %v1993 = vsel %vm1925, %v1991, %v1992
      %v1994 = vrot.slane %v1870, 6
      %v1995 = vsel %vm1925, %v1992, %v1994
      %v1996 = vrot.slane %v1871, 6
      %v1997 = vrot.slane %v1872, 6
      %v1998 = vsel %vm1925, %v1996, %v1997
      %v1999 = vrot.slane %v1873, 6
      %v2000 = vsel %vm1925, %v1997, %v1999
      %v2001 = vrot.slane %v1874, 6
      %v2002 = vrot.slane %v1875, 6
      %v2003 = vsel %vm1925, %v2001, %v2002
      %v2004 = vrot.slane %v1876, 6
      %v2005 = vsel %vm1925, %v2002, %v2004
      %v2038 = vadd.f32 %v1793, %v1928
      %v2039 = vadd.f32 %v1794, %v1930
      %v2040 = vadd.f32 %v1795, %v1933
      %v2041 = vadd.f32 %v1796, %v1935
      %v2042 = vadd.f32 %v1797, %v1938
      %v2043 = vadd.f32 %v1798, %v1940
      %v2044 = vadd.f32 %v1799, %v1943
      %v2045 = vadd.f32 %v1800, %v1945
      %v2046 = vadd.f32 %v1801, %v1948
      %v2047 = vadd.f32 %v1802, %v1950
      %v2048 = vadd.f32 %v1803, %v1953
      %v2049 = vadd.f32 %v1804, %v1955
      %v2050 = vadd.f32 %v1805, %v1958
      %v2051 = vadd.f32 %v1806, %v1960
      %v2052 = vadd.f32 %v1807, %v1963
      %v2053 = vadd.f32 %v1808, %v1965
      %v2054 = vadd.f32 %v1809, %v1968
      %v2055 = vadd.f32 %v1810, %v1970
      %v2056 = vadd.f32 %v1811, %v1973
      %v2057 = vadd.f32 %v1812, %v1975
      %v2058 = vadd.f32 %v1813, %v1978
      %v2059 = vadd.f32 %v1814, %v1980
      %v2060 = vadd.f32 %v1815, %v1983
      %v2061 = vadd.f32 %v1816, %v1985
      %v2062 = vadd.f32 %v1817, %v1988
      %v2063 = vadd.f32 %v1818, %v1990
      %v2064 = vadd.f32 %v1819, %v1993
      %v2065 = vadd.f32 %v1820, %v1995
      %v2066 = vadd.f32 %v1821, %v1998
      %v2067 = vadd.f32 %v1822, %v2000
      %v2068 = vadd.f32 %v1823, %v2003
      %v2069 = vadd.f32 %v1824, %v2005
      %v2070 = vlaneseq
      %v2071 = vshrl.u32 %v2070, 7
      %v2072 = vsub.s32 0, %v2071
      %v2073 = vrot.slane %v526, %v2072
      %v2074 = vmul.f32 %v462, %v2073
      %v2075 = vmul.f32 %v463, %v2073
      %v2076 = vmul.f32 %v465, %v2073
      %v2077 = vmul.f32 %v466, %v2073
      %v2078 = vmul.f32 %v468, %v2073
      %v2079 = vmul.f32 %v469, %v2073
      %v2080 = vmul.f32 %v471, %v2073
      %v2081 = vmul.f32 %v472, %v2073
      %v2082 = vmul.f32 %v474, %v2073
      %v2083 = vmul.f32 %v475, %v2073
      %v2084 = vmul.f32 %v477, %v2073
      %v2085 = vmul.f32 %v478, %v2073
      %v2086 = vmul.f32 %v480, %v2073
      %v2087 = vmul.f32 %v481, %v2073
      %v2088 = vmul.f32 %v483, %v2073
      %v2089 = vmul.f32 %v484, %v2073
      %v2090 = vmul.f32 %v486, %v2073
      %v2091 = vmul.f32 %v487, %v2073
      %v2092 = vmul.f32 %v489, %v2073
      %v2093 = vmul.f32 %v490, %v2073
      %v2094 = vmul.f32 %v492, %v2073
      %v2095 = vmul.f32 %v493, %v2073
      %v2096 = vmul.f32 %v495, %v2073
      %v2097 = vmul.f32 %v496, %v2073
      %v2098 = vmul.f32 %v498, %v2073
      %v2099 = vmul.f32 %v499, %v2073
      %v2100 = vmul.f32 %v501, %v2073
      %v2101 = vmul.f32 %v502, %v2073
      %v2102 = vmul.f32 %v504, %v2073
      %v2103 = vmul.f32 %v505, %v2073
      %v2104 = vmul.f32 %v507, %v2073
      %v2105 = vmul.f32 %v508, %v2073
      %v2106 = vadd.f32 %v2038, %v2074
      %v2107 = vadd.f32 %v2039, %v2075
      %v2108 = vadd.f32 %v2040, %v2076
      %v2109 = vadd.f32 %v2041, %v2077
      %v2110 = vadd.f32 %v2042, %v2078
      %v2111 = vadd.f32 %v2043, %v2079
      %v2112 = vadd.f32 %v2044, %v2080
      %v2113 = vadd.f32 %v2045, %v2081
      %v2114 = vadd.f32 %v2046, %v2082
      %v2115 = vadd.f32 %v2047, %v2083
      %v2116 = vadd.f32 %v2048, %v2084
      %v2117 = vadd.f32 %v2049, %v2085
      %v2118 = vadd.f32 %v2050, %v2086
      %v2119 = vadd.f32 %v2051, %v2087
      %v2120 = vadd.f32 %v2052, %v2088
      %v2121 = vadd.f32 %v2053, %v2089
      %v2122 = vadd.f32 %v2054, %v2090
      %v2123 = vadd.f32 %v2055, %v2091
      %v2124 = vadd.f32 %v2056, %v2092
      %v2125 = vadd.f32 %v2057, %v2093
      %v2126 = vadd.f32 %v2058, %v2094
      %v2127 = vadd.f32 %v2059, %v2095
      %v2128 = vadd.f32 %v2060, %v2096
      %v2129 = vadd.f32 %v2061, %v2097
      %v2130 = vadd.f32 %v2062, %v2098
      %v2131 = vadd.f32 %v2063, %v2099
      %v2132 = vadd.f32 %v2064, %v2100
      %v2133 = vadd.f32 %v2065, %v2101
      %v2134 = vadd.f32 %v2066, %v2102
      %v2135 = vadd.f32 %v2067, %v2103
      %v2136 = vadd.f32 %v2068, %v2104
      %v2137 = vadd.f32 %v2069, %v2105
      %v2138 = vlaneseq
      %v2139 = vshrl.u32 %v2138, 7
      %v2140 = vsub.s32 1, %v2139
      %v2141 = vrot.slane %v526, %v2140
      %v2142 = vmul.f32 %v462, %v2141
      %v2143 = vmul.f32 %v463, %v2141
      %v2144 = vmul.f32 %v464, %v2141
      %v2145 = vmul.f32 %v465, %v2141
      %v2146 = vmul.f32 %v466, %v2141
      %v2147 = vmul.f32 %v467, %v2141
      %v2148 = vmul.f32 %v468, %v2141
      %v2149 = vmul.f32 %v469, %v2141
      %v2150 = vmul.f32 %v470, %v2141
      %v2151 = vmul.f32 %v471, %v2141
      %v2152 = vmul.f32 %v472, %v2141
      %v2153 = vmul.f32 %v473, %v2141
      %v2154 = vmul.f32 %v474, %v2141
      %v2155 = vmul.f32 %v475, %v2141
      %v2156 = vmul.f32 %v476, %v2141
      %v2157 = vmul.f32 %v477, %v2141
      %v2158 = vmul.f32 %v478, %v2141
      %v2159 = vmul.f32 %v479, %v2141
      %v2160 = vmul.f32 %v480, %v2141
      %v2161 = vmul.f32 %v481, %v2141
      %v2162 = vmul.f32 %v482, %v2141
      %v2163 = vmul.f32 %v483, %v2141
      %v2164 = vmul.f32 %v484, %v2141
      %v2165 = vmul.f32 %v485, %v2141
      %v2166 = vmul.f32 %v486, %v2141
      %v2167 = vmul.f32 %v487, %v2141
      %v2168 = vmul.f32 %v488, %v2141
      %v2169 = vmul.f32 %v489, %v2141
      %v2170 = vmul.f32 %v490, %v2141
      %v2171 = vmul.f32 %v491, %v2141
      %v2172 = vmul.f32 %v492, %v2141
      %v2173 = vmul.f32 %v493, %v2141
      %v2174 = vmul.f32 %v494, %v2141
      %v2175 = vmul.f32 %v495, %v2141
      %v2176 = vmul.f32 %v496, %v2141
      %v2177 = vmul.f32 %v497, %v2141
      %v2178 = vmul.f32 %v498, %v2141
      %v2179 = vmul.f32 %v499, %v2141
      %v2180 = vmul.f32 %v500, %v2141
      %v2181 = vmul.f32 %v501, %v2141
      %v2182 = vmul.f32 %v502, %v2141
      %v2183 = vmul.f32 %v503, %v2141
      %v2184 = vmul.f32 %v504, %v2141
      %v2185 = vmul.f32 %v505, %v2141
      %v2186 = vmul.f32 %v506, %v2141
      %v2187 = vmul.f32 %v507, %v2141
      %v2188 = vmul.f32 %v508, %v2141
      %v2189 = vmul.f32 %v509, %v2141
      %v2238 = vrot.slane %v2142, 1
      %v2239 = vrot.slane %v2143, 1
      %v2240 = vsel %vm700, %v2238, %v2239
      %v2241 = vrot.slane %v2144, 1
      %v2242 = vsel %vm700, %v2239, %v2241
      %v2243 = vrot.slane %v2145, 1
      %v2244 = vrot.slane %v2146, 1
      %v2245 = vsel %vm700, %v2243, %v2244
      %v2246 = vrot.slane %v2147, 1
      %v2247 = vsel %vm700, %v2244, %v2246
      %v2248 = vrot.slane %v2148, 1
      %v2249 = vrot.slane %v2149, 1
      %v2250 = vsel %vm700, %v2248, %v2249
      %v2251 = vrot.slane %v2150, 1
      %v2252 = vsel %vm700, %v2249, %v2251
      %v2253 = vrot.slane %v2151, 1
      %v2254 = vrot.slane %v2152, 1
      %v2255 = vsel %vm700, %v2253, %v2254
      %v2256 = vrot.slane %v2153, 1
      %v2257 = vsel %vm700, %v2254, %v2256
      %v2258 = vrot.slane %v2154, 1
      %v2259 = vrot.slane %v2155, 1
      %v2260 = vsel %vm700, %v2258, %v2259
      %v2261 = vrot.slane %v2156, 1
      %v2262 = vsel %vm700, %v2259, %v2261
      %v2263 = vrot.slane %v2157, 1
      %v2264 = vrot.slane %v2158, 1
      %v2265 = vsel %vm700, %v2263, %v2264
      %v2266 = vrot.slane %v2159, 1
      %v2267 = vsel %vm700, %v2264, %v2266
      %v2268 = vrot.slane %v2160, 1
      %v2269 = vrot.slane %v2161, 1
      %v2270 = vsel %vm700, %v2268, %v2269
      %v2271 = vrot.slane %v2162, 1
      %v2272 = vsel %vm700, %v2269, %v2271
      %v2273 = vrot.slane %v2163, 1
      %v2274 = vrot.slane %v2164, 1
      %v2275 = vsel %vm700, %v2273, %v2274
      %v2276 = vrot.slane %v2165, 1
      %v2277 = vsel %vm700, %v2274, %v2276
      %v2278 = vrot.slane %v2166, 1
      %v2279 = vrot.slane %v2167, 1
      %v2280 = vsel %vm700, %v2278, %v2279
      %v2281 = vrot.slane %v2168, 1
      %v2282 = vsel %vm700, %v2279, %v2281
      %v2283 = vrot.slane %v2169, 1
      %v2284 = vrot.slane %v2170, 1
      %v2285 = vsel %vm700, %v2283, %v2284
      %v2286 = vrot.slane %v2171, 1
      %v2287 = vsel %vm700, %v2284, %v2286
      %v2288 = vrot.slane %v2172, 1
      %v2289 = vrot.slane %v2173, 1
      %v2290 = vsel %vm700, %v2288, %v2289
      %v2291 = vrot.slane %v2174, 1
      %v2292 = vsel %vm700, %v2289, %v2291
      %v2293 = vrot.slane %v2175, 1
      %v2294 = vrot.slane %v2176, 1
      %v2295 = vsel %vm700, %v2293, %v2294
      %v2296 = vrot.slane %v2177, 1
      %v2297 = vsel %vm700, %v2294, %v2296
      %v2298 = vrot.slane %v2178, 1
      %v2299 = vrot.slane %v2179, 1
      %v2300 = vsel %vm700, %v2298, %v2299
      %v2301 = vrot.slane %v2180, 1
      %v2302 = vsel %vm700, %v2299, %v2301
      %v2303 = vrot.slane %v2181, 1
      %v2304 = vrot.slane %v2182, 1
      %v2305 = vsel %vm700, %v2303, %v2304
      %v2306 = vrot.slane %v2183, 1
      %v2307 = vsel %vm700, %v2304, %v2306
      %v2308 = vrot.slane %v2184, 1
      %v2309 = vrot.slane %v2185, 1
      %v2310 = vsel %vm700, %v2308, %v2309
      %v2311 = vrot.slane %v2186, 1
      %v2312 = vsel %vm700, %v2309, %v2311
      %v2313 = vrot.slane %v2187, 1
      %v2314 = vrot.slane %v2188, 1
      %v2315 = vsel %vm700, %v2313, %v2314
      %v2316 = vrot.slane %v2189, 1
      %v2317 = vsel %vm700, %v2314, %v2316
      %v2350 = vadd.f32 %v2106, %v2240
      %v2351 = vadd.f32 %v2107, %v2242
      %v2352 = vadd.f32 %v2108, %v2245
      %v2353 = vadd.f32 %v2109, %v2247
      %v2354 = vadd.f32 %v2110, %v2250
      %v2355 = vadd.f32 %v2111, %v2252
      %v2356 = vadd.f32 %v2112, %v2255
      %v2357 = vadd.f32 %v2113, %v2257
      %v2358 = vadd.f32 %v2114, %v2260
      %v2359 = vadd.f32 %v2115, %v2262
      %v2360 = vadd.f32 %v2116, %v2265
      %v2361 = vadd.f32 %v2117, %v2267
      %v2362 = vadd.f32 %v2118, %v2270
      %v2363 = vadd.f32 %v2119, %v2272
      %v2364 = vadd.f32 %v2120, %v2275
      %v2365 = vadd.f32 %v2121, %v2277
      %v2366 = vadd.f32 %v2122, %v2280
      %v2367 = vadd.f32 %v2123, %v2282
      %v2368 = vadd.f32 %v2124, %v2285
      %v2369 = vadd.f32 %v2125, %v2287
      %v2370 = vadd.f32 %v2126, %v2290
      %v2371 = vadd.f32 %v2127, %v2292
      %v2372 = vadd.f32 %v2128, %v2295
      %v2373 = vadd.f32 %v2129, %v2297
      %v2374 = vadd.f32 %v2130, %v2300
      %v2375 = vadd.f32 %v2131, %v2302
      %v2376 = vadd.f32 %v2132, %v2305
      %v2377 = vadd.f32 %v2133, %v2307
      %v2378 = vadd.f32 %v2134, %v2310
      %v2379 = vadd.f32 %v2135, %v2312
      %v2380 = vadd.f32 %v2136, %v2315
      %v2381 = vadd.f32 %v2137, %v2317
      %v2382 = vlaneseq
      %v2383 = vshrl.u32 %v2382, 7
      %v2384 = vsub.s32 2, %v2383
      %v2385 = vrot.slane %v526, %v2384
      %v2386 = vmul.f32 %v462, %v2385
      %v2387 = vmul.f32 %v463, %v2385
      %v2388 = vmul.f32 %v464, %v2385
      %v2389 = vmul.f32 %v465, %v2385
      %v2390 = vmul.f32 %v466, %v2385
      %v2391 = vmul.f32 %v467, %v2385
      %v2392 = vmul.f32 %v468, %v2385
      %v2393 = vmul.f32 %v469, %v2385
      %v2394 = vmul.f32 %v470, %v2385
      %v2395 = vmul.f32 %v471, %v2385
      %v2396 = vmul.f32 %v472, %v2385
      %v2397 = vmul.f32 %v473, %v2385
      %v2398 = vmul.f32 %v474, %v2385
      %v2399 = vmul.f32 %v475, %v2385
      %v2400 = vmul.f32 %v476, %v2385
      %v2401 = vmul.f32 %v477, %v2385
      %v2402 = vmul.f32 %v478, %v2385
      %v2403 = vmul.f32 %v479, %v2385
      %v2404 = vmul.f32 %v480, %v2385
      %v2405 = vmul.f32 %v481, %v2385
      %v2406 = vmul.f32 %v482, %v2385
      %v2407 = vmul.f32 %v483, %v2385
      %v2408 = vmul.f32 %v484, %v2385
      %v2409 = vmul.f32 %v485, %v2385
      %v2410 = vmul.f32 %v486, %v2385
      %v2411 = vmul.f32 %v487, %v2385
      %v2412 = vmul.f32 %v488, %v2385
      %v2413 = vmul.f32 %v489, %v2385
      %v2414 = vmul.f32 %v490, %v2385
      %v2415 = vmul.f32 %v491, %v2385
      %v2416 = vmul.f32 %v492, %v2385
      %v2417 = vmul.f32 %v493, %v2385
      %v2418 = vmul.f32 %v494, %v2385
      %v2419 = vmul.f32 %v495, %v2385
      %v2420 = vmul.f32 %v496, %v2385
      %v2421 = vmul.f32 %v497, %v2385
      %v2422 = vmul.f32 %v498, %v2385
      %v2423 = vmul.f32 %v499, %v2385
      %v2424 = vmul.f32 %v500, %v2385
      %v2425 = vmul.f32 %v501, %v2385
      %v2426 = vmul.f32 %v502, %v2385
      %v2427 = vmul.f32 %v503, %v2385
      %v2428 = vmul.f32 %v504, %v2385
      %v2429 = vmul.f32 %v505, %v2385
      %v2430 = vmul.f32 %v506, %v2385
      %v2431 = vmul.f32 %v507, %v2385
      %v2432 = vmul.f32 %v508, %v2385
      %v2433 = vmul.f32 %v509, %v2385
      %v2482 = vrot.slane %v2386, 2
      %v2483 = vrot.slane %v2387, 2
      %v2484 = vsel %vm945, %v2482, %v2483
      %v2485 = vrot.slane %v2388, 2
      %v2486 = vsel %vm945, %v2483, %v2485
      %v2487 = vrot.slane %v2389, 2
      %v2488 = vrot.slane %v2390, 2
      %v2489 = vsel %vm945, %v2487, %v2488
      %v2490 = vrot.slane %v2391, 2
      %v2491 = vsel %vm945, %v2488, %v2490
      %v2492 = vrot.slane %v2392, 2
      %v2493 = vrot.slane %v2393, 2
      %v2494 = vsel %vm945, %v2492, %v2493
      %v2495 = vrot.slane %v2394, 2
      %v2496 = vsel %vm945, %v2493, %v2495
      %v2497 = vrot.slane %v2395, 2
      %v2498 = vrot.slane %v2396, 2
      %v2499 = vsel %vm945, %v2497, %v2498
      %v2500 = vrot.slane %v2397, 2
      %v2501 = vsel %vm945, %v2498, %v2500
      %v2502 = vrot.slane %v2398, 2
      %v2503 = vrot.slane %v2399, 2
      %v2504 = vsel %vm945, %v2502, %v2503
      %v2505 = vrot.slane %v2400, 2
      %v2506 = vsel %vm945, %v2503, %v2505
      %v2507 = vrot.slane %v2401, 2
      %v2508 = vrot.slane %v2402, 2
      %v2509 = vsel %vm945, %v2507, %v2508
      %v2510 = vrot.slane %v2403, 2
      %v2511 = vsel %vm945, %v2508, %v2510
      %v2512 = vrot.slane %v2404, 2
      %v2513 = vrot.slane %v2405, 2
      %v2514 = vsel %vm945, %v2512, %v2513
      %v2515 = vrot.slane %v2406, 2
      %v2516 = vsel %vm945, %v2513, %v2515
      %v2517 = vrot.slane %v2407, 2
      %v2518 = vrot.slane %v2408, 2
      %v2519 = vsel %vm945, %v2517, %v2518
      %v2520 = vrot.slane %v2409, 2
      %v2521 = vsel %vm945, %v2518, %v2520
      %v2522 = vrot.slane %v2410, 2
      %v2523 = vrot.slane %v2411, 2
      %v2524 = vsel %vm945, %v2522, %v2523
      %v2525 = vrot.slane %v2412, 2
      %v2526 = vsel %vm945, %v2523, %v2525
      %v2527 = vrot.slane %v2413, 2
      %v2528 = vrot.slane %v2414, 2
      %v2529 = vsel %vm945, %v2527, %v2528
      %v2530 = vrot.slane %v2415, 2
      %v2531 = vsel %vm945, %v2528, %v2530
      %v2532 = vrot.slane %v2416, 2
      %v2533 = vrot.slane %v2417, 2
      %v2534 = vsel %vm945, %v2532, %v2533
      %v2535 = vrot.slane %v2418, 2
      %v2536 = vsel %vm945, %v2533, %v2535
      %v2537 = vrot.slane %v2419, 2
      %v2538 = vrot.slane %v2420, 2
      %v2539 = vsel %vm945, %v2537, %v2538
      %v2540 = vrot.slane %v2421, 2
      %v2541 = vsel %vm945, %v2538, %v2540
      %v2542 = vrot.slane %v2422, 2
      %v2543 = vrot.slane %v2423, 2
      %v2544 = vsel %vm945, %v2542, %v2543
      %v2545 = vrot.slane %v2424, 2
      %v2546 = vsel %vm945, %v2543, %v2545
      %v2547 = vrot.slane %v2425, 2
      %v2548 = vrot.slane %v2426, 2
      %v2549 = vsel %vm945, %v2547, %v2548
      %v2550 = vrot.slane %v2427, 2
      %v2551 = vsel %vm945, %v2548, %v2550
      %v2552 = vrot.slane %v2428, 2
      %v2553 = vrot.slane %v2429, 2
      %v2554 = vsel %vm945, %v2552, %v2553
      %v2555 = vrot.slane %v2430, 2
      %v2556 = vsel %vm945, %v2553, %v2555
      %v2557 = vrot.slane %v2431, 2
      %v2558 = vrot.slane %v2432, 2
      %v2559 = vsel %vm945, %v2557, %v2558
      %v2560 = vrot.slane %v2433, 2
      %v2561 = vsel %vm945, %v2558, %v2560
      %v2594 = vadd.f32 %v2350, %v2484
      %v2595 = vadd.f32 %v2351, %v2486
      %v2596 = vadd.f32 %v2352, %v2489
      %v2597 = vadd.f32 %v2353, %v2491
      %v2598 = vadd.f32 %v2354, %v2494
      %v2599 = vadd.f32 %v2355, %v2496
      %v2600 = vadd.f32 %v2356, %v2499
      %v2601 = vadd.f32 %v2357, %v2501
      %v2602 = vadd.f32 %v2358, %v2504
      %v2603 = vadd.f32 %v2359, %v2506
      %v2604 = vadd.f32 %v2360, %v2509
      %v2605 = vadd.f32 %v2361, %v2511
      %v2606 = vadd.f32 %v2362, %v2514
      %v2607 = vadd.f32 %v2363, %v2516
      %v2608 = vadd.f32 %v2364, %v2519
      %v2609 = vadd.f32 %v2365, %v2521
      %v2610 = vadd.f32 %v2366, %v2524
      %v2611 = vadd.f32 %v2367, %v2526
      %v2612 = vadd.f32 %v2368, %v2529
      %v2613 = vadd.f32 %v2369, %v2531
      %v2614 = vadd.f32 %v2370, %v2534
      %v2615 = vadd.f32 %v2371, %v2536
      %v2616 = vadd.f32 %v2372, %v2539
      %v2617 = vadd.f32 %v2373, %v2541
      %v2618 = vadd.f32 %v2374, %v2544
      %v2619 = vadd.f32 %v2375, %v2546
      %v2620 = vadd.f32 %v2376, %v2549
      %v2621 = vadd.f32 %v2377, %v2551
      %v2622 = vadd.f32 %v2378, %v2554
      %v2623 = vadd.f32 %v2379, %v2556
      %v2624 = vadd.f32 %v2380, %v2559
      %v2625 = vadd.f32 %v2381, %v2561
      %v2626 = vlaneseq
      %v2627 = vshrl.u32 %v2626, 7
      %v2628 = vsub.s32 3, %v2627
      %v2629 = vrot.slane %v526, %v2628
      %v2630 = vmul.f32 %v462, %v2629
      %v2631 = vmul.f32 %v463, %v2629
      %v2632 = vmul.f32 %v464, %v2629
      %v2633 = vmul.f32 %v465, %v2629
      %v2634 = vmul.f32 %v466, %v2629
      %v2635 = vmul.f32 %v467, %v2629
      %v2636 = vmul.f32 %v468, %v2629
      %v2637 = vmul.f32 %v469, %v2629
      %v2638 = vmul.f32 %v470, %v2629
      %v2639 = vmul.f32 %v471, %v2629
      %v2640 = vmul.f32 %v472, %v2629
      %v2641 = vmul.f32 %v473, %v2629
      %v2642 = vmul.f32 %v474, %v2629
      %v2643 = vmul.f32 %v475, %v2629
      %v2644 = vmul.f32 %v476, %v2629
      %v2645 = vmul.f32 %v477, %v2629
      %v2646 = vmul.f32 %v478, %v2629
      %v2647 = vmul.f32 %v479, %v2629
      %v2648 = vmul.f32 %v480, %v2629
      %v2649 = vmul.f32 %v481, %v2629
      %v2650 = vmul.f32 %v482, %v2629
      %v2651 = vmul.f32 %v483, %v2629
      %v2652 = vmul.f32 %v484, %v2629
      %v2653 = vmul.f32 %v485, %v2629
      %v2654 = vmul.f32 %v486, %v2629
      %v2655 = vmul.f32 %v487, %v2629
      %v2656 = vmul.f32 %v488, %v2629
      %v2657 = vmul.f32 %v489, %v2629
      %v2658 = vmul.f32 %v490, %v2629
      %v2659 = vmul.f32 %v491, %v2629
      %v2660 = vmul.f32 %v492, %v2629
      %v2661 = vmul.f32 %v493, %v2629
      %v2662 = vmul.f32 %v494, %v2629
      %v2663 = vmul.f32 %v495, %v2629
      %v2664 = vmul.f32 %v496, %v2629
      %v2665 = vmul.f32 %v497, %v2629
      %v2666 = vmul.f32 %v498, %v2629
      %v2667 = vmul.f32 %v499, %v2629
      %v2668 = vmul.f32 %v500, %v2629
      %v2669 = vmul.f32 %v501, %v2629
      %v2670 = vmul.f32 %v502, %v2629
      %v2671 = vmul.f32 %v503, %v2629
      %v2672 = vmul.f32 %v504, %v2629
      %v2673 = vmul.f32 %v505, %v2629
      %v2674 = vmul.f32 %v506, %v2629
      %v2675 = vmul.f32 %v507, %v2629
      %v2676 = vmul.f32 %v508, %v2629
      %v2677 = vmul.f32 %v509, %v2629
      %v2726 = vrot.slane %v2630, 3
      %v2727 = vrot.slane %v2631, 3
      %v2728 = vsel %vm1190, %v2726, %v2727
      %v2729 = vrot.slane %v2632, 3
      %v2730 = vsel %vm1190, %v2727, %v2729
      %v2731 = vrot.slane %v2633, 3
      %v2732 = vrot.slane %v2634, 3
      %v2733 = vsel %vm1190, %v2731, %v2732
      %v2734 = vrot.slane %v2635, 3
      %v2735 = vsel %vm1190, %v2732, %v2734
      %v2736 = vrot.slane %v2636, 3
      %v2737 = vrot.slane %v2637, 3
      %v2738 = vsel %vm1190, %v2736, %v2737
      %v2739 = vrot.slane %v2638, 3
      %v2740 = vsel %vm1190, %v2737, %v2739
      %v2741 = vrot.slane %v2639, 3
      %v2742 = vrot.slane %v2640, 3
      %v2743 = vsel %vm1190, %v2741, %v2742
      %v2744 = vrot.slane %v2641, 3
      %v2745 = vsel %vm1190, %v2742, %v2744
      %v2746 = vrot.slane %v2642, 3
      %v2747 = vrot.slane %v2643, 3
      %v2748 = vsel %vm1190, %v2746, %v2747
      %v2749 = vrot.slane %v2644, 3
      %v2750 = vsel %vm1190, %v2747, %v2749
      %v2751 = vrot.slane %v2645, 3
      %v2752 = vrot.slane %v2646, 3
      %v2753 = vsel %vm1190, %v2751, %v2752
      %v2754 = vrot.slane %v2647, 3
      %v2755 = vsel %vm1190, %v2752, %v2754
      %v2756 = vrot.slane %v2648, 3
      %v2757 = vrot.slane %v2649, 3
      %v2758 = vsel %vm1190, %v2756, %v2757
      %v2759 = vrot.slane %v2650, 3
      %v2760 = vsel %vm1190, %v2757, %v2759
      %v2761 = vrot.slane %v2651, 3
      %v2762 = vrot.slane %v2652, 3
      %v2763 = vsel %vm1190, %v2761, %v2762
      %v2764 = vrot.slane %v2653, 3
      %v2765 = vsel %vm1190, %v2762, %v2764
      %v2766 = vrot.slane %v2654, 3
      %v2767 = vrot.slane %v2655, 3
      %v2768 = vsel %vm1190, %v2766, %v2767
      %v2769 = vrot.slane %v2656, 3
      %v2770 = vsel %vm1190, %v2767, %v2769
      %v2771 = vrot.slane %v2657, 3
      %v2772 = vrot.slane %v2658, 3
      %v2773 = vsel %vm1190, %v2771, %v2772
      %v2774 = vrot.slane %v2659, 3
      %v2775 = vsel %vm1190, %v2772, %v2774
      %v2776 = vrot.slane %v2660, 3
      %v2777 = vrot.slane %v2661, 3
      %v2778 = vsel %vm1190, %v2776, %v2777
      %v2779 = vrot.slane %v2662, 3
      %v2780 = vsel %vm1190, %v2777, %v2779
      %v2781 = vrot.slane %v2663, 3
      %v2782 = vrot.slane %v2664, 3
      %v2783 = vsel %vm1190, %v2781, %v2782
      %v2784 = vrot.slane %v2665, 3
      %v2785 = vsel %vm1190, %v2782, %v2784
      %v2786 = vrot.slane %v2666, 3
      %v2787 = vrot.slane %v2667, 3
      %v2788 = vsel %vm1190, %v2786, %v2787
      %v2789 = vrot.slane %v2668, 3
      %v2790 = vsel %vm1190, %v2787, %v2789
      %v2791 = vrot.slane %v2669, 3
      %v2792 = vrot.slane %v2670, 3
      %v2793 = vsel %vm1190, %v2791, %v2792
      %v2794 = vrot.slane %v2671, 3
      %v2795 = vsel %vm1190, %v2792, %v2794
      %v2796 = vrot.slane %v2672, 3
      %v2797 = vrot.slane %v2673, 3
      %v2798 = vsel %vm1190, %v2796, %v2797
      %v2799 = vrot.slane %v2674, 3
      %v2800 = vsel %vm1190, %v2797, %v2799
      %v2801 = vrot.slane %v2675, 3
      %v2802 = vrot.slane %v2676, 3
      %v2803 = vsel %vm1190, %v2801, %v2802
      %v2804 = vrot.slane %v2677, 3
      %v2805 = vsel %vm1190, %v2802, %v2804
      %v2838 = vadd.f32 %v2594, %v2728
      %v2839 = vadd.f32 %v2595, %v2730
      %v2840 = vadd.f32 %v2596, %v2733
      %v2841 = vadd.f32 %v2597, %v2735
      %v2842 = vadd.f32 %v2598, %v2738
      %v2843 = vadd.f32 %v2599, %v2740
      %v2844 = vadd.f32 %v2600, %v2743
      %v2845 = vadd.f32 %v2601, %v2745
      %v2846 = vadd.f32 %v2602, %v2748
      %v2847 = vadd.f32 %v2603, %v2750
      %v2848 = vadd.f32 %v2604, %v2753
      %v2849 = vadd.f32 %v2605, %v2755
      %v2850 = vadd.f32 %v2606, %v2758
      %v2851 = vadd.f32 %v2607, %v2760
      %v2852 = vadd.f32 %v2608, %v2763
      %v2853 = vadd.f32 %v2609, %v2765
      %v2854 = vadd.f32 %v2610, %v2768
      %v2855 = vadd.f32 %v2611, %v2770
      %v2856 = vadd.f32 %v2612, %v2773
      %v2857 = vadd.f32 %v2613, %v2775
      %v2858 = vadd.f32 %v2614, %v2778
      %v2859 = vadd.f32 %v2615, %v2780
      %v2860 = vadd.f32 %v2616, %v2783
      %v2861 = vadd.f32 %v2617, %v2785
      %v2862 = vadd.f32 %v2618, %v2788
      %v2863 = vadd.f32 %v2619, %v2790
      %v2864 = vadd.f32 %v2620, %v2793
      %v2865 = vadd.f32 %v2621, %v2795
      %v2866 = vadd.f32 %v2622, %v2798
      %v2867 = vadd.f32 %v2623, %v2800
      %v2868 = vadd.f32 %v2624, %v2803
      %v2869 = vadd.f32 %v2625, %v2805
      %v2870 = vlaneseq
      %v2871 = vshrl.u32 %v2870, 7
      %v2872 = vsub.s32 4, %v2871
      %v2873 = vrot.slane %v526, %v2872
      %v2874 = vmul.f32 %v462, %v2873
      %v2875 = vmul.f32 %v463, %v2873
      %v2876 = vmul.f32 %v464, %v2873
      %v2877 = vmul.f32 %v465, %v2873
      %v2878 = vmul.f32 %v466, %v2873
      %v2879 = vmul.f32 %v467, %v2873
      %v2880 = vmul.f32 %v468, %v2873
      %v2881 = vmul.f32 %v469, %v2873
      %v2882 = vmul.f32 %v470, %v2873
      %v2883 = vmul.f32 %v471, %v2873
      %v2884 = vmul.f32 %v472, %v2873
      %v2885 = vmul.f32 %v473, %v2873
      %v2886 = vmul.f32 %v474, %v2873
      %v2887 = vmul.f32 %v475, %v2873
      %v2888 = vmul.f32 %v476, %v2873
      %v2889 = vmul.f32 %v477, %v2873
      %v2890 = vmul.f32 %v478, %v2873
      %v2891 = vmul.f32 %v479, %v2873
      %v2892 = vmul.f32 %v480, %v2873
      %v2893 = vmul.f32 %v481, %v2873
      %v2894 = vmul.f32 %v482, %v2873
      %v2895 = vmul.f32 %v483, %v2873
      %v2896 = vmul.f32 %v484, %v2873
      %v2897 = vmul.f32 %v485, %v2873
      %v2898 = vmul.f32 %v486, %v2873
      %v2899 = vmul.f32 %v487, %v2873
      %v2900 = vmul.f32 %v488, %v2873
      %v2901 = vmul.f32 %v489, %v2873
      %v2902 = vmul.f32 %v490, %v2873
      %v2903 = vmul.f32 %v491, %v2873
      %v2904 = vmul.f32 %v492, %v2873
      %v2905 = vmul.f32 %v493, %v2873
      %v2906 = vmul.f32 %v494, %v2873
      %v2907 = vmul.f32 %v495, %v2873
      %v2908 = vmul.f32 %v496, %v2873
      %v2909 = vmul.f32 %v497, %v2873
      %v2910 = vmul.f32 %v498, %v2873
      %v2911 = vmul.f32 %v499, %v2873
      %v2912 = vmul.f32 %v500, %v2873
      %v2913 = vmul.f32 %v501, %v2873
      %v2914 = vmul.f32 %v502, %v2873
      %v2915 = vmul.f32 %v503, %v2873
      %v2916 = vmul.f32 %v504, %v2873
      %v2917 = vmul.f32 %v505, %v2873
      %v2918 = vmul.f32 %v506, %v2873
      %v2919 = vmul.f32 %v507, %v2873
      %v2920 = vmul.f32 %v508, %v2873
      %v2921 = vmul.f32 %v509, %v2873
      %v2970 = vrot.slane %v2874, 4
      %v2971 = vrot.slane %v2875, 4
      %v2972 = vsel %vm1435, %v2970, %v2971
      %v2973 = vrot.slane %v2876, 4
      %v2974 = vsel %vm1435, %v2971, %v2973
      %v2975 = vrot.slane %v2877, 4
      %v2976 = vrot.slane %v2878, 4
      %v2977 = vsel %vm1435, %v2975, %v2976
      %v2978 = vrot.slane %v2879, 4
      %v2979 = vsel %vm1435, %v2976, %v2978
      %v2980 = vrot.slane %v2880, 4
      %v2981 = vrot.slane %v2881, 4
      %v2982 = vsel %vm1435, %v2980, %v2981
      %v2983 = vrot.slane %v2882, 4
      %v2984 = vsel %vm1435, %v2981, %v2983
      %v2985 = vrot.slane %v2883, 4
      %v2986 = vrot.slane %v2884, 4
      %v2987 = vsel %vm1435, %v2985, %v2986
      %v2988 = vrot.slane %v2885, 4
      %v2989 = vsel %vm1435, %v2986, %v2988
      %v2990 = vrot.slane %v2886, 4
      %v2991 = vrot.slane %v2887, 4
      %v2992 = vsel %vm1435, %v2990, %v2991
      %v2993 = vrot.slane %v2888, 4
      %v2994 = vsel %vm1435, %v2991, %v2993
      %v2995 = vrot.slane %v2889, 4
      %v2996 = vrot.slane %v2890, 4
      %v2997 = vsel %vm1435, %v2995, %v2996
      %v2998 = vrot.slane %v2891, 4
      %v2999 = vsel %vm1435, %v2996, %v2998
      %v3000 = vrot.slane %v2892, 4
      %v3001 = vrot.slane %v2893, 4
      %v3002 = vsel %vm1435, %v3000, %v3001
      %v3003 = vrot.slane %v2894, 4
      %v3004 = vsel %vm1435, %v3001, %v3003
      %v3005 = vrot.slane %v2895, 4
      %v3006 = vrot.slane %v2896, 4
      %v3007 = vsel %vm1435, %v3005, %v3006
      %v3008 = vrot.slane %v2897, 4
      %v3009 = vsel %vm1435, %v3006, %v3008
      %v3010 = vrot.slane %v2898, 4
      %v3011 = vrot.slane %v2899, 4
      %v3012 = vsel %vm1435, %v3010, %v3011
      %v3013 = vrot.slane %v2900, 4
      %v3014 = vsel %vm1435, %v3011, %v3013
      %v3015 = vrot.slane %v2901, 4
      %v3016 = vrot.slane %v2902, 4
      %v3017 = vsel %vm1435, %v3015, %v3016
      %v3018 = vrot.slane %v2903, 4
      %v3019 = vsel %vm1435, %v3016, %v3018
      %v3020 = vrot.slane %v2904, 4
      %v3021 = vrot.slane %v2905, 4
      %v3022 = vsel %vm1435, %v3020, %v3021
      %v3023 = vrot.slane %v2906, 4
      %v3024 = vsel %vm1435, %v3021, %v3023
      %v3025 = vrot.slane %v2907, 4
      %v3026 = vrot.slane %v2908, 4
      %v3027 = vsel %vm1435, %v3025, %v3026
      %v3028 = vrot.slane %v2909, 4
      %v3029 = vsel %vm1435, %v3026, %v3028
      %v3030 = vrot.slane %v2910, 4
      %v3031 = vrot.slane %v2911, 4
      %v3032 = vsel %vm1435, %v3030, %v3031
      %v3033 = vrot.slane %v2912, 4
      %v3034 = vsel %vm1435, %v3031, %v3033
      %v3035 = vrot.slane %v2913, 4
      %v3036 = vrot.slane %v2914, 4
      %v3037 = vsel %vm1435, %v3035, %v3036
      %v3038 = vrot.slane %v2915, 4
      %v3039 = vsel %vm1435, %v3036, %v3038
      %v3040 = vrot.slane %v2916, 4
      %v3041 = vrot.slane %v2917, 4
      %v3042 = vsel %vm1435, %v3040, %v3041
      %v3043 = vrot.slane %v2918, 4
      %v3044 = vsel %vm1435, %v3041, %v3043
      %v3045 = vrot.slane %v2919, 4
      %v3046 = vrot.slane %v2920, 4
      %v3047 = vsel %vm1435, %v3045, %v3046
      %v3048 = vrot.slane %v2921, 4
      %v3049 = vsel %vm1435, %v3046, %v3048
      %v3082 = vadd.f32 %v2838, %v2972
      %v3083 = vadd.f32 %v2839, %v2974
      %v3084 = vadd.f32 %v2840, %v2977
      %v3085 = vadd.f32 %v2841, %v2979
      %v3086 = vadd.f32 %v2842, %v2982
      %v3087 = vadd.f32 %v2843, %v2984
      %v3088 = vadd.f32 %v2844, %v2987
      %v3089 = vadd.f32 %v2845, %v2989
      %v3090 = vadd.f32 %v2846, %v2992
      %v3091 = vadd.f32 %v2847, %v2994
      %v3092 = vadd.f32 %v2848, %v2997
      %v3093 = vadd.f32 %v2849, %v2999
      %v3094 = vadd.f32 %v2850, %v3002
      %v3095 = vadd.f32 %v2851, %v3004
      %v3096 = vadd.f32 %v2852, %v3007
      %v3097 = vadd.f32 %v2853, %v3009
      %v3098 = vadd.f32 %v2854, %v3012
      %v3099 = vadd.f32 %v2855, %v3014
      %v3100 = vadd.f32 %v2856, %v3017
      %v3101 = vadd.f32 %v2857, %v3019
      %v3102 = vadd.f32 %v2858, %v3022
      %v3103 = vadd.f32 %v2859, %v3024
      %v3104 = vadd.f32 %v2860, %v3027
      %v3105 = vadd.f32 %v2861, %v3029
      %v3106 = vadd.f32 %v2862, %v3032
      %v3107 = vadd.f32 %v2863, %v3034
      %v3108 = vadd.f32 %v2864, %v3037
      %v3109 = vadd.f32 %v2865, %v3039
      %v3110 = vadd.f32 %v2866, %v3042
      %v3111 = vadd.f32 %v2867, %v3044
      %v3112 = vadd.f32 %v2868, %v3047
      %v3113 = vadd.f32 %v2869, %v3049
      %v3114 = vlaneseq
      %v3115 = vshrl.u32 %v3114, 7
      %v3116 = vsub.s32 5, %v3115
      %v3117 = vrot.slane %v526, %v3116
      %v3118 = vmul.f32 %v462, %v3117
      %v3119 = vmul.f32 %v463, %v3117
      %v3120 = vmul.f32 %v464, %v3117
      %v3121 = vmul.f32 %v465, %v3117
      %v3122 = vmul.f32 %v466, %v3117
      %v3123 = vmul.f32 %v467, %v3117
      %v3124 = vmul.f32 %v468, %v3117
      %v3125 = vmul.f32 %v469, %v3117
      %v3126 = vmul.f32 %v470, %v3117
      %v3127 = vmul.f32 %v471, %v3117
      %v3128 = vmul.f32 %v472, %v3117
      %v3129 = vmul.f32 %v473, %v3117
      %v3130 = vmul.f32 %v474, %v3117
      %v3131 = vmul.f32 %v475, %v3117
      %v3132 = vmul.f32 %v476, %v3117
      %v3133 = vmul.f32 %v477, %v3117
      %v3134 = vmul.f32 %v478, %v3117
      %v3135 = vmul.f32 %v479, %v3117
      %v3136 = vmul.f32 %v480, %v3117
      %v3137 = vmul.f32 %v481, %v3117
      %v3138 = vmul.f32 %v482, %v3117
      %v3139 = vmul.f32 %v483, %v3117
      %v3140 = vmul.f32 %v484, %v3117
      %v3141 = vmul.f32 %v485, %v3117
      %v3142 = vmul.f32 %v486, %v3117
      %v3143 = vmul.f32 %v487, %v3117
      %v3144 = vmul.f32 %v488, %v3117
      %v3145 = vmul.f32 %v489, %v3117
      %v3146 = vmul.f32 %v490, %v3117
      %v3147 = vmul.f32 %v491, %v3117
      %v3148 = vmul.f32 %v492, %v3117
      %v3149 = vmul.f32 %v493, %v3117
      %v3150 = vmul.f32 %v494, %v3117
      %v3151 = vmul.f32 %v495, %v3117
      %v3152 = vmul.f32 %v496, %v3117
      %v3153 = vmul.f32 %v497, %v3117
      %v3154 = vmul.f32 %v498, %v3117
      %v3155 = vmul.f32 %v499, %v3117
      %v3156 = vmul.f32 %v500, %v3117
      %v3157 = vmul.f32 %v501, %v3117
      %v3158 = vmul.f32 %v502, %v3117
      %v3159 = vmul.f32 %v503, %v3117
      %v3160 = vmul.f32 %v504, %v3117
      %v3161 = vmul.f32 %v505, %v3117
      %v3162 = vmul.f32 %v506, %v3117
      %v3163 = vmul.f32 %v507, %v3117
      %v3164 = vmul.f32 %v508, %v3117
      %v3165 = vmul.f32 %v509, %v3117
      %v3214 = vrot.slane %v3118, 5
      %v3215 = vrot.slane %v3119, 5
      %v3216 = vsel %vm1680, %v3214, %v3215
      %v3217 = vrot.slane %v3120, 5
      %v3218 = vsel %vm1680, %v3215, %v3217
      %v3219 = vrot.slane %v3121, 5
      %v3220 = vrot.slane %v3122, 5
      %v3221 = vsel %vm1680, %v3219, %v3220
      %v3222 = vrot.slane %v3123, 5
      %v3223 = vsel %vm1680, %v3220, %v3222
      %v3224 = vrot.slane %v3124, 5
      %v3225 = vrot.slane %v3125, 5
      %v3226 = vsel %vm1680, %v3224, %v3225
      %v3227 = vrot.slane %v3126, 5
      %v3228 = vsel %vm1680, %v3225, %v3227
      %v3229 = vrot.slane %v3127, 5
      %v3230 = vrot.slane %v3128, 5
      %v3231 = vsel %vm1680, %v3229, %v3230
      %v3232 = vrot.slane %v3129, 5
      %v3233 = vsel %vm1680, %v3230, %v3232
      %v3234 = vrot.slane %v3130, 5
      %v3235 = vrot.slane %v3131, 5
      %v3236 = vsel %vm1680, %v3234, %v3235
      %v3237 = vrot.slane %v3132, 5
      %v3238 = vsel %vm1680, %v3235, %v3237
      %v3239 = vrot.slane %v3133, 5
      %v3240 = vrot.slane %v3134, 5
      %v3241 = vsel %vm1680, %v3239, %v3240
      %v3242 = vrot.slane %v3135, 5
      %v3243 = vsel %vm1680, %v3240, %v3242
      %v3244 = vrot.slane %v3136, 5
      %v3245 = vrot.slane %v3137, 5
      %v3246 = vsel %vm1680, %v3244, %v3245
      %v3247 = vrot.slane %v3138, 5
      %v3248 = vsel %vm1680, %v3245, %v3247
      %v3249 = vrot.slane %v3139, 5
      %v3250 = vrot.slane %v3140, 5
      %v3251 = vsel %vm1680, %v3249, %v3250
      %v3252 = vrot.slane %v3141, 5
      %v3253 = vsel %vm1680, %v3250, %v3252
      %v3254 = vrot.slane %v3142, 5
      %v3255 = vrot.slane %v3143, 5
      %v3256 = vsel %vm1680, %v3254, %v3255
      %v3257 = vrot.slane %v3144, 5
      %v3258 = vsel %vm1680, %v3255, %v3257
      %v3259 = vrot.slane %v3145, 5
      %v3260 = vrot.slane %v3146, 5
      %v3261 = vsel %vm1680, %v3259, %v3260
      %v3262 = vrot.slane %v3147, 5
      %v3263 = vsel %vm1680, %v3260, %v3262
      %v3264 = vrot.slane %v3148, 5
      %v3265 = vrot.slane %v3149, 5
      %v3266 = vsel %vm1680, %v3264, %v3265
      %v3267 = vrot.slane %v3150, 5
      %v3268 = vsel %vm1680, %v3265, %v3267
      %v3269 = vrot.slane %v3151, 5
      %v3270 = vrot.slane %v3152, 5
      %v3271 = vsel %vm1680, %v3269, %v3270
      %v3272 = vrot.slane %v3153, 5
      %v3273 = vsel %vm1680, %v3270, %v3272
      %v3274 = vrot.slane %v3154, 5
      %v3275 = vrot.slane %v3155, 5
      %v3276 = vsel %vm1680, %v3274, %v3275
      %v3277 = vrot.slane %v3156, 5
      %v3278 = vsel %vm1680, %v3275, %v3277
      %v3279 = vrot.slane %v3157, 5
      %v3280 = vrot.slane %v3158, 5
      %v3281 = vsel %vm1680, %v3279, %v3280
      %v3282 = vrot.slane %v3159, 5
      %v3283 = vsel %vm1680, %v3280, %v3282
      %v3284 = vrot.slane %v3160, 5
      %v3285 = vrot.slane %v3161, 5
      %v3286 = vsel %vm1680, %v3284, %v3285
      %v3287 = vrot.slane %v3162, 5
      %v3288 = vsel %vm1680, %v3285, %v3287
      %v3289 = vrot.slane %v3163, 5
      %v3290 = vrot.slane %v3164, 5
      %v3291 = vsel %vm1680, %v3289, %v3290
      %v3292 = vrot.slane %v3165, 5
      %v3293 = vsel %vm1680, %v3290, %v3292
      %v3326 = vadd.f32 %v3082, %v3216
      %v3327 = vadd.f32 %v3083, %v3218
      %v3328 = vadd.f32 %v3084, %v3221
      %v3329 = vadd.f32 %v3085, %v3223
      %v3330 = vadd.f32 %v3086, %v3226
      %v3331 = vadd.f32 %v3087, %v3228
      %v3332 = vadd.f32 %v3088, %v3231
      %v3333 = vadd.f32 %v3089, %v3233
      %v3334 = vadd.f32 %v3090, %v3236
      %v3335 = vadd.f32 %v3091, %v3238
      %v3336 = vadd.f32 %v3092, %v3241
      %v3337 = vadd.f32 %v3093, %v3243
      %v3338 = vadd.f32 %v3094, %v3246
      %v3339 = vadd.f32 %v3095, %v3248
      %v3340 = vadd.f32 %v3096, %v3251
      %v3341 = vadd.f32 %v3097, %v3253
      %v3342 = vadd.f32 %v3098, %v3256
      %v3343 = vadd.f32 %v3099, %v3258
      %v3344 = vadd.f32 %v3100, %v3261
      %v3345 = vadd.f32 %v3101, %v3263
      %v3346 = vadd.f32 %v3102, %v3266
      %v3347 = vadd.f32 %v3103, %v3268
      %v3348 = vadd.f32 %v3104, %v3271
      %v3349 = vadd.f32 %v3105, %v3273
      %v3350 = vadd.f32 %v3106, %v3276
      %v3351 = vadd.f32 %v3107, %v3278
      %v3352 = vadd.f32 %v3108, %v3281
      %v3353 = vadd.f32 %v3109, %v3283
      %v3354 = vadd.f32 %v3110, %v3286
      %v3355 = vadd.f32 %v3111, %v3288
      %v3356 = vadd.f32 %v3112, %v3291
      %v3357 = vadd.f32 %v3113, %v3293
      %v3358 = vlaneseq
      %v3359 = vshrl.u32 %v3358, 7
      %v3360 = vsub.s32 6, %v3359
      %v3361 = vrot.slane %v526, %v3360
      %v3362 = vmul.f32 %v462, %v3361
      %v3363 = vmul.f32 %v463, %v3361
      %v3364 = vmul.f32 %v464, %v3361
      %v3365 = vmul.f32 %v465, %v3361
      %v3366 = vmul.f32 %v466, %v3361
      %v3367 = vmul.f32 %v467, %v3361
      %v3368 = vmul.f32 %v468, %v3361
      %v3369 = vmul.f32 %v469, %v3361
      %v3370 = vmul.f32 %v470, %v3361
      %v3371 = vmul.f32 %v471, %v3361
      %v3372 = vmul.f32 %v472, %v3361
      %v3373 = vmul.f32 %v473, %v3361
      %v3374 = vmul.f32 %v474, %v3361
      %v3375 = vmul.f32 %v475, %v3361
      %v3376 = vmul.f32 %v476, %v3361
      %v3377 = vmul.f32 %v477, %v3361
      %v3378 = vmul.f32 %v478, %v3361
      %v3379 = vmul.f32 %v479, %v3361
      %v3380 = vmul.f32 %v480, %v3361
      %v3381 = vmul.f32 %v481, %v3361
      %v3382 = vmul.f32 %v482, %v3361
      %v3383 = vmul.f32 %v483, %v3361
      %v3384 = vmul.f32 %v484, %v3361
      %v3385 = vmul.f32 %v485, %v3361
      %v3386 = vmul.f32 %v486, %v3361
      %v3387 = vmul.f32 %v487, %v3361
      %v3388 = vmul.f32 %v488, %v3361
      %v3389 = vmul.f32 %v489, %v3361
      %v3390 = vmul.f32 %v490, %v3361
      %v3391 = vmul.f32 %v491, %v3361
      %v3392 = vmul.f32 %v492, %v3361
      %v3393 = vmul.f32 %v493, %v3361
      %v3394 = vmul.f32 %v494, %v3361
      %v3395 = vmul.f32 %v495, %v3361
      %v3396 = vmul.f32 %v496, %v3361
      %v3397 = vmul.f32 %v497, %v3361
      %v3398 = vmul.f32 %v498, %v3361
      %v3399 = vmul.f32 %v499, %v3361
      %v3400 = vmul.f32 %v500, %v3361
      %v3401 = vmul.f32 %v501, %v3361
      %v3402 = vmul.f32 %v502, %v3361
      %v3403 = vmul.f32 %v503, %v3361
      %v3404 = vmul.f32 %v504, %v3361
      %v3405 = vmul.f32 %v505, %v3361
      %v3406 = vmul.f32 %v506, %v3361
      %v3407 = vmul.f32 %v507, %v3361
      %v3408 = vmul.f32 %v508, %v3361
      %v3409 = vmul.f32 %v509, %v3361
      %v3458 = vrot.slane %v3362, 6
      %v3459 = vrot.slane %v3363, 6
      %v3460 = vsel %vm1925, %v3458, %v3459
      %v3461 = vrot.slane %v3364, 6
      %v3462 = vsel %vm1925, %v3459, %v3461
      %v3463 = vrot.slane %v3365, 6
      %v3464 = vrot.slane %v3366, 6
      %v3465 = vsel %vm1925, %v3463, %v3464
      %v3466 = vrot.slane %v3367, 6
      %v3467 = vsel %vm1925, %v3464, %v3466
      %v3468 = vrot.slane %v3368, 6
      %v3469 = vrot.slane %v3369, 6
      %v3470 = vsel %vm1925, %v3468, %v3469
      %v3471 = vrot.slane %v3370, 6
      %v3472 = vsel %vm1925, %v3469, %v3471
      %v3473 = vrot.slane %v3371, 6
      %v3474 = vrot.slane %v3372, 6
      %v3475 = vsel %vm1925, %v3473, %v3474
      %v3476 = vrot.slane %v3373, 6
      %v3477 = vsel %vm1925, %v3474, %v3476
      %v3478 = vrot.slane %v3374, 6
      %v3479 = vrot.slane %v3375, 6
      %v3480 = vsel %vm1925, %v3478, %v3479
      %v3481 = vrot.slane %v3376, 6
      %v3482 = vsel %vm1925, %v3479, %v3481
      %v3483 = vrot.slane %v3377, 6
      %v3484 = vrot.slane %v3378, 6
      %v3485 = vsel %vm1925, %v3483, %v3484
      %v3486 = vrot.slane %v3379, 6
      %v3487 = vsel %vm1925, %v3484, %v3486
      %v3488 = vrot.slane %v3380, 6
      %v3489 = vrot.slane %v3381, 6
      %v3490 = vsel %vm1925, %v3488, %v3489
      %v3491 = vrot.slane %v3382, 6
      %v3492 = vsel %vm1925, %v3489, %v3491
      %v3493 = vrot.slane %v3383, 6
      %v3494 = vrot.slane %v3384, 6
      %v3495 = vsel %vm1925, %v3493, %v3494
      %v3496 = vrot.slane %v3385, 6
      %v3497 = vsel %vm1925, %v3494, %v3496
      %v3498 = vrot.slane %v3386, 6
      %v3499 = vrot.slane %v3387, 6
      %v3500 = vsel %vm1925, %v3498, %v3499
      %v3501 = vrot.slane %v3388, 6
      %v3502 = vsel %vm1925, %v3499, %v3501
      %v3503 = vrot.slane %v3389, 6
      %v3504 = vrot.slane %v3390, 6
      %v3505 = vsel %vm1925, %v3503, %v3504
      %v3506 = vrot.slane %v3391, 6
      %v3507 = vsel %vm1925, %v3504, %v3506
      %v3508 = vrot.slane %v3392, 6
      %v3509 = vrot.slane %v3393, 6
      %v3510 = vsel %vm1925, %v3508, %v3509
      %v3511 = vrot.slane %v3394, 6
      %v3512 = vsel %vm1925, %v3509, %v3511
      %v3513 = vrot.slane %v3395, 6
      %v3514 = vrot.slane %v3396, 6
      %v3515 = vsel %vm1925, %v3513, %v3514
      %v3516 = vrot.slane %v3397, 6
      %v3517 = vsel %vm1925, %v3514, %v3516
      %v3518 = vrot.slane %v3398, 6
      %v3519 = vrot.slane %v3399, 6
      %v3520 = vsel %vm1925, %v3518, %v3519
      %v3521 = vrot.slane %v3400, 6
      %v3522 = vsel %vm1925, %v3519, %v3521
      %v3523 = vrot.slane %v3401, 6
      %v3524 = vrot.slane %v3402, 6
      %v3525 = vsel %vm1925, %v3523, %v3524
      %v3526 = vrot.slane %v3403, 6
      %v3527 = vsel %vm1925, %v3524, %v3526
      %v3528 = vrot.slane %v3404, 6
      %v3529 = vrot.slane %v3405, 6
      %v3530 = vsel %vm1925, %v3528, %v3529
      %v3531 = vrot.slane %v3406, 6
      %v3532 = vsel %vm1925, %v3529, %v3531
      %v3533 = vrot.slane %v3407, 6
      %v3534 = vrot.slane %v3408, 6
      %v3535 = vsel %vm1925, %v3533, %v3534
      %v3536 = vrot.slane %v3409, 6
      %v3537 = vsel %vm1925, %v3534, %v3536
      %v3570 = vadd.f32 %v3326, %v3460
      %v3571 = vadd.f32 %v3327, %v3462
      %v3572 = vadd.f32 %v3328, %v3465
      %v3573 = vadd.f32 %v3329, %v3467
      %v3574 = vadd.f32 %v3330, %v3470
      %v3575 = vadd.f32 %v3331, %v3472
      %v3576 = vadd.f32 %v3332, %v3475
      %v3577 = vadd.f32 %v3333, %v3477
      %v3578 = vadd.f32 %v3334, %v3480
      %v3579 = vadd.f32 %v3335, %v3482
      %v3580 = vadd.f32 %v3336, %v3485
      %v3581 = vadd.f32 %v3337, %v3487
      %v3582 = vadd.f32 %v3338, %v3490
      %v3583 = vadd.f32 %v3339, %v3492
      %v3584 = vadd.f32 %v3340, %v3495
      %v3585 = vadd.f32 %v3341, %v3497
      %v3586 = vadd.f32 %v3342, %v3500
      %v3587 = vadd.f32 %v3343, %v3502
      %v3588 = vadd.f32 %v3344, %v3505
      %v3589 = vadd.f32 %v3345, %v3507
      %v3590 = vadd.f32 %v3346, %v3510
      %v3591 = vadd.f32 %v3347, %v3512
      %v3592 = vadd.f32 %v3348, %v3515
      %v3593 = vadd.f32 %v3349, %v3517
      %v3594 = vadd.f32 %v3350, %v3520
      %v3595 = vadd.f32 %v3351, %v3522
      %v3596 = vadd.f32 %v3352, %v3525
      %v3597 = vadd.f32 %v3353, %v3527
      %v3598 = vadd.f32 %v3354, %v3530
      %v3599 = vadd.f32 %v3355, %v3532
      %v3600 = vadd.f32 %v3356, %v3535
      %v3601 = vadd.f32 %v3357, %v3537
      %v3602 = vlaneseq
      %v3603 = vshrl.u32 %v3602, 7
      %v3604 = vsub.s32 0, %v3603
      %v3605 = vrot.slane %v527, %v3604
      %v3606 = vmul.f32 %v465, %v3605
      %v3607 = vmul.f32 %v466, %v3605
      %v3608 = vmul.f32 %v468, %v3605
      %v3609 = vmul.f32 %v469, %v3605
      %v3610 = vmul.f32 %v471, %v3605
      %v3611 = vmul.f32 %v472, %v3605
      %v3612 = vmul.f32 %v474, %v3605
      %v3613 = vmul.f32 %v475, %v3605
      %v3614 = vmul.f32 %v477, %v3605
      %v3615 = vmul.f32 %v478, %v3605
      %v3616 = vmul.f32 %v480, %v3605
      %v3617 = vmul.f32 %v481, %v3605
      %v3618 = vmul.f32 %v483, %v3605
      %v3619 = vmul.f32 %v484, %v3605
      %v3620 = vmul.f32 %v486, %v3605
      %v3621 = vmul.f32 %v487, %v3605
      %v3622 = vmul.f32 %v489, %v3605
      %v3623 = vmul.f32 %v490, %v3605
      %v3624 = vmul.f32 %v492, %v3605
      %v3625 = vmul.f32 %v493, %v3605
      %v3626 = vmul.f32 %v495, %v3605
      %v3627 = vmul.f32 %v496, %v3605
      %v3628 = vmul.f32 %v498, %v3605
      %v3629 = vmul.f32 %v499, %v3605
      %v3630 = vmul.f32 %v501, %v3605
      %v3631 = vmul.f32 %v502, %v3605
      %v3632 = vmul.f32 %v504, %v3605
      %v3633 = vmul.f32 %v505, %v3605
      %v3634 = vmul.f32 %v507, %v3605
      %v3635 = vmul.f32 %v508, %v3605
      %v3636 = vmul.f32 %v510, %v3605
      %v3637 = vmul.f32 %v511, %v3605
      %v3638 = vadd.f32 %v3570, %v3606
      %v3639 = vadd.f32 %v3571, %v3607
      %v3640 = vadd.f32 %v3572, %v3608
      %v3641 = vadd.f32 %v3573, %v3609
      %v3642 = vadd.f32 %v3574, %v3610
      %v3643 = vadd.f32 %v3575, %v3611
      %v3644 = vadd.f32 %v3576, %v3612
      %v3645 = vadd.f32 %v3577, %v3613
      %v3646 = vadd.f32 %v3578, %v3614
      %v3647 = vadd.f32 %v3579, %v3615
      %v3648 = vadd.f32 %v3580, %v3616
      %v3649 = vadd.f32 %v3581, %v3617
      %v3650 = vadd.f32 %v3582, %v3618
      %v3651 = vadd.f32 %v3583, %v3619
      %v3652 = vadd.f32 %v3584, %v3620
      %v3653 = vadd.f32 %v3585, %v3621
      %v3654 = vadd.f32 %v3586, %v3622
      %v3655 = vadd.f32 %v3587, %v3623
      %v3656 = vadd.f32 %v3588, %v3624
      %v3657 = vadd.f32 %v3589, %v3625
      %v3658 = vadd.f32 %v3590, %v3626
      %v3659 = vadd.f32 %v3591, %v3627
      %v3660 = vadd.f32 %v3592, %v3628
      %v3661 = vadd.f32 %v3593, %v3629
      %v3662 = vadd.f32 %v3594, %v3630
      %v3663 = vadd.f32 %v3595, %v3631
      %v3664 = vadd.f32 %v3596, %v3632
      %v3665 = vadd.f32 %v3597, %v3633
      %v3666 = vadd.f32 %v3598, %v3634
      %v3667 = vadd.f32 %v3599, %v3635
      %v3668 = vadd.f32 %v3600, %v3636
      %v3669 = vadd.f32 %v3601, %v3637
      %v3670 = vlaneseq
      %v3671 = vshrl.u32 %v3670, 7
      %v3672 = vsub.s32 1, %v3671
      %v3673 = vrot.slane %v527, %v3672
      %v3674 = vmul.f32 %v465, %v3673
      %v3675 = vmul.f32 %v466, %v3673
      %v3676 = vmul.f32 %v467, %v3673
      %v3677 = vmul.f32 %v468, %v3673
      %v3678 = vmul.f32 %v469, %v3673
      %v3679 = vmul.f32 %v470, %v3673
      %v3680 = vmul.f32 %v471, %v3673
      %v3681 = vmul.f32 %v472, %v3673
      %v3682 = vmul.f32 %v473, %v3673
      %v3683 = vmul.f32 %v474, %v3673
      %v3684 = vmul.f32 %v475, %v3673
      %v3685 = vmul.f32 %v476, %v3673
      %v3686 = vmul.f32 %v477, %v3673
      %v3687 = vmul.f32 %v478, %v3673
      %v3688 = vmul.f32 %v479, %v3673
      %v3689 = vmul.f32 %v480, %v3673
      %v3690 = vmul.f32 %v481, %v3673
      %v3691 = vmul.f32 %v482, %v3673
      %v3692 = vmul.f32 %v483, %v3673
      %v3693 = vmul.f32 %v484, %v3673
      %v3694 = vmul.f32 %v485, %v3673
      %v3695 = vmul.f32 %v486, %v3673
      %v3696 = vmul.f32 %v487, %v3673
      %v3697 = vmul.f32 %v488, %v3673
      %v3698 = vmul.f32 %v489, %v3673
      %v3699 = vmul.f32 %v490, %v3673
      %v3700 = vmul.f32 %v491, %v3673
      %v3701 = vmul.f32 %v492, %v3673
      %v3702 = vmul.f32 %v493, %v3673
      %v3703 = vmul.f32 %v494, %v3673
      %v3704 = vmul.f32 %v495, %v3673
      %v3705 = vmul.f32 %v496, %v3673
      %v3706 = vmul.f32 %v497, %v3673
      %v3707 = vmul.f32 %v498, %v3673
      %v3708 = vmul.f32 %v499, %v3673
      %v3709 = vmul.f32 %v500, %v3673
      %v3710 = vmul.f32 %v501, %v3673
      %v3711 = vmul.f32 %v502, %v3673
      %v3712 = vmul.f32 %v503, %v3673
      %v3713 = vmul.f32 %v504, %v3673
      %v3714 = vmul.f32 %v505, %v3673
      %v3715 = vmul.f32 %v506, %v3673
      %v3716 = vmul.f32 %v507, %v3673
      %v3717 = vmul.f32 %v508, %v3673
      %v3718 = vmul.f32 %v509, %v3673
      %v3719 = vmul.f32 %v510, %v3673
      %v3720 = vmul.f32 %v511, %v3673
      %v3721 = vmul.f32 %v512, %v3673
      %v3770 = vrot.slane %v3674, 1
      %v3771 = vrot.slane %v3675, 1
      %v3772 = vsel %vm700, %v3770, %v3771
      %v3773 = vrot.slane %v3676, 1
      %v3774 = vsel %vm700, %v3771, %v3773
      %v3775 = vrot.slane %v3677, 1
      %v3776 = vrot.slane %v3678, 1
      %v3777 = vsel %vm700, %v3775, %v3776
      %v3778 = vrot.slane %v3679, 1
      %v3779 = vsel %vm700, %v3776, %v3778
      %v3780 = vrot.slane %v3680, 1
      %v3781 = vrot.slane %v3681, 1
      %v3782 = vsel %vm700, %v3780, %v3781
      %v3783 = vrot.slane %v3682, 1
      %v3784 = vsel %vm700, %v3781, %v3783
      %v3785 = vrot.slane %v3683, 1
      %v3786 = vrot.slane %v3684, 1
      %v3787 = vsel %vm700, %v3785, %v3786
      %v3788 = vrot.slane %v3685, 1
      %v3789 = vsel %vm700, %v3786, %v3788
      %v3790 = vrot.slane %v3686, 1
      %v3791 = vrot.slane %v3687, 1
      %v3792 = vsel %vm700, %v3790, %v3791
      %v3793 = vrot.slane %v3688, 1
      %v3794 = vsel %vm700, %v3791, %v3793
      %v3795 = vrot.slane %v3689, 1
      %v3796 = vrot.slane %v3690, 1
      %v3797 = vsel %vm700, %v3795, %v3796
      %v3798 = vrot.slane %v3691, 1
      %v3799 = vsel %vm700, %v3796, %v3798
      %v3800 = vrot.slane %v3692, 1
      %v3801 = vrot.slane %v3693, 1
      %v3802 = vsel %vm700, %v3800, %v3801
      %v3803 = vrot.slane %v3694, 1
      %v3804 = vsel %vm700, %v3801, %v3803
      %v3805 = vrot.slane %v3695, 1
      %v3806 = vrot.slane %v3696, 1
      %v3807 = vsel %vm700, %v3805, %v3806
      %v3808 = vrot.slane %v3697, 1
      %v3809 = vsel %vm700, %v3806, %v3808
      %v3810 = vrot.slane %v3698, 1
      %v3811 = vrot.slane %v3699, 1
      %v3812 = vsel %vm700, %v3810, %v3811
      %v3813 = vrot.slane %v3700, 1
      %v3814 = vsel %vm700, %v3811, %v3813
      %v3815 = vrot.slane %v3701, 1
      %v3816 = vrot.slane %v3702, 1
      %v3817 = vsel %vm700, %v3815, %v3816
      %v3818 = vrot.slane %v3703, 1
      %v3819 = vsel %vm700, %v3816, %v3818
      %v3820 = vrot.slane %v3704, 1
      %v3821 = vrot.slane %v3705, 1
      %v3822 = vsel %vm700, %v3820, %v3821
      %v3823 = vrot.slane %v3706, 1
      %v3824 = vsel %vm700, %v3821, %v3823
      %v3825 = vrot.slane %v3707, 1
      %v3826 = vrot.slane %v3708, 1
      %v3827 = vsel %vm700, %v3825, %v3826
      %v3828 = vrot.slane %v3709, 1
      %v3829 = vsel %vm700, %v3826, %v3828
      %v3830 = vrot.slane %v3710, 1
      %v3831 = vrot.slane %v3711, 1
      %v3832 = vsel %vm700, %v3830, %v3831
      %v3833 = vrot.slane %v3712, 1
      %v3834 = vsel %vm700, %v3831, %v3833
      %v3835 = vrot.slane %v3713, 1
      %v3836 = vrot.slane %v3714, 1
      %v3837 = vsel %vm700, %v3835, %v3836
      %v3838 = vrot.slane %v3715, 1
      %v3839 = vsel %vm700, %v3836, %v3838
      %v3840 = vrot.slane %v3716, 1
      %v3841 = vrot.slane %v3717, 1
      %v3842 = vsel %vm700, %v3840, %v3841
      %v3843 = vrot.slane %v3718, 1
      %v3844 = vsel %vm700, %v3841, %v3843
      %v3845 = vrot.slane %v3719, 1
      %v3846 = vrot.slane %v3720, 1
      %v3847 = vsel %vm700, %v3845, %v3846
      %v3848 = vrot.slane %v3721, 1
      %v3849 = vsel %vm700, %v3846, %v3848
      %v3882 = vadd.f32 %v3638, %v3772
      %v3883 = vadd.f32 %v3639, %v3774
      %v3884 = vadd.f32 %v3640, %v3777
      %v3885 = vadd.f32 %v3641, %v3779
      %v3886 = vadd.f32 %v3642, %v3782
      %v3887 = vadd.f32 %v3643, %v3784
      %v3888 = vadd.f32 %v3644, %v3787
      %v3889 = vadd.f32 %v3645, %v3789
      %v3890 = vadd.f32 %v3646, %v3792
      %v3891 = vadd.f32 %v3647, %v3794
      %v3892 = vadd.f32 %v3648, %v3797
      %v3893 = vadd.f32 %v3649, %v3799
      %v3894 = vadd.f32 %v3650, %v3802
      %v3895 = vadd.f32 %v3651, %v3804
      %v3896 = vadd.f32 %v3652, %v3807
      %v3897 = vadd.f32 %v3653, %v3809
      %v3898 = vadd.f32 %v3654, %v3812
      %v3899 = vadd.f32 %v3655, %v3814
      %v3900 = vadd.f32 %v3656, %v3817
      %v3901 = vadd.f32 %v3657, %v3819
      %v3902 = vadd.f32 %v3658, %v3822
      %v3903 = vadd.f32 %v3659, %v3824
      %v3904 = vadd.f32 %v3660, %v3827
      %v3905 = vadd.f32 %v3661, %v3829
      %v3906 = vadd.f32 %v3662, %v3832
      %v3907 = vadd.f32 %v3663, %v3834
      %v3908 = vadd.f32 %v3664, %v3837
      %v3909 = vadd.f32 %v3665, %v3839
      %v3910 = vadd.f32 %v3666, %v3842
      %v3911 = vadd.f32 %v3667, %v3844
      %v3912 = vadd.f32 %v3668, %v3847
      %v3913 = vadd.f32 %v3669, %v3849
      %v3914 = vlaneseq
      %v3915 = vshrl.u32 %v3914, 7
      %v3916 = vsub.s32 2, %v3915
      %v3917 = vrot.slane %v527, %v3916
      %v3918 = vmul.f32 %v465, %v3917
      %v3919 = vmul.f32 %v466, %v3917
      %v3920 = vmul.f32 %v467, %v3917
      %v3921 = vmul.f32 %v468, %v3917
      %v3922 = vmul.f32 %v469, %v3917
      %v3923 = vmul.f32 %v470, %v3917
      %v3924 = vmul.f32 %v471, %v3917
      %v3925 = vmul.f32 %v472, %v3917
      %v3926 = vmul.f32 %v473, %v3917
      %v3927 = vmul.f32 %v474, %v3917
      %v3928 = vmul.f32 %v475, %v3917
      %v3929 = vmul.f32 %v476, %v3917
      %v3930 = vmul.f32 %v477, %v3917
      %v3931 = vmul.f32 %v478, %v3917
      %v3932 = vmul.f32 %v479, %v3917
      %v3933 = vmul.f32 %v480, %v3917
      %v3934 = vmul.f32 %v481, %v3917
      %v3935 = vmul.f32 %v482, %v3917
      %v3936 = vmul.f32 %v483, %v3917
      %v3937 = vmul.f32 %v484, %v3917
      %v3938 = vmul.f32 %v485, %v3917
      %v3939 = vmul.f32 %v486, %v3917
      %v3940 = vmul.f32 %v487, %v3917
      %v3941 = vmul.f32 %v488, %v3917
      %v3942 = vmul.f32 %v489, %v3917
      %v3943 = vmul.f32 %v490, %v3917
      %v3944 = vmul.f32 %v491, %v3917
      %v3945 = vmul.f32 %v492, %v3917
      %v3946 = vmul.f32 %v493, %v3917
      %v3947 = vmul.f32 %v494, %v3917
      %v3948 = vmul.f32 %v495, %v3917
      %v3949 = vmul.f32 %v496, %v3917
      %v3950 = vmul.f32 %v497, %v3917
      %v3951 = vmul.f32 %v498, %v3917
      %v3952 = vmul.f32 %v499, %v3917
      %v3953 = vmul.f32 %v500, %v3917
      %v3954 = vmul.f32 %v501, %v3917
      %v3955 = vmul.f32 %v502, %v3917
      %v3956 = vmul.f32 %v503, %v3917
      %v3957 = vmul.f32 %v504, %v3917
      %v3958 = vmul.f32 %v505, %v3917
      %v3959 = vmul.f32 %v506, %v3917
      %v3960 = vmul.f32 %v507, %v3917
      %v3961 = vmul.f32 %v508, %v3917
      %v3962 = vmul.f32 %v509, %v3917
      %v3963 = vmul.f32 %v510, %v3917
      %v3964 = vmul.f32 %v511, %v3917
      %v3965 = vmul.f32 %v512, %v3917
      %v4014 = vrot.slane %v3918, 2
      %v4015 = vrot.slane %v3919, 2
      %v4016 = vsel %vm945, %v4014, %v4015
      %v4017 = vrot.slane %v3920, 2
      %v4018 = vsel %vm945, %v4015, %v4017
      %v4019 = vrot.slane %v3921, 2
      %v4020 = vrot.slane %v3922, 2
      %v4021 = vsel %vm945, %v4019, %v4020
      %v4022 = vrot.slane %v3923, 2
      %v4023 = vsel %vm945, %v4020, %v4022
      %v4024 = vrot.slane %v3924, 2
      %v4025 = vrot.slane %v3925, 2
      %v4026 = vsel %vm945, %v4024, %v4025
      %v4027 = vrot.slane %v3926, 2
      %v4028 = vsel %vm945, %v4025, %v4027
      %v4029 = vrot.slane %v3927, 2
      %v4030 = vrot.slane %v3928, 2
      %v4031 = vsel %vm945, %v4029, %v4030
      %v4032 = vrot.slane %v3929, 2
      %v4033 = vsel %vm945, %v4030, %v4032
      %v4034 = vrot.slane %v3930, 2
      %v4035 = vrot.slane %v3931, 2
      %v4036 = vsel %vm945, %v4034, %v4035
      %v4037 = vrot.slane %v3932, 2
      %v4038 = vsel %vm945, %v4035, %v4037
      %v4039 = vrot.slane %v3933, 2
      %v4040 = vrot.slane %v3934, 2
      %v4041 = vsel %vm945, %v4039, %v4040
      %v4042 = vrot.slane %v3935, 2
      %v4043 = vsel %vm945, %v4040, %v4042
      %v4044 = vrot.slane %v3936, 2
      %v4045 = vrot.slane %v3937, 2
      %v4046 = vsel %vm945, %v4044, %v4045
      %v4047 = vrot.slane %v3938, 2
      %v4048 = vsel %vm945, %v4045, %v4047
      %v4049 = vrot.slane %v3939, 2
      %v4050 = vrot.slane %v3940, 2
      %v4051 = vsel %vm945, %v4049, %v4050
      %v4052 = vrot.slane %v3941, 2
      %v4053 = vsel %vm945, %v4050, %v4052
      %v4054 = vrot.slane %v3942, 2
      %v4055 = vrot.slane %v3943, 2
      %v4056 = vsel %vm945, %v4054, %v4055
      %v4057 = vrot.slane %v3944, 2
      %v4058 = vsel %vm945, %v4055, %v4057
      %v4059 = vrot.slane %v3945, 2
      %v4060 = vrot.slane %v3946, 2
      %v4061 = vsel %vm945, %v4059, %v4060
      %v4062 = vrot.slane %v3947, 2
      %v4063 = vsel %vm945, %v4060, %v4062
      %v4064 = vrot.slane %v3948, 2
      %v4065 = vrot.slane %v3949, 2
      %v4066 = vsel %vm945, %v4064, %v4065
      %v4067 = vrot.slane %v3950, 2
      %v4068 = vsel %vm945, %v4065, %v4067
      %v4069 = vrot.slane %v3951, 2
      %v4070 = vrot.slane %v3952, 2
      %v4071 = vsel %vm945, %v4069, %v4070
      %v4072 = vrot.slane %v3953, 2
      %v4073 = vsel %vm945, %v4070, %v4072
      %v4074 = vrot.slane %v3954, 2
      %v4075 = vrot.slane %v3955, 2
      %v4076 = vsel %vm945, %v4074, %v4075
      %v4077 = vrot.slane %v3956, 2
      %v4078 = vsel %vm945, %v4075, %v4077
      %v4079 = vrot.slane %v3957, 2
      %v4080 = vrot.slane %v3958, 2
      %v4081 = vsel %vm945, %v4079, %v4080
      %v4082 = vrot.slane %v3959, 2
      %v4083 = vsel %vm945, %v4080, %v4082
      %v4084 = vrot.slane %v3960, 2
      %v4085 = vrot.slane %v3961, 2
      %v4086 = vsel %vm945, %v4084, %v4085
      %v4087 = vrot.slane %v3962, 2
      %v4088 = vsel %vm945, %v4085, %v4087
      %v4089 = vrot.slane %v3963, 2
      %v4090 = vrot.slane %v3964, 2
      %v4091 = vsel %vm945, %v4089, %v4090
      %v4092 = vrot.slane %v3965, 2
      %v4093 = vsel %vm945, %v4090, %v4092
      %v4126 = vadd.f32 %v3882, %v4016
      %v4127 = vadd.f32 %v3883, %v4018
      %v4128 = vadd.f32 %v3884, %v4021
      %v4129 = vadd.f32 %v3885, %v4023
      %v4130 = vadd.f32 %v3886, %v4026
      %v4131 = vadd.f32 %v3887, %v4028
      %v4132 = vadd.f32 %v3888, %v4031
      %v4133 = vadd.f32 %v3889, %v4033
      %v4134 = vadd.f32 %v3890, %v4036
      %v4135 = vadd.f32 %v3891, %v4038
      %v4136 = vadd.f32 %v3892, %v4041
      %v4137 = vadd.f32 %v3893, %v4043
      %v4138 = vadd.f32 %v3894, %v4046
      %v4139 = vadd.f32 %v3895, %v4048
      %v4140 = vadd.f32 %v3896, %v4051
      %v4141 = vadd.f32 %v3897, %v4053
      %v4142 = vadd.f32 %v3898, %v4056
      %v4143 = vadd.f32 %v3899, %v4058
      %v4144 = vadd.f32 %v3900, %v4061
      %v4145 = vadd.f32 %v3901, %v4063
      %v4146 = vadd.f32 %v3902, %v4066
      %v4147 = vadd.f32 %v3903, %v4068
      %v4148 = vadd.f32 %v3904, %v4071
      %v4149 = vadd.f32 %v3905, %v4073
      %v4150 = vadd.f32 %v3906, %v4076
      %v4151 = vadd.f32 %v3907, %v4078
      %v4152 = vadd.f32 %v3908, %v4081
      %v4153 = vadd.f32 %v3909, %v4083
      %v4154 = vadd.f32 %v3910, %v4086
      %v4155 = vadd.f32 %v3911, %v4088
      %v4156 = vadd.f32 %v3912, %v4091
      %v4157 = vadd.f32 %v3913, %v4093
      %v4158 = vlaneseq
      %v4159 = vshrl.u32 %v4158, 7
      %v4160 = vsub.s32 3, %v4159
      %v4161 = vrot.slane %v527, %v4160
      %v4162 = vmul.f32 %v465, %v4161
      %v4163 = vmul.f32 %v466, %v4161
      %v4164 = vmul.f32 %v467, %v4161
      %v4165 = vmul.f32 %v468, %v4161
      %v4166 = vmul.f32 %v469, %v4161
      %v4167 = vmul.f32 %v470, %v4161
      %v4168 = vmul.f32 %v471, %v4161
      %v4169 = vmul.f32 %v472, %v4161
      %v4170 = vmul.f32 %v473, %v4161
      %v4171 = vmul.f32 %v474, %v4161
      %v4172 = vmul.f32 %v475, %v4161
      %v4173 = vmul.f32 %v476, %v4161
      %v4174 = vmul.f32 %v477, %v4161
      %v4175 = vmul.f32 %v478, %v4161
      %v4176 = vmul.f32 %v479, %v4161
      %v4177 = vmul.f32 %v480, %v4161
      %v4178 = vmul.f32 %v481, %v4161
      %v4179 = vmul.f32 %v482, %v4161
      %v4180 = vmul.f32 %v483, %v4161
      %v4181 = vmul.f32 %v484, %v4161
      %v4182 = vmul.f32 %v485, %v4161
      %v4183 = vmul.f32 %v486, %v4161
      %v4184 = vmul.f32 %v487, %v4161
      %v4185 = vmul.f32 %v488, %v4161
      %v4186 = vmul.f32 %v489, %v4161
      %v4187 = vmul.f32 %v490, %v4161
      %v4188 = vmul.f32 %v491, %v4161
      %v4189 = vmul.f32 %v492, %v4161
      %v4190 = vmul.f32 %v493, %v4161
      %v4191 = vmul.f32 %v494, %v4161
      %v4192 = vmul.f32 %v495, %v4161
      %v4193 = vmul.f32 %v496, %v4161
      %v4194 = vmul.f32 %v497, %v4161
      %v4195 = vmul.f32 %v498, %v4161
      %v4196 = vmul.f32 %v499, %v4161
      %v4197 = vmul.f32 %v500, %v4161
      %v4198 = vmul.f32 %v501, %v4161
      %v4199 = vmul.f32 %v502, %v4161
      %v4200 = vmul.f32 %v503, %v4161
      %v4201 = vmul.f32 %v504, %v4161
      %v4202 = vmul.f32 %v505, %v4161
      %v4203 = vmul.f32 %v506, %v4161
      %v4204 = vmul.f32 %v507, %v4161
      %v4205 = vmul.f32 %v508, %v4161
      %v4206 = vmul.f32 %v509, %v4161
      %v4207 = vmul.f32 %v510, %v4161
      %v4208 = vmul.f32 %v511, %v4161
      %v4209 = vmul.f32 %v512, %v4161
      %v4258 = vrot.slane %v4162, 3
      %v4259 = vrot.slane %v4163, 3
      %v4260 = vsel %vm1190, %v4258, %v4259
      %v4261 = vrot.slane %v4164, 3
      %v4262 = vsel %vm1190, %v4259, %v4261
      %v4263 = vrot.slane %v4165, 3
      %v4264 = vrot.slane %v4166, 3
      %v4265 = vsel %vm1190, %v4263, %v4264
      %v4266 = vrot.slane %v4167, 3
      %v4267 = vsel %vm1190, %v4264, %v4266
      %v4268 = vrot.slane %v4168, 3
      %v4269 = vrot.slane %v4169, 3
      %v4270 = vsel %vm1190, %v4268, %v4269
      %v4271 = vrot.slane %v4170, 3
      %v4272 = vsel %vm1190, %v4269, %v4271
      %v4273 = vrot.slane %v4171, 3
      %v4274 = vrot.slane %v4172, 3
      %v4275 = vsel %vm1190, %v4273, %v4274
      %v4276 = vrot.slane %v4173, 3
      %v4277 = vsel %vm1190, %v4274, %v4276
      %v4278 = vrot.slane %v4174, 3
      %v4279 = vrot.slane %v4175, 3
      %v4280 = vsel %vm1190, %v4278, %v4279
      %v4281 = vrot.slane %v4176, 3
      %v4282 = vsel %vm1190, %v4279, %v4281
      %v4283 = vrot.slane %v4177, 3
      %v4284 = vrot.slane %v4178, 3
      %v4285 = vsel %vm1190, %v4283, %v4284
      %v4286 = vrot.slane %v4179, 3
      %v4287 = vsel %vm1190, %v4284, %v4286
      %v4288 = vrot.slane %v4180, 3
      %v4289 = vrot.slane %v4181, 3
      %v4290 = vsel %vm1190, %v4288, %v4289
      %v4291 = vrot.slane %v4182, 3
      %v4292 = vsel %vm1190, %v4289, %v4291
      %v4293 = vrot.slane %v4183, 3
      %v4294 = vrot.slane %v4184, 3
      %v4295 = vsel %vm1190, %v4293, %v4294
      %v4296 = vrot.slane %v4185, 3
      %v4297 = vsel %vm1190, %v4294, %v4296
      %v4298 = vrot.slane %v4186, 3
      %v4299 = vrot.slane %v4187, 3
      %v4300 = vsel %vm1190, %v4298, %v4299
      %v4301 = vrot.slane %v4188, 3
      %v4302 = vsel %vm1190, %v4299, %v4301
      %v4303 = vrot.slane %v4189, 3
      %v4304 = vrot.slane %v4190, 3
      %v4305 = vsel %vm1190, %v4303, %v4304
      %v4306 = vrot.slane %v4191, 3
      %v4307 = vsel %vm1190, %v4304, %v4306
      %v4308 = vrot.slane %v4192, 3
      %v4309 = vrot.slane %v4193, 3
      %v4310 = vsel %vm1190, %v4308, %v4309
      %v4311 = vrot.slane %v4194, 3
      %v4312 = vsel %vm1190, %v4309, %v4311
      %v4313 = vrot.slane %v4195, 3
      %v4314 = vrot.slane %v4196, 3
      %v4315 = vsel %vm1190, %v4313, %v4314
      %v4316 = vrot.slane %v4197, 3
      %v4317 = vsel %vm1190, %v4314, %v4316
      %v4318 = vrot.slane %v4198, 3
      %v4319 = vrot.slane %v4199, 3
      %v4320 = vsel %vm1190, %v4318, %v4319
      %v4321 = vrot.slane %v4200, 3
      %v4322 = vsel %vm1190, %v4319, %v4321
      %v4323 = vrot.slane %v4201, 3
      %v4324 = vrot.slane %v4202, 3
      %v4325 = vsel %vm1190, %v4323, %v4324
      %v4326 = vrot.slane %v4203, 3
      %v4327 = vsel %vm1190, %v4324, %v4326
      %v4328 = vrot.slane %v4204, 3
      %v4329 = vrot.slane %v4205, 3
      %v4330 = vsel %vm1190, %v4328, %v4329
      %v4331 = vrot.slane %v4206, 3
      %v4332 = vsel %vm1190, %v4329, %v4331
      %v4333 = vrot.slane %v4207, 3
      %v4334 = vrot.slane %v4208, 3
      %v4335 = vsel %vm1190, %v4333, %v4334
      %v4336 = vrot.slane %v4209, 3
      %v4337 = vsel %vm1190, %v4334, %v4336
      %v4370 = vadd.f32 %v4126, %v4260
      %v4371 = vadd.f32 %v4127, %v4262
      %v4372 = vadd.f32 %v4128, %v4265
      %v4373 = vadd.f32 %v4129, %v4267
      %v4374 = vadd.f32 %v4130, %v4270
      %v4375 = vadd.f32 %v4131, %v4272
      %v4376 = vadd.f32 %v4132, %v4275
      %v4377 = vadd.f32 %v4133, %v4277
      %v4378 = vadd.f32 %v4134, %v4280
      %v4379 = vadd.f32 %v4135, %v4282
      %v4380 = vadd.f32 %v4136, %v4285
      %v4381 = vadd.f32 %v4137, %v4287
      %v4382 = vadd.f32 %v4138, %v4290
      %v4383 = vadd.f32 %v4139, %v4292
      %v4384 = vadd.f32 %v4140, %v4295
      %v4385 = vadd.f32 %v4141, %v4297
      %v4386 = vadd.f32 %v4142, %v4300
      %v4387 = vadd.f32 %v4143, %v4302
      %v4388 = vadd.f32 %v4144, %v4305
      %v4389 = vadd.f32 %v4145, %v4307
      %v4390 = vadd.f32 %v4146, %v4310
      %v4391 = vadd.f32 %v4147, %v4312
      %v4392 = vadd.f32 %v4148, %v4315
      %v4393 = vadd.f32 %v4149, %v4317
      %v4394 = vadd.f32 %v4150, %v4320
      %v4395 = vadd.f32 %v4151, %v4322
      %v4396 = vadd.f32 %v4152, %v4325
      %v4397 = vadd.f32 %v4153, %v4327
      %v4398 = vadd.f32 %v4154, %v4330
      %v4399 = vadd.f32 %v4155, %v4332
      %v4400 = vadd.f32 %v4156, %v4335
      %v4401 = vadd.f32 %v4157, %v4337
      %v4402 = vlaneseq
      %v4403 = vshrl.u32 %v4402, 7
      %v4404 = vsub.s32 4, %v4403
      %v4405 = vrot.slane %v527, %v4404
      %v4406 = vmul.f32 %v465, %v4405
      %v4407 = vmul.f32 %v466, %v4405
      %v4408 = vmul.f32 %v467, %v4405
      %v4409 = vmul.f32 %v468, %v4405
      %v4410 = vmul.f32 %v469, %v4405
      %v4411 = vmul.f32 %v470, %v4405
      %v4412 = vmul.f32 %v471, %v4405
      %v4413 = vmul.f32 %v472, %v4405
      %v4414 = vmul.f32 %v473, %v4405
      %v4415 = vmul.f32 %v474, %v4405
      %v4416 = vmul.f32 %v475, %v4405
      %v4417 = vmul.f32 %v476, %v4405
      %v4418 = vmul.f32 %v477, %v4405
      %v4419 = vmul.f32 %v478, %v4405
      %v4420 = vmul.f32 %v479, %v4405
      %v4421 = vmul.f32 %v480, %v4405
      %v4422 = vmul.f32 %v481, %v4405
      %v4423 = vmul.f32 %v482, %v4405
      %v4424 = vmul.f32 %v483, %v4405
      %v4425 = vmul.f32 %v484, %v4405
      %v4426 = vmul.f32 %v485, %v4405
      %v4427 = vmul.f32 %v486, %v4405
      %v4428 = vmul.f32 %v487, %v4405
      %v4429 = vmul.f32 %v488, %v4405
      %v4430 = vmul.f32 %v489, %v4405
      %v4431 = vmul.f32 %v490, %v4405
      %v4432 = vmul.f32 %v491, %v4405
      %v4433 = vmul.f32 %v492, %v4405
      %v4434 = vmul.f32 %v493, %v4405
      %v4435 = vmul.f32 %v494, %v4405
      %v4436 = vmul.f32 %v495, %v4405
      %v4437 = vmul.f32 %v496, %v4405
      %v4438 = vmul.f32 %v497, %v4405
      %v4439 = vmul.f32 %v498, %v4405
      %v4440 = vmul.f32 %v499, %v4405
      %v4441 = vmul.f32 %v500, %v4405
      %v4442 = vmul.f32 %v501, %v4405
      %v4443 = vmul.f32 %v502, %v4405
      %v4444 = vmul.f32 %v503, %v4405
      %v4445 = vmul.f32 %v504, %v4405
      %v4446 = vmul.f32 %v505, %v4405
      %v4447 = vmul.f32 %v506, %v4405
      %v4448 = vmul.f32 %v507, %v4405
      %v4449 = vmul.f32 %v508, %v4405
      %v4450 = vmul.f32 %v509, %v4405
      %v4451 = vmul.f32 %v510, %v4405
      %v4452 = vmul.f32 %v511, %v4405
      %v4453 = vmul.f32 %v512, %v4405
      %v4502 = vrot.slane %v4406, 4
      %v4503 = vrot.slane %v4407, 4
      %v4504 = vsel %vm1435, %v4502, %v4503
      %v4505 = vrot.slane %v4408, 4
      %v4506 = vsel %vm1435, %v4503, %v4505
      %v4507 = vrot.slane %v4409, 4
      %v4508 = vrot.slane %v4410, 4
      %v4509 = vsel %vm1435, %v4507, %v4508
      %v4510 = vrot.slane %v4411, 4
      %v4511 = vsel %vm1435, %v4508, %v4510
      %v4512 = vrot.slane %v4412, 4
      %v4513 = vrot.slane %v4413, 4
      %v4514 = vsel %vm1435, %v4512, %v4513
      %v4515 = vrot.slane %v4414, 4
      %v4516 = vsel %vm1435, %v4513, %v4515
      %v4517 = vrot.slane %v4415, 4
      %v4518 = vrot.slane %v4416, 4
      %v4519 = vsel %vm1435, %v4517, %v4518
      %v4520 = vrot.slane %v4417, 4
      %v4521 = vsel %vm1435, %v4518, %v4520
      %v4522 = vrot.slane %v4418, 4
      %v4523 = vrot.slane %v4419, 4
      %v4524 = vsel %vm1435, %v4522, %v4523
      %v4525 = vrot.slane %v4420, 4
      %v4526 = vsel %vm1435, %v4523, %v4525
      %v4527 = vrot.slane %v4421, 4
      %v4528 = vrot.slane %v4422, 4
      %v4529 = vsel %vm1435, %v4527, %v4528
      %v4530 = vrot.slane %v4423, 4
      %v4531 = vsel %vm1435, %v4528, %v4530
      %v4532 = vrot.slane %v4424, 4
      %v4533 = vrot.slane %v4425, 4
      %v4534 = vsel %vm1435, %v4532, %v4533
      %v4535 = vrot.slane %v4426, 4
      %v4536 = vsel %vm1435, %v4533, %v4535
      %v4537 = vrot.slane %v4427, 4
      %v4538 = vrot.slane %v4428, 4
      %v4539 = vsel %vm1435, %v4537, %v4538
      %v4540 = vrot.slane %v4429, 4
      %v4541 = vsel %vm1435, %v4538, %v4540
      %v4542 = vrot.slane %v4430, 4
      %v4543 = vrot.slane %v4431, 4
      %v4544 = vsel %vm1435, %v4542, %v4543
      %v4545 = vrot.slane %v4432, 4
      %v4546 = vsel %vm1435, %v4543, %v4545
      %v4547 = vrot.slane %v4433, 4
      %v4548 = vrot.slane %v4434, 4
      %v4549 = vsel %vm1435, %v4547, %v4548
      %v4550 = vrot.slane %v4435, 4
      %v4551 = vsel %vm1435, %v4548, %v4550
      %v4552 = vrot.slane %v4436, 4
      %v4553 = vrot.slane %v4437, 4
      %v4554 = vsel %vm1435, %v4552, %v4553
      %v4555 = vrot.slane %v4438, 4
      %v4556 = vsel %vm1435, %v4553, %v4555
      %v4557 = vrot.slane %v4439, 4
      %v4558 = vrot.slane %v4440, 4
      %v4559 = vsel %vm1435, %v4557, %v4558
      %v4560 = vrot.slane %v4441, 4
      %v4561 = vsel %vm1435, %v4558, %v4560
      %v4562 = vrot.slane %v4442, 4
      %v4563 = vrot.slane %v4443, 4
      %v4564 = vsel %vm1435, %v4562, %v4563
      %v4565 = vrot.slane %v4444, 4
      %v4566 = vsel %vm1435, %v4563, %v4565
      %v4567 = vrot.slane %v4445, 4
      %v4568 = vrot.slane %v4446, 4
      %v4569 = vsel %vm1435, %v4567, %v4568
      %v4570 = vrot.slane %v4447, 4
      %v4571 = vsel %vm1435, %v4568, %v4570
      %v4572 = vrot.slane %v4448, 4
      %v4573 = vrot.slane %v4449, 4
      %v4574 = vsel %vm1435, %v4572, %v4573
      %v4575 = vrot.slane %v4450, 4
      %v4576 = vsel %vm1435, %v4573, %v4575
      %v4577 = vrot.slane %v4451, 4
      %v4578 = vrot.slane %v4452, 4
      %v4579 = vsel %vm1435, %v4577, %v4578
      %v4580 = vrot.slane %v4453, 4
      %v4581 = vsel %vm1435, %v4578, %v4580
      %v4614 = vadd.f32 %v4370, %v4504
      %v4615 = vadd.f32 %v4371, %v4506
      %v4616 = vadd.f32 %v4372, %v4509
      %v4617 = vadd.f32 %v4373, %v4511
      %v4618 = vadd.f32 %v4374, %v4514
      %v4619 = vadd.f32 %v4375, %v4516
      %v4620 = vadd.f32 %v4376, %v4519
      %v4621 = vadd.f32 %v4377, %v4521
      %v4622 = vadd.f32 %v4378, %v4524
      %v4623 = vadd.f32 %v4379, %v4526
      %v4624 = vadd.f32 %v4380, %v4529
      %v4625 = vadd.f32 %v4381, %v4531
      %v4626 = vadd.f32 %v4382, %v4534
      %v4627 = vadd.f32 %v4383, %v4536
      %v4628 = vadd.f32 %v4384, %v4539
      %v4629 = vadd.f32 %v4385, %v4541
      %v4630 = vadd.f32 %v4386, %v4544
      %v4631 = vadd.f32 %v4387, %v4546
      %v4632 = vadd.f32 %v4388, %v4549
      %v4633 = vadd.f32 %v4389, %v4551
      %v4634 = vadd.f32 %v4390, %v4554
      %v4635 = vadd.f32 %v4391, %v4556
      %v4636 = vadd.f32 %v4392, %v4559
      %v4637 = vadd.f32 %v4393, %v4561
      %v4638 = vadd.f32 %v4394, %v4564
      %v4639 = vadd.f32 %v4395, %v4566
      %v4640 = vadd.f32 %v4396, %v4569
      %v4641 = vadd.f32 %v4397, %v4571
      %v4642 = vadd.f32 %v4398, %v4574
      %v4643 = vadd.f32 %v4399, %v4576
      %v4644 = vadd.f32 %v4400, %v4579
      %v4645 = vadd.f32 %v4401, %v4581
      %v4646 = vlaneseq
      %v4647 = vshrl.u32 %v4646, 7
      %v4648 = vsub.s32 5, %v4647
      %v4649 = vrot.slane %v527, %v4648
      %v4650 = vmul.f32 %v465, %v4649
      %v4651 = vmul.f32 %v466, %v4649
      %v4652 = vmul.f32 %v467, %v4649
      %v4653 = vmul.f32 %v468, %v4649
      %v4654 = vmul.f32 %v469, %v4649
      %v4655 = vmul.f32 %v470, %v4649
      %v4656 = vmul.f32 %v471, %v4649
      %v4657 = vmul.f32 %v472, %v4649
      %v4658 = vmul.f32 %v473, %v4649
      %v4659 = vmul.f32 %v474, %v4649
      %v4660 = vmul.f32 %v475, %v4649
      %v4661 = vmul.f32 %v476, %v4649
      %v4662 = vmul.f32 %v477, %v4649
      %v4663 = vmul.f32 %v478, %v4649
      %v4664 = vmul.f32 %v479, %v4649
      %v4665 = vmul.f32 %v480, %v4649
      %v4666 = vmul.f32 %v481, %v4649
      %v4667 = vmul.f32 %v482, %v4649
      %v4668 = vmul.f32 %v483, %v4649
      %v4669 = vmul.f32 %v484, %v4649
      %v4670 = vmul.f32 %v485, %v4649
      %v4671 = vmul.f32 %v486, %v4649
      %v4672 = vmul.f32 %v487, %v4649
      %v4673 = vmul.f32 %v488, %v4649
      %v4674 = vmul.f32 %v489, %v4649
      %v4675 = vmul.f32 %v490, %v4649
      %v4676 = vmul.f32 %v491, %v4649
      %v4677 = vmul.f32 %v492, %v4649
      %v4678 = vmul.f32 %v493, %v4649
      %v4679 = vmul.f32 %v494, %v4649
      %v4680 = vmul.f32 %v495, %v4649
      %v4681 = vmul.f32 %v496, %v4649
      %v4682 = vmul.f32 %v497, %v4649
      %v4683 = vmul.f32 %v498, %v4649
      %v4684 = vmul.f32 %v499, %v4649
      %v4685 = vmul.f32 %v500, %v4649
      %v4686 = vmul.f32 %v501, %v4649
      %v4687 = vmul.f32 %v502, %v4649
      %v4688 = vmul.f32 %v503, %v4649
      %v4689 = vmul.f32 %v504, %v4649
      %v4690 = vmul.f32 %v505, %v4649
      %v4691 = vmul.f32 %v506, %v4649
      %v4692 = vmul.f32 %v507, %v4649
      %v4693 = vmul.f32 %v508, %v4649
      %v4694 = vmul.f32 %v509, %v4649
      %v4695 = vmul.f32 %v510, %v4649
      %v4696 = vmul.f32 %v511, %v4649
      %v4697 = vmul.f32 %v512, %v4649
      %v4746 = vrot.slane %v4650, 5
      %v4747 = vrot.slane %v4651, 5
      %v4748 = vsel %vm1680, %v4746, %v4747
      %v4749 = vrot.slane %v4652, 5
      %v4750 = vsel %vm1680, %v4747, %v4749
      %v4751 = vrot.slane %v4653, 5
      %v4752 = vrot.slane %v4654, 5
      %v4753 = vsel %vm1680, %v4751, %v4752
      %v4754 = vrot.slane %v4655, 5
      %v4755 = vsel %vm1680, %v4752, %v4754
      %v4756 = vrot.slane %v4656, 5
      %v4757 = vrot.slane %v4657, 5
      %v4758 = vsel %vm1680, %v4756, %v4757
      %v4759 = vrot.slane %v4658, 5
      %v4760 = vsel %vm1680, %v4757, %v4759
      %v4761 = vrot.slane %v4659, 5
      %v4762 = vrot.slane %v4660, 5
      %v4763 = vsel %vm1680, %v4761, %v4762
      %v4764 = vrot.slane %v4661, 5
      %v4765 = vsel %vm1680, %v4762, %v4764
      %v4766 = vrot.slane %v4662, 5
      %v4767 = vrot.slane %v4663, 5
      %v4768 = vsel %vm1680, %v4766, %v4767
      %v4769 = vrot.slane %v4664, 5
      %v4770 = vsel %vm1680, %v4767, %v4769
      %v4771 = vrot.slane %v4665, 5
      %v4772 = vrot.slane %v4666, 5
      %v4773 = vsel %vm1680, %v4771, %v4772
      %v4774 = vrot.slane %v4667, 5
      %v4775 = vsel %vm1680, %v4772, %v4774
      %v4776 = vrot.slane %v4668, 5
      %v4777 = vrot.slane %v4669, 5
      %v4778 = vsel %vm1680, %v4776, %v4777
      %v4779 = vrot.slane %v4670, 5
      %v4780 = vsel %vm1680, %v4777, %v4779
      %v4781 = vrot.slane %v4671, 5
      %v4782 = vrot.slane %v4672, 5
      %v4783 = vsel %vm1680, %v4781, %v4782
      %v4784 = vrot.slane %v4673, 5
      %v4785 = vsel %vm1680, %v4782, %v4784
      %v4786 = vrot.slane %v4674, 5
      %v4787 = vrot.slane %v4675, 5
      %v4788 = vsel %vm1680, %v4786, %v4787
      %v4789 = vrot.slane %v4676, 5
      %v4790 = vsel %vm1680, %v4787, %v4789
      %v4791 = vrot.slane %v4677, 5
      %v4792 = vrot.slane %v4678, 5
      %v4793 = vsel %vm1680, %v4791, %v4792
      %v4794 = vrot.slane %v4679, 5
      %v4795 = vsel %vm1680, %v4792, %v4794
      %v4796 = vrot.slane %v4680, 5
      %v4797 = vrot.slane %v4681, 5
      %v4798 = vsel %vm1680, %v4796, %v4797
      %v4799 = vrot.slane %v4682, 5
      %v4800 = vsel %vm1680, %v4797, %v4799
      %v4801 = vrot.slane %v4683, 5
      %v4802 = vrot.slane %v4684, 5
      %v4803 = vsel %vm1680, %v4801, %v4802
      %v4804 = vrot.slane %v4685, 5
      %v4805 = vsel %vm1680, %v4802, %v4804
      %v4806 = vrot.slane %v4686, 5
      %v4807 = vrot.slane %v4687, 5
      %v4808 = vsel %vm1680, %v4806, %v4807
      %v4809 = vrot.slane %v4688, 5
      %v4810 = vsel %vm1680, %v4807, %v4809
      %v4811 = vrot.slane %v4689, 5
      %v4812 = vrot.slane %v4690, 5
      %v4813 = vsel %vm1680, %v4811, %v4812
      %v4814 = vrot.slane %v4691, 5
      %v4815 = vsel %vm1680, %v4812, %v4814
      %v4816 = vrot.slane %v4692, 5
      %v4817 = vrot.slane %v4693, 5
      %v4818 = vsel %vm1680, %v4816, %v4817
      %v4819 = vrot.slane %v4694, 5
      %v4820 = vsel %vm1680, %v4817, %v4819
      %v4821 = vrot.slane %v4695, 5
      %v4822 = vrot.slane %v4696, 5
      %v4823 = vsel %vm1680, %v4821, %v4822
      %v4824 = vrot.slane %v4697, 5
      %v4825 = vsel %vm1680, %v4822, %v4824
      %v4858 = vadd.f32 %v4614, %v4748
      %v4859 = vadd.f32 %v4615, %v4750
      %v4860 = vadd.f32 %v4616, %v4753
      %v4861 = vadd.f32 %v4617, %v4755
      %v4862 = vadd.f32 %v4618, %v4758
      %v4863 = vadd.f32 %v4619, %v4760
      %v4864 = vadd.f32 %v4620, %v4763
      %v4865 = vadd.f32 %v4621, %v4765
      %v4866 = vadd.f32 %v4622, %v4768
      %v4867 = vadd.f32 %v4623, %v4770
      %v4868 = vadd.f32 %v4624, %v4773
      %v4869 = vadd.f32 %v4625, %v4775
      %v4870 = vadd.f32 %v4626, %v4778
      %v4871 = vadd.f32 %v4627, %v4780
      %v4872 = vadd.f32 %v4628, %v4783
      %v4873 = vadd.f32 %v4629, %v4785
      %v4874 = vadd.f32 %v4630, %v4788
      %v4875 = vadd.f32 %v4631, %v4790
      %v4876 = vadd.f32 %v4632, %v4793
      %v4877 = vadd.f32 %v4633, %v4795
      %v4878 = vadd.f32 %v4634, %v4798
      %v4879 = vadd.f32 %v4635, %v4800
      %v4880 = vadd.f32 %v4636, %v4803
      %v4881 = vadd.f32 %v4637, %v4805
      %v4882 = vadd.f32 %v4638, %v4808
      %v4883 = vadd.f32 %v4639, %v4810
      %v4884 = vadd.f32 %v4640, %v4813
      %v4885 = vadd.f32 %v4641, %v4815
      %v4886 = vadd.f32 %v4642, %v4818
      %v4887 = vadd.f32 %v4643, %v4820
      %v4888 = vadd.f32 %v4644, %v4823
      %v4889 = vadd.f32 %v4645, %v4825
      %v4890 = vlaneseq
      %v4891 = vshrl.u32 %v4890, 7
      %v4892 = vsub.s32 6, %v4891
      %v4893 = vrot.slane %v527, %v4892
      %v4894 = vmul.f32 %v465, %v4893
      %v4895 = vmul.f32 %v466, %v4893
      %v4896 = vmul.f32 %v467, %v4893
      %v4897 = vmul.f32 %v468, %v4893
      %v4898 = vmul.f32 %v469, %v4893
      %v4899 = vmul.f32 %v470, %v4893
      %v4900 = vmul.f32 %v471, %v4893
      %v4901 = vmul.f32 %v472, %v4893
      %v4902 = vmul.f32 %v473, %v4893
      %v4903 = vmul.f32 %v474, %v4893
      %v4904 = vmul.f32 %v475, %v4893
      %v4905 = vmul.f32 %v476, %v4893
      %v4906 = vmul.f32 %v477, %v4893
      %v4907 = vmul.f32 %v478, %v4893
      %v4908 = vmul.f32 %v479, %v4893
      %v4909 = vmul.f32 %v480, %v4893
      %v4910 = vmul.f32 %v481, %v4893
      %v4911 = vmul.f32 %v482, %v4893
      %v4912 = vmul.f32 %v483, %v4893
      %v4913 = vmul.f32 %v484, %v4893
      %v4914 = vmul.f32 %v485, %v4893
      %v4915 = vmul.f32 %v486, %v4893
      %v4916 = vmul.f32 %v487, %v4893
      %v4917 = vmul.f32 %v488, %v4893
      %v4918 = vmul.f32 %v489, %v4893
      %v4919 = vmul.f32 %v490, %v4893
      %v4920 = vmul.f32 %v491, %v4893
      %v4921 = vmul.f32 %v492, %v4893
      %v4922 = vmul.f32 %v493, %v4893
      %v4923 = vmul.f32 %v494, %v4893
      %v4924 = vmul.f32 %v495, %v4893
      %v4925 = vmul.f32 %v496, %v4893
      %v4926 = vmul.f32 %v497, %v4893
      %v4927 = vmul.f32 %v498, %v4893
      %v4928 = vmul.f32 %v499, %v4893
      %v4929 = vmul.f32 %v500, %v4893
      %v4930 = vmul.f32 %v501, %v4893
      %v4931 = vmul.f32 %v502, %v4893
      %v4932 = vmul.f32 %v503, %v4893
      %v4933 = vmul.f32 %v504, %v4893
      %v4934 = vmul.f32 %v505, %v4893
      %v4935 = vmul.f32 %v506, %v4893
      %v4936 = vmul.f32 %v507, %v4893
      %v4937 = vmul.f32 %v508, %v4893
      %v4938 = vmul.f32 %v509, %v4893
      %v4939 = vmul.f32 %v510, %v4893
      %v4940 = vmul.f32 %v511, %v4893
      %v4941 = vmul.f32 %v512, %v4893
      %v4990 = vrot.slane %v4894, 6
      %v4991 = vrot.slane %v4895, 6
      %v4992 = vsel %vm1925, %v4990, %v4991
      %v4993 = vrot.slane %v4896, 6
      %v4994 = vsel %vm1925, %v4991, %v4993
      %v4995 = vrot.slane %v4897, 6
      %v4996 = vrot.slane %v4898, 6
      %v4997 = vsel %vm1925, %v4995, %v4996
      %v4998 = vrot.slane %v4899, 6
      %v4999 = vsel %vm1925, %v4996, %v4998
      %v5000 = vrot.slane %v4900, 6
      %v5001 = vrot.slane %v4901, 6
      %v5002 = vsel %vm1925, %v5000, %v5001
      %v5003 = vrot.slane %v4902, 6
      %v5004 = vsel %vm1925, %v5001, %v5003
      %v5005 = vrot.slane %v4903, 6
      %v5006 = vrot.slane %v4904, 6
      %v5007 = vsel %vm1925, %v5005, %v5006
      %v5008 = vrot.slane %v4905, 6
      %v5009 = vsel %vm1925, %v5006, %v5008
      %v5010 = vrot.slane %v4906, 6
      %v5011 = vrot.slane %v4907, 6
      %v5012 = vsel %vm1925, %v5010, %v5011
      %v5013 = vrot.slane %v4908, 6
      %v5014 = vsel %vm1925, %v5011, %v5013
      %v5015 = vrot.slane %v4909, 6
      %v5016 = vrot.slane %v4910, 6
      %v5017 = vsel %vm1925, %v5015, %v5016
      %v5018 = vrot.slane %v4911, 6
      %v5019 = vsel %vm1925, %v5016, %v5018
      %v5020 = vrot.slane %v4912, 6
      %v5021 = vrot.slane %v4913, 6
      %v5022 = vsel %vm1925, %v5020, %v5021
      %v5023 = vrot.slane %v4914, 6
      %v5024 = vsel %vm1925, %v5021, %v5023
      %v5025 = vrot.slane %v4915, 6
      %v5026 = vrot.slane %v4916, 6
      %v5027 = vsel %vm1925, %v5025, %v5026
      %v5028 = vrot.slane %v4917, 6
      %v5029 = vsel %vm1925, %v5026, %v5028
      %v5030 = vrot.slane %v4918, 6
      %v5031 = vrot.slane %v4919, 6
      %v5032 = vsel %vm1925, %v5030, %v5031
      %v5033 = vrot.slane %v4920, 6
      %v5034 = vsel %vm1925, %v5031, %v5033
      %v5035 = vrot.slane %v4921, 6
      %v5036 = vrot.slane %v4922, 6
      %v5037 = vsel %vm1925, %v5035, %v5036
      %v5038 = vrot.slane %v4923, 6
      %v5039 = vsel %vm1925, %v5036, %v5038
      %v5040 = vrot.slane %v4924, 6
      %v5041 = vrot.slane %v4925, 6
      %v5042 = vsel %vm1925, %v5040, %v5041
      %v5043 = vrot.slane %v4926, 6
      %v5044 = vsel %vm1925, %v5041, %v5043
      %v5045 = vrot.slane %v4927, 6
      %v5046 = vrot.slane %v4928, 6
      %v5047 = vsel %vm1925, %v5045, %v5046
      %v5048 = vrot.slane %v4929, 6
      %v5049 = vsel %vm1925, %v5046, %v5048
      %v5050 = vrot.slane %v4930, 6
      %v5051 = vrot.slane %v4931, 6
      %v5052 = vsel %vm1925, %v5050, %v5051
      %v5053 = vrot.slane %v4932, 6
      %v5054 = vsel %vm1925, %v5051, %v5053
      %v5055 = vrot.slane %v4933, 6
      %v5056 = vrot.slane %v4934, 6
      %v5057 = vsel %vm1925, %v5055, %v5056
      %v5058 = vrot.slane %v4935, 6
      %v5059 = vsel %vm1925, %v5056, %v5058
      %v5060 = vrot.slane %v4936, 6
      %v5061 = vrot.slane %v4937, 6
      %v5062 = vsel %vm1925, %v5060, %v5061
      %v5063 = vrot.slane %v4938, 6
      %v5064 = vsel %vm1925, %v5061, %v5063
      %v5065 = vrot.slane %v4939, 6
      %v5066 = vrot.slane %v4940, 6
      %v5067 = vsel %vm1925, %v5065, %v5066
      %v5068 = vrot.slane %v4941, 6
      %v5069 = vsel %vm1925, %v5066, %v5068
      %v5102 = vadd.f32 %v4858, %v4992
      %v5103 = vadd.f32 %v4859, %v4994
      %v5104 = vadd.f32 %v4860, %v4997
      %v5105 = vadd.f32 %v4861, %v4999
      %v5106 = vadd.f32 %v4862, %v5002
      %v5107 = vadd.f32 %v4863, %v5004
      %v5108 = vadd.f32 %v4864, %v5007
      %v5109 = vadd.f32 %v4865, %v5009
      %v5110 = vadd.f32 %v4866, %v5012
      %v5111 = vadd.f32 %v4867, %v5014
      %v5112 = vadd.f32 %v4868, %v5017
      %v5113 = vadd.f32 %v4869, %v5019
      %v5114 = vadd.f32 %v4870, %v5022
      %v5115 = vadd.f32 %v4871, %v5024
      %v5116 = vadd.f32 %v4872, %v5027
      %v5117 = vadd.f32 %v4873, %v5029
      %v5118 = vadd.f32 %v4874, %v5032
      %v5119 = vadd.f32 %v4875, %v5034
      %v5120 = vadd.f32 %v4876, %v5037
      %v5121 = vadd.f32 %v4877, %v5039
      %v5122 = vadd.f32 %v4878, %v5042
      %v5123 = vadd.f32 %v4879, %v5044
      %v5124 = vadd.f32 %v4880, %v5047
      %v5125 = vadd.f32 %v4881, %v5049
      %v5126 = vadd.f32 %v4882, %v5052
      %v5127 = vadd.f32 %v4883, %v5054
      %v5128 = vadd.f32 %v4884, %v5057
      %v5129 = vadd.f32 %v4885, %v5059
      %v5130 = vadd.f32 %v4886, %v5062
      %v5131 = vadd.f32 %v4887, %v5064
      %v5132 = vadd.f32 %v4888, %v5067
      %v5133 = vadd.f32 %v4889, %v5069
      %v5134 = vlaneseq
      %v5135 = vshrl.u32 %v5134, 7
      %v5136 = vsub.s32 0, %v5135
      %v5137 = vrot.slane %v528, %v5136
      %v5138 = vmul.f32 %v468, %v5137
      %v5139 = vmul.f32 %v469, %v5137
      %v5140 = vmul.f32 %v471, %v5137
      %v5141 = vmul.f32 %v472, %v5137
      %v5142 = vmul.f32 %v474, %v5137
      %v5143 = vmul.f32 %v475, %v5137
      %v5144 = vmul.f32 %v477, %v5137
      %v5145 = vmul.f32 %v478, %v5137
      %v5146 = vmul.f32 %v480, %v5137
      %v5147 = vmul.f32 %v481, %v5137
      %v5148 = vmul.f32 %v483, %v5137
      %v5149 = vmul.f32 %v484, %v5137
      %v5150 = vmul.f32 %v486, %v5137
      %v5151 = vmul.f32 %v487, %v5137
      %v5152 = vmul.f32 %v489, %v5137
      %v5153 = vmul.f32 %v490, %v5137
      %v5154 = vmul.f32 %v492, %v5137
      %v5155 = vmul.f32 %v493, %v5137
      %v5156 = vmul.f32 %v495, %v5137
      %v5157 = vmul.f32 %v496, %v5137
      %v5158 = vmul.f32 %v498, %v5137
      %v5159 = vmul.f32 %v499, %v5137
      %v5160 = vmul.f32 %v501, %v5137
      %v5161 = vmul.f32 %v502, %v5137
      %v5162 = vmul.f32 %v504, %v5137
      %v5163 = vmul.f32 %v505, %v5137
      %v5164 = vmul.f32 %v507, %v5137
      %v5165 = vmul.f32 %v508, %v5137
      %v5166 = vmul.f32 %v510, %v5137
      %v5167 = vmul.f32 %v511, %v5137
      %v5168 = vmul.f32 %v513, %v5137
      %v5169 = vmul.f32 %v514, %v5137
      %v5170 = vadd.f32 %v5102, %v5138
      %v5171 = vadd.f32 %v5103, %v5139
      %v5172 = vadd.f32 %v5104, %v5140
      %v5173 = vadd.f32 %v5105, %v5141
      %v5174 = vadd.f32 %v5106, %v5142
      %v5175 = vadd.f32 %v5107, %v5143
      %v5176 = vadd.f32 %v5108, %v5144
      %v5177 = vadd.f32 %v5109, %v5145
      %v5178 = vadd.f32 %v5110, %v5146
      %v5179 = vadd.f32 %v5111, %v5147
      %v5180 = vadd.f32 %v5112, %v5148
      %v5181 = vadd.f32 %v5113, %v5149
      %v5182 = vadd.f32 %v5114, %v5150
      %v5183 = vadd.f32 %v5115, %v5151
      %v5184 = vadd.f32 %v5116, %v5152
      %v5185 = vadd.f32 %v5117, %v5153
      %v5186 = vadd.f32 %v5118, %v5154
      %v5187 = vadd.f32 %v5119, %v5155
      %v5188 = vadd.f32 %v5120, %v5156
      %v5189 = vadd.f32 %v5121, %v5157
      %v5190 = vadd.f32 %v5122, %v5158
      %v5191 = vadd.f32 %v5123, %v5159
      %v5192 = vadd.f32 %v5124, %v5160
      %v5193 = vadd.f32 %v5125, %v5161
      %v5194 = vadd.f32 %v5126, %v5162
      %v5195 = vadd.f32 %v5127, %v5163
      %v5196 = vadd.f32 %v5128, %v5164
      %v5197 = vadd.f32 %v5129, %v5165
      %v5198 = vadd.f32 %v5130, %v5166
      %v5199 = vadd.f32 %v5131, %v5167
      %v5200 = vadd.f32 %v5132, %v5168
      %v5201 = vadd.f32 %v5133, %v5169
      %v5202 = vlaneseq
      %v5203 = vshrl.u32 %v5202, 7
      %v5204 = vsub.s32 1, %v5203
      %v5205 = vrot.slane %v528, %v5204
      %v5206 = vmul.f32 %v468, %v5205
      %v5207 = vmul.f32 %v469, %v5205
      %v5208 = vmul.f32 %v470, %v5205
      %v5209 = vmul.f32 %v471, %v5205
      %v5210 = vmul.f32 %v472, %v5205
      %v5211 = vmul.f32 %v473, %v5205
      %v5212 = vmul.f32 %v474, %v5205
      %v5213 = vmul.f32 %v475, %v5205
      %v5214 = vmul.f32 %v476, %v5205
      %v5215 = vmul.f32 %v477, %v5205
      %v5216 = vmul.f32 %v478, %v5205
      %v5217 = vmul.f32 %v479, %v5205
      %v5218 = vmul.f32 %v480, %v5205
      %v5219 = vmul.f32 %v481, %v5205
      %v5220 = vmul.f32 %v482, %v5205
      %v5221 = vmul.f32 %v483, %v5205
      %v5222 = vmul.f32 %v484, %v5205
      %v5223 = vmul.f32 %v485, %v5205
      %v5224 = vmul.f32 %v486, %v5205
      %v5225 = vmul.f32 %v487, %v5205
      %v5226 = vmul.f32 %v488, %v5205
      %v5227 = vmul.f32 %v489, %v5205
      %v5228 = vmul.f32 %v490, %v5205
      %v5229 = vmul.f32 %v491, %v5205
      %v5230 = vmul.f32 %v492, %v5205
      %v5231 = vmul.f32 %v493, %v5205
      %v5232 = vmul.f32 %v494, %v5205
      %v5233 = vmul.f32 %v495, %v5205
      %v5234 = vmul.f32 %v496, %v5205
      %v5235 = vmul.f32 %v497, %v5205
      %v5236 = vmul.f32 %v498, %v5205
      %v5237 = vmul.f32 %v499, %v5205
      %v5238 = vmul.f32 %v500, %v5205
      %v5239 = vmul.f32 %v501, %v5205
      %v5240 = vmul.f32 %v502, %v5205
      %v5241 = vmul.f32 %v503, %v5205
      %v5242 = vmul.f32 %v504, %v5205
      %v5243 = vmul.f32 %v505, %v5205
      %v5244 = vmul.f32 %v506, %v5205
      %v5245 = vmul.f32 %v507, %v5205
      %v5246 = vmul.f32 %v508, %v5205
      %v5247 = vmul.f32 %v509, %v5205
      %v5248 = vmul.f32 %v510, %v5205
      %v5249 = vmul.f32 %v511, %v5205
      %v5250 = vmul.f32 %v512, %v5205
      %v5251 = vmul.f32 %v513, %v5205
      %v5252 = vmul.f32 %v514, %v5205
      %v5253 = vmul.f32 %v515, %v5205
      %v5302 = vrot.slane %v5206, 1
      %v5303 = vrot.slane %v5207, 1
      %v5304 = vsel %vm700, %v5302, %v5303
      %v5305 = vrot.slane %v5208, 1
      %v5306 = vsel %vm700, %v5303, %v5305
      %v5307 = vrot.slane %v5209, 1
      %v5308 = vrot.slane %v5210, 1
      %v5309 = vsel %vm700, %v5307, %v5308
      %v5310 = vrot.slane %v5211, 1
      %v5311 = vsel %vm700, %v5308, %v5310
      %v5312 = vrot.slane %v5212, 1
      %v5313 = vrot.slane %v5213, 1
      %v5314 = vsel %vm700, %v5312, %v5313
      %v5315 = vrot.slane %v5214, 1
      %v5316 = vsel %vm700, %v5313, %v5315
      %v5317 = vrot.slane %v5215, 1
      %v5318 = vrot.slane %v5216, 1
      %v5319 = vsel %vm700, %v5317, %v5318
      %v5320 = vrot.slane %v5217, 1
      %v5321 = vsel %vm700, %v5318, %v5320
      %v5322 = vrot.slane %v5218, 1
      %v5323 = vrot.slane %v5219, 1
      %v5324 = vsel %vm700, %v5322, %v5323
      %v5325 = vrot.slane %v5220, 1
      %v5326 = vsel %vm700, %v5323, %v5325
      %v5327 = vrot.slane %v5221, 1
      %v5328 = vrot.slane %v5222, 1
      %v5329 = vsel %vm700, %v5327, %v5328
      %v5330 = vrot.slane %v5223, 1
      %v5331 = vsel %vm700, %v5328, %v5330
      %v5332 = vrot.slane %v5224, 1
      %v5333 = vrot.slane %v5225, 1
      %v5334 = vsel %vm700, %v5332, %v5333
      %v5335 = vrot.slane %v5226, 1
      %v5336 = vsel %vm700, %v5333, %v5335
      %v5337 = vrot.slane %v5227, 1
      %v5338 = vrot.slane %v5228, 1
      %v5339 = vsel %vm700, %v5337, %v5338
      %v5340 = vrot.slane %v5229, 1
      %v5341 = vsel %vm700, %v5338, %v5340
      %v5342 = vrot.slane %v5230, 1
      %v5343 = vrot.slane %v5231, 1
      %v5344 = vsel %vm700, %v5342, %v5343
      %v5345 = vrot.slane %v5232, 1
      %v5346 = vsel %vm700, %v5343, %v5345
      %v5347 = vrot.slane %v5233, 1
      %v5348 = vrot.slane %v5234, 1
      %v5349 = vsel %vm700, %v5347, %v5348
      %v5350 = vrot.slane %v5235, 1
      %v5351 = vsel %vm700, %v5348, %v5350
      %v5352 = vrot.slane %v5236, 1
      %v5353 = vrot.slane %v5237, 1
      %v5354 = vsel %vm700, %v5352, %v5353
      %v5355 = vrot.slane %v5238, 1
      %v5356 = vsel %vm700, %v5353, %v5355
      %v5357 = vrot.slane %v5239, 1
      %v5358 = vrot.slane %v5240, 1
      %v5359 = vsel %vm700, %v5357, %v5358
      %v5360 = vrot.slane %v5241, 1
      %v5361 = vsel %vm700, %v5358, %v5360
      %v5362 = vrot.slane %v5242, 1
      %v5363 = vrot.slane %v5243, 1
      %v5364 = vsel %vm700, %v5362, %v5363
      %v5365 = vrot.slane %v5244, 1
      %v5366 = vsel %vm700, %v5363, %v5365
      %v5367 = vrot.slane %v5245, 1
      %v5368 = vrot.slane %v5246, 1
      %v5369 = vsel %vm700, %v5367, %v5368
      %v5370 = vrot.slane %v5247, 1
      %v5371 = vsel %vm700, %v5368, %v5370
      %v5372 = vrot.slane %v5248, 1
      %v5373 = vrot.slane %v5249, 1
      %v5374 = vsel %vm700, %v5372, %v5373
      %v5375 = vrot.slane %v5250, 1
      %v5376 = vsel %vm700, %v5373, %v5375
      %v5377 = vrot.slane %v5251, 1
      %v5378 = vrot.slane %v5252, 1
      %v5379 = vsel %vm700, %v5377, %v5378
      %v5380 = vrot.slane %v5253, 1
      %v5381 = vsel %vm700, %v5378, %v5380
      %v5414 = vadd.f32 %v5170, %v5304
      %v5415 = vadd.f32 %v5171, %v5306
      %v5416 = vadd.f32 %v5172, %v5309
      %v5417 = vadd.f32 %v5173, %v5311
      %v5418 = vadd.f32 %v5174, %v5314
      %v5419 = vadd.f32 %v5175, %v5316
      %v5420 = vadd.f32 %v5176, %v5319
      %v5421 = vadd.f32 %v5177, %v5321
      %v5422 = vadd.f32 %v5178, %v5324
      %v5423 = vadd.f32 %v5179, %v5326
      %v5424 = vadd.f32 %v5180, %v5329
      %v5425 = vadd.f32 %v5181, %v5331
      %v5426 = vadd.f32 %v5182, %v5334
      %v5427 = vadd.f32 %v5183, %v5336
      %v5428 = vadd.f32 %v5184, %v5339
      %v5429 = vadd.f32 %v5185, %v5341
      %v5430 = vadd.f32 %v5186, %v5344
      %v5431 = vadd.f32 %v5187, %v5346
      %v5432 = vadd.f32 %v5188, %v5349
      %v5433 = vadd.f32 %v5189, %v5351
      %v5434 = vadd.f32 %v5190, %v5354
      %v5435 = vadd.f32 %v5191, %v5356
      %v5436 = vadd.f32 %v5192, %v5359
      %v5437 = vadd.f32 %v5193, %v5361
      %v5438 = vadd.f32 %v5194, %v5364
      %v5439 = vadd.f32 %v5195, %v5366
      %v5440 = vadd.f32 %v5196, %v5369
      %v5441 = vadd.f32 %v5197, %v5371
      %v5442 = vadd.f32 %v5198, %v5374
      %v5443 = vadd.f32 %v5199, %v5376
      %v5444 = vadd.f32 %v5200, %v5379
      %v5445 = vadd.f32 %v5201, %v5381
      %v5446 = vlaneseq
      %v5447 = vshrl.u32 %v5446, 7
      %v5448 = vsub.s32 2, %v5447
      %v5449 = vrot.slane %v528, %v5448
      %v5450 = vmul.f32 %v468, %v5449
      %v5451 = vmul.f32 %v469, %v5449
      %v5452 = vmul.f32 %v470, %v5449
      %v5453 = vmul.f32 %v471, %v5449
      %v5454 = vmul.f32 %v472, %v5449
      %v5455 = vmul.f32 %v473, %v5449
      %v5456 = vmul.f32 %v474, %v5449
      %v5457 = vmul.f32 %v475, %v5449
      %v5458 = vmul.f32 %v476, %v5449
      %v5459 = vmul.f32 %v477, %v5449
      %v5460 = vmul.f32 %v478, %v5449
      %v5461 = vmul.f32 %v479, %v5449
      %v5462 = vmul.f32 %v480, %v5449
      %v5463 = vmul.f32 %v481, %v5449
      %v5464 = vmul.f32 %v482, %v5449
      %v5465 = vmul.f32 %v483, %v5449
      %v5466 = vmul.f32 %v484, %v5449
      %v5467 = vmul.f32 %v485, %v5449
      %v5468 = vmul.f32 %v486, %v5449
      %v5469 = vmul.f32 %v487, %v5449
      %v5470 = vmul.f32 %v488, %v5449
      %v5471 = vmul.f32 %v489, %v5449
      %v5472 = vmul.f32 %v490, %v5449
      %v5473 = vmul.f32 %v491, %v5449
      %v5474 = vmul.f32 %v492, %v5449
      %v5475 = vmul.f32 %v493, %v5449
      %v5476 = vmul.f32 %v494, %v5449
      %v5477 = vmul.f32 %v495, %v5449
      %v5478 = vmul.f32 %v496, %v5449
      %v5479 = vmul.f32 %v497, %v5449
      %v5480 = vmul.f32 %v498, %v5449
      %v5481 = vmul.f32 %v499, %v5449
      %v5482 = vmul.f32 %v500, %v5449
      %v5483 = vmul.f32 %v501, %v5449
      %v5484 = vmul.f32 %v502, %v5449
      %v5485 = vmul.f32 %v503, %v5449
      %v5486 = vmul.f32 %v504, %v5449
      %v5487 = vmul.f32 %v505, %v5449
      %v5488 = vmul.f32 %v506, %v5449
      %v5489 = vmul.f32 %v507, %v5449
      %v5490 = vmul.f32 %v508, %v5449
      %v5491 = vmul.f32 %v509, %v5449
      %v5492 = vmul.f32 %v510, %v5449
      %v5493 = vmul.f32 %v511, %v5449
      %v5494 = vmul.f32 %v512, %v5449
      %v5495 = vmul.f32 %v513, %v5449
      %v5496 = vmul.f32 %v514, %v5449
      %v5497 = vmul.f32 %v515, %v5449
      %v5546 = vrot.slane %v5450, 2
      %v5547 = vrot.slane %v5451, 2
      %v5548 = vsel %vm945, %v5546, %v5547
      %v5549 = vrot.slane %v5452, 2
      %v5550 = vsel %vm945, %v5547, %v5549
      %v5551 = vrot.slane %v5453, 2
      %v5552 = vrot.slane %v5454, 2
      %v5553 = vsel %vm945, %v5551, %v5552
      %v5554 = vrot.slane %v5455, 2
      %v5555 = vsel %vm945, %v5552, %v5554
      %v5556 = vrot.slane %v5456, 2
      %v5557 = vrot.slane %v5457, 2
      %v5558 = vsel %vm945, %v5556, %v5557
      %v5559 = vrot.slane %v5458, 2
      %v5560 = vsel %vm945, %v5557, %v5559
      %v5561 = vrot.slane %v5459, 2
      %v5562 = vrot.slane %v5460, 2
      %v5563 = vsel %vm945, %v5561, %v5562
      %v5564 = vrot.slane %v5461, 2
      %v5565 = vsel %vm945, %v5562, %v5564
      %v5566 = vrot.slane %v5462, 2
      %v5567 = vrot.slane %v5463, 2
      %v5568 = vsel %vm945, %v5566, %v5567
      %v5569 = vrot.slane %v5464, 2
      %v5570 = vsel %vm945, %v5567, %v5569
      %v5571 = vrot.slane %v5465, 2
      %v5572 = vrot.slane %v5466, 2
      %v5573 = vsel %vm945, %v5571, %v5572
      %v5574 = vrot.slane %v5467, 2
      %v5575 = vsel %vm945, %v5572, %v5574
      %v5576 = vrot.slane %v5468, 2
      %v5577 = vrot.slane %v5469, 2
      %v5578 = vsel %vm945, %v5576, %v5577
      %v5579 = vrot.slane %v5470, 2
      %v5580 = vsel %vm945, %v5577, %v5579
      %v5581 = vrot.slane %v5471, 2
      %v5582 = vrot.slane %v5472, 2
      %v5583 = vsel %vm945, %v5581, %v5582
      %v5584 = vrot.slane %v5473, 2
      %v5585 = vsel %vm945, %v5582, %v5584
      %v5586 = vrot.slane %v5474, 2
      %v5587 = vrot.slane %v5475, 2
      %v5588 = vsel %vm945, %v5586, %v5587
      %v5589 = vrot.slane %v5476, 2
      %v5590 = vsel %vm945, %v5587, %v5589
      %v5591 = vrot.slane %v5477, 2
      %v5592 = vrot.slane %v5478, 2
      %v5593 = vsel %vm945, %v5591, %v5592
      %v5594 = vrot.slane %v5479, 2
      %v5595 = vsel %vm945, %v5592, %v5594
      %v5596 = vrot.slane %v5480, 2
      %v5597 = vrot.slane %v5481, 2
      %v5598 = vsel %vm945, %v5596, %v5597
      %v5599 = vrot.slane %v5482, 2
      %v5600 = vsel %vm945, %v5597, %v5599
      %v5601 = vrot.slane %v5483, 2
      %v5602 = vrot.slane %v5484, 2
      %v5603 = vsel %vm945, %v5601, %v5602
      %v5604 = vrot.slane %v5485, 2
      %v5605 = vsel %vm945, %v5602, %v5604
      %v5606 = vrot.slane %v5486, 2
      %v5607 = vrot.slane %v5487, 2
      %v5608 = vsel %vm945, %v5606, %v5607
      %v5609 = vrot.slane %v5488, 2
      %v5610 = vsel %vm945, %v5607, %v5609
      %v5611 = vrot.slane %v5489, 2
      %v5612 = vrot.slane %v5490, 2
      %v5613 = vsel %vm945, %v5611, %v5612
      %v5614 = vrot.slane %v5491, 2
      %v5615 = vsel %vm945, %v5612, %v5614
      %v5616 = vrot.slane %v5492, 2
      %v5617 = vrot.slane %v5493, 2
      %v5618 = vsel %vm945, %v5616, %v5617
      %v5619 = vrot.slane %v5494, 2
      %v5620 = vsel %vm945, %v5617, %v5619
      %v5621 = vrot.slane %v5495, 2
      %v5622 = vrot.slane %v5496, 2
      %v5623 = vsel %vm945, %v5621, %v5622
      %v5624 = vrot.slane %v5497, 2
      %v5625 = vsel %vm945, %v5622, %v5624
      %v5658 = vadd.f32 %v5414, %v5548
      %v5659 = vadd.f32 %v5415, %v5550
      %v5660 = vadd.f32 %v5416, %v5553
      %v5661 = vadd.f32 %v5417, %v5555
      %v5662 = vadd.f32 %v5418, %v5558
      %v5663 = vadd.f32 %v5419, %v5560
      %v5664 = vadd.f32 %v5420, %v5563
      %v5665 = vadd.f32 %v5421, %v5565
      %v5666 = vadd.f32 %v5422, %v5568
      %v5667 = vadd.f32 %v5423, %v5570
      %v5668 = vadd.f32 %v5424, %v5573
      %v5669 = vadd.f32 %v5425, %v5575
      %v5670 = vadd.f32 %v5426, %v5578
      %v5671 = vadd.f32 %v5427, %v5580
      %v5672 = vadd.f32 %v5428, %v5583
      %v5673 = vadd.f32 %v5429, %v5585
      %v5674 = vadd.f32 %v5430, %v5588
      %v5675 = vadd.f32 %v5431, %v5590
      %v5676 = vadd.f32 %v5432, %v5593
      %v5677 = vadd.f32 %v5433, %v5595
      %v5678 = vadd.f32 %v5434, %v5598
      %v5679 = vadd.f32 %v5435, %v5600
      %v5680 = vadd.f32 %v5436, %v5603
      %v5681 = vadd.f32 %v5437, %v5605
      %v5682 = vadd.f32 %v5438, %v5608
      %v5683 = vadd.f32 %v5439, %v5610
      %v5684 = vadd.f32 %v5440, %v5613
      %v5685 = vadd.f32 %v5441, %v5615
      %v5686 = vadd.f32 %v5442, %v5618
      %v5687 = vadd.f32 %v5443, %v5620
      %v5688 = vadd.f32 %v5444, %v5623
      %v5689 = vadd.f32 %v5445, %v5625
      %v5690 = vlaneseq
      %v5691 = vshrl.u32 %v5690, 7
      %v5692 = vsub.s32 3, %v5691
      %v5693 = vrot.slane %v528, %v5692
      %v5694 = vmul.f32 %v468, %v5693
      %v5695 = vmul.f32 %v469, %v5693
      %v5696 = vmul.f32 %v470, %v5693
      %v5697 = vmul.f32 %v471, %v5693
      %v5698 = vmul.f32 %v472, %v5693
      %v5699 = vmul.f32 %v473, %v5693
      %v5700 = vmul.f32 %v474, %v5693
      %v5701 = vmul.f32 %v475, %v5693
      %v5702 = vmul.f32 %v476, %v5693
      %v5703 = vmul.f32 %v477, %v5693
      %v5704 = vmul.f32 %v478, %v5693
      %v5705 = vmul.f32 %v479, %v5693
      %v5706 = vmul.f32 %v480, %v5693
      %v5707 = vmul.f32 %v481, %v5693
      %v5708 = vmul.f32 %v482, %v5693
      %v5709 = vmul.f32 %v483, %v5693
      %v5710 = vmul.f32 %v484, %v5693
      %v5711 = vmul.f32 %v485, %v5693
      %v5712 = vmul.f32 %v486, %v5693
      %v5713 = vmul.f32 %v487, %v5693
      %v5714 = vmul.f32 %v488, %v5693
      %v5715 = vmul.f32 %v489, %v5693
      %v5716 = vmul.f32 %v490, %v5693
      %v5717 = vmul.f32 %v491, %v5693
      %v5718 = vmul.f32 %v492, %v5693
      %v5719 = vmul.f32 %v493, %v5693
      %v5720 = vmul.f32 %v494, %v5693
      %v5721 = vmul.f32 %v495, %v5693
      %v5722 = vmul.f32 %v496, %v5693
      %v5723 = vmul.f32 %v497, %v5693
      %v5724 = vmul.f32 %v498, %v5693
      %v5725 = vmul.f32 %v499, %v5693
      %v5726 = vmul.f32 %v500, %v5693
      %v5727 = vmul.f32 %v501, %v5693
      %v5728 = vmul.f32 %v502, %v5693
      %v5729 = vmul.f32 %v503, %v5693
      %v5730 = vmul.f32 %v504, %v5693
      %v5731 = vmul.f32 %v505, %v5693
      %v5732 = vmul.f32 %v506, %v5693
      %v5733 = vmul.f32 %v507, %v5693
      %v5734 = vmul.f32 %v508, %v5693
      %v5735 = vmul.f32 %v509, %v5693
      %v5736 = vmul.f32 %v510, %v5693
      %v5737 = vmul.f32 %v511, %v5693
      %v5738 = vmul.f32 %v512, %v5693
      %v5739 = vmul.f32 %v513, %v5693
      %v5740 = vmul.f32 %v514, %v5693
      %v5741 = vmul.f32 %v515, %v5693
      %v5790 = vrot.slane %v5694, 3
      %v5791 = vrot.slane %v5695, 3
      %v5792 = vsel %vm1190, %v5790, %v5791
      %v5793 = vrot.slane %v5696, 3
      %v5794 = vsel %vm1190, %v5791, %v5793
      %v5795 = vrot.slane %v5697, 3
      %v5796 = vrot.slane %v5698, 3
      %v5797 = vsel %vm1190, %v5795, %v5796
      %v5798 = vrot.slane %v5699, 3
      %v5799 = vsel %vm1190, %v5796, %v5798
      %v5800 = vrot.slane %v5700, 3
      %v5801 = vrot.slane %v5701, 3
      %v5802 = vsel %vm1190, %v5800, %v5801
      %v5803 = vrot.slane %v5702, 3
      %v5804 = vsel %vm1190, %v5801, %v5803
      %v5805 = vrot.slane %v5703, 3
      %v5806 = vrot.slane %v5704, 3
      %v5807 = vsel %vm1190, %v5805, %v5806
      %v5808 = vrot.slane %v5705, 3
      %v5809 = vsel %vm1190, %v5806, %v5808
      %v5810 = vrot.slane %v5706, 3
      %v5811 = vrot.slane %v5707, 3
      %v5812 = vsel %vm1190, %v5810, %v5811
      %v5813 = vrot.slane %v5708, 3
      %v5814 = vsel %vm1190, %v5811, %v5813
      %v5815 = vrot.slane %v5709, 3
      %v5816 = vrot.slane %v5710, 3
      %v5817 = vsel %vm1190, %v5815, %v5816
      %v5818 = vrot.slane %v5711, 3
      %v5819 = vsel %vm1190, %v5816, %v5818
      %v5820 = vrot.slane %v5712, 3
      %v5821 = vrot.slane %v5713, 3
      %v5822 = vsel %vm1190, %v5820, %v5821
      %v5823 = vrot.slane %v5714, 3
      %v5824 = vsel %vm1190, %v5821, %v5823
      %v5825 = vrot.slane %v5715, 3
      %v5826 = vrot.slane %v5716, 3
      %v5827 = vsel %vm1190, %v5825, %v5826
      %v5828 = vrot.slane %v5717, 3
      %v5829 = vsel %vm1190, %v5826, %v5828
      %v5830 = vrot.slane %v5718, 3
      %v5831 = vrot.slane %v5719, 3
      %v5832 = vsel %vm1190, %v5830, %v5831
      %v5833 = vrot.slane %v5720, 3
      %v5834 = vsel %vm1190, %v5831, %v5833
      %v5835 = vrot.slane %v5721, 3
      %v5836 = vrot.slane %v5722, 3
      %v5837 = vsel %vm1190, %v5835, %v5836
      %v5838 = vrot.slane %v5723, 3
      %v5839 = vsel %vm1190, %v5836, %v5838
      %v5840 = vrot.slane %v5724, 3
      %v5841 = vrot.slane %v5725, 3
      %v5842 = vsel %vm1190, %v5840, %v5841
      %v5843 = vrot.slane %v5726, 3
      %v5844 = vsel %vm1190, %v5841, %v5843
      %v5845 = vrot.slane %v5727, 3
      %v5846 = vrot.slane %v5728, 3
      %v5847 = vsel %vm1190, %v5845, %v5846
      %v5848 = vrot.slane %v5729, 3
      %v5849 = vsel %vm1190, %v5846, %v5848
      %v5850 = vrot.slane %v5730, 3
      %v5851 = vrot.slane %v5731, 3
      %v5852 = vsel %vm1190, %v5850, %v5851
      %v5853 = vrot.slane %v5732, 3
      %v5854 = vsel %vm1190, %v5851, %v5853
      %v5855 = vrot.slane %v5733, 3
      %v5856 = vrot.slane %v5734, 3
      %v5857 = vsel %vm1190, %v5855, %v5856
      %v5858 = vrot.slane %v5735, 3
      %v5859 = vsel %vm1190, %v5856, %v5858
      %v5860 = vrot.slane %v5736, 3
      %v5861 = vrot.slane %v5737, 3
      %v5862 = vsel %vm1190, %v5860, %v5861
      %v5863 = vrot.slane %v5738, 3
      %v5864 = vsel %vm1190, %v5861, %v5863
      %v5865 = vrot.slane %v5739, 3
      %v5866 = vrot.slane %v5740, 3
      %v5867 = vsel %vm1190, %v5865, %v5866
      %v5868 = vrot.slane %v5741, 3
      %v5869 = vsel %vm1190, %v5866, %v5868
      %v5902 = vadd.f32 %v5658, %v5792
      %v5903 = vadd.f32 %v5659, %v5794
      %v5904 = vadd.f32 %v5660, %v5797
      %v5905 = vadd.f32 %v5661, %v5799
      %v5906 = vadd.f32 %v5662, %v5802
      %v5907 = vadd.f32 %v5663, %v5804
      %v5908 = vadd.f32 %v5664, %v5807
      %v5909 = vadd.f32 %v5665, %v5809
      %v5910 = vadd.f32 %v5666, %v5812
      %v5911 = vadd.f32 %v5667, %v5814
      %v5912 = vadd.f32 %v5668, %v5817
      %v5913 = vadd.f32 %v5669, %v5819
      %v5914 = vadd.f32 %v5670, %v5822
      %v5915 = vadd.f32 %v5671, %v5824
      %v5916 = vadd.f32 %v5672, %v5827
      %v5917 = vadd.f32 %v5673, %v5829
      %v5918 = vadd.f32 %v5674, %v5832
      %v5919 = vadd.f32 %v5675, %v5834
      %v5920 = vadd.f32 %v5676, %v5837
      %v5921 = vadd.f32 %v5677, %v5839
      %v5922 = vadd.f32 %v5678, %v5842
      %v5923 = vadd.f32 %v5679, %v5844
      %v5924 = vadd.f32 %v5680, %v5847
      %v5925 = vadd.f32 %v5681, %v5849
      %v5926 = vadd.f32 %v5682, %v5852
      %v5927 = vadd.f32 %v5683, %v5854
      %v5928 = vadd.f32 %v5684, %v5857
      %v5929 = vadd.f32 %v5685, %v5859
      %v5930 = vadd.f32 %v5686, %v5862
      %v5931 = vadd.f32 %v5687, %v5864
      %v5932 = vadd.f32 %v5688, %v5867
      %v5933 = vadd.f32 %v5689, %v5869
      %v5934 = vlaneseq
      %v5935 = vshrl.u32 %v5934, 7
      %v5936 = vsub.s32 4, %v5935
      %v5937 = vrot.slane %v528, %v5936
      %v5938 = vmul.f32 %v468, %v5937
      %v5939 = vmul.f32 %v469, %v5937
      %v5940 = vmul.f32 %v470, %v5937
      %v5941 = vmul.f32 %v471, %v5937
      %v5942 = vmul.f32 %v472, %v5937
      %v5943 = vmul.f32 %v473, %v5937
      %v5944 = vmul.f32 %v474, %v5937
      %v5945 = vmul.f32 %v475, %v5937
      %v5946 = vmul.f32 %v476, %v5937
      %v5947 = vmul.f32 %v477, %v5937
      %v5948 = vmul.f32 %v478, %v5937
      %v5949 = vmul.f32 %v479, %v5937
      %v5950 = vmul.f32 %v480, %v5937
      %v5951 = vmul.f32 %v481, %v5937
      %v5952 = vmul.f32 %v482, %v5937
      %v5953 = vmul.f32 %v483, %v5937
      %v5954 = vmul.f32 %v484, %v5937
      %v5955 = vmul.f32 %v485, %v5937
      %v5956 = vmul.f32 %v486, %v5937
      %v5957 = vmul.f32 %v487, %v5937
      %v5958 = vmul.f32 %v488, %v5937
      %v5959 = vmul.f32 %v489, %v5937
      %v5960 = vmul.f32 %v490, %v5937
      %v5961 = vmul.f32 %v491, %v5937
      %v5962 = vmul.f32 %v492, %v5937
      %v5963 = vmul.f32 %v493, %v5937
      %v5964 = vmul.f32 %v494, %v5937
      %v5965 = vmul.f32 %v495, %v5937
      %v5966 = vmul.f32 %v496, %v5937
      %v5967 = vmul.f32 %v497, %v5937
      %v5968 = vmul.f32 %v498, %v5937
      %v5969 = vmul.f32 %v499, %v5937
      %v5970 = vmul.f32 %v500, %v5937
      %v5971 = vmul.f32 %v501, %v5937
      %v5972 = vmul.f32 %v502, %v5937
      %v5973 = vmul.f32 %v503, %v5937
      %v5974 = vmul.f32 %v504, %v5937
      %v5975 = vmul.f32 %v505, %v5937
      %v5976 = vmul.f32 %v506, %v5937
      %v5977 = vmul.f32 %v507, %v5937
      %v5978 = vmul.f32 %v508, %v5937
      %v5979 = vmul.f32 %v509, %v5937
      %v5980 = vmul.f32 %v510, %v5937
      %v5981 = vmul.f32 %v511, %v5937
      %v5982 = vmul.f32 %v512, %v5937
      %v5983 = vmul.f32 %v513, %v5937
      %v5984 = vmul.f32 %v514, %v5937
      %v5985 = vmul.f32 %v515, %v5937
      %v6034 = vrot.slane %v5938, 4
      %v6035 = vrot.slane %v5939, 4
      %v6036 = vsel %vm1435, %v6034, %v6035
      %v6037 = vrot.slane %v5940, 4
      %v6038 = vsel %vm1435, %v6035, %v6037
      %v6039 = vrot.slane %v5941, 4
      %v6040 = vrot.slane %v5942, 4
      %v6041 = vsel %vm1435, %v6039, %v6040
      %v6042 = vrot.slane %v5943, 4
      %v6043 = vsel %vm1435, %v6040, %v6042
      %v6044 = vrot.slane %v5944, 4
      %v6045 = vrot.slane %v5945, 4
      %v6046 = vsel %vm1435, %v6044, %v6045
      %v6047 = vrot.slane %v5946, 4
      %v6048 = vsel %vm1435, %v6045, %v6047
      %v6049 = vrot.slane %v5947, 4
      %v6050 = vrot.slane %v5948, 4
      %v6051 = vsel %vm1435, %v6049, %v6050
      %v6052 = vrot.slane %v5949, 4
      %v6053 = vsel %vm1435, %v6050, %v6052
      %v6054 = vrot.slane %v5950, 4
      %v6055 = vrot.slane %v5951, 4
      %v6056 = vsel %vm1435, %v6054, %v6055
      %v6057 = vrot.slane %v5952, 4
      %v6058 = vsel %vm1435, %v6055, %v6057
      %v6059 = vrot.slane %v5953, 4
      %v6060 = vrot.slane %v5954, 4
      %v6061 = vsel %vm1435, %v6059, %v6060
      %v6062 = vrot.slane %v5955, 4
      %v6063 = vsel %vm1435, %v6060, %v6062
      %v6064 = vrot.slane %v5956, 4
      %v6065 = vrot.slane %v5957, 4
      %v6066 = vsel %vm1435, %v6064, %v6065
      %v6067 = vrot.slane %v5958, 4
      %v6068 = vsel %vm1435, %v6065, %v6067
      %v6069 = vrot.slane %v5959, 4
      %v6070 = vrot.slane %v5960, 4
      %v6071 = vsel %vm1435, %v6069, %v6070
      %v6072 = vrot.slane %v5961, 4
      %v6073 = vsel %vm1435, %v6070, %v6072
      %v6074 = vrot.slane %v5962, 4
      %v6075 = vrot.slane %v5963, 4
      %v6076 = vsel %vm1435, %v6074, %v6075
      %v6077 = vrot.slane %v5964, 4
      %v6078 = vsel %vm1435, %v6075, %v6077
      %v6079 = vrot.slane %v5965, 4
      %v6080 = vrot.slane %v5966, 4
      %v6081 = vsel %vm1435, %v6079, %v6080
      %v6082 = vrot.slane %v5967, 4
      %v6083 = vsel %vm1435, %v6080, %v6082
      %v6084 = vrot.slane %v5968, 4
      %v6085 = vrot.slane %v5969, 4
      %v6086 = vsel %vm1435, %v6084, %v6085
      %v6087 = vrot.slane %v5970, 4
      %v6088 = vsel %vm1435, %v6085, %v6087
      %v6089 = vrot.slane %v5971, 4
      %v6090 = vrot.slane %v5972, 4
      %v6091 = vsel %vm1435, %v6089, %v6090
      %v6092 = vrot.slane %v5973, 4
      %v6093 = vsel %vm1435, %v6090, %v6092
      %v6094 = vrot.slane %v5974, 4
      %v6095 = vrot.slane %v5975, 4
      %v6096 = vsel %vm1435, %v6094, %v6095
      %v6097 = vrot.slane %v5976, 4
      %v6098 = vsel %vm1435, %v6095, %v6097
      %v6099 = vrot.slane %v5977, 4
      %v6100 = vrot.slane %v5978, 4
      %v6101 = vsel %vm1435, %v6099, %v6100
      %v6102 = vrot.slane %v5979, 4
      %v6103 = vsel %vm1435, %v6100, %v6102
      %v6104 = vrot.slane %v5980, 4
      %v6105 = vrot.slane %v5981, 4
      %v6106 = vsel %vm1435, %v6104, %v6105
      %v6107 = vrot.slane %v5982, 4
      %v6108 = vsel %vm1435, %v6105, %v6107
      %v6109 = vrot.slane %v5983, 4
      %v6110 = vrot.slane %v5984, 4
      %v6111 = vsel %vm1435, %v6109, %v6110
      %v6112 = vrot.slane %v5985, 4
      %v6113 = vsel %vm1435, %v6110, %v6112
      %v6146 = vadd.f32 %v5902, %v6036
      %v6147 = vadd.f32 %v5903, %v6038
      %v6148 = vadd.f32 %v5904, %v6041
      %v6149 = vadd.f32 %v5905, %v6043
      %v6150 = vadd.f32 %v5906, %v6046
      %v6151 = vadd.f32 %v5907, %v6048
      %v6152 = vadd.f32 %v5908, %v6051
      %v6153 = vadd.f32 %v5909, %v6053
      %v6154 = vadd.f32 %v5910, %v6056
      %v6155 = vadd.f32 %v5911, %v6058
      %v6156 = vadd.f32 %v5912, %v6061
      %v6157 = vadd.f32 %v5913, %v6063
      %v6158 = vadd.f32 %v5914, %v6066
      %v6159 = vadd.f32 %v5915, %v6068
      %v6160 = vadd.f32 %v5916, %v6071
      %v6161 = vadd.f32 %v5917, %v6073
      %v6162 = vadd.f32 %v5918, %v6076
      %v6163 = vadd.f32 %v5919, %v6078
      %v6164 = vadd.f32 %v5920, %v6081
      %v6165 = vadd.f32 %v5921, %v6083
      %v6166 = vadd.f32 %v5922, %v6086
      %v6167 = vadd.f32 %v5923, %v6088
      %v6168 = vadd.f32 %v5924, %v6091
      %v6169 = vadd.f32 %v5925, %v6093
      %v6170 = vadd.f32 %v5926, %v6096
      %v6171 = vadd.f32 %v5927, %v6098
      %v6172 = vadd.f32 %v5928, %v6101
      %v6173 = vadd.f32 %v5929, %v6103
      %v6174 = vadd.f32 %v5930, %v6106
      %v6175 = vadd.f32 %v5931, %v6108
      %v6176 = vadd.f32 %v5932, %v6111
      %v6177 = vadd.f32 %v5933, %v6113
      %v6178 = vlaneseq
      %v6179 = vshrl.u32 %v6178, 7
      %v6180 = vsub.s32 5, %v6179
      %v6181 = vrot.slane %v528, %v6180
      %v6182 = vmul.f32 %v468, %v6181
      %v6183 = vmul.f32 %v469, %v6181
      %v6184 = vmul.f32 %v470, %v6181
      %v6185 = vmul.f32 %v471, %v6181
      %v6186 = vmul.f32 %v472, %v6181
      %v6187 = vmul.f32 %v473, %v6181
      %v6188 = vmul.f32 %v474, %v6181
      %v6189 = vmul.f32 %v475, %v6181
      %v6190 = vmul.f32 %v476, %v6181
      %v6191 = vmul.f32 %v477, %v6181
      %v6192 = vmul.f32 %v478, %v6181
      %v6193 = vmul.f32 %v479, %v6181
      %v6194 = vmul.f32 %v480, %v6181
      %v6195 = vmul.f32 %v481, %v6181
      %v6196 = vmul.f32 %v482, %v6181
      %v6197 = vmul.f32 %v483, %v6181
      %v6198 = vmul.f32 %v484, %v6181
      %v6199 = vmul.f32 %v485, %v6181
      %v6200 = vmul.f32 %v486, %v6181
      %v6201 = vmul.f32 %v487, %v6181
      %v6202 = vmul.f32 %v488, %v6181
      %v6203 = vmul.f32 %v489, %v6181
      %v6204 = vmul.f32 %v490, %v6181
      %v6205 = vmul.f32 %v491, %v6181
      %v6206 = vmul.f32 %v492, %v6181
      %v6207 = vmul.f32 %v493, %v6181
      %v6208 = vmul.f32 %v494, %v6181
      %v6209 = vmul.f32 %v495, %v6181
      %v6210 = vmul.f32 %v496, %v6181
      %v6211 = vmul.f32 %v497, %v6181
      %v6212 = vmul.f32 %v498, %v6181
      %v6213 = vmul.f32 %v499, %v6181
      %v6214 = vmul.f32 %v500, %v6181
      %v6215 = vmul.f32 %v501, %v6181
      %v6216 = vmul.f32 %v502, %v6181
      %v6217 = vmul.f32 %v503, %v6181
      %v6218 = vmul.f32 %v504, %v6181
      %v6219 = vmul.f32 %v505, %v6181
      %v6220 = vmul.f32 %v506, %v6181
      %v6221 = vmul.f32 %v507, %v6181
      %v6222 = vmul.f32 %v508, %v6181
      %v6223 = vmul.f32 %v509, %v6181
      %v6224 = vmul.f32 %v510, %v6181
      %v6225 = vmul.f32 %v511, %v6181
      %v6226 = vmul.f32 %v512, %v6181
      %v6227 = vmul.f32 %v513, %v6181
      %v6228 = vmul.f32 %v514, %v6181
      %v6229 = vmul.f32 %v515, %v6181
      %v6278 = vrot.slane %v6182, 5
      %v6279 = vrot.slane %v6183, 5
      %v6280 = vsel %vm1680, %v6278, %v6279
      %v6281 = vrot.slane %v6184, 5
      %v6282 = vsel %vm1680, %v6279, %v6281
      %v6283 = vrot.slane %v6185, 5
      %v6284 = vrot.slane %v6186, 5
      %v6285 = vsel %vm1680, %v6283, %v6284
      %v6286 = vrot.slane %v6187, 5
      %v6287 = vsel %vm1680, %v6284, %v6286
      %v6288 = vrot.slane %v6188, 5
      %v6289 = vrot.slane %v6189, 5
      %v6290 = vsel %vm1680, %v6288, %v6289
      %v6291 = vrot.slane %v6190, 5
      %v6292 = vsel %vm1680, %v6289, %v6291
      %v6293 = vrot.slane %v6191, 5
      %v6294 = vrot.slane %v6192, 5
      %v6295 = vsel %vm1680, %v6293, %v6294
      %v6296 = vrot.slane %v6193, 5
      %v6297 = vsel %vm1680, %v6294, %v6296
      %v6298 = vrot.slane %v6194, 5
      %v6299 = vrot.slane %v6195, 5
      %v6300 = vsel %vm1680, %v6298, %v6299
      %v6301 = vrot.slane %v6196, 5
      %v6302 = vsel %vm1680, %v6299, %v6301
      %v6303 = vrot.slane %v6197, 5
      %v6304 = vrot.slane %v6198, 5
      %v6305 = vsel %vm1680, %v6303, %v6304
      %v6306 = vrot.slane %v6199, 5
      %v6307 = vsel %vm1680, %v6304, %v6306
      %v6308 = vrot.slane %v6200, 5
      %v6309 = vrot.slane %v6201, 5
      %v6310 = vsel %vm1680, %v6308, %v6309
      %v6311 = vrot.slane %v6202, 5
      %v6312 = vsel %vm1680, %v6309, %v6311
      %v6313 = vrot.slane %v6203, 5
      %v6314 = vrot.slane %v6204, 5
      %v6315 = vsel %vm1680, %v6313, %v6314
      %v6316 = vrot.slane %v6205, 5
      %v6317 = vsel %vm1680, %v6314, %v6316
      %v6318 = vrot.slane %v6206, 5
      %v6319 = vrot.slane %v6207, 5
      %v6320 = vsel %vm1680, %v6318, %v6319
      %v6321 = vrot.slane %v6208, 5
      %v6322 = vsel %vm1680, %v6319, %v6321
      %v6323 = vrot.slane %v6209, 5
      %v6324 = vrot.slane %v6210, 5
      %v6325 = vsel %vm1680, %v6323, %v6324
      %v6326 = vrot.slane %v6211, 5
      %v6327 = vsel %vm1680, %v6324, %v6326
      %v6328 = vrot.slane %v6212, 5
      %v6329 = vrot.slane %v6213, 5
      %v6330 = vsel %vm1680, %v6328, %v6329
      %v6331 = vrot.slane %v6214, 5
      %v6332 = vsel %vm1680, %v6329, %v6331
      %v6333 = vrot.slane %v6215, 5
      %v6334 = vrot.slane %v6216, 5
      %v6335 = vsel %vm1680, %v6333, %v6334
      %v6336 = vrot.slane %v6217, 5
      %v6337 = vsel %vm1680, %v6334, %v6336
      %v6338 = vrot.slane %v6218, 5
      %v6339 = vrot.slane %v6219, 5
      %v6340 = vsel %vm1680, %v6338, %v6339
      %v6341 = vrot.slane %v6220, 5
      %v6342 = vsel %vm1680, %v6339, %v6341
      %v6343 = vrot.slane %v6221, 5
      %v6344 = vrot.slane %v6222, 5
      %v6345 = vsel %vm1680, %v6343, %v6344
      %v6346 = vrot.slane %v6223, 5
      %v6347 = vsel %vm1680, %v6344, %v6346
      %v6348 = vrot.slane %v6224, 5
      %v6349 = vrot.slane %v6225, 5
      %v6350 = vsel %vm1680, %v6348, %v6349
      %v6351 = vrot.slane %v6226, 5
      %v6352 = vsel %vm1680, %v6349, %v6351
      %v6353 = vrot.slane %v6227, 5
      %v6354 = vrot.slane %v6228, 5
      %v6355 = vsel %vm1680, %v6353, %v6354
      %v6356 = vrot.slane %v6229, 5
      %v6357 = vsel %vm1680, %v6354, %v6356
      %v6390 = vadd.f32 %v6146, %v6280
      %v6391 = vadd.f32 %v6147, %v6282
      %v6392 = vadd.f32 %v6148, %v6285
      %v6393 = vadd.f32 %v6149, %v6287
      %v6394 = vadd.f32 %v6150, %v6290
      %v6395 = vadd.f32 %v6151, %v6292
      %v6396 = vadd.f32 %v6152, %v6295
      %v6397 = vadd.f32 %v6153, %v6297
      %v6398 = vadd.f32 %v6154, %v6300
      %v6399 = vadd.f32 %v6155, %v6302
      %v6400 = vadd.f32 %v6156, %v6305
      %v6401 = vadd.f32 %v6157, %v6307
      %v6402 = vadd.f32 %v6158, %v6310
      %v6403 = vadd.f32 %v6159, %v6312
      %v6404 = vadd.f32 %v6160, %v6315
      %v6405 = vadd.f32 %v6161, %v6317
      %v6406 = vadd.f32 %v6162, %v6320
      %v6407 = vadd.f32 %v6163, %v6322
      %v6408 = vadd.f32 %v6164, %v6325
      %v6409 = vadd.f32 %v6165, %v6327
      %v6410 = vadd.f32 %v6166, %v6330
      %v6411 = vadd.f32 %v6167, %v6332
      %v6412 = vadd.f32 %v6168, %v6335
      %v6413 = vadd.f32 %v6169, %v6337
      %v6414 = vadd.f32 %v6170, %v6340
      %v6415 = vadd.f32 %v6171, %v6342
      %v6416 = vadd.f32 %v6172, %v6345
      %v6417 = vadd.f32 %v6173, %v6347
      %v6418 = vadd.f32 %v6174, %v6350
      %v6419 = vadd.f32 %v6175, %v6352
      %v6420 = vadd.f32 %v6176, %v6355
      %v6421 = vadd.f32 %v6177, %v6357
      %v6422 = vlaneseq
      %v6423 = vshrl.u32 %v6422, 7
      %v6424 = vsub.s32 6, %v6423
      %v6425 = vrot.slane %v528, %v6424
      %v6426 = vmul.f32 %v468, %v6425
      %v6427 = vmul.f32 %v469, %v6425
      %v6428 = vmul.f32 %v470, %v6425
      %v6429 = vmul.f32 %v471, %v6425
      %v6430 = vmul.f32 %v472, %v6425
      %v6431 = vmul.f32 %v473, %v6425
      %v6432 = vmul.f32 %v474, %v6425
      %v6433 = vmul.f32 %v475, %v6425
      %v6434 = vmul.f32 %v476, %v6425
      %v6435 = vmul.f32 %v477, %v6425
      %v6436 = vmul.f32 %v478, %v6425
      %v6437 = vmul.f32 %v479, %v6425
      %v6438 = vmul.f32 %v480, %v6425
      %v6439 = vmul.f32 %v481, %v6425
      %v6440 = vmul.f32 %v482, %v6425
      %v6441 = vmul.f32 %v483, %v6425
      %v6442 = vmul.f32 %v484, %v6425
      %v6443 = vmul.f32 %v485, %v6425
      %v6444 = vmul.f32 %v486, %v6425
      %v6445 = vmul.f32 %v487, %v6425
      %v6446 = vmul.f32 %v488, %v6425
      %v6447 = vmul.f32 %v489, %v6425
      %v6448 = vmul.f32 %v490, %v6425
      %v6449 = vmul.f32 %v491, %v6425
      %v6450 = vmul.f32 %v492, %v6425
      %v6451 = vmul.f32 %v493, %v6425
      %v6452 = vmul.f32 %v494, %v6425
      %v6453 = vmul.f32 %v495, %v6425
      %v6454 = vmul.f32 %v496, %v6425
      %v6455 = vmul.f32 %v497, %v6425
      %v6456 = vmul.f32 %v498, %v6425
      %v6457 = vmul.f32 %v499, %v6425
      %v6458 = vmul.f32 %v500, %v6425
      %v6459 = vmul.f32 %v501, %v6425
      %v6460 = vmul.f32 %v502, %v6425
      %v6461 = vmul.f32 %v503, %v6425
      %v6462 = vmul.f32 %v504, %v6425
      %v6463 = vmul.f32 %v505, %v6425
      %v6464 = vmul.f32 %v506, %v6425
      %v6465 = vmul.f32 %v507, %v6425
      %v6466 = vmul.f32 %v508, %v6425
      %v6467 = vmul.f32 %v509, %v6425
      %v6468 = vmul.f32 %v510, %v6425
      %v6469 = vmul.f32 %v511, %v6425
      %v6470 = vmul.f32 %v512, %v6425
      %v6471 = vmul.f32 %v513, %v6425
      %v6472 = vmul.f32 %v514, %v6425
      %v6473 = vmul.f32 %v515, %v6425
      %v6522 = vrot.slane %v6426, 6
      %v6523 = vrot.slane %v6427, 6
      %v6524 = vsel %vm1925, %v6522, %v6523
      %v6525 = vrot.slane %v6428, 6
      %v6526 = vsel %vm1925, %v6523, %v6525
      %v6527 = vrot.slane %v6429, 6
      %v6528 = vrot.slane %v6430, 6
      %v6529 = vsel %vm1925, %v6527, %v6528
      %v6530 = vrot.slane %v6431, 6
      %v6531 = vsel %vm1925, %v6528, %v6530
      %v6532 = vrot.slane %v6432, 6
      %v6533 = vrot.slane %v6433, 6
      %v6534 = vsel %vm1925, %v6532, %v6533
      %v6535 = vrot.slane %v6434, 6
      %v6536 = vsel %vm1925, %v6533, %v6535
      %v6537 = vrot.slane %v6435, 6
      %v6538 = vrot.slane %v6436, 6
      %v6539 = vsel %vm1925, %v6537, %v6538
      %v6540 = vrot.slane %v6437, 6
      %v6541 = vsel %vm1925, %v6538, %v6540
      %v6542 = vrot.slane %v6438, 6
      %v6543 = vrot.slane %v6439, 6
      %v6544 = vsel %vm1925, %v6542, %v6543
      %v6545 = vrot.slane %v6440, 6
      %v6546 = vsel %vm1925, %v6543, %v6545
      %v6547 = vrot.slane %v6441, 6
      %v6548 = vrot.slane %v6442, 6
      %v6549 = vsel %vm1925, %v6547, %v6548
      %v6550 = vrot.slane %v6443, 6
      %v6551 = vsel %vm1925, %v6548, %v6550
      %v6552 = vrot.slane %v6444, 6
      %v6553 = vrot.slane %v6445, 6
      %v6554 = vsel %vm1925, %v6552, %v6553
      %v6555 = vrot.slane %v6446, 6
      %v6556 = vsel %vm1925, %v6553, %v6555
      %v6557 = vrot.slane %v6447, 6
      %v6558 = vrot.slane %v6448, 6
      %v6559 = vsel %vm1925, %v6557, %v6558
      %v6560 = vrot.slane %v6449, 6
      %v6561 = vsel %vm1925, %v6558, %v6560
      %v6562 = vrot.slane %v6450, 6
      %v6563 = vrot.slane %v6451, 6
      %v6564 = vsel %vm1925, %v6562, %v6563
      %v6565 = vrot.slane %v6452, 6
      %v6566 = vsel %vm1925, %v6563, %v6565
      %v6567 = vrot.slane %v6453, 6
      %v6568 = vrot.slane %v6454, 6
      %v6569 = vsel %vm1925, %v6567, %v6568
      %v6570 = vrot.slane %v6455, 6
      %v6571 = vsel %vm1925, %v6568, %v6570
      %v6572 = vrot.slane %v6456, 6
      %v6573 = vrot.slane %v6457, 6
      %v6574 = vsel %vm1925, %v6572, %v6573
      %v6575 = vrot.slane %v6458, 6
      %v6576 = vsel %vm1925, %v6573, %v6575
      %v6577 = vrot.slane %v6459, 6
      %v6578 = vrot.slane %v6460, 6
      %v6579 = vsel %vm1925, %v6577, %v6578
      %v6580 = vrot.slane %v6461, 6
      %v6581 = vsel %vm1925, %v6578, %v6580
      %v6582 = vrot.slane %v6462, 6
      %v6583 = vrot.slane %v6463, 6
      %v6584 = vsel %vm1925, %v6582, %v6583
      %v6585 = vrot.slane %v6464, 6
      %v6586 = vsel %vm1925, %v6583, %v6585
      %v6587 = vrot.slane %v6465, 6
      %v6588 = vrot.slane %v6466, 6
      %v6589 = vsel %vm1925, %v6587, %v6588
      %v6590 = vrot.slane %v6467, 6
      %v6591 = vsel %vm1925, %v6588, %v6590
      %v6592 = vrot.slane %v6468, 6
      %v6593 = vrot.slane %v6469, 6
      %v6594 = vsel %vm1925, %v6592, %v6593
      %v6595 = vrot.slane %v6470, 6
      %v6596 = vsel %vm1925, %v6593, %v6595
      %v6597 = vrot.slane %v6471, 6
      %v6598 = vrot.slane %v6472, 6
      %v6599 = vsel %vm1925, %v6597, %v6598
      %v6600 = vrot.slane %v6473, 6
      %v6601 = vsel %vm1925, %v6598, %v6600
      %v6634 = vadd.f32 %v6390, %v6524
      %v6635 = vadd.f32 %v6391, %v6526
      %v6636 = vadd.f32 %v6392, %v6529
      %v6637 = vadd.f32 %v6393, %v6531
      %v6638 = vadd.f32 %v6394, %v6534
      %v6639 = vadd.f32 %v6395, %v6536
      %v6640 = vadd.f32 %v6396, %v6539
      %v6641 = vadd.f32 %v6397, %v6541
      %v6642 = vadd.f32 %v6398, %v6544
      %v6643 = vadd.f32 %v6399, %v6546
      %v6644 = vadd.f32 %v6400, %v6549
      %v6645 = vadd.f32 %v6401, %v6551
      %v6646 = vadd.f32 %v6402, %v6554
      %v6647 = vadd.f32 %v6403, %v6556
      %v6648 = vadd.f32 %v6404, %v6559
      %v6649 = vadd.f32 %v6405, %v6561
      %v6650 = vadd.f32 %v6406, %v6564
      %v6651 = vadd.f32 %v6407, %v6566
      %v6652 = vadd.f32 %v6408, %v6569
      %v6653 = vadd.f32 %v6409, %v6571
      %v6654 = vadd.f32 %v6410, %v6574
      %v6655 = vadd.f32 %v6411, %v6576
      %v6656 = vadd.f32 %v6412, %v6579
      %v6657 = vadd.f32 %v6413, %v6581
      %v6658 = vadd.f32 %v6414, %v6584
      %v6659 = vadd.f32 %v6415, %v6586
      %v6660 = vadd.f32 %v6416, %v6589
      %v6661 = vadd.f32 %v6417, %v6591
      %v6662 = vadd.f32 %v6418, %v6594
      %v6663 = vadd.f32 %v6419, %v6596
      %v6664 = vadd.f32 %v6420, %v6599
      %v6665 = vadd.f32 %v6421, %v6601
      %v6666 = vlaneseq
      %v6667 = vshrl.u32 %v6666, 7
      %v6668 = vsub.s32 0, %v6667
      %v6669 = vrot.slane %v529, %v6668
      %v6670 = vmul.f32 %v471, %v6669
      %v6671 = vmul.f32 %v472, %v6669
      %v6672 = vmul.f32 %v474, %v6669
      %v6673 = vmul.f32 %v475, %v6669
      %v6674 = vmul.f32 %v477, %v6669
      %v6675 = vmul.f32 %v478, %v6669
      %v6676 = vmul.f32 %v480, %v6669
      %v6677 = vmul.f32 %v481, %v6669
      %v6678 = vmul.f32 %v483, %v6669
      %v6679 = vmul.f32 %v484, %v6669
      %v6680 = vmul.f32 %v486, %v6669
      %v6681 = vmul.f32 %v487, %v6669
      %v6682 = vmul.f32 %v489, %v6669
      %v6683 = vmul.f32 %v490, %v6669
      %v6684 = vmul.f32 %v492, %v6669
      %v6685 = vmul.f32 %v493, %v6669
      %v6686 = vmul.f32 %v495, %v6669
      %v6687 = vmul.f32 %v496, %v6669
      %v6688 = vmul.f32 %v498, %v6669
      %v6689 = vmul.f32 %v499, %v6669
      %v6690 = vmul.f32 %v501, %v6669
      %v6691 = vmul.f32 %v502, %v6669
      %v6692 = vmul.f32 %v504, %v6669
      %v6693 = vmul.f32 %v505, %v6669
      %v6694 = vmul.f32 %v507, %v6669
      %v6695 = vmul.f32 %v508, %v6669
      %v6696 = vmul.f32 %v510, %v6669
      %v6697 = vmul.f32 %v511, %v6669
      %v6698 = vmul.f32 %v513, %v6669
      %v6699 = vmul.f32 %v514, %v6669
      %v6700 = vmul.f32 %v516, %v6669
      %v6701 = vmul.f32 %v517, %v6669
      %v6702 = vadd.f32 %v6634, %v6670
      %v6703 = vadd.f32 %v6635, %v6671
      %v6704 = vadd.f32 %v6636, %v6672
      %v6705 = vadd.f32 %v6637, %v6673
      %v6706 = vadd.f32 %v6638, %v6674
      %v6707 = vadd.f32 %v6639, %v6675
      %v6708 = vadd.f32 %v6640, %v6676
      %v6709 = vadd.f32 %v6641, %v6677
      %v6710 = vadd.f32 %v6642, %v6678
      %v6711 = vadd.f32 %v6643, %v6679
      %v6712 = vadd.f32 %v6644, %v6680
      %v6713 = vadd.f32 %v6645, %v6681
      %v6714 = vadd.f32 %v6646, %v6682
      %v6715 = vadd.f32 %v6647, %v6683
      %v6716 = vadd.f32 %v6648, %v6684
      %v6717 = vadd.f32 %v6649, %v6685
      %v6718 = vadd.f32 %v6650, %v6686
      %v6719 = vadd.f32 %v6651, %v6687
      %v6720 = vadd.f32 %v6652, %v6688
      %v6721 = vadd.f32 %v6653, %v6689
      %v6722 = vadd.f32 %v6654, %v6690
      %v6723 = vadd.f32 %v6655, %v6691
      %v6724 = vadd.f32 %v6656, %v6692
      %v6725 = vadd.f32 %v6657, %v6693
      %v6726 = vadd.f32 %v6658, %v6694
      %v6727 = vadd.f32 %v6659, %v6695
      %v6728 = vadd.f32 %v6660, %v6696
      %v6729 = vadd.f32 %v6661, %v6697
      %v6730 = vadd.f32 %v6662, %v6698
      %v6731 = vadd.f32 %v6663, %v6699
      %v6732 = vadd.f32 %v6664, %v6700
      %v6733 = vadd.f32 %v6665, %v6701
      %v6734 = vlaneseq
      %v6735 = vshrl.u32 %v6734, 7
      %v6736 = vsub.s32 1, %v6735
      %v6737 = vrot.slane %v529, %v6736
      %v6738 = vmul.f32 %v471, %v6737
      %v6739 = vmul.f32 %v472, %v6737
      %v6740 = vmul.f32 %v473, %v6737
      %v6741 = vmul.f32 %v474, %v6737
      %v6742 = vmul.f32 %v475, %v6737
      %v6743 = vmul.f32 %v476, %v6737
      %v6744 = vmul.f32 %v477, %v6737
      %v6745 = vmul.f32 %v478, %v6737
      %v6746 = vmul.f32 %v479, %v6737
      %v6747 = vmul.f32 %v480, %v6737
      %v6748 = vmul.f32 %v481, %v6737
      %v6749 = vmul.f32 %v482, %v6737
      %v6750 = vmul.f32 %v483, %v6737
      %v6751 = vmul.f32 %v484, %v6737
      %v6752 = vmul.f32 %v485, %v6737
      %v6753 = vmul.f32 %v486, %v6737
      %v6754 = vmul.f32 %v487, %v6737
      %v6755 = vmul.f32 %v488, %v6737
      %v6756 = vmul.f32 %v489, %v6737
      %v6757 = vmul.f32 %v490, %v6737
      %v6758 = vmul.f32 %v491, %v6737
      %v6759 = vmul.f32 %v492, %v6737
      %v6760 = vmul.f32 %v493, %v6737
      %v6761 = vmul.f32 %v494, %v6737
      %v6762 = vmul.f32 %v495, %v6737
      %v6763 = vmul.f32 %v496, %v6737
      %v6764 = vmul.f32 %v497, %v6737
      %v6765 = vmul.f32 %v498, %v6737
      %v6766 = vmul.f32 %v499, %v6737
      %v6767 = vmul.f32 %v500, %v6737
      %v6768 = vmul.f32 %v501, %v6737
      %v6769 = vmul.f32 %v502, %v6737
      %v6770 = vmul.f32 %v503, %v6737
      %v6771 = vmul.f32 %v504, %v6737
      %v6772 = vmul.f32 %v505, %v6737
      %v6773 = vmul.f32 %v506, %v6737
      %v6774 = vmul.f32 %v507, %v6737
      %v6775 = vmul.f32 %v508, %v6737
      %v6776 = vmul.f32 %v509, %v6737
      %v6777 = vmul.f32 %v510, %v6737
      %v6778 = vmul.f32 %v511, %v6737
      %v6779 = vmul.f32 %v512, %v6737
      %v6780 = vmul.f32 %v513, %v6737
      %v6781 = vmul.f32 %v514, %v6737
      %v6782 = vmul.f32 %v515, %v6737
      %v6783 = vmul.f32 %v516, %v6737
      %v6784 = vmul.f32 %v517, %v6737
      %v6785 = vmul.f32 %v518, %v6737
      %v6834 = vrot.slane %v6738, 1
      %v6835 = vrot.slane %v6739, 1
      %v6836 = vsel %vm700, %v6834, %v6835
      %v6837 = vrot.slane %v6740, 1
      %v6838 = vsel %vm700, %v6835, %v6837
      %v6839 = vrot.slane %v6741, 1
      %v6840 = vrot.slane %v6742, 1
      %v6841 = vsel %vm700, %v6839, %v6840
      %v6842 = vrot.slane %v6743, 1
      %v6843 = vsel %vm700, %v6840, %v6842
      %v6844 = vrot.slane %v6744, 1
      %v6845 = vrot.slane %v6745, 1
      %v6846 = vsel %vm700, %v6844, %v6845
      %v6847 = vrot.slane %v6746, 1
      %v6848 = vsel %vm700, %v6845, %v6847
      %v6849 = vrot.slane %v6747, 1
      %v6850 = vrot.slane %v6748, 1
      %v6851 = vsel %vm700, %v6849, %v6850
      %v6852 = vrot.slane %v6749, 1
      %v6853 = vsel %vm700, %v6850, %v6852
      %v6854 = vrot.slane %v6750, 1
      %v6855 = vrot.slane %v6751, 1
      %v6856 = vsel %vm700, %v6854, %v6855
      %v6857 = vrot.slane %v6752, 1
      %v6858 = vsel %vm700, %v6855, %v6857
      %v6859 = vrot.slane %v6753, 1
      %v6860 = vrot.slane %v6754, 1
      %v6861 = vsel %vm700, %v6859, %v6860
      %v6862 = vrot.slane %v6755, 1
      %v6863 = vsel %vm700, %v6860, %v6862
      %v6864 = vrot.slane %v6756, 1
      %v6865 = vrot.slane %v6757, 1
      %v6866 = vsel %vm700, %v6864, %v6865
      %v6867 = vrot.slane %v6758, 1
      %v6868 = vsel %vm700, %v6865, %v6867
      %v6869 = vrot.slane %v6759, 1
      %v6870 = vrot.slane %v6760, 1
      %v6871 = vsel %vm700, %v6869, %v6870
      %v6872 = vrot.slane %v6761, 1
      %v6873 = vsel %vm700, %v6870, %v6872
      %v6874 = vrot.slane %v6762, 1
      %v6875 = vrot.slane %v6763, 1
      %v6876 = vsel %vm700, %v6874, %v6875
      %v6877 = vrot.slane %v6764, 1
      %v6878 = vsel %vm700, %v6875, %v6877
      %v6879 = vrot.slane %v6765, 1
      %v6880 = vrot.slane %v6766, 1
      %v6881 = vsel %vm700, %v6879, %v6880
      %v6882 = vrot.slane %v6767, 1
      %v6883 = vsel %vm700, %v6880, %v6882
      %v6884 = vrot.slane %v6768, 1
      %v6885 = vrot.slane %v6769, 1
      %v6886 = vsel %vm700, %v6884, %v6885
      %v6887 = vrot.slane %v6770, 1
      %v6888 = vsel %vm700, %v6885, %v6887
      %v6889 = vrot.slane %v6771, 1
      %v6890 = vrot.slane %v6772, 1
      %v6891 = vsel %vm700, %v6889, %v6890
      %v6892 = vrot.slane %v6773, 1
      %v6893 = vsel %vm700, %v6890, %v6892
      %v6894 = vrot.slane %v6774, 1
      %v6895 = vrot.slane %v6775, 1
      %v6896 = vsel %vm700, %v6894, %v6895
      %v6897 = vrot.slane %v6776, 1
      %v6898 = vsel %vm700, %v6895, %v6897
      %v6899 = vrot.slane %v6777, 1
      %v6900 = vrot.slane %v6778, 1
      %v6901 = vsel %vm700, %v6899, %v6900
      %v6902 = vrot.slane %v6779, 1
      %v6903 = vsel %vm700, %v6900, %v6902
      %v6904 = vrot.slane %v6780, 1
      %v6905 = vrot.slane %v6781, 1
      %v6906 = vsel %vm700, %v6904, %v6905
      %v6907 = vrot.slane %v6782, 1
      %v6908 = vsel %vm700, %v6905, %v6907
      %v6909 = vrot.slane %v6783, 1
      %v6910 = vrot.slane %v6784, 1
      %v6911 = vsel %vm700, %v6909, %v6910
      %v6912 = vrot.slane %v6785, 1
      %v6913 = vsel %vm700, %v6910, %v6912
      %v6946 = vadd.f32 %v6702, %v6836
      %v6947 = vadd.f32 %v6703, %v6838
      %v6948 = vadd.f32 %v6704, %v6841
      %v6949 = vadd.f32 %v6705, %v6843
      %v6950 = vadd.f32 %v6706, %v6846
      %v6951 = vadd.f32 %v6707, %v6848
      %v6952 = vadd.f32 %v6708, %v6851
      %v6953 = vadd.f32 %v6709, %v6853
      %v6954 = vadd.f32 %v6710, %v6856
      %v6955 = vadd.f32 %v6711, %v6858
      %v6956 = vadd.f32 %v6712, %v6861
      %v6957 = vadd.f32 %v6713, %v6863
      %v6958 = vadd.f32 %v6714, %v6866
      %v6959 = vadd.f32 %v6715, %v6868
      %v6960 = vadd.f32 %v6716, %v6871
      %v6961 = vadd.f32 %v6717, %v6873
      %v6962 = vadd.f32 %v6718, %v6876
      %v6963 = vadd.f32 %v6719, %v6878
      %v6964 = vadd.f32 %v6720, %v6881
      %v6965 = vadd.f32 %v6721, %v6883
      %v6966 = vadd.f32 %v6722, %v6886
      %v6967 = vadd.f32 %v6723, %v6888
      %v6968 = vadd.f32 %v6724, %v6891
      %v6969 = vadd.f32 %v6725, %v6893
      %v6970 = vadd.f32 %v6726, %v6896
      %v6971 = vadd.f32 %v6727, %v6898
      %v6972 = vadd.f32 %v6728, %v6901
      %v6973 = vadd.f32 %v6729, %v6903
      %v6974 = vadd.f32 %v6730, %v6906
      %v6975 = vadd.f32 %v6731, %v6908
      %v6976 = vadd.f32 %v6732, %v6911
      %v6977 = vadd.f32 %v6733, %v6913
      %v6978 = vlaneseq
      %v6979 = vshrl.u32 %v6978, 7
      %v6980 = vsub.s32 2, %v6979
      %v6981 = vrot.slane %v529, %v6980
      %v6982 = vmul.f32 %v471, %v6981
      %v6983 = vmul.f32 %v472, %v6981
      %v6984 = vmul.f32 %v473, %v6981
      %v6985 = vmul.f32 %v474, %v6981
      %v6986 = vmul.f32 %v475, %v6981
      %v6987 = vmul.f32 %v476, %v6981
      %v6988 = vmul.f32 %v477, %v6981
      %v6989 = vmul.f32 %v478, %v6981
      %v6990 = vmul.f32 %v479, %v6981
      %v6991 = vmul.f32 %v480, %v6981
      %v6992 = vmul.f32 %v481, %v6981
      %v6993 = vmul.f32 %v482, %v6981
      %v6994 = vmul.f32 %v483, %v6981
      %v6995 = vmul.f32 %v484, %v6981
      %v6996 = vmul.f32 %v485, %v6981
      %v6997 = vmul.f32 %v486, %v6981
      %v6998 = vmul.f32 %v487, %v6981
      %v6999 = vmul.f32 %v488, %v6981
      %v7000 = vmul.f32 %v489, %v6981
      %v7001 = vmul.f32 %v490, %v6981
      %v7002 = vmul.f32 %v491, %v6981
      %v7003 = vmul.f32 %v492, %v6981
      %v7004 = vmul.f32 %v493, %v6981
      %v7005 = vmul.f32 %v494, %v6981
      %v7006 = vmul.f32 %v495, %v6981
      %v7007 = vmul.f32 %v496, %v6981
      %v7008 = vmul.f32 %v497, %v6981
      %v7009 = vmul.f32 %v498, %v6981
      %v7010 = vmul.f32 %v499, %v6981
      %v7011 = vmul.f32 %v500, %v6981
      %v7012 = vmul.f32 %v501, %v6981
      %v7013 = vmul.f32 %v502, %v6981
      %v7014 = vmul.f32 %v503, %v6981
      %v7015 = vmul.f32 %v504, %v6981
      %v7016 = vmul.f32 %v505, %v6981
      %v7017 = vmul.f32 %v506, %v6981
      %v7018 = vmul.f32 %v507, %v6981
      %v7019 = vmul.f32 %v508, %v6981
      %v7020 = vmul.f32 %v509, %v6981
      %v7021 = vmul.f32 %v510, %v6981
      %v7022 = vmul.f32 %v511, %v6981
      %v7023 = vmul.f32 %v512, %v6981
      %v7024 = vmul.f32 %v513, %v6981
      %v7025 = vmul.f32 %v514, %v6981
      %v7026 = vmul.f32 %v515, %v6981
      %v7027 = vmul.f32 %v516, %v6981
      %v7028 = vmul.f32 %v517, %v6981
      %v7029 = vmul.f32 %v518, %v6981
      %v7078 = vrot.slane %v6982, 2
      %v7079 = vrot.slane %v6983, 2
      %v7080 = vsel %vm945, %v7078, %v7079
      %v7081 = vrot.slane %v6984, 2
      %v7082 = vsel %vm945, %v7079, %v7081
      %v7083 = vrot.slane %v6985, 2
      %v7084 = vrot.slane %v6986, 2
      %v7085 = vsel %vm945, %v7083, %v7084
      %v7086 = vrot.slane %v6987, 2
      %v7087 = vsel %vm945, %v7084, %v7086
      %v7088 = vrot.slane %v6988, 2
      %v7089 = vrot.slane %v6989, 2
      %v7090 = vsel %vm945, %v7088, %v7089
      %v7091 = vrot.slane %v6990, 2
      %v7092 = vsel %vm945, %v7089, %v7091
      %v7093 = vrot.slane %v6991, 2
      %v7094 = vrot.slane %v6992, 2
      %v7095 = vsel %vm945, %v7093, %v7094
      %v7096 = vrot.slane %v6993, 2
      %v7097 = vsel %vm945, %v7094, %v7096
      %v7098 = vrot.slane %v6994, 2
      %v7099 = vrot.slane %v6995, 2
      %v7100 = vsel %vm945, %v7098, %v7099
      %v7101 = vrot.slane %v6996, 2
      %v7102 = vsel %vm945, %v7099, %v7101
      %v7103 = vrot.slane %v6997, 2
      %v7104 = vrot.slane %v6998, 2
      %v7105 = vsel %vm945, %v7103, %v7104
      %v7106 = vrot.slane %v6999, 2
      %v7107 = vsel %vm945, %v7104, %v7106
      %v7108 = vrot.slane %v7000, 2
      %v7109 = vrot.slane %v7001, 2
      %v7110 = vsel %vm945, %v7108, %v7109
      %v7111 = vrot.slane %v7002, 2
      %v7112 = vsel %vm945, %v7109, %v7111
      %v7113 = vrot.slane %v7003, 2
      %v7114 = vrot.slane %v7004, 2
      %v7115 = vsel %vm945, %v7113, %v7114
      %v7116 = vrot.slane %v7005, 2
      %v7117 = vsel %vm945, %v7114, %v7116
      %v7118 = vrot.slane %v7006, 2
      %v7119 = vrot.slane %v7007, 2
      %v7120 = vsel %vm945, %v7118, %v7119
      %v7121 = vrot.slane %v7008, 2
      %v7122 = vsel %vm945, %v7119, %v7121
      %v7123 = vrot.slane %v7009, 2
      %v7124 = vrot.slane %v7010, 2
      %v7125 = vsel %vm945, %v7123, %v7124
      %v7126 = vrot.slane %v7011, 2
      %v7127 = vsel %vm945, %v7124, %v7126
      %v7128 = vrot.slane %v7012, 2
      %v7129 = vrot.slane %v7013, 2
      %v7130 = vsel %vm945, %v7128, %v7129
      %v7131 = vrot.slane %v7014, 2
      %v7132 = vsel %vm945, %v7129, %v7131
      %v7133 = vrot.slane %v7015, 2
      %v7134 = vrot.slane %v7016, 2
      %v7135 = vsel %vm945, %v7133, %v7134
      %v7136 = vrot.slane %v7017, 2
      %v7137 = vsel %vm945, %v7134, %v7136
      %v7138 = vrot.slane %v7018, 2
      %v7139 = vrot.slane %v7019, 2
      %v7140 = vsel %vm945, %v7138, %v7139
      %v7141 = vrot.slane %v7020, 2
      %v7142 = vsel %vm945, %v7139, %v7141
      %v7143 = vrot.slane %v7021, 2
      %v7144 = vrot.slane %v7022, 2
      %v7145 = vsel %vm945, %v7143, %v7144
      %v7146 = vrot.slane %v7023, 2
      %v7147 = vsel %vm945, %v7144, %v7146
      %v7148 = vrot.slane %v7024, 2
      %v7149 = vrot.slane %v7025, 2
      %v7150 = vsel %vm945, %v7148, %v7149
      %v7151 = vrot.slane %v7026, 2
      %v7152 = vsel %vm945, %v7149, %v7151
      %v7153 = vrot.slane %v7027, 2
      %v7154 = vrot.slane %v7028, 2
      %v7155 = vsel %vm945, %v7153, %v7154
      %v7156 = vrot.slane %v7029, 2
      %v7157 = vsel %vm945, %v7154, %v7156
      %v7190 = vadd.f32 %v6946, %v7080
      %v7191 = vadd.f32 %v6947, %v7082
      %v7192 = vadd.f32 %v6948, %v7085
      %v7193 = vadd.f32 %v6949, %v7087
      %v7194 = vadd.f32 %v6950, %v7090
      %v7195 = vadd.f32 %v6951, %v7092
      %v7196 = vadd.f32 %v6952, %v7095
      %v7197 = vadd.f32 %v6953, %v7097
      %v7198 = vadd.f32 %v6954, %v7100
      %v7199 = vadd.f32 %v6955, %v7102
      %v7200 = vadd.f32 %v6956, %v7105
      %v7201 = vadd.f32 %v6957, %v7107
      %v7202 = vadd.f32 %v6958, %v7110
      %v7203 = vadd.f32 %v6959, %v7112
      %v7204 = vadd.f32 %v6960, %v7115
      %v7205 = vadd.f32 %v6961, %v7117
      %v7206 = vadd.f32 %v6962, %v7120
      %v7207 = vadd.f32 %v6963, %v7122
      %v7208 = vadd.f32 %v6964, %v7125
      %v7209 = vadd.f32 %v6965, %v7127
      %v7210 = vadd.f32 %v6966, %v7130
      %v7211 = vadd.f32 %v6967, %v7132
      %v7212 = vadd.f32 %v6968, %v7135
      %v7213 = vadd.f32 %v6969, %v7137
      %v7214 = vadd.f32 %v6970, %v7140
      %v7215 = vadd.f32 %v6971, %v7142
      %v7216 = vadd.f32 %v6972, %v7145
      %v7217 = vadd.f32 %v6973, %v7147
      %v7218 = vadd.f32 %v6974, %v7150
      %v7219 = vadd.f32 %v6975, %v7152
      %v7220 = vadd.f32 %v6976, %v7155
      %v7221 = vadd.f32 %v6977, %v7157
      %v7222 = vlaneseq
      %v7223 = vshrl.u32 %v7222, 7
      %v7224 = vsub.s32 3, %v7223
      %v7225 = vrot.slane %v529, %v7224
      %v7226 = vmul.f32 %v471, %v7225
      %v7227 = vmul.f32 %v472, %v7225
      %v7228 = vmul.f32 %v473, %v7225
      %v7229 = vmul.f32 %v474, %v7225
      %v7230 = vmul.f32 %v475, %v7225
      %v7231 = vmul.f32 %v476, %v7225
      %v7232 = vmul.f32 %v477, %v7225
      %v7233 = vmul.f32 %v478, %v7225
      %v7234 = vmul.f32 %v479, %v7225
      %v7235 = vmul.f32 %v480, %v7225
      %v7236 = vmul.f32 %v481, %v7225
      %v7237 = vmul.f32 %v482, %v7225
      %v7238 = vmul.f32 %v483, %v7225
      %v7239 = vmul.f32 %v484, %v7225
      %v7240 = vmul.f32 %v485, %v7225
      %v7241 = vmul.f32 %v486, %v7225
      %v7242 = vmul.f32 %v487, %v7225
      %v7243 = vmul.f32 %v488, %v7225
      %v7244 = vmul.f32 %v489, %v7225
      %v7245 = vmul.f32 %v490, %v7225
      %v7246 = vmul.f32 %v491, %v7225
      %v7247 = vmul.f32 %v492, %v7225
      %v7248 = vmul.f32 %v493, %v7225
      %v7249 = vmul.f32 %v494, %v7225
      %v7250 = vmul.f32 %v495, %v7225
      %v7251 = vmul.f32 %v496, %v7225
      %v7252 = vmul.f32 %v497, %v7225
      %v7253 = vmul.f32 %v498, %v7225
      %v7254 = vmul.f32 %v499, %v7225
      %v7255 = vmul.f32 %v500, %v7225
      %v7256 = vmul.f32 %v501, %v7225
      %v7257 = vmul.f32 %v502, %v7225
      %v7258 = vmul.f32 %v503, %v7225
      %v7259 = vmul.f32 %v504, %v7225
      %v7260 = vmul.f32 %v505, %v7225
      %v7261 = vmul.f32 %v506, %v7225
      %v7262 = vmul.f32 %v507, %v7225
      %v7263 = vmul.f32 %v508, %v7225
      %v7264 = vmul.f32 %v509, %v7225
      %v7265 = vmul.f32 %v510, %v7225
      %v7266 = vmul.f32 %v511, %v7225
      %v7267 = vmul.f32 %v512, %v7225
      %v7268 = vmul.f32 %v513, %v7225
      %v7269 = vmul.f32 %v514, %v7225
      %v7270 = vmul.f32 %v515, %v7225
      %v7271 = vmul.f32 %v516, %v7225
      %v7272 = vmul.f32 %v517, %v7225
      %v7273 = vmul.f32 %v518, %v7225
      %v7322 = vrot.slane %v7226, 3
      %v7323 = vrot.slane %v7227, 3
      %v7324 = vsel %vm1190, %v7322, %v7323
      %v7325 = vrot.slane %v7228, 3
      %v7326 = vsel %vm1190, %v7323, %v7325
      %v7327 = vrot.slane %v7229, 3
      %v7328 = vrot.slane %v7230, 3
      %v7329 = vsel %vm1190, %v7327, %v7328
      %v7330 = vrot.slane %v7231, 3
      %v7331 = vsel %vm1190, %v7328, %v7330
      %v7332 = vrot.slane %v7232, 3
      %v7333 = vrot.slane %v7233, 3
      %v7334 = vsel %vm1190, %v7332, %v7333
      %v7335 = vrot.slane %v7234, 3
      %v7336 = vsel %vm1190, %v7333, %v7335
      %v7337 = vrot.slane %v7235, 3
      %v7338 = vrot.slane %v7236, 3
      %v7339 = vsel %vm1190, %v7337, %v7338
      %v7340 = vrot.slane %v7237, 3
      %v7341 = vsel %vm1190, %v7338, %v7340
      %v7342 = vrot.slane %v7238, 3
      %v7343 = vrot.slane %v7239, 3
      %v7344 = vsel %vm1190, %v7342, %v7343
      %v7345 = vrot.slane %v7240, 3
      %v7346 = vsel %vm1190, %v7343, %v7345
      %v7347 = vrot.slane %v7241, 3
      %v7348 = vrot.slane %v7242, 3
      %v7349 = vsel %vm1190, %v7347, %v7348
      %v7350 = vrot.slane %v7243, 3
      %v7351 = vsel %vm1190, %v7348, %v7350
      %v7352 = vrot.slane %v7244, 3
      %v7353 = vrot.slane %v7245, 3
      %v7354 = vsel %vm1190, %v7352, %v7353
      %v7355 = vrot.slane %v7246, 3
      %v7356 = vsel %vm1190, %v7353, %v7355
      %v7357 = vrot.slane %v7247, 3
      %v7358 = vrot.slane %v7248, 3
      %v7359 = vsel %vm1190, %v7357, %v7358
      %v7360 = vrot.slane %v7249, 3
      %v7361 = vsel %vm1190, %v7358, %v7360
      %v7362 = vrot.slane %v7250, 3
      %v7363 = vrot.slane %v7251, 3
      %v7364 = vsel %vm1190, %v7362, %v7363
      %v7365 = vrot.slane %v7252, 3
      %v7366 = vsel %vm1190, %v7363, %v7365
      %v7367 = vrot.slane %v7253, 3
      %v7368 = vrot.slane %v7254, 3
      %v7369 = vsel %vm1190, %v7367, %v7368
      %v7370 = vrot.slane %v7255, 3
      %v7371 = vsel %vm1190, %v7368, %v7370
      %v7372 = vrot.slane %v7256, 3
      %v7373 = vrot.slane %v7257, 3
      %v7374 = vsel %vm1190, %v7372, %v7373
      %v7375 = vrot.slane %v7258, 3
      %v7376 = vsel %vm1190, %v7373, %v7375
      %v7377 = vrot.slane %v7259, 3
      %v7378 = vrot.slane %v7260, 3
      %v7379 = vsel %vm1190, %v7377, %v7378
      %v7380 = vrot.slane %v7261, 3
      %v7381 = vsel %vm1190, %v7378, %v7380
      %v7382 = vrot.slane %v7262, 3
      %v7383 = vrot.slane %v7263, 3
      %v7384 = vsel %vm1190, %v7382, %v7383
      %v7385 = vrot.slane %v7264, 3
      %v7386 = vsel %vm1190, %v7383, %v7385
      %v7387 = vrot.slane %v7265, 3
      %v7388 = vrot.slane %v7266, 3
      %v7389 = vsel %vm1190, %v7387, %v7388
      %v7390 = vrot.slane %v7267, 3
      %v7391 = vsel %vm1190, %v7388, %v7390
      %v7392 = vrot.slane %v7268, 3
      %v7393 = vrot.slane %v7269, 3
      %v7394 = vsel %vm1190, %v7392, %v7393
      %v7395 = vrot.slane %v7270, 3
      %v7396 = vsel %vm1190, %v7393, %v7395
      %v7397 = vrot.slane %v7271, 3
      %v7398 = vrot.slane %v7272, 3
      %v7399 = vsel %vm1190, %v7397, %v7398
      %v7400 = vrot.slane %v7273, 3
      %v7401 = vsel %vm1190, %v7398, %v7400
      %v7434 = vadd.f32 %v7190, %v7324
      %v7435 = vadd.f32 %v7191, %v7326
      %v7436 = vadd.f32 %v7192, %v7329
      %v7437 = vadd.f32 %v7193, %v7331
      %v7438 = vadd.f32 %v7194, %v7334
      %v7439 = vadd.f32 %v7195, %v7336
      %v7440 = vadd.f32 %v7196, %v7339
      %v7441 = vadd.f32 %v7197, %v7341
      %v7442 = vadd.f32 %v7198, %v7344
      %v7443 = vadd.f32 %v7199, %v7346
      %v7444 = vadd.f32 %v7200, %v7349
      %v7445 = vadd.f32 %v7201, %v7351
      %v7446 = vadd.f32 %v7202, %v7354
      %v7447 = vadd.f32 %v7203, %v7356
      %v7448 = vadd.f32 %v7204, %v7359
      %v7449 = vadd.f32 %v7205, %v7361
      %v7450 = vadd.f32 %v7206, %v7364
      %v7451 = vadd.f32 %v7207, %v7366
      %v7452 = vadd.f32 %v7208, %v7369
      %v7453 = vadd.f32 %v7209, %v7371
      %v7454 = vadd.f32 %v7210, %v7374
      %v7455 = vadd.f32 %v7211, %v7376
      %v7456 = vadd.f32 %v7212, %v7379
      %v7457 = vadd.f32 %v7213, %v7381
      %v7458 = vadd.f32 %v7214, %v7384
      %v7459 = vadd.f32 %v7215, %v7386
      %v7460 = vadd.f32 %v7216, %v7389
      %v7461 = vadd.f32 %v7217, %v7391
      %v7462 = vadd.f32 %v7218, %v7394
      %v7463 = vadd.f32 %v7219, %v7396
      %v7464 = vadd.f32 %v7220, %v7399
      %v7465 = vadd.f32 %v7221, %v7401
      %v7466 = vlaneseq
      %v7467 = vshrl.u32 %v7466, 7
      %v7468 = vsub.s32 4, %v7467
      %v7469 = vrot.slane %v529, %v7468
      %v7470 = vmul.f32 %v471, %v7469
      %v7471 = vmul.f32 %v472, %v7469
      %v7472 = vmul.f32 %v473, %v7469
      %v7473 = vmul.f32 %v474, %v7469
      %v7474 = vmul.f32 %v475, %v7469
      %v7475 = vmul.f32 %v476, %v7469
      %v7476 = vmul.f32 %v477, %v7469
      %v7477 = vmul.f32 %v478, %v7469
      %v7478 = vmul.f32 %v479, %v7469
      %v7479 = vmul.f32 %v480, %v7469
      %v7480 = vmul.f32 %v481, %v7469
      %v7481 = vmul.f32 %v482, %v7469
      %v7482 = vmul.f32 %v483, %v7469
      %v7483 = vmul.f32 %v484, %v7469
      %v7484 = vmul.f32 %v485, %v7469
      %v7485 = vmul.f32 %v486, %v7469
      %v7486 = vmul.f32 %v487, %v7469
      %v7487 = vmul.f32 %v488, %v7469
      %v7488 = vmul.f32 %v489, %v7469
      %v7489 = vmul.f32 %v490, %v7469
      %v7490 = vmul.f32 %v491, %v7469
      %v7491 = vmul.f32 %v492, %v7469
      %v7492 = vmul.f32 %v493, %v7469
      %v7493 = vmul.f32 %v494, %v7469
      %v7494 = vmul.f32 %v495, %v7469
      %v7495 = vmul.f32 %v496, %v7469
      %v7496 = vmul.f32 %v497, %v7469
      %v7497 = vmul.f32 %v498, %v7469
      %v7498 = vmul.f32 %v499, %v7469
      %v7499 = vmul.f32 %v500, %v7469
      %v7500 = vmul.f32 %v501, %v7469
      %v7501 = vmul.f32 %v502, %v7469
      %v7502 = vmul.f32 %v503, %v7469
      %v7503 = vmul.f32 %v504, %v7469
      %v7504 = vmul.f32 %v505, %v7469
      %v7505 = vmul.f32 %v506, %v7469
      %v7506 = vmul.f32 %v507, %v7469
      %v7507 = vmul.f32 %v508, %v7469
      %v7508 = vmul.f32 %v509, %v7469
      %v7509 = vmul.f32 %v510, %v7469
      %v7510 = vmul.f32 %v511, %v7469
      %v7511 = vmul.f32 %v512, %v7469
      %v7512 = vmul.f32 %v513, %v7469
      %v7513 = vmul.f32 %v514, %v7469
      %v7514 = vmul.f32 %v515, %v7469
      %v7515 = vmul.f32 %v516, %v7469
      %v7516 = vmul.f32 %v517, %v7469
      %v7517 = vmul.f32 %v518, %v7469
      %v7566 = vrot.slane %v7470, 4
      %v7567 = vrot.slane %v7471, 4
      %v7568 = vsel %vm1435, %v7566, %v7567
      %v7569 = vrot.slane %v7472, 4
      %v7570 = vsel %vm1435, %v7567, %v7569
      %v7571 = vrot.slane %v7473, 4
      %v7572 = vrot.slane %v7474, 4
      %v7573 = vsel %vm1435, %v7571, %v7572
      %v7574 = vrot.slane %v7475, 4
      %v7575 = vsel %vm1435, %v7572, %v7574
      %v7576 = vrot.slane %v7476, 4
      %v7577 = vrot.slane %v7477, 4
      %v7578 = vsel %vm1435, %v7576, %v7577
      %v7579 = vrot.slane %v7478, 4
      %v7580 = vsel %vm1435, %v7577, %v7579
      %v7581 = vrot.slane %v7479, 4
      %v7582 = vrot.slane %v7480, 4
      %v7583 = vsel %vm1435, %v7581, %v7582
      %v7584 = vrot.slane %v7481, 4
      %v7585 = vsel %vm1435, %v7582, %v7584
      %v7586 = vrot.slane %v7482, 4
      %v7587 = vrot.slane %v7483, 4
      %v7588 = vsel %vm1435, %v7586, %v7587
      %v7589 = vrot.slane %v7484, 4
      %v7590 = vsel %vm1435, %v7587, %v7589
      %v7591 = vrot.slane %v7485, 4
      %v7592 = vrot.slane %v7486, 4
      %v7593 = vsel %vm1435, %v7591, %v7592
      %v7594 = vrot.slane %v7487, 4
      %v7595 = vsel %vm1435, %v7592, %v7594
      %v7596 = vrot.slane %v7488, 4
      %v7597 = vrot.slane %v7489, 4
      %v7598 = vsel %vm1435, %v7596, %v7597
      %v7599 = vrot.slane %v7490, 4
      %v7600 = vsel %vm1435, %v7597, %v7599
      %v7601 = vrot.slane %v7491, 4
      %v7602 = vrot.slane %v7492, 4
      %v7603 = vsel %vm1435, %v7601, %v7602
      %v7604 = vrot.slane %v7493, 4
      %v7605 = vsel %vm1435, %v7602, %v7604
      %v7606 = vrot.slane %v7494, 4
      %v7607 = vrot.slane %v7495, 4
      %v7608 = vsel %vm1435, %v7606, %v7607
      %v7609 = vrot.slane %v7496, 4
      %v7610 = vsel %vm1435, %v7607, %v7609
      %v7611 = vrot.slane %v7497, 4
      %v7612 = vrot.slane %v7498, 4
      %v7613 = vsel %vm1435, %v7611, %v7612
      %v7614 = vrot.slane %v7499, 4
      %v7615 = vsel %vm1435, %v7612, %v7614
      %v7616 = vrot.slane %v7500, 4
      %v7617 = vrot.slane %v7501, 4
      %v7618 = vsel %vm1435, %v7616, %v7617
      %v7619 = vrot.slane %v7502, 4
      %v7620 = vsel %vm1435, %v7617, %v7619
      %v7621 = vrot.slane %v7503, 4
      %v7622 = vrot.slane %v7504, 4
      %v7623 = vsel %vm1435, %v7621, %v7622
      %v7624 = vrot.slane %v7505, 4
      %v7625 = vsel %vm1435, %v7622, %v7624
      %v7626 = vrot.slane %v7506, 4
      %v7627 = vrot.slane %v7507, 4
      %v7628 = vsel %vm1435, %v7626, %v7627
      %v7629 = vrot.slane %v7508, 4
      %v7630 = vsel %vm1435, %v7627, %v7629
      %v7631 = vrot.slane %v7509, 4
      %v7632 = vrot.slane %v7510, 4
      %v7633 = vsel %vm1435, %v7631, %v7632
      %v7634 = vrot.slane %v7511, 4
      %v7635 = vsel %vm1435, %v7632, %v7634
      %v7636 = vrot.slane %v7512, 4
      %v7637 = vrot.slane %v7513, 4
      %v7638 = vsel %vm1435, %v7636, %v7637
      %v7639 = vrot.slane %v7514, 4
      %v7640 = vsel %vm1435, %v7637, %v7639
      %v7641 = vrot.slane %v7515, 4
      %v7642 = vrot.slane %v7516, 4
      %v7643 = vsel %vm1435, %v7641, %v7642
      %v7644 = vrot.slane %v7517, 4
      %v7645 = vsel %vm1435, %v7642, %v7644
      %v7678 = vadd.f32 %v7434, %v7568
      %v7679 = vadd.f32 %v7435, %v7570
      %v7680 = vadd.f32 %v7436, %v7573
      %v7681 = vadd.f32 %v7437, %v7575
      %v7682 = vadd.f32 %v7438, %v7578
      %v7683 = vadd.f32 %v7439, %v7580
      %v7684 = vadd.f32 %v7440, %v7583
      %v7685 = vadd.f32 %v7441, %v7585
      %v7686 = vadd.f32 %v7442, %v7588
      %v7687 = vadd.f32 %v7443, %v7590
      %v7688 = vadd.f32 %v7444, %v7593
      %v7689 = vadd.f32 %v7445, %v7595
      %v7690 = vadd.f32 %v7446, %v7598
      %v7691 = vadd.f32 %v7447, %v7600
      %v7692 = vadd.f32 %v7448, %v7603
      %v7693 = vadd.f32 %v7449, %v7605
      %v7694 = vadd.f32 %v7450, %v7608
      %v7695 = vadd.f32 %v7451, %v7610
      %v7696 = vadd.f32 %v7452, %v7613
      %v7697 = vadd.f32 %v7453, %v7615
      %v7698 = vadd.f32 %v7454, %v7618
      %v7699 = vadd.f32 %v7455, %v7620
      %v7700 = vadd.f32 %v7456, %v7623
      %v7701 = vadd.f32 %v7457, %v7625
      %v7702 = vadd.f32 %v7458, %v7628
      %v7703 = vadd.f32 %v7459, %v7630
      %v7704 = vadd.f32 %v7460, %v7633
      %v7705 = vadd.f32 %v7461, %v7635
      %v7706 = vadd.f32 %v7462, %v7638
      %v7707 = vadd.f32 %v7463, %v7640
      %v7708 = vadd.f32 %v7464, %v7643
      %v7709 = vadd.f32 %v7465, %v7645
      %v7710 = vlaneseq
      %v7711 = vshrl.u32 %v7710, 7
      %v7712 = vsub.s32 5, %v7711
      %v7713 = vrot.slane %v529, %v7712
      %v7714 = vmul.f32 %v471, %v7713
      %v7715 = vmul.f32 %v472, %v7713
      %v7716 = vmul.f32 %v473, %v7713
      %v7717 = vmul.f32 %v474, %v7713
      %v7718 = vmul.f32 %v475, %v7713
      %v7719 = vmul.f32 %v476, %v7713
      %v7720 = vmul.f32 %v477, %v7713
      %v7721 = vmul.f32 %v478, %v7713
      %v7722 = vmul.f32 %v479, %v7713
      %v7723 = vmul.f32 %v480, %v7713
      %v7724 = vmul.f32 %v481, %v7713
      %v7725 = vmul.f32 %v482, %v7713
      %v7726 = vmul.f32 %v483, %v7713
      %v7727 = vmul.f32 %v484, %v7713
      %v7728 = vmul.f32 %v485, %v7713
      %v7729 = vmul.f32 %v486, %v7713
      %v7730 = vmul.f32 %v487, %v7713
      %v7731 = vmul.f32 %v488, %v7713
      %v7732 = vmul.f32 %v489, %v7713
      %v7733 = vmul.f32 %v490, %v7713
      %v7734 = vmul.f32 %v491, %v7713
      %v7735 = vmul.f32 %v492, %v7713
      %v7736 = vmul.f32 %v493, %v7713
      %v7737 = vmul.f32 %v494, %v7713
      %v7738 = vmul.f32 %v495, %v7713
      %v7739 = vmul.f32 %v496, %v7713
      %v7740 = vmul.f32 %v497, %v7713
      %v7741 = vmul.f32 %v498, %v7713
      %v7742 = vmul.f32 %v499, %v7713
      %v7743 = vmul.f32 %v500, %v7713
      %v7744 = vmul.f32 %v501, %v7713
      %v7745 = vmul.f32 %v502, %v7713
      %v7746 = vmul.f32 %v503, %v7713
      %v7747 = vmul.f32 %v504, %v7713
      %v7748 = vmul.f32 %v505, %v7713
      %v7749 = vmul.f32 %v506, %v7713
      %v7750 = vmul.f32 %v507, %v7713
      %v7751 = vmul.f32 %v508, %v7713
      %v7752 = vmul.f32 %v509, %v7713
      %v7753 = vmul.f32 %v510, %v7713
      %v7754 = vmul.f32 %v511, %v7713
      %v7755 = vmul.f32 %v512, %v7713
      %v7756 = vmul.f32 %v513, %v7713
      %v7757 = vmul.f32 %v514, %v7713
      %v7758 = vmul.f32 %v515, %v7713
      %v7759 = vmul.f32 %v516, %v7713
      %v7760 = vmul.f32 %v517, %v7713
      %v7761 = vmul.f32 %v518, %v7713
      %v7810 = vrot.slane %v7714, 5
      %v7811 = vrot.slane %v7715, 5
      %v7812 = vsel %vm1680, %v7810, %v7811
      %v7813 = vrot.slane %v7716, 5
      %v7814 = vsel %vm1680, %v7811, %v7813
      %v7815 = vrot.slane %v7717, 5
      %v7816 = vrot.slane %v7718, 5
      %v7817 = vsel %vm1680, %v7815, %v7816
      %v7818 = vrot.slane %v7719, 5
      %v7819 = vsel %vm1680, %v7816, %v7818
      %v7820 = vrot.slane %v7720, 5
      %v7821 = vrot.slane %v7721, 5
      %v7822 = vsel %vm1680, %v7820, %v7821
      %v7823 = vrot.slane %v7722, 5
      %v7824 = vsel %vm1680, %v7821, %v7823
      %v7825 = vrot.slane %v7723, 5
      %v7826 = vrot.slane %v7724, 5
      %v7827 = vsel %vm1680, %v7825, %v7826
      %v7828 = vrot.slane %v7725, 5
      %v7829 = vsel %vm1680, %v7826, %v7828
      %v7830 = vrot.slane %v7726, 5
      %v7831 = vrot.slane %v7727, 5
      %v7832 = vsel %vm1680, %v7830, %v7831
      %v7833 = vrot.slane %v7728, 5
      %v7834 = vsel %vm1680, %v7831, %v7833
      %v7835 = vrot.slane %v7729, 5
      %v7836 = vrot.slane %v7730, 5
      %v7837 = vsel %vm1680, %v7835, %v7836
      %v7838 = vrot.slane %v7731, 5
      %v7839 = vsel %vm1680, %v7836, %v7838
      %v7840 = vrot.slane %v7732, 5
      %v7841 = vrot.slane %v7733, 5
      %v7842 = vsel %vm1680, %v7840, %v7841
      %v7843 = vrot.slane %v7734, 5
      %v7844 = vsel %vm1680, %v7841, %v7843
      %v7845 = vrot.slane %v7735, 5
      %v7846 = vrot.slane %v7736, 5
      %v7847 = vsel %vm1680, %v7845, %v7846
      %v7848 = vrot.slane %v7737, 5
      %v7849 = vsel %vm1680, %v7846, %v7848
      %v7850 = vrot.slane %v7738, 5
      %v7851 = vrot.slane %v7739, 5
      %v7852 = vsel %vm1680, %v7850, %v7851
      %v7853 = vrot.slane %v7740, 5
      %v7854 = vsel %vm1680, %v7851, %v7853
      %v7855 = vrot.slane %v7741, 5
      %v7856 = vrot.slane %v7742, 5
      %v7857 = vsel %vm1680, %v7855, %v7856
      %v7858 = vrot.slane %v7743, 5
      %v7859 = vsel %vm1680, %v7856, %v7858
      %v7860 = vrot.slane %v7744, 5
      %v7861 = vrot.slane %v7745, 5
      %v7862 = vsel %vm1680, %v7860, %v7861
      %v7863 = vrot.slane %v7746, 5
      %v7864 = vsel %vm1680, %v7861, %v7863
      %v7865 = vrot.slane %v7747, 5
      %v7866 = vrot.slane %v7748, 5
      %v7867 = vsel %vm1680, %v7865, %v7866
      %v7868 = vrot.slane %v7749, 5
      %v7869 = vsel %vm1680, %v7866, %v7868
      %v7870 = vrot.slane %v7750, 5
      %v7871 = vrot.slane %v7751, 5
      %v7872 = vsel %vm1680, %v7870, %v7871
      %v7873 = vrot.slane %v7752, 5
      %v7874 = vsel %vm1680, %v7871, %v7873
      %v7875 = vrot.slane %v7753, 5
      %v7876 = vrot.slane %v7754, 5
      %v7877 = vsel %vm1680, %v7875, %v7876
      %v7878 = vrot.slane %v7755, 5
      %v7879 = vsel %vm1680, %v7876, %v7878
      %v7880 = vrot.slane %v7756, 5
      %v7881 = vrot.slane %v7757, 5
      %v7882 = vsel %vm1680, %v7880, %v7881
      %v7883 = vrot.slane %v7758, 5
      %v7884 = vsel %vm1680, %v7881, %v7883
      %v7885 = vrot.slane %v7759, 5
      %v7886 = vrot.slane %v7760, 5
      %v7887 = vsel %vm1680, %v7885, %v7886
      %v7888 = vrot.slane %v7761, 5
      %v7889 = vsel %vm1680, %v7886, %v7888
      %v7922 = vadd.f32 %v7678, %v7812
      %v7923 = vadd.f32 %v7679, %v7814
      %v7924 = vadd.f32 %v7680, %v7817
      %v7925 = vadd.f32 %v7681, %v7819
      %v7926 = vadd.f32 %v7682, %v7822
      %v7927 = vadd.f32 %v7683, %v7824
      %v7928 = vadd.f32 %v7684, %v7827
      %v7929 = vadd.f32 %v7685, %v7829
      %v7930 = vadd.f32 %v7686, %v7832
      %v7931 = vadd.f32 %v7687, %v7834
      %v7932 = vadd.f32 %v7688, %v7837
      %v7933 = vadd.f32 %v7689, %v7839
      %v7934 = vadd.f32 %v7690, %v7842
      %v7935 = vadd.f32 %v7691, %v7844
      %v7936 = vadd.f32 %v7692, %v7847
      %v7937 = vadd.f32 %v7693, %v7849
      %v7938 = vadd.f32 %v7694, %v7852
      %v7939 = vadd.f32 %v7695, %v7854
      %v7940 = vadd.f32 %v7696, %v7857
      %v7941 = vadd.f32 %v7697, %v7859
      %v7942 = vadd.f32 %v7698, %v7862
      %v7943 = vadd.f32 %v7699, %v7864
      %v7944 = vadd.f32 %v7700, %v7867
      %v7945 = vadd.f32 %v7701, %v7869
      %v7946 = vadd.f32 %v7702, %v7872
      %v7947 = vadd.f32 %v7703, %v7874
      %v7948 = vadd.f32 %v7704, %v7877
      %v7949 = vadd.f32 %v7705, %v7879
      %v7950 = vadd.f32 %v7706, %v7882
      %v7951 = vadd.f32 %v7707, %v7884
      %v7952 = vadd.f32 %v7708, %v7887
      %v7953 = vadd.f32 %v7709, %v7889
      %v7954 = vlaneseq
      %v7955 = vshrl.u32 %v7954, 7
      %v7956 = vsub.s32 6, %v7955
      %v7957 = vrot.slane %v529, %v7956
      %v7958 = vmul.f32 %v471, %v7957
      %v7959 = vmul.f32 %v472, %v7957
      %v7960 = vmul.f32 %v473, %v7957
      %v7961 = vmul.f32 %v474, %v7957
      %v7962 = vmul.f32 %v475, %v7957
      %v7963 = vmul.f32 %v476, %v7957
      %v7964 = vmul.f32 %v477, %v7957
      %v7965 = vmul.f32 %v478, %v7957
      %v7966 = vmul.f32 %v479, %v7957
      %v7967 = vmul.f32 %v480, %v7957
      %v7968 = vmul.f32 %v481, %v7957
      %v7969 = vmul.f32 %v482, %v7957
      %v7970 = vmul.f32 %v483, %v7957
      %v7971 = vmul.f32 %v484, %v7957
      %v7972 = vmul.f32 %v485, %v7957
      %v7973 = vmul.f32 %v486, %v7957
      %v7974 = vmul.f32 %v487, %v7957
      %v7975 = vmul.f32 %v488, %v7957
      %v7976 = vmul.f32 %v489, %v7957
      %v7977 = vmul.f32 %v490, %v7957
      %v7978 = vmul.f32 %v491, %v7957
      %v7979 = vmul.f32 %v492, %v7957
      %v7980 = vmul.f32 %v493, %v7957
      %v7981 = vmul.f32 %v494, %v7957
      %v7982 = vmul.f32 %v495, %v7957
      %v7983 = vmul.f32 %v496, %v7957
      %v7984 = vmul.f32 %v497, %v7957
      %v7985 = vmul.f32 %v498, %v7957
      %v7986 = vmul.f32 %v499, %v7957
      %v7987 = vmul.f32 %v500, %v7957
      %v7988 = vmul.f32 %v501, %v7957
      %v7989 = vmul.f32 %v502, %v7957
      %v7990 = vmul.f32 %v503, %v7957
      %v7991 = vmul.f32 %v504, %v7957
      %v7992 = vmul.f32 %v505, %v7957
      %v7993 = vmul.f32 %v506, %v7957
      %v7994 = vmul.f32 %v507, %v7957
      %v7995 = vmul.f32 %v508, %v7957
      %v7996 = vmul.f32 %v509, %v7957
      %v7997 = vmul.f32 %v510, %v7957
      %v7998 = vmul.f32 %v511, %v7957
      %v7999 = vmul.f32 %v512, %v7957
      %v8000 = vmul.f32 %v513, %v7957
      %v8001 = vmul.f32 %v514, %v7957
      %v8002 = vmul.f32 %v515, %v7957
      %v8003 = vmul.f32 %v516, %v7957
      %v8004 = vmul.f32 %v517, %v7957
      %v8005 = vmul.f32 %v518, %v7957
      %v8054 = vrot.slane %v7958, 6
      %v8055 = vrot.slane %v7959, 6
      %v8056 = vsel %vm1925, %v8054, %v8055
      %v8057 = vrot.slane %v7960, 6
      %v8058 = vsel %vm1925, %v8055, %v8057
      %v8059 = vrot.slane %v7961, 6
      %v8060 = vrot.slane %v7962, 6
      %v8061 = vsel %vm1925, %v8059, %v8060
      %v8062 = vrot.slane %v7963, 6
      %v8063 = vsel %vm1925, %v8060, %v8062
      %v8064 = vrot.slane %v7964, 6
      %v8065 = vrot.slane %v7965, 6
      %v8066 = vsel %vm1925, %v8064, %v8065
      %v8067 = vrot.slane %v7966, 6
      %v8068 = vsel %vm1925, %v8065, %v8067
      %v8069 = vrot.slane %v7967, 6
      %v8070 = vrot.slane %v7968, 6
      %v8071 = vsel %vm1925, %v8069, %v8070
      %v8072 = vrot.slane %v7969, 6
      %v8073 = vsel %vm1925, %v8070, %v8072
      %v8074 = vrot.slane %v7970, 6
      %v8075 = vrot.slane %v7971, 6
      %v8076 = vsel %vm1925, %v8074, %v8075
      %v8077 = vrot.slane %v7972, 6
      %v8078 = vsel %vm1925, %v8075, %v8077
      %v8079 = vrot.slane %v7973, 6
      %v8080 = vrot.slane %v7974, 6
      %v8081 = vsel %vm1925, %v8079, %v8080
      %v8082 = vrot.slane %v7975, 6
      %v8083 = vsel %vm1925, %v8080, %v8082
      %v8084 = vrot.slane %v7976, 6
      %v8085 = vrot.slane %v7977, 6
      %v8086 = vsel %vm1925, %v8084, %v8085
      %v8087 = vrot.slane %v7978, 6
      %v8088 = vsel %vm1925, %v8085, %v8087
      %v8089 = vrot.slane %v7979, 6
      %v8090 = vrot.slane %v7980, 6
      %v8091 = vsel %vm1925, %v8089, %v8090
      %v8092 = vrot.slane %v7981, 6
      %v8093 = vsel %vm1925, %v8090, %v8092
      %v8094 = vrot.slane %v7982, 6
      %v8095 = vrot.slane %v7983, 6
      %v8096 = vsel %vm1925, %v8094, %v8095
      %v8097 = vrot.slane %v7984, 6
      %v8098 = vsel %vm1925, %v8095, %v8097
      %v8099 = vrot.slane %v7985, 6
      %v8100 = vrot.slane %v7986, 6
      %v8101 = vsel %vm1925, %v8099, %v8100
      %v8102 = vrot.slane %v7987, 6
      %v8103 = vsel %vm1925, %v8100, %v8102
      %v8104 = vrot.slane %v7988, 6
      %v8105 = vrot.slane %v7989, 6
      %v8106 = vsel %vm1925, %v8104, %v8105
      %v8107 = vrot.slane %v7990, 6
      %v8108 = vsel %vm1925, %v8105, %v8107
      %v8109 = vrot.slane %v7991, 6
      %v8110 = vrot.slane %v7992, 6
      %v8111 = vsel %vm1925, %v8109, %v8110
      %v8112 = vrot.slane %v7993, 6
      %v8113 = vsel %vm1925, %v8110, %v8112
      %v8114 = vrot.slane %v7994, 6
      %v8115 = vrot.slane %v7995, 6
      %v8116 = vsel %vm1925, %v8114, %v8115
      %v8117 = vrot.slane %v7996, 6
      %v8118 = vsel %vm1925, %v8115, %v8117
      %v8119 = vrot.slane %v7997, 6
      %v8120 = vrot.slane %v7998, 6
      %v8121 = vsel %vm1925, %v8119, %v8120
      %v8122 = vrot.slane %v7999, 6
      %v8123 = vsel %vm1925, %v8120, %v8122
      %v8124 = vrot.slane %v8000, 6
      %v8125 = vrot.slane %v8001, 6
      %v8126 = vsel %vm1925, %v8124, %v8125
      %v8127 = vrot.slane %v8002, 6
      %v8128 = vsel %vm1925, %v8125, %v8127
      %v8129 = vrot.slane %v8003, 6
      %v8130 = vrot.slane %v8004, 6
      %v8131 = vsel %vm1925, %v8129, %v8130
      %v8132 = vrot.slane %v8005, 6
      %v8133 = vsel %vm1925, %v8130, %v8132
      %v8166 = vadd.f32 %v7922, %v8056
      %v8167 = vadd.f32 %v7923, %v8058
      %v8168 = vadd.f32 %v7924, %v8061
      %v8169 = vadd.f32 %v7925, %v8063
      %v8170 = vadd.f32 %v7926, %v8066
      %v8171 = vadd.f32 %v7927, %v8068
      %v8172 = vadd.f32 %v7928, %v8071
      %v8173 = vadd.f32 %v7929, %v8073
      %v8174 = vadd.f32 %v7930, %v8076
      %v8175 = vadd.f32 %v7931, %v8078
      %v8176 = vadd.f32 %v7932, %v8081
      %v8177 = vadd.f32 %v7933, %v8083
      %v8178 = vadd.f32 %v7934, %v8086
      %v8179 = vadd.f32 %v7935, %v8088
      %v8180 = vadd.f32 %v7936, %v8091
      %v8181 = vadd.f32 %v7937, %v8093
      %v8182 = vadd.f32 %v7938, %v8096
      %v8183 = vadd.f32 %v7939, %v8098
      %v8184 = vadd.f32 %v7940, %v8101
      %v8185 = vadd.f32 %v7941, %v8103
      %v8186 = vadd.f32 %v7942, %v8106
      %v8187 = vadd.f32 %v7943, %v8108
      %v8188 = vadd.f32 %v7944, %v8111
      %v8189 = vadd.f32 %v7945, %v8113
      %v8190 = vadd.f32 %v7946, %v8116
      %v8191 = vadd.f32 %v7947, %v8118
      %v8192 = vadd.f32 %v7948, %v8121
      %v8193 = vadd.f32 %v7949, %v8123
      %v8194 = vadd.f32 %v7950, %v8126
      %v8195 = vadd.f32 %v7951, %v8128
      %v8196 = vadd.f32 %v7952, %v8131
      %v8197 = vadd.f32 %v7953, %v8133
      %v8198 = vlaneseq
      %v8199 = vshrl.u32 %v8198, 7
      %v8200 = vsub.s32 0, %v8199
      %v8201 = vrot.slane %v530, %v8200
      %v8202 = vmul.f32 %v474, %v8201
      %v8203 = vmul.f32 %v475, %v8201
      %v8204 = vmul.f32 %v477, %v8201
      %v8205 = vmul.f32 %v478, %v8201
      %v8206 = vmul.f32 %v480, %v8201
      %v8207 = vmul.f32 %v481, %v8201
      %v8208 = vmul.f32 %v483, %v8201
      %v8209 = vmul.f32 %v484, %v8201
      %v8210 = vmul.f32 %v486, %v8201
      %v8211 = vmul.f32 %v487, %v8201
      %v8212 = vmul.f32 %v489, %v8201
      %v8213 = vmul.f32 %v490, %v8201
      %v8214 = vmul.f32 %v492, %v8201
      %v8215 = vmul.f32 %v493, %v8201
      %v8216 = vmul.f32 %v495, %v8201
      %v8217 = vmul.f32 %v496, %v8201
      %v8218 = vmul.f32 %v498, %v8201
      %v8219 = vmul.f32 %v499, %v8201
      %v8220 = vmul.f32 %v501, %v8201
      %v8221 = vmul.f32 %v502, %v8201
      %v8222 = vmul.f32 %v504, %v8201
      %v8223 = vmul.f32 %v505, %v8201
      %v8224 = vmul.f32 %v507, %v8201
      %v8225 = vmul.f32 %v508, %v8201
      %v8226 = vmul.f32 %v510, %v8201
      %v8227 = vmul.f32 %v511, %v8201
      %v8228 = vmul.f32 %v513, %v8201
      %v8229 = vmul.f32 %v514, %v8201
      %v8230 = vmul.f32 %v516, %v8201
      %v8231 = vmul.f32 %v517, %v8201
      %v8232 = vmul.f32 %v519, %v8201
      %v8233 = vmul.f32 %v520, %v8201
      %v8234 = vadd.f32 %v8166, %v8202
      %v8235 = vadd.f32 %v8167, %v8203
      %v8236 = vadd.f32 %v8168, %v8204
      %v8237 = vadd.f32 %v8169, %v8205
      %v8238 = vadd.f32 %v8170, %v8206
      %v8239 = vadd.f32 %v8171, %v8207
      %v8240 = vadd.f32 %v8172, %v8208
      %v8241 = vadd.f32 %v8173, %v8209
      %v8242 = vadd.f32 %v8174, %v8210
      %v8243 = vadd.f32 %v8175, %v8211
      %v8244 = vadd.f32 %v8176, %v8212
      %v8245 = vadd.f32 %v8177, %v8213
      %v8246 = vadd.f32 %v8178, %v8214
      %v8247 = vadd.f32 %v8179, %v8215
      %v8248 = vadd.f32 %v8180, %v8216
      %v8249 = vadd.f32 %v8181, %v8217
      %v8250 = vadd.f32 %v8182, %v8218
      %v8251 = vadd.f32 %v8183, %v8219
      %v8252 = vadd.f32 %v8184, %v8220
      %v8253 = vadd.f32 %v8185, %v8221
      %v8254 = vadd.f32 %v8186, %v8222
      %v8255 = vadd.f32 %v8187, %v8223
      %v8256 = vadd.f32 %v8188, %v8224
      %v8257 = vadd.f32 %v8189, %v8225
      %v8258 = vadd.f32 %v8190, %v8226
      %v8259 = vadd.f32 %v8191, %v8227
      %v8260 = vadd.f32 %v8192, %v8228
      %v8261 = vadd.f32 %v8193, %v8229
      %v8262 = vadd.f32 %v8194, %v8230
      %v8263 = vadd.f32 %v8195, %v8231
      %v8264 = vadd.f32 %v8196, %v8232
      %v8265 = vadd.f32 %v8197, %v8233
      %v8266 = vlaneseq
      %v8267 = vshrl.u32 %v8266, 7
      %v8268 = vsub.s32 1, %v8267
      %v8269 = vrot.slane %v530, %v8268
      %v8270 = vmul.f32 %v474, %v8269
      %v8271 = vmul.f32 %v475, %v8269
      %v8272 = vmul.f32 %v476, %v8269
      %v8273 = vmul.f32 %v477, %v8269
      %v8274 = vmul.f32 %v478, %v8269
      %v8275 = vmul.f32 %v479, %v8269
      %v8276 = vmul.f32 %v480, %v8269
      %v8277 = vmul.f32 %v481, %v8269
      %v8278 = vmul.f32 %v482, %v8269
      %v8279 = vmul.f32 %v483, %v8269
      %v8280 = vmul.f32 %v484, %v8269
      %v8281 = vmul.f32 %v485, %v8269
      %v8282 = vmul.f32 %v486, %v8269
      %v8283 = vmul.f32 %v487, %v8269
      %v8284 = vmul.f32 %v488, %v8269
      %v8285 = vmul.f32 %v489, %v8269
      %v8286 = vmul.f32 %v490, %v8269
      %v8287 = vmul.f32 %v491, %v8269
      %v8288 = vmul.f32 %v492, %v8269
      %v8289 = vmul.f32 %v493, %v8269
      %v8290 = vmul.f32 %v494, %v8269
      %v8291 = vmul.f32 %v495, %v8269
      %v8292 = vmul.f32 %v496, %v8269
      %v8293 = vmul.f32 %v497, %v8269
      %v8294 = vmul.f32 %v498, %v8269
      %v8295 = vmul.f32 %v499, %v8269
      %v8296 = vmul.f32 %v500, %v8269
      %v8297 = vmul.f32 %v501, %v8269
      %v8298 = vmul.f32 %v502, %v8269
      %v8299 = vmul.f32 %v503, %v8269
      %v8300 = vmul.f32 %v504, %v8269
      %v8301 = vmul.f32 %v505, %v8269
      %v8302 = vmul.f32 %v506, %v8269
      %v8303 = vmul.f32 %v507, %v8269
      %v8304 = vmul.f32 %v508, %v8269
      %v8305 = vmul.f32 %v509, %v8269
      %v8306 = vmul.f32 %v510, %v8269
      %v8307 = vmul.f32 %v511, %v8269
      %v8308 = vmul.f32 %v512, %v8269
      %v8309 = vmul.f32 %v513, %v8269
      %v8310 = vmul.f32 %v514, %v8269
      %v8311 = vmul.f32 %v515, %v8269
      %v8312 = vmul.f32 %v516, %v8269
      %v8313 = vmul.f32 %v517, %v8269
      %v8314 = vmul.f32 %v518, %v8269
      %v8315 = vmul.f32 %v519, %v8269
      %v8316 = vmul.f32 %v520, %v8269
      %v8317 = vmul.f32 %v521, %v8269
      %v8366 = vrot.slane %v8270, 1
      %v8367 = vrot.slane %v8271, 1
      %v8368 = vsel %vm700, %v8366, %v8367
      %v8369 = vrot.slane %v8272, 1
      %v8370 = vsel %vm700, %v8367, %v8369
      %v8371 = vrot.slane %v8273, 1
      %v8372 = vrot.slane %v8274, 1
      %v8373 = vsel %vm700, %v8371, %v8372
      %v8374 = vrot.slane %v8275, 1
      %v8375 = vsel %vm700, %v8372, %v8374
      %v8376 = vrot.slane %v8276, 1
      %v8377 = vrot.slane %v8277, 1
      %v8378 = vsel %vm700, %v8376, %v8377
      %v8379 = vrot.slane %v8278, 1
      %v8380 = vsel %vm700, %v8377, %v8379
      %v8381 = vrot.slane %v8279, 1
      %v8382 = vrot.slane %v8280, 1
      %v8383 = vsel %vm700, %v8381, %v8382
      %v8384 = vrot.slane %v8281, 1
      %v8385 = vsel %vm700, %v8382, %v8384
      %v8386 = vrot.slane %v8282, 1
      %v8387 = vrot.slane %v8283, 1
      %v8388 = vsel %vm700, %v8386, %v8387
      %v8389 = vrot.slane %v8284, 1
      %v8390 = vsel %vm700, %v8387, %v8389
      %v8391 = vrot.slane %v8285, 1
      %v8392 = vrot.slane %v8286, 1
      %v8393 = vsel %vm700, %v8391, %v8392
      %v8394 = vrot.slane %v8287, 1
      %v8395 = vsel %vm700, %v8392, %v8394
      %v8396 = vrot.slane %v8288, 1
      %v8397 = vrot.slane %v8289, 1
      %v8398 = vsel %vm700, %v8396, %v8397
      %v8399 = vrot.slane %v8290, 1
      %v8400 = vsel %vm700, %v8397, %v8399
      %v8401 = vrot.slane %v8291, 1
      %v8402 = vrot.slane %v8292, 1
      %v8403 = vsel %vm700, %v8401, %v8402
      %v8404 = vrot.slane %v8293, 1
      %v8405 = vsel %vm700, %v8402, %v8404
      %v8406 = vrot.slane %v8294, 1
      %v8407 = vrot.slane %v8295, 1
      %v8408 = vsel %vm700, %v8406, %v8407
      %v8409 = vrot.slane %v8296, 1
      %v8410 = vsel %vm700, %v8407, %v8409
      %v8411 = vrot.slane %v8297, 1
      %v8412 = vrot.slane %v8298, 1
      %v8413 = vsel %vm700, %v8411, %v8412
      %v8414 = vrot.slane %v8299, 1
      %v8415 = vsel %vm700, %v8412, %v8414
      %v8416 = vrot.slane %v8300, 1
      %v8417 = vrot.slane %v8301, 1
      %v8418 = vsel %vm700, %v8416, %v8417
      %v8419 = vrot.slane %v8302, 1
      %v8420 = vsel %vm700, %v8417, %v8419
      %v8421 = vrot.slane %v8303, 1
      %v8422 = vrot.slane %v8304, 1
      %v8423 = vsel %vm700, %v8421, %v8422
      %v8424 = vrot.slane %v8305, 1
      %v8425 = vsel %vm700, %v8422, %v8424
      %v8426 = vrot.slane %v8306, 1
      %v8427 = vrot.slane %v8307, 1
      %v8428 = vsel %vm700, %v8426, %v8427
      %v8429 = vrot.slane %v8308, 1
      %v8430 = vsel %vm700, %v8427, %v8429
      %v8431 = vrot.slane %v8309, 1
      %v8432 = vrot.slane %v8310, 1
      %v8433 = vsel %vm700, %v8431, %v8432
      %v8434 = vrot.slane %v8311, 1
      %v8435 = vsel %vm700, %v8432, %v8434
      %v8436 = vrot.slane %v8312, 1
      %v8437 = vrot.slane %v8313, 1
      %v8438 = vsel %vm700, %v8436, %v8437
      %v8439 = vrot.slane %v8314, 1
      %v8440 = vsel %vm700, %v8437, %v8439
      %v8441 = vrot.slane %v8315, 1
      %v8442 = vrot.slane %v8316, 1
      %v8443 = vsel %vm700, %v8441, %v8442
      %v8444 = vrot.slane %v8317, 1
      %v8445 = vsel %vm700, %v8442, %v8444
      %v8478 = vadd.f32 %v8234, %v8368
      %v8479 = vadd.f32 %v8235, %v8370
      %v8480 = vadd.f32 %v8236, %v8373
      %v8481 = vadd.f32 %v8237, %v8375
      %v8482 = vadd.f32 %v8238, %v8378
      %v8483 = vadd.f32 %v8239, %v8380
      %v8484 = vadd.f32 %v8240, %v8383
      %v8485 = vadd.f32 %v8241, %v8385
      %v8486 = vadd.f32 %v8242, %v8388
      %v8487 = vadd.f32 %v8243, %v8390
      %v8488 = vadd.f32 %v8244, %v8393
      %v8489 = vadd.f32 %v8245, %v8395
      %v8490 = vadd.f32 %v8246, %v8398
      %v8491 = vadd.f32 %v8247, %v8400
      %v8492 = vadd.f32 %v8248, %v8403
      %v8493 = vadd.f32 %v8249, %v8405
      %v8494 = vadd.f32 %v8250, %v8408
      %v8495 = vadd.f32 %v8251, %v8410
      %v8496 = vadd.f32 %v8252, %v8413
      %v8497 = vadd.f32 %v8253, %v8415
      %v8498 = vadd.f32 %v8254, %v8418
      %v8499 = vadd.f32 %v8255, %v8420
      %v8500 = vadd.f32 %v8256, %v8423
      %v8501 = vadd.f32 %v8257, %v8425
      %v8502 = vadd.f32 %v8258, %v8428
      %v8503 = vadd.f32 %v8259, %v8430
      %v8504 = vadd.f32 %v8260, %v8433
      %v8505 = vadd.f32 %v8261, %v8435
      %v8506 = vadd.f32 %v8262, %v8438
      %v8507 = vadd.f32 %v8263, %v8440
      %v8508 = vadd.f32 %v8264, %v8443
      %v8509 = vadd.f32 %v8265, %v8445
      %v8510 = vlaneseq
      %v8511 = vshrl.u32 %v8510, 7
      %v8512 = vsub.s32 2, %v8511
      %v8513 = vrot.slane %v530, %v8512
      %v8514 = vmul.f32 %v474, %v8513
      %v8515 = vmul.f32 %v475, %v8513
      %v8516 = vmul.f32 %v476, %v8513
      %v8517 = vmul.f32 %v477, %v8513
      %v8518 = vmul.f32 %v478, %v8513
      %v8519 = vmul.f32 %v479, %v8513
      %v8520 = vmul.f32 %v480, %v8513
      %v8521 = vmul.f32 %v481, %v8513
      %v8522 = vmul.f32 %v482, %v8513
      %v8523 = vmul.f32 %v483, %v8513
      %v8524 = vmul.f32 %v484, %v8513
      %v8525 = vmul.f32 %v485, %v8513
      %v8526 = vmul.f32 %v486, %v8513
      %v8527 = vmul.f32 %v487, %v8513
      %v8528 = vmul.f32 %v488, %v8513
      %v8529 = vmul.f32 %v489, %v8513
      %v8530 = vmul.f32 %v490, %v8513
      %v8531 = vmul.f32 %v491, %v8513
      %v8532 = vmul.f32 %v492, %v8513
      %v8533 = vmul.f32 %v493, %v8513
      %v8534 = vmul.f32 %v494, %v8513
      %v8535 = vmul.f32 %v495, %v8513
      %v8536 = vmul.f32 %v496, %v8513
      %v8537 = vmul.f32 %v497, %v8513
      %v8538 = vmul.f32 %v498, %v8513
      %v8539 = vmul.f32 %v499, %v8513
      %v8540 = vmul.f32 %v500, %v8513
      %v8541 = vmul.f32 %v501, %v8513
      %v8542 = vmul.f32 %v502, %v8513
      %v8543 = vmul.f32 %v503, %v8513
      %v8544 = vmul.f32 %v504, %v8513
      %v8545 = vmul.f32 %v505, %v8513
      %v8546 = vmul.f32 %v506, %v8513
      %v8547 = vmul.f32 %v507, %v8513
      %v8548 = vmul.f32 %v508, %v8513
      %v8549 = vmul.f32 %v509, %v8513
      %v8550 = vmul.f32 %v510, %v8513
      %v8551 = vmul.f32 %v511, %v8513
      %v8552 = vmul.f32 %v512, %v8513
      %v8553 = vmul.f32 %v513, %v8513
      %v8554 = vmul.f32 %v514, %v8513
      %v8555 = vmul.f32 %v515, %v8513
      %v8556 = vmul.f32 %v516, %v8513
      %v8557 = vmul.f32 %v517, %v8513
      %v8558 = vmul.f32 %v518, %v8513
      %v8559 = vmul.f32 %v519, %v8513
      %v8560 = vmul.f32 %v520, %v8513
      %v8561 = vmul.f32 %v521, %v8513
      %v8610 = vrot.slane %v8514, 2
      %v8611 = vrot.slane %v8515, 2
      %v8612 = vsel %vm945, %v8610, %v8611
      %v8613 = vrot.slane %v8516, 2
      %v8614 = vsel %vm945, %v8611, %v8613
      %v8615 = vrot.slane %v8517, 2
      %v8616 = vrot.slane %v8518, 2
      %v8617 = vsel %vm945, %v8615, %v8616
      %v8618 = vrot.slane %v8519, 2
      %v8619 = vsel %vm945, %v8616, %v8618
      %v8620 = vrot.slane %v8520, 2
      %v8621 = vrot.slane %v8521, 2
      %v8622 = vsel %vm945, %v8620, %v8621
      %v8623 = vrot.slane %v8522, 2
      %v8624 = vsel %vm945, %v8621, %v8623
      %v8625 = vrot.slane %v8523, 2
      %v8626 = vrot.slane %v8524, 2
      %v8627 = vsel %vm945, %v8625, %v8626
      %v8628 = vrot.slane %v8525, 2
      %v8629 = vsel %vm945, %v8626, %v8628
      %v8630 = vrot.slane %v8526, 2
      %v8631 = vrot.slane %v8527, 2
      %v8632 = vsel %vm945, %v8630, %v8631
      %v8633 = vrot.slane %v8528, 2
      %v8634 = vsel %vm945, %v8631, %v8633
      %v8635 = vrot.slane %v8529, 2
      %v8636 = vrot.slane %v8530, 2
      %v8637 = vsel %vm945, %v8635, %v8636
      %v8638 = vrot.slane %v8531, 2
      %v8639 = vsel %vm945, %v8636, %v8638
      %v8640 = vrot.slane %v8532, 2
      %v8641 = vrot.slane %v8533, 2
      %v8642 = vsel %vm945, %v8640, %v8641
      %v8643 = vrot.slane %v8534, 2
      %v8644 = vsel %vm945, %v8641, %v8643
      %v8645 = vrot.slane %v8535, 2
      %v8646 = vrot.slane %v8536, 2
      %v8647 = vsel %vm945, %v8645, %v8646
      %v8648 = vrot.slane %v8537, 2
      %v8649 = vsel %vm945, %v8646, %v8648
      %v8650 = vrot.slane %v8538, 2
      %v8651 = vrot.slane %v8539, 2
      %v8652 = vsel %vm945, %v8650, %v8651
      %v8653 = vrot.slane %v8540, 2
      %v8654 = vsel %vm945, %v8651, %v8653
      %v8655 = vrot.slane %v8541, 2
      %v8656 = vrot.slane %v8542, 2
      %v8657 = vsel %vm945, %v8655, %v8656
      %v8658 = vrot.slane %v8543, 2
      %v8659 = vsel %vm945, %v8656, %v8658
      %v8660 = vrot.slane %v8544, 2
      %v8661 = vrot.slane %v8545, 2
      %v8662 = vsel %vm945, %v8660, %v8661
      %v8663 = vrot.slane %v8546, 2
      %v8664 = vsel %vm945, %v8661, %v8663
      %v8665 = vrot.slane %v8547, 2
      %v8666 = vrot.slane %v8548, 2
      %v8667 = vsel %vm945, %v8665, %v8666
      %v8668 = vrot.slane %v8549, 2
      %v8669 = vsel %vm945, %v8666, %v8668
      %v8670 = vrot.slane %v8550, 2
      %v8671 = vrot.slane %v8551, 2
      %v8672 = vsel %vm945, %v8670, %v8671
      %v8673 = vrot.slane %v8552, 2
      %v8674 = vsel %vm945, %v8671, %v8673
      %v8675 = vrot.slane %v8553, 2
      %v8676 = vrot.slane %v8554, 2
      %v8677 = vsel %vm945, %v8675, %v8676
      %v8678 = vrot.slane %v8555, 2
      %v8679 = vsel %vm945, %v8676, %v8678
      %v8680 = vrot.slane %v8556, 2
      %v8681 = vrot.slane %v8557, 2
      %v8682 = vsel %vm945, %v8680, %v8681
      %v8683 = vrot.slane %v8558, 2
      %v8684 = vsel %vm945, %v8681, %v8683
      %v8685 = vrot.slane %v8559, 2
      %v8686 = vrot.slane %v8560, 2
      %v8687 = vsel %vm945, %v8685, %v8686
      %v8688 = vrot.slane %v8561, 2
      %v8689 = vsel %vm945, %v8686, %v8688
      %v8722 = vadd.f32 %v8478, %v8612
      %v8723 = vadd.f32 %v8479, %v8614
      %v8724 = vadd.f32 %v8480, %v8617
      %v8725 = vadd.f32 %v8481, %v8619
      %v8726 = vadd.f32 %v8482, %v8622
      %v8727 = vadd.f32 %v8483, %v8624
      %v8728 = vadd.f32 %v8484, %v8627
      %v8729 = vadd.f32 %v8485, %v8629
      %v8730 = vadd.f32 %v8486, %v8632
      %v8731 = vadd.f32 %v8487, %v8634
      %v8732 = vadd.f32 %v8488, %v8637
      %v8733 = vadd.f32 %v8489, %v8639
      %v8734 = vadd.f32 %v8490, %v8642
      %v8735 = vadd.f32 %v8491, %v8644
      %v8736 = vadd.f32 %v8492, %v8647
      %v8737 = vadd.f32 %v8493, %v8649
      %v8738 = vadd.f32 %v8494, %v8652
      %v8739 = vadd.f32 %v8495, %v8654
      %v8740 = vadd.f32 %v8496, %v8657
      %v8741 = vadd.f32 %v8497, %v8659
      %v8742 = vadd.f32 %v8498, %v8662
      %v8743 = vadd.f32 %v8499, %v8664
      %v8744 = vadd.f32 %v8500, %v8667
      %v8745 = vadd.f32 %v8501, %v8669
      %v8746 = vadd.f32 %v8502, %v8672
      %v8747 = vadd.f32 %v8503, %v8674
      %v8748 = vadd.f32 %v8504, %v8677
      %v8749 = vadd.f32 %v8505, %v8679
      %v8750 = vadd.f32 %v8506, %v8682
      %v8751 = vadd.f32 %v8507, %v8684
      %v8752 = vadd.f32 %v8508, %v8687
      %v8753 = vadd.f32 %v8509, %v8689
      %v8754 = vlaneseq
      %v8755 = vshrl.u32 %v8754, 7
      %v8756 = vsub.s32 3, %v8755
      %v8757 = vrot.slane %v530, %v8756
      %v8758 = vmul.f32 %v474, %v8757
      %v8759 = vmul.f32 %v475, %v8757
      %v8760 = vmul.f32 %v476, %v8757
      %v8761 = vmul.f32 %v477, %v8757
      %v8762 = vmul.f32 %v478, %v8757
      %v8763 = vmul.f32 %v479, %v8757
      %v8764 = vmul.f32 %v480, %v8757
      %v8765 = vmul.f32 %v481, %v8757
      %v8766 = vmul.f32 %v482, %v8757
      %v8767 = vmul.f32 %v483, %v8757
      %v8768 = vmul.f32 %v484, %v8757
      %v8769 = vmul.f32 %v485, %v8757
      %v8770 = vmul.f32 %v486, %v8757
      %v8771 = vmul.f32 %v487, %v8757
      %v8772 = vmul.f32 %v488, %v8757
      %v8773 = vmul.f32 %v489, %v8757
      %v8774 = vmul.f32 %v490, %v8757
      %v8775 = vmul.f32 %v491, %v8757
      %v8776 = vmul.f32 %v492, %v8757
      %v8777 = vmul.f32 %v493, %v8757
      %v8778 = vmul.f32 %v494, %v8757
      %v8779 = vmul.f32 %v495, %v8757
      %v8780 = vmul.f32 %v496, %v8757
      %v8781 = vmul.f32 %v497, %v8757
      %v8782 = vmul.f32 %v498, %v8757
      %v8783 = vmul.f32 %v499, %v8757
      %v8784 = vmul.f32 %v500, %v8757
      %v8785 = vmul.f32 %v501, %v8757
      %v8786 = vmul.f32 %v502, %v8757
      %v8787 = vmul.f32 %v503, %v8757
      %v8788 = vmul.f32 %v504, %v8757
      %v8789 = vmul.f32 %v505, %v8757
      %v8790 = vmul.f32 %v506, %v8757
      %v8791 = vmul.f32 %v507, %v8757
      %v8792 = vmul.f32 %v508, %v8757
      %v8793 = vmul.f32 %v509, %v8757
      %v8794 = vmul.f32 %v510, %v8757
      %v8795 = vmul.f32 %v511, %v8757
      %v8796 = vmul.f32 %v512, %v8757
      %v8797 = vmul.f32 %v513, %v8757
      %v8798 = vmul.f32 %v514, %v8757
      %v8799 = vmul.f32 %v515, %v8757
      %v8800 = vmul.f32 %v516, %v8757
      %v8801 = vmul.f32 %v517, %v8757
      %v8802 = vmul.f32 %v518, %v8757
      %v8803 = vmul.f32 %v519, %v8757
      %v8804 = vmul.f32 %v520, %v8757
      %v8805 = vmul.f32 %v521, %v8757
      %v8854 = vrot.slane %v8758, 3
      %v8855 = vrot.slane %v8759, 3
      %v8856 = vsel %vm1190, %v8854, %v8855
      %v8857 = vrot.slane %v8760, 3
      %v8858 = vsel %vm1190, %v8855, %v8857
      %v8859 = vrot.slane %v8761, 3
      %v8860 = vrot.slane %v8762, 3
      %v8861 = vsel %vm1190, %v8859, %v8860
      %v8862 = vrot.slane %v8763, 3
      %v8863 = vsel %vm1190, %v8860, %v8862
      %v8864 = vrot.slane %v8764, 3
      %v8865 = vrot.slane %v8765, 3
      %v8866 = vsel %vm1190, %v8864, %v8865
      %v8867 = vrot.slane %v8766, 3
      %v8868 = vsel %vm1190, %v8865, %v8867
      %v8869 = vrot.slane %v8767, 3
      %v8870 = vrot.slane %v8768, 3
      %v8871 = vsel %vm1190, %v8869, %v8870
      %v8872 = vrot.slane %v8769, 3
      %v8873 = vsel %vm1190, %v8870, %v8872
      %v8874 = vrot.slane %v8770, 3
      %v8875 = vrot.slane %v8771, 3
      %v8876 = vsel %vm1190, %v8874, %v8875
      %v8877 = vrot.slane %v8772, 3
      %v8878 = vsel %vm1190, %v8875, %v8877
      %v8879 = vrot.slane %v8773, 3
      %v8880 = vrot.slane %v8774, 3
      %v8881 = vsel %vm1190, %v8879, %v8880
      %v8882 = vrot.slane %v8775, 3
      %v8883 = vsel %vm1190, %v8880, %v8882
      %v8884 = vrot.slane %v8776, 3
      %v8885 = vrot.slane %v8777, 3
      %v8886 = vsel %vm1190, %v8884, %v8885
      %v8887 = vrot.slane %v8778, 3
      %v8888 = vsel %vm1190, %v8885, %v8887
      %v8889 = vrot.slane %v8779, 3
      %v8890 = vrot.slane %v8780, 3
      %v8891 = vsel %vm1190, %v8889, %v8890
      %v8892 = vrot.slane %v8781, 3
      %v8893 = vsel %vm1190, %v8890, %v8892
      %v8894 = vrot.slane %v8782, 3
      %v8895 = vrot.slane %v8783, 3
      %v8896 = vsel %vm1190, %v8894, %v8895
      %v8897 = vrot.slane %v8784, 3
      %v8898 = vsel %vm1190, %v8895, %v8897
      %v8899 = vrot.slane %v8785, 3
      %v8900 = vrot.slane %v8786, 3
      %v8901 = vsel %vm1190, %v8899, %v8900
      %v8902 = vrot.slane %v8787, 3
      %v8903 = vsel %vm1190, %v8900, %v8902
      %v8904 = vrot.slane %v8788, 3
      %v8905 = vrot.slane %v8789, 3
      %v8906 = vsel %vm1190, %v8904, %v8905
      %v8907 = vrot.slane %v8790, 3
      %v8908 = vsel %vm1190, %v8905, %v8907
      %v8909 = vrot.slane %v8791, 3
      %v8910 = vrot.slane %v8792, 3
      %v8911 = vsel %vm1190, %v8909, %v8910
      %v8912 = vrot.slane %v8793, 3
      %v8913 = vsel %vm1190, %v8910, %v8912
      %v8914 = vrot.slane %v8794, 3
      %v8915 = vrot.slane %v8795, 3
      %v8916 = vsel %vm1190, %v8914, %v8915
      %v8917 = vrot.slane %v8796, 3
      %v8918 = vsel %vm1190, %v8915, %v8917
      %v8919 = vrot.slane %v8797, 3
      %v8920 = vrot.slane %v8798, 3
      %v8921 = vsel %vm1190, %v8919, %v8920
      %v8922 = vrot.slane %v8799, 3
      %v8923 = vsel %vm1190, %v8920, %v8922
      %v8924 = vrot.slane %v8800, 3
      %v8925 = vrot.slane %v8801, 3
      %v8926 = vsel %vm1190, %v8924, %v8925
      %v8927 = vrot.slane %v8802, 3
      %v8928 = vsel %vm1190, %v8925, %v8927
      %v8929 = vrot.slane %v8803, 3
      %v8930 = vrot.slane %v8804, 3
      %v8931 = vsel %vm1190, %v8929, %v8930
      %v8932 = vrot.slane %v8805, 3
      %v8933 = vsel %vm1190, %v8930, %v8932
      %v8966 = vadd.f32 %v8722, %v8856
      %v8967 = vadd.f32 %v8723, %v8858
      %v8968 = vadd.f32 %v8724, %v8861
      %v8969 = vadd.f32 %v8725, %v8863
      %v8970 = vadd.f32 %v8726, %v8866
      %v8971 = vadd.f32 %v8727, %v8868
      %v8972 = vadd.f32 %v8728, %v8871
      %v8973 = vadd.f32 %v8729, %v8873
      %v8974 = vadd.f32 %v8730, %v8876
      %v8975 = vadd.f32 %v8731, %v8878
      %v8976 = vadd.f32 %v8732, %v8881
      %v8977 = vadd.f32 %v8733, %v8883
      %v8978 = vadd.f32 %v8734, %v8886
      %v8979 = vadd.f32 %v8735, %v8888
      %v8980 = vadd.f32 %v8736, %v8891
      %v8981 = vadd.f32 %v8737, %v8893
      %v8982 = vadd.f32 %v8738, %v8896
      %v8983 = vadd.f32 %v8739, %v8898
      %v8984 = vadd.f32 %v8740, %v8901
      %v8985 = vadd.f32 %v8741, %v8903
      %v8986 = vadd.f32 %v8742, %v8906
      %v8987 = vadd.f32 %v8743, %v8908
      %v8988 = vadd.f32 %v8744, %v8911
      %v8989 = vadd.f32 %v8745, %v8913
      %v8990 = vadd.f32 %v8746, %v8916
      %v8991 = vadd.f32 %v8747, %v8918
      %v8992 = vadd.f32 %v8748, %v8921
      %v8993 = vadd.f32 %v8749, %v8923
      %v8994 = vadd.f32 %v8750, %v8926
      %v8995 = vadd.f32 %v8751, %v8928
      %v8996 = vadd.f32 %v8752, %v8931
      %v8997 = vadd.f32 %v8753, %v8933
      %v8998 = vlaneseq
      %v8999 = vshrl.u32 %v8998, 7
      %v9000 = vsub.s32 4, %v8999
      %v9001 = vrot.slane %v530, %v9000
      %v9002 = vmul.f32 %v474, %v9001
      %v9003 = vmul.f32 %v475, %v9001
      %v9004 = vmul.f32 %v476, %v9001
      %v9005 = vmul.f32 %v477, %v9001
      %v9006 = vmul.f32 %v478, %v9001
      %v9007 = vmul.f32 %v479, %v9001
      %v9008 = vmul.f32 %v480, %v9001
      %v9009 = vmul.f32 %v481, %v9001
      %v9010 = vmul.f32 %v482, %v9001
      %v9011 = vmul.f32 %v483, %v9001
      %v9012 = vmul.f32 %v484, %v9001
      %v9013 = vmul.f32 %v485, %v9001
      %v9014 = vmul.f32 %v486, %v9001
      %v9015 = vmul.f32 %v487, %v9001
      %v9016 = vmul.f32 %v488, %v9001
      %v9017 = vmul.f32 %v489, %v9001
      %v9018 = vmul.f32 %v490, %v9001
      %v9019 = vmul.f32 %v491, %v9001
      %v9020 = vmul.f32 %v492, %v9001
      %v9021 = vmul.f32 %v493, %v9001
      %v9022 = vmul.f32 %v494, %v9001
      %v9023 = vmul.f32 %v495, %v9001
      %v9024 = vmul.f32 %v496, %v9001
      %v9025 = vmul.f32 %v497, %v9001
      %v9026 = vmul.f32 %v498, %v9001
      %v9027 = vmul.f32 %v499, %v9001
      %v9028 = vmul.f32 %v500, %v9001
      %v9029 = vmul.f32 %v501, %v9001
      %v9030 = vmul.f32 %v502, %v9001
      %v9031 = vmul.f32 %v503, %v9001
      %v9032 = vmul.f32 %v504, %v9001
      %v9033 = vmul.f32 %v505, %v9001
      %v9034 = vmul.f32 %v506, %v9001
      %v9035 = vmul.f32 %v507, %v9001
      %v9036 = vmul.f32 %v508, %v9001
      %v9037 = vmul.f32 %v509, %v9001
      %v9038 = vmul.f32 %v510, %v9001
      %v9039 = vmul.f32 %v511, %v9001
      %v9040 = vmul.f32 %v512, %v9001
      %v9041 = vmul.f32 %v513, %v9001
      %v9042 = vmul.f32 %v514, %v9001
      %v9043 = vmul.f32 %v515, %v9001
      %v9044 = vmul.f32 %v516, %v9001
      %v9045 = vmul.f32 %v517, %v9001
      %v9046 = vmul.f32 %v518, %v9001
      %v9047 = vmul.f32 %v519, %v9001
      %v9048 = vmul.f32 %v520, %v9001
      %v9049 = vmul.f32 %v521, %v9001
      %v9098 = vrot.slane %v9002, 4
      %v9099 = vrot.slane %v9003, 4
      %v9100 = vsel %vm1435, %v9098, %v9099
      %v9101 = vrot.slane %v9004, 4
      %v9102 = vsel %vm1435, %v9099, %v9101
      %v9103 = vrot.slane %v9005, 4
      %v9104 = vrot.slane %v9006, 4
      %v9105 = vsel %vm1435, %v9103, %v9104
      %v9106 = vrot.slane %v9007, 4
      %v9107 = vsel %vm1435, %v9104, %v9106
      %v9108 = vrot.slane %v9008, 4
      %v9109 = vrot.slane %v9009, 4
      %v9110 = vsel %vm1435, %v9108, %v9109
      %v9111 = vrot.slane %v9010, 4
      %v9112 = vsel %vm1435, %v9109, %v9111
      %v9113 = vrot.slane %v9011, 4
      %v9114 = vrot.slane %v9012, 4
      %v9115 = vsel %vm1435, %v9113, %v9114
      %v9116 = vrot.slane %v9013, 4
      %v9117 = vsel %vm1435, %v9114, %v9116
      %v9118 = vrot.slane %v9014, 4
      %v9119 = vrot.slane %v9015, 4
      %v9120 = vsel %vm1435, %v9118, %v9119
      %v9121 = vrot.slane %v9016, 4
      %v9122 = vsel %vm1435, %v9119, %v9121
      %v9123 = vrot.slane %v9017, 4
      %v9124 = vrot.slane %v9018, 4
      %v9125 = vsel %vm1435, %v9123, %v9124
      %v9126 = vrot.slane %v9019, 4
      %v9127 = vsel %vm1435, %v9124, %v9126
      %v9128 = vrot.slane %v9020, 4
      %v9129 = vrot.slane %v9021, 4
      %v9130 = vsel %vm1435, %v9128, %v9129
      %v9131 = vrot.slane %v9022, 4
      %v9132 = vsel %vm1435, %v9129, %v9131
      %v9133 = vrot.slane %v9023, 4
      %v9134 = vrot.slane %v9024, 4
      %v9135 = vsel %vm1435, %v9133, %v9134
      %v9136 = vrot.slane %v9025, 4
      %v9137 = vsel %vm1435, %v9134, %v9136
      %v9138 = vrot.slane %v9026, 4
      %v9139 = vrot.slane %v9027, 4
      %v9140 = vsel %vm1435, %v9138, %v9139
      %v9141 = vrot.slane %v9028, 4
      %v9142 = vsel %vm1435, %v9139, %v9141
      %v9143 = vrot.slane %v9029, 4
      %v9144 = vrot.slane %v9030, 4
      %v9145 = vsel %vm1435, %v9143, %v9144
      %v9146 = vrot.slane %v9031, 4
      %v9147 = vsel %vm1435, %v9144, %v9146
      %v9148 = vrot.slane %v9032, 4
      %v9149 = vrot.slane %v9033, 4
      %v9150 = vsel %vm1435, %v9148, %v9149
      %v9151 = vrot.slane %v9034, 4
      %v9152 = vsel %vm1435, %v9149, %v9151
      %v9153 = vrot.slane %v9035, 4
      %v9154 = vrot.slane %v9036, 4
      %v9155 = vsel %vm1435, %v9153, %v9154
      %v9156 = vrot.slane %v9037, 4
      %v9157 = vsel %vm1435, %v9154, %v9156
      %v9158 = vrot.slane %v9038, 4
      %v9159 = vrot.slane %v9039, 4
      %v9160 = vsel %vm1435, %v9158, %v9159
      %v9161 = vrot.slane %v9040, 4
      %v9162 = vsel %vm1435, %v9159, %v9161
      %v9163 = vrot.slane %v9041, 4
      %v9164 = vrot.slane %v9042, 4
      %v9165 = vsel %vm1435, %v9163, %v9164
      %v9166 = vrot.slane %v9043, 4
      %v9167 = vsel %vm1435, %v9164, %v9166
      %v9168 = vrot.slane %v9044, 4
      %v9169 = vrot.slane %v9045, 4
      %v9170 = vsel %vm1435, %v9168, %v9169
      %v9171 = vrot.slane %v9046, 4
      %v9172 = vsel %vm1435, %v9169, %v9171
      %v9173 = vrot.slane %v9047, 4
      %v9174 = vrot.slane %v9048, 4
      %v9175 = vsel %vm1435, %v9173, %v9174
      %v9176 = vrot.slane %v9049, 4
      %v9177 = vsel %vm1435, %v9174, %v9176
      %v9210 = vadd.f32 %v8966, %v9100
      %v9211 = vadd.f32 %v8967, %v9102
      %v9212 = vadd.f32 %v8968, %v9105
      %v9213 = vadd.f32 %v8969, %v9107
      %v9214 = vadd.f32 %v8970, %v9110
      %v9215 = vadd.f32 %v8971, %v9112
      %v9216 = vadd.f32 %v8972, %v9115
      %v9217 = vadd.f32 %v8973, %v9117
      %v9218 = vadd.f32 %v8974, %v9120
      %v9219 = vadd.f32 %v8975, %v9122
      %v9220 = vadd.f32 %v8976, %v9125
      %v9221 = vadd.f32 %v8977, %v9127
      %v9222 = vadd.f32 %v8978, %v9130
      %v9223 = vadd.f32 %v8979, %v9132
      %v9224 = vadd.f32 %v8980, %v9135
      %v9225 = vadd.f32 %v8981, %v9137
      %v9226 = vadd.f32 %v8982, %v9140
      %v9227 = vadd.f32 %v8983, %v9142
      %v9228 = vadd.f32 %v8984, %v9145
      %v9229 = vadd.f32 %v8985, %v9147
      %v9230 = vadd.f32 %v8986, %v9150
      %v9231 = vadd.f32 %v8987, %v9152
      %v9232 = vadd.f32 %v8988, %v9155
      %v9233 = vadd.f32 %v8989, %v9157
      %v9234 = vadd.f32 %v8990, %v9160
      %v9235 = vadd.f32 %v8991, %v9162
      %v9236 = vadd.f32 %v8992, %v9165
      %v9237 = vadd.f32 %v8993, %v9167
      %v9238 = vadd.f32 %v8994, %v9170
      %v9239 = vadd.f32 %v8995, %v9172
      %v9240 = vadd.f32 %v8996, %v9175
      %v9241 = vadd.f32 %v8997, %v9177
      %v9242 = vlaneseq
      %v9243 = vshrl.u32 %v9242, 7
      %v9244 = vsub.s32 5, %v9243
      %v9245 = vrot.slane %v530, %v9244
      %v9246 = vmul.f32 %v474, %v9245
      %v9247 = vmul.f32 %v475, %v9245
      %v9248 = vmul.f32 %v476, %v9245
      %v9249 = vmul.f32 %v477, %v9245
      %v9250 = vmul.f32 %v478, %v9245
      %v9251 = vmul.f32 %v479, %v9245
      %v9252 = vmul.f32 %v480, %v9245
      %v9253 = vmul.f32 %v481, %v9245
      %v9254 = vmul.f32 %v482, %v9245
      %v9255 = vmul.f32 %v483, %v9245
      %v9256 = vmul.f32 %v484, %v9245
      %v9257 = vmul.f32 %v485, %v9245
      %v9258 = vmul.f32 %v486, %v9245
      %v9259 = vmul.f32 %v487, %v9245
      %v9260 = vmul.f32 %v488, %v9245
      %v9261 = vmul.f32 %v489, %v9245
      %v9262 = vmul.f32 %v490, %v9245
      %v9263 = vmul.f32 %v491, %v9245
      %v9264 = vmul.f32 %v492, %v9245
      %v9265 = vmul.f32 %v493, %v9245
      %v9266 = vmul.f32 %v494, %v9245
      %v9267 = vmul.f32 %v495, %v9245
      %v9268 = vmul.f32 %v496, %v9245
      %v9269 = vmul.f32 %v497, %v9245
      %v9270 = vmul.f32 %v498, %v9245
      %v9271 = vmul.f32 %v499, %v9245
      %v9272 = vmul.f32 %v500, %v9245
      %v9273 = vmul.f32 %v501, %v9245
      %v9274 = vmul.f32 %v502, %v9245
      %v9275 = vmul.f32 %v503, %v9245
      %v9276 = vmul.f32 %v504, %v9245
      %v9277 = vmul.f32 %v505, %v9245
      %v9278 = vmul.f32 %v506, %v9245
      %v9279 = vmul.f32 %v507, %v9245
      %v9280 = vmul.f32 %v508, %v9245
      %v9281 = vmul.f32 %v509, %v9245
      %v9282 = vmul.f32 %v510, %v9245
      %v9283 = vmul.f32 %v511, %v9245
      %v9284 = vmul.f32 %v512, %v9245
      %v9285 = vmul.f32 %v513, %v9245
      %v9286 = vmul.f32 %v514, %v9245
      %v9287 = vmul.f32 %v515, %v9245
      %v9288 = vmul.f32 %v516, %v9245
      %v9289 = vmul.f32 %v517, %v9245
      %v9290 = vmul.f32 %v518, %v9245
      %v9291 = vmul.f32 %v519, %v9245
      %v9292 = vmul.f32 %v520, %v9245
      %v9293 = vmul.f32 %v521, %v9245
      %v9342 = vrot.slane %v9246, 5
      %v9343 = vrot.slane %v9247, 5
      %v9344 = vsel %vm1680, %v9342, %v9343
      %v9345 = vrot.slane %v9248, 5
      %v9346 = vsel %vm1680, %v9343, %v9345
      %v9347 = vrot.slane %v9249, 5
      %v9348 = vrot.slane %v9250, 5
      %v9349 = vsel %vm1680, %v9347, %v9348
      %v9350 = vrot.slane %v9251, 5
      %v9351 = vsel %vm1680, %v9348, %v9350
      %v9352 = vrot.slane %v9252, 5
      %v9353 = vrot.slane %v9253, 5
      %v9354 = vsel %vm1680, %v9352, %v9353
      %v9355 = vrot.slane %v9254, 5
      %v9356 = vsel %vm1680, %v9353, %v9355
      %v9357 = vrot.slane %v9255, 5
      %v9358 = vrot.slane %v9256, 5
      %v9359 = vsel %vm1680, %v9357, %v9358
      %v9360 = vrot.slane %v9257, 5
      %v9361 = vsel %vm1680, %v9358, %v9360
      %v9362 = vrot.slane %v9258, 5
      %v9363 = vrot.slane %v9259, 5
      %v9364 = vsel %vm1680, %v9362, %v9363
      %v9365 = vrot.slane %v9260, 5
      %v9366 = vsel %vm1680, %v9363, %v9365
      %v9367 = vrot.slane %v9261, 5
      %v9368 = vrot.slane %v9262, 5
      %v9369 = vsel %vm1680, %v9367, %v9368
      %v9370 = vrot.slane %v9263, 5
      %v9371 = vsel %vm1680, %v9368, %v9370
      %v9372 = vrot.slane %v9264, 5
      %v9373 = vrot.slane %v9265, 5
      %v9374 = vsel %vm1680, %v9372, %v9373
      %v9375 = vrot.slane %v9266, 5
      %v9376 = vsel %vm1680, %v9373, %v9375
      %v9377 = vrot.slane %v9267, 5
      %v9378 = vrot.slane %v9268, 5
      %v9379 = vsel %vm1680, %v9377, %v9378
      %v9380 = vrot.slane %v9269, 5
      %v9381 = vsel %vm1680, %v9378, %v9380
      %v9382 = vrot.slane %v9270, 5
      %v9383 = vrot.slane %v9271, 5
      %v9384 = vsel %vm1680, %v9382, %v9383
      %v9385 = vrot.slane %v9272, 5
      %v9386 = vsel %vm1680, %v9383, %v9385
      %v9387 = vrot.slane %v9273, 5
      %v9388 = vrot.slane %v9274, 5
      %v9389 = vsel %vm1680, %v9387, %v9388
      %v9390 = vrot.slane %v9275, 5
      %v9391 = vsel %vm1680, %v9388, %v9390
      %v9392 = vrot.slane %v9276, 5
      %v9393 = vrot.slane %v9277, 5
      %v9394 = vsel %vm1680, %v9392, %v9393
      %v9395 = vrot.slane %v9278, 5
      %v9396 = vsel %vm1680, %v9393, %v9395
      %v9397 = vrot.slane %v9279, 5
      %v9398 = vrot.slane %v9280, 5
      %v9399 = vsel %vm1680, %v9397, %v9398
      %v9400 = vrot.slane %v9281, 5
      %v9401 = vsel %vm1680, %v9398, %v9400
      %v9402 = vrot.slane %v9282, 5
      %v9403 = vrot.slane %v9283, 5
      %v9404 = vsel %vm1680, %v9402, %v9403
      %v9405 = vrot.slane %v9284, 5
      %v9406 = vsel %vm1680, %v9403, %v9405
      %v9407 = vrot.slane %v9285, 5
      %v9408 = vrot.slane %v9286, 5
      %v9409 = vsel %vm1680, %v9407, %v9408
      %v9410 = vrot.slane %v9287, 5
      %v9411 = vsel %vm1680, %v9408, %v9410
      %v9412 = vrot.slane %v9288, 5
      %v9413 = vrot.slane %v9289, 5
      %v9414 = vsel %vm1680, %v9412, %v9413
      %v9415 = vrot.slane %v9290, 5
      %v9416 = vsel %vm1680, %v9413, %v9415
      %v9417 = vrot.slane %v9291, 5
      %v9418 = vrot.slane %v9292, 5
      %v9419 = vsel %vm1680, %v9417, %v9418
      %v9420 = vrot.slane %v9293, 5
      %v9421 = vsel %vm1680, %v9418, %v9420
      %v9454 = vadd.f32 %v9210, %v9344
      %v9455 = vadd.f32 %v9211, %v9346
      %v9456 = vadd.f32 %v9212, %v9349
      %v9457 = vadd.f32 %v9213, %v9351
      %v9458 = vadd.f32 %v9214, %v9354
      %v9459 = vadd.f32 %v9215, %v9356
      %v9460 = vadd.f32 %v9216, %v9359
      %v9461 = vadd.f32 %v9217, %v9361
      %v9462 = vadd.f32 %v9218, %v9364
      %v9463 = vadd.f32 %v9219, %v9366
      %v9464 = vadd.f32 %v9220, %v9369
      %v9465 = vadd.f32 %v9221, %v9371
      %v9466 = vadd.f32 %v9222, %v9374
      %v9467 = vadd.f32 %v9223, %v9376
      %v9468 = vadd.f32 %v9224, %v9379
      %v9469 = vadd.f32 %v9225, %v9381
      %v9470 = vadd.f32 %v9226, %v9384
      %v9471 = vadd.f32 %v9227, %v9386
      %v9472 = vadd.f32 %v9228, %v9389
      %v9473 = vadd.f32 %v9229, %v9391
      %v9474 = vadd.f32 %v9230, %v9394
      %v9475 = vadd.f32 %v9231, %v9396
      %v9476 = vadd.f32 %v9232, %v9399
      %v9477 = vadd.f32 %v9233, %v9401
      %v9478 = vadd.f32 %v9234, %v9404
      %v9479 = vadd.f32 %v9235, %v9406
      %v9480 = vadd.f32 %v9236, %v9409
      %v9481 = vadd.f32 %v9237, %v9411
      %v9482 = vadd.f32 %v9238, %v9414
      %v9483 = vadd.f32 %v9239, %v9416
      %v9484 = vadd.f32 %v9240, %v9419
      %v9485 = vadd.f32 %v9241, %v9421
      %v9486 = vlaneseq
      %v9487 = vshrl.u32 %v9486, 7
      %v9488 = vsub.s32 6, %v9487
      %v9489 = vrot.slane %v530, %v9488
      %v9490 = vmul.f32 %v474, %v9489
      %v9491 = vmul.f32 %v475, %v9489
      %v9492 = vmul.f32 %v476, %v9489
      %v9493 = vmul.f32 %v477, %v9489
      %v9494 = vmul.f32 %v478, %v9489
      %v9495 = vmul.f32 %v479, %v9489
      %v9496 = vmul.f32 %v480, %v9489
      %v9497 = vmul.f32 %v481, %v9489
      %v9498 = vmul.f32 %v482, %v9489
      %v9499 = vmul.f32 %v483, %v9489
      %v9500 = vmul.f32 %v484, %v9489
      %v9501 = vmul.f32 %v485, %v9489
      %v9502 = vmul.f32 %v486, %v9489
      %v9503 = vmul.f32 %v487, %v9489
      %v9504 = vmul.f32 %v488, %v9489
      %v9505 = vmul.f32 %v489, %v9489
      %v9506 = vmul.f32 %v490, %v9489
      %v9507 = vmul.f32 %v491, %v9489
      %v9508 = vmul.f32 %v492, %v9489
      %v9509 = vmul.f32 %v493, %v9489
      %v9510 = vmul.f32 %v494, %v9489
      %v9511 = vmul.f32 %v495, %v9489
      %v9512 = vmul.f32 %v496, %v9489
      %v9513 = vmul.f32 %v497, %v9489
      %v9514 = vmul.f32 %v498, %v9489
      %v9515 = vmul.f32 %v499, %v9489
      %v9516 = vmul.f32 %v500, %v9489
      %v9517 = vmul.f32 %v501, %v9489
      %v9518 = vmul.f32 %v502, %v9489
      %v9519 = vmul.f32 %v503, %v9489
      %v9520 = vmul.f32 %v504, %v9489
      %v9521 = vmul.f32 %v505, %v9489
      %v9522 = vmul.f32 %v506, %v9489
      %v9523 = vmul.f32 %v507, %v9489
      %v9524 = vmul.f32 %v508, %v9489
      %v9525 = vmul.f32 %v509, %v9489
      %v9526 = vmul.f32 %v510, %v9489
      %v9527 = vmul.f32 %v511, %v9489
      %v9528 = vmul.f32 %v512, %v9489
      %v9529 = vmul.f32 %v513, %v9489
      %v9530 = vmul.f32 %v514, %v9489
      %v9531 = vmul.f32 %v515, %v9489
      %v9532 = vmul.f32 %v516, %v9489
      %v9533 = vmul.f32 %v517, %v9489
      %v9534 = vmul.f32 %v518, %v9489
      %v9535 = vmul.f32 %v519, %v9489
      %v9536 = vmul.f32 %v520, %v9489
      %v9537 = vmul.f32 %v521, %v9489
      %v9586 = vrot.slane %v9490, 6
      %v9587 = vrot.slane %v9491, 6
      %v9588 = vsel %vm1925, %v9586, %v9587
      %v9589 = vrot.slane %v9492, 6
      %v9590 = vsel %vm1925, %v9587, %v9589
      %v9591 = vrot.slane %v9493, 6
      %v9592 = vrot.slane %v9494, 6
      %v9593 = vsel %vm1925, %v9591, %v9592
      %v9594 = vrot.slane %v9495, 6
      %v9595 = vsel %vm1925, %v9592, %v9594
      %v9596 = vrot.slane %v9496, 6
      %v9597 = vrot.slane %v9497, 6
      %v9598 = vsel %vm1925, %v9596, %v9597
      %v9599 = vrot.slane %v9498, 6
      %v9600 = vsel %vm1925, %v9597, %v9599
      %v9601 = vrot.slane %v9499, 6
      %v9602 = vrot.slane %v9500, 6
      %v9603 = vsel %vm1925, %v9601, %v9602
      %v9604 = vrot.slane %v9501, 6
      %v9605 = vsel %vm1925, %v9602, %v9604
      %v9606 = vrot.slane %v9502, 6
      %v9607 = vrot.slane %v9503, 6
      %v9608 = vsel %vm1925, %v9606, %v9607
      %v9609 = vrot.slane %v9504, 6
      %v9610 = vsel %vm1925, %v9607, %v9609
      %v9611 = vrot.slane %v9505, 6
      %v9612 = vrot.slane %v9506, 6
      %v9613 = vsel %vm1925, %v9611, %v9612
      %v9614 = vrot.slane %v9507, 6
      %v9615 = vsel %vm1925, %v9612, %v9614
      %v9616 = vrot.slane %v9508, 6
      %v9617 = vrot.slane %v9509, 6
      %v9618 = vsel %vm1925, %v9616, %v9617
      %v9619 = vrot.slane %v9510, 6
      %v9620 = vsel %vm1925, %v9617, %v9619
      %v9621 = vrot.slane %v9511, 6
      %v9622 = vrot.slane %v9512, 6
      %v9623 = vsel %vm1925, %v9621, %v9622
      %v9624 = vrot.slane %v9513, 6
      %v9625 = vsel %vm1925, %v9622, %v9624
      %v9626 = vrot.slane %v9514, 6
      %v9627 = vrot.slane %v9515, 6
      %v9628 = vsel %vm1925, %v9626, %v9627
      %v9629 = vrot.slane %v9516, 6
      %v9630 = vsel %vm1925, %v9627, %v9629
      %v9631 = vrot.slane %v9517, 6
      %v9632 = vrot.slane %v9518, 6
      %v9633 = vsel %vm1925, %v9631, %v9632
      %v9634 = vrot.slane %v9519, 6
      %v9635 = vsel %vm1925, %v9632, %v9634
      %v9636 = vrot.slane %v9520, 6
      %v9637 = vrot.slane %v9521, 6
      %v9638 = vsel %vm1925, %v9636, %v9637
      %v9639 = vrot.slane %v9522, 6
      %v9640 = vsel %vm1925, %v9637, %v9639
      %v9641 = vrot.slane %v9523, 6
      %v9642 = vrot.slane %v9524, 6
      %v9643 = vsel %vm1925, %v9641, %v9642
      %v9644 = vrot.slane %v9525, 6
      %v9645 = vsel %vm1925, %v9642, %v9644
      %v9646 = vrot.slane %v9526, 6
      %v9647 = vrot.slane %v9527, 6
      %v9648 = vsel %vm1925, %v9646, %v9647
      %v9649 = vrot.slane %v9528, 6
      %v9650 = vsel %vm1925, %v9647, %v9649
      %v9651 = vrot.slane %v9529, 6
      %v9652 = vrot.slane %v9530, 6
      %v9653 = vsel %vm1925, %v9651, %v9652
      %v9654 = vrot.slane %v9531, 6
      %v9655 = vsel %vm1925, %v9652, %v9654
      %v9656 = vrot.slane %v9532, 6
      %v9657 = vrot.slane %v9533, 6
      %v9658 = vsel %vm1925, %v9656, %v9657
      %v9659 = vrot.slane %v9534, 6
      %v9660 = vsel %vm1925, %v9657, %v9659
      %v9661 = vrot.slane %v9535, 6
      %v9662 = vrot.slane %v9536, 6
      %v9663 = vsel %vm1925, %v9661, %v9662
      %v9664 = vrot.slane %v9537, 6
      %v9665 = vsel %vm1925, %v9662, %v9664
      %v9698 = vadd.f32 %v9454, %v9588
      %v9699 = vadd.f32 %v9455, %v9590
      %v9700 = vadd.f32 %v9456, %v9593
      %v9701 = vadd.f32 %v9457, %v9595
      %v9702 = vadd.f32 %v9458, %v9598
      %v9703 = vadd.f32 %v9459, %v9600
      %v9704 = vadd.f32 %v9460, %v9603
      %v9705 = vadd.f32 %v9461, %v9605
      %v9706 = vadd.f32 %v9462, %v9608
      %v9707 = vadd.f32 %v9463, %v9610
      %v9708 = vadd.f32 %v9464, %v9613
      %v9709 = vadd.f32 %v9465, %v9615
      %v9710 = vadd.f32 %v9466, %v9618
      %v9711 = vadd.f32 %v9467, %v9620
      %v9712 = vadd.f32 %v9468, %v9623
      %v9713 = vadd.f32 %v9469, %v9625
      %v9714 = vadd.f32 %v9470, %v9628
      %v9715 = vadd.f32 %v9471, %v9630
      %v9716 = vadd.f32 %v9472, %v9633
      %v9717 = vadd.f32 %v9473, %v9635
      %v9718 = vadd.f32 %v9474, %v9638
      %v9719 = vadd.f32 %v9475, %v9640
      %v9720 = vadd.f32 %v9476, %v9643
      %v9721 = vadd.f32 %v9477, %v9645
      %v9722 = vadd.f32 %v9478, %v9648
      %v9723 = vadd.f32 %v9479, %v9650
      %v9724 = vadd.f32 %v9480, %v9653
      %v9725 = vadd.f32 %v9481, %v9655
      %v9726 = vadd.f32 %v9482, %v9658
      %v9727 = vadd.f32 %v9483, %v9660
      %v9728 = vadd.f32 %v9484, %v9663
      %v9729 = vadd.f32 %v9485, %v9665
      %v9730 = vlaneseq
      %v9731 = vshrl.u32 %v9730, 7
      %v9732 = vsub.s32 0, %v9731
      %v9733 = vrot.slane %v531, %v9732
      %v9734 = vmul.f32 %v477, %v9733
      %v9735 = vmul.f32 %v478, %v9733
      %v9736 = vmul.f32 %v480, %v9733
      %v9737 = vmul.f32 %v481, %v9733
      %v9738 = vmul.f32 %v483, %v9733
      %v9739 = vmul.f32 %v484, %v9733
      %v9740 = vmul.f32 %v486, %v9733
      %v9741 = vmul.f32 %v487, %v9733
      %v9742 = vmul.f32 %v489, %v9733
      %v9743 = vmul.f32 %v490, %v9733
      %v9744 = vmul.f32 %v492, %v9733
      %v9745 = vmul.f32 %v493, %v9733
      %v9746 = vmul.f32 %v495, %v9733
      %v9747 = vmul.f32 %v496, %v9733
      %v9748 = vmul.f32 %v498, %v9733
      %v9749 = vmul.f32 %v499, %v9733
      %v9750 = vmul.f32 %v501, %v9733
      %v9751 = vmul.f32 %v502, %v9733
      %v9752 = vmul.f32 %v504, %v9733
      %v9753 = vmul.f32 %v505, %v9733
      %v9754 = vmul.f32 %v507, %v9733
      %v9755 = vmul.f32 %v508, %v9733
      %v9756 = vmul.f32 %v510, %v9733
      %v9757 = vmul.f32 %v511, %v9733
      %v9758 = vmul.f32 %v513, %v9733
      %v9759 = vmul.f32 %v514, %v9733
      %v9760 = vmul.f32 %v516, %v9733
      %v9761 = vmul.f32 %v517, %v9733
      %v9762 = vmul.f32 %v519, %v9733
      %v9763 = vmul.f32 %v520, %v9733
      %v9764 = vmul.f32 %v522, %v9733
      %v9765 = vmul.f32 %v523, %v9733
      %v9766 = vadd.f32 %v9698, %v9734
      %v9767 = vadd.f32 %v9699, %v9735
      %v9768 = vadd.f32 %v9700, %v9736
      %v9769 = vadd.f32 %v9701, %v9737
      %v9770 = vadd.f32 %v9702, %v9738
      %v9771 = vadd.f32 %v9703, %v9739
      %v9772 = vadd.f32 %v9704, %v9740
      %v9773 = vadd.f32 %v9705, %v9741
      %v9774 = vadd.f32 %v9706, %v9742
      %v9775 = vadd.f32 %v9707, %v9743
      %v9776 = vadd.f32 %v9708, %v9744
      %v9777 = vadd.f32 %v9709, %v9745
      %v9778 = vadd.f32 %v9710, %v9746
      %v9779 = vadd.f32 %v9711, %v9747
      %v9780 = vadd.f32 %v9712, %v9748
      %v9781 = vadd.f32 %v9713, %v9749
      %v9782 = vadd.f32 %v9714, %v9750
      %v9783 = vadd.f32 %v9715, %v9751
      %v9784 = vadd.f32 %v9716, %v9752
      %v9785 = vadd.f32 %v9717, %v9753
      %v9786 = vadd.f32 %v9718, %v9754
      %v9787 = vadd.f32 %v9719, %v9755
      %v9788 = vadd.f32 %v9720, %v9756
      %v9789 = vadd.f32 %v9721, %v9757
      %v9790 = vadd.f32 %v9722, %v9758
      %v9791 = vadd.f32 %v9723, %v9759
      %v9792 = vadd.f32 %v9724, %v9760
      %v9793 = vadd.f32 %v9725, %v9761
      %v9794 = vadd.f32 %v9726, %v9762
      %v9795 = vadd.f32 %v9727, %v9763
      %v9796 = vadd.f32 %v9728, %v9764
      %v9797 = vadd.f32 %v9729, %v9765
      %v9798 = vlaneseq
      %v9799 = vshrl.u32 %v9798, 7
      %v9800 = vsub.s32 1, %v9799
      %v9801 = vrot.slane %v531, %v9800
      %v9802 = vmul.f32 %v477, %v9801
      %v9803 = vmul.f32 %v478, %v9801
      %v9804 = vmul.f32 %v479, %v9801
      %v9805 = vmul.f32 %v480, %v9801
      %v9806 = vmul.f32 %v481, %v9801
      %v9807 = vmul.f32 %v482, %v9801
      %v9808 = vmul.f32 %v483, %v9801
      %v9809 = vmul.f32 %v484, %v9801
      %v9810 = vmul.f32 %v485, %v9801
      %v9811 = vmul.f32 %v486, %v9801
      %v9812 = vmul.f32 %v487, %v9801
      %v9813 = vmul.f32 %v488, %v9801
      %v9814 = vmul.f32 %v489, %v9801
      %v9815 = vmul.f32 %v490, %v9801
      %v9816 = vmul.f32 %v491, %v9801
      %v9817 = vmul.f32 %v492, %v9801
      %v9818 = vmul.f32 %v493, %v9801
      %v9819 = vmul.f32 %v494, %v9801
      %v9820 = vmul.f32 %v495, %v9801
      %v9821 = vmul.f32 %v496, %v9801
      %v9822 = vmul.f32 %v497, %v9801
      %v9823 = vmul.f32 %v498, %v9801
      %v9824 = vmul.f32 %v499, %v9801
      %v9825 = vmul.f32 %v500, %v9801
      %v9826 = vmul.f32 %v501, %v9801
      %v9827 = vmul.f32 %v502, %v9801
      %v9828 = vmul.f32 %v503, %v9801
      %v9829 = vmul.f32 %v504, %v9801
      %v9830 = vmul.f32 %v505, %v9801
      %v9831 = vmul.f32 %v506, %v9801
      %v9832 = vmul.f32 %v507, %v9801
      %v9833 = vmul.f32 %v508, %v9801
      %v9834 = vmul.f32 %v509, %v9801
      %v9835 = vmul.f32 %v510, %v9801
      %v9836 = vmul.f32 %v511, %v9801
      %v9837 = vmul.f32 %v512, %v9801
      %v9838 = vmul.f32 %v513, %v9801
      %v9839 = vmul.f32 %v514, %v9801
      %v9840 = vmul.f32 %v515, %v9801
      %v9841 = vmul.f32 %v516, %v9801
      %v9842 = vmul.f32 %v517, %v9801
      %v9843 = vmul.f32 %v518, %v9801
      %v9844 = vmul.f32 %v519, %v9801
      %v9845 = vmul.f32 %v520, %v9801
      %v9846 = vmul.f32 %v521, %v9801
      %v9847 = vmul.f32 %v522, %v9801
      %v9848 = vmul.f32 %v523, %v9801
      %v9849 = vmul.f32 %v524, %v9801
      %v9898 = vrot.slane %v9802, 1
      %v9899 = vrot.slane %v9803, 1
      %v9900 = vsel %vm700, %v9898, %v9899
      %v9901 = vrot.slane %v9804, 1
      %v9902 = vsel %vm700, %v9899, %v9901
      %v9903 = vrot.slane %v9805, 1
      %v9904 = vrot.slane %v9806, 1
      %v9905 = vsel %vm700, %v9903, %v9904
      %v9906 = vrot.slane %v9807, 1
      %v9907 = vsel %vm700, %v9904, %v9906
      %v9908 = vrot.slane %v9808, 1
      %v9909 = vrot.slane %v9809, 1
      %v9910 = vsel %vm700, %v9908, %v9909
      %v9911 = vrot.slane %v9810, 1
      %v9912 = vsel %vm700, %v9909, %v9911
      %v9913 = vrot.slane %v9811, 1
      %v9914 = vrot.slane %v9812, 1
      %v9915 = vsel %vm700, %v9913, %v9914
      %v9916 = vrot.slane %v9813, 1
      %v9917 = vsel %vm700, %v9914, %v9916
      %v9918 = vrot.slane %v9814, 1
      %v9919 = vrot.slane %v9815, 1
      %v9920 = vsel %vm700, %v9918, %v9919
      %v9921 = vrot.slane %v9816, 1
      %v9922 = vsel %vm700, %v9919, %v9921
      %v9923 = vrot.slane %v9817, 1
      %v9924 = vrot.slane %v9818, 1
      %v9925 = vsel %vm700, %v9923, %v9924
      %v9926 = vrot.slane %v9819, 1
      %v9927 = vsel %vm700, %v9924, %v9926
      %v9928 = vrot.slane %v9820, 1
      %v9929 = vrot.slane %v9821, 1
      %v9930 = vsel %vm700, %v9928, %v9929
      %v9931 = vrot.slane %v9822, 1
      %v9932 = vsel %vm700, %v9929, %v9931
      %v9933 = vrot.slane %v9823, 1
      %v9934 = vrot.slane %v9824, 1
      %v9935 = vsel %vm700, %v9933, %v9934
      %v9936 = vrot.slane %v9825, 1
      %v9937 = vsel %vm700, %v9934, %v9936
      %v9938 = vrot.slane %v9826, 1
      %v9939 = vrot.slane %v9827, 1
      %v9940 = vsel %vm700, %v9938, %v9939
      %v9941 = vrot.slane %v9828, 1
      %v9942 = vsel %vm700, %v9939, %v9941
      %v9943 = vrot.slane %v9829, 1
      %v9944 = vrot.slane %v9830, 1
      %v9945 = vsel %vm700, %v9943, %v9944
      %v9946 = vrot.slane %v9831, 1
      %v9947 = vsel %vm700, %v9944, %v9946
      %v9948 = vrot.slane %v9832, 1
      %v9949 = vrot.slane %v9833, 1
      %v9950 = vsel %vm700, %v9948, %v9949
      %v9951 = vrot.slane %v9834, 1
      %v9952 = vsel %vm700, %v9949, %v9951
      %v9953 = vrot.slane %v9835, 1
      %v9954 = vrot.slane %v9836, 1
      %v9955 = vsel %vm700, %v9953, %v9954
      %v9956 = vrot.slane %v9837, 1
      %v9957 = vsel %vm700, %v9954, %v9956
      %v9958 = vrot.slane %v9838, 1
      %v9959 = vrot.slane %v9839, 1
      %v9960 = vsel %vm700, %v9958, %v9959
      %v9961 = vrot.slane %v9840, 1
      %v9962 = vsel %vm700, %v9959, %v9961
      %v9963 = vrot.slane %v9841, 1
      %v9964 = vrot.slane %v9842, 1
      %v9965 = vsel %vm700, %v9963, %v9964
      %v9966 = vrot.slane %v9843, 1
      %v9967 = vsel %vm700, %v9964, %v9966
      %v9968 = vrot.slane %v9844, 1
      %v9969 = vrot.slane %v9845, 1
      %v9970 = vsel %vm700, %v9968, %v9969
      %v9971 = vrot.slane %v9846, 1
      %v9972 = vsel %vm700, %v9969, %v9971
      %v9973 = vrot.slane %v9847, 1
      %v9974 = vrot.slane %v9848, 1
      %v9975 = vsel %vm700, %v9973, %v9974
      %v9976 = vrot.slane %v9849, 1
      %v9977 = vsel %vm700, %v9974, %v9976
      %v10010 = vadd.f32 %v9766, %v9900
      %v10011 = vadd.f32 %v9767, %v9902
      %v10012 = vadd.f32 %v9768, %v9905
      %v10013 = vadd.f32 %v9769, %v9907
      %v10014 = vadd.f32 %v9770, %v9910
      %v10015 = vadd.f32 %v9771, %v9912
      %v10016 = vadd.f32 %v9772, %v9915
      %v10017 = vadd.f32 %v9773, %v9917
      %v10018 = vadd.f32 %v9774, %v9920
      %v10019 = vadd.f32 %v9775, %v9922
      %v10020 = vadd.f32 %v9776, %v9925
      %v10021 = vadd.f32 %v9777, %v9927
      %v10022 = vadd.f32 %v9778, %v9930
      %v10023 = vadd.f32 %v9779, %v9932
      %v10024 = vadd.f32 %v9780, %v9935
      %v10025 = vadd.f32 %v9781, %v9937
      %v10026 = vadd.f32 %v9782, %v9940
      %v10027 = vadd.f32 %v9783, %v9942
      %v10028 = vadd.f32 %v9784, %v9945
      %v10029 = vadd.f32 %v9785, %v9947
      %v10030 = vadd.f32 %v9786, %v9950
      %v10031 = vadd.f32 %v9787, %v9952
      %v10032 = vadd.f32 %v9788, %v9955
      %v10033 = vadd.f32 %v9789, %v9957
      %v10034 = vadd.f32 %v9790, %v9960
      %v10035 = vadd.f32 %v9791, %v9962
      %v10036 = vadd.f32 %v9792, %v9965
      %v10037 = vadd.f32 %v9793, %v9967
      %v10038 = vadd.f32 %v9794, %v9970
      %v10039 = vadd.f32 %v9795, %v9972
      %v10040 = vadd.f32 %v9796, %v9975
      %v10041 = vadd.f32 %v9797, %v9977
      %v10042 = vlaneseq
      %v10043 = vshrl.u32 %v10042, 7
      %v10044 = vsub.s32 2, %v10043
      %v10045 = vrot.slane %v531, %v10044
      %v10046 = vmul.f32 %v477, %v10045
      %v10047 = vmul.f32 %v478, %v10045
      %v10048 = vmul.f32 %v479, %v10045
      %v10049 = vmul.f32 %v480, %v10045
      %v10050 = vmul.f32 %v481, %v10045
      %v10051 = vmul.f32 %v482, %v10045
      %v10052 = vmul.f32 %v483, %v10045
      %v10053 = vmul.f32 %v484, %v10045
      %v10054 = vmul.f32 %v485, %v10045
      %v10055 = vmul.f32 %v486, %v10045
      %v10056 = vmul.f32 %v487, %v10045
      %v10057 = vmul.f32 %v488, %v10045
      %v10058 = vmul.f32 %v489, %v10045
      %v10059 = vmul.f32 %v490, %v10045
      %v10060 = vmul.f32 %v491, %v10045
      %v10061 = vmul.f32 %v492, %v10045
      %v10062 = vmul.f32 %v493, %v10045
      %v10063 = vmul.f32 %v494, %v10045
      %v10064 = vmul.f32 %v495, %v10045
      %v10065 = vmul.f32 %v496, %v10045
      %v10066 = vmul.f32 %v497, %v10045
      %v10067 = vmul.f32 %v498, %v10045
      %v10068 = vmul.f32 %v499, %v10045
      %v10069 = vmul.f32 %v500, %v10045
      %v10070 = vmul.f32 %v501, %v10045
      %v10071 = vmul.f32 %v502, %v10045
      %v10072 = vmul.f32 %v503, %v10045
      %v10073 = vmul.f32 %v504, %v10045
      %v10074 = vmul.f32 %v505, %v10045
      %v10075 = vmul.f32 %v506, %v10045
      %v10076 = vmul.f32 %v507, %v10045
      %v10077 = vmul.f32 %v508, %v10045
      %v10078 = vmul.f32 %v509, %v10045
      %v10079 = vmul.f32 %v510, %v10045
      %v10080 = vmul.f32 %v511, %v10045
      %v10081 = vmul.f32 %v512, %v10045
      %v10082 = vmul.f32 %v513, %v10045
      %v10083 = vmul.f32 %v514, %v10045
      %v10084 = vmul.f32 %v515, %v10045
      %v10085 = vmul.f32 %v516, %v10045
      %v10086 = vmul.f32 %v517, %v10045
      %v10087 = vmul.f32 %v518, %v10045
      %v10088 = vmul.f32 %v519, %v10045
      %v10089 = vmul.f32 %v520, %v10045
      %v10090 = vmul.f32 %v521, %v10045
      %v10091 = vmul.f32 %v522, %v10045
      %v10092 = vmul.f32 %v523, %v10045
      %v10093 = vmul.f32 %v524, %v10045
      %v10142 = vrot.slane %v10046, 2
      %v10143 = vrot.slane %v10047, 2
      %v10144 = vsel %vm945, %v10142, %v10143
      %v10145 = vrot.slane %v10048, 2
      %v10146 = vsel %vm945, %v10143, %v10145
      %v10147 = vrot.slane %v10049, 2
      %v10148 = vrot.slane %v10050, 2
      %v10149 = vsel %vm945, %v10147, %v10148
      %v10150 = vrot.slane %v10051, 2
      %v10151 = vsel %vm945, %v10148, %v10150
      %v10152 = vrot.slane %v10052, 2
      %v10153 = vrot.slane %v10053, 2
      %v10154 = vsel %vm945, %v10152, %v10153
      %v10155 = vrot.slane %v10054, 2
      %v10156 = vsel %vm945, %v10153, %v10155
      %v10157 = vrot.slane %v10055, 2
      %v10158 = vrot.slane %v10056, 2
      %v10159 = vsel %vm945, %v10157, %v10158
      %v10160 = vrot.slane %v10057, 2
      %v10161 = vsel %vm945, %v10158, %v10160
      %v10162 = vrot.slane %v10058, 2
      %v10163 = vrot.slane %v10059, 2
      %v10164 = vsel %vm945, %v10162, %v10163
      %v10165 = vrot.slane %v10060, 2
      %v10166 = vsel %vm945, %v10163, %v10165
      %v10167 = vrot.slane %v10061, 2
      %v10168 = vrot.slane %v10062, 2
      %v10169 = vsel %vm945, %v10167, %v10168
      %v10170 = vrot.slane %v10063, 2
      %v10171 = vsel %vm945, %v10168, %v10170
      %v10172 = vrot.slane %v10064, 2
      %v10173 = vrot.slane %v10065, 2
      %v10174 = vsel %vm945, %v10172, %v10173
      %v10175 = vrot.slane %v10066, 2
      %v10176 = vsel %vm945, %v10173, %v10175
      %v10177 = vrot.slane %v10067, 2
      %v10178 = vrot.slane %v10068, 2
      %v10179 = vsel %vm945, %v10177, %v10178
      %v10180 = vrot.slane %v10069, 2
      %v10181 = vsel %vm945, %v10178, %v10180
      %v10182 = vrot.slane %v10070, 2
      %v10183 = vrot.slane %v10071, 2
      %v10184 = vsel %vm945, %v10182, %v10183
      %v10185 = vrot.slane %v10072, 2
      %v10186 = vsel %vm945, %v10183, %v10185
      %v10187 = vrot.slane %v10073, 2
      %v10188 = vrot.slane %v10074, 2
      %v10189 = vsel %vm945, %v10187, %v10188
      %v10190 = vrot.slane %v10075, 2
      %v10191 = vsel %vm945, %v10188, %v10190
      %v10192 = vrot.slane %v10076, 2
      %v10193 = vrot.slane %v10077, 2
      %v10194 = vsel %vm945, %v10192, %v10193
      %v10195 = vrot.slane %v10078, 2
      %v10196 = vsel %vm945, %v10193, %v10195
      %v10197 = vrot.slane %v10079, 2
      %v10198 = vrot.slane %v10080, 2
      %v10199 = vsel %vm945, %v10197, %v10198
      %v10200 = vrot.slane %v10081, 2
      %v10201 = vsel %vm945, %v10198, %v10200
      %v10202 = vrot.slane %v10082, 2
      %v10203 = vrot.slane %v10083, 2
      %v10204 = vsel %vm945, %v10202, %v10203
      %v10205 = vrot.slane %v10084, 2
      %v10206 = vsel %vm945, %v10203, %v10205
      %v10207 = vrot.slane %v10085, 2
      %v10208 = vrot.slane %v10086, 2
      %v10209 = vsel %vm945, %v10207, %v10208
      %v10210 = vrot.slane %v10087, 2
      %v10211 = vsel %vm945, %v10208, %v10210
      %v10212 = vrot.slane %v10088, 2
      %v10213 = vrot.slane %v10089, 2
      %v10214 = vsel %vm945, %v10212, %v10213
      %v10215 = vrot.slane %v10090, 2
      %v10216 = vsel %vm945, %v10213, %v10215
      %v10217 = vrot.slane %v10091, 2
      %v10218 = vrot.slane %v10092, 2
      %v10219 = vsel %vm945, %v10217, %v10218
      %v10220 = vrot.slane %v10093, 2
      %v10221 = vsel %vm945, %v10218, %v10220
      %v10254 = vadd.f32 %v10010, %v10144
      %v10255 = vadd.f32 %v10011, %v10146
      %v10256 = vadd.f32 %v10012, %v10149
      %v10257 = vadd.f32 %v10013, %v10151
      %v10258 = vadd.f32 %v10014, %v10154
      %v10259 = vadd.f32 %v10015, %v10156
      %v10260 = vadd.f32 %v10016, %v10159
      %v10261 = vadd.f32 %v10017, %v10161
      %v10262 = vadd.f32 %v10018, %v10164
      %v10263 = vadd.f32 %v10019, %v10166
      %v10264 = vadd.f32 %v10020, %v10169
      %v10265 = vadd.f32 %v10021, %v10171
      %v10266 = vadd.f32 %v10022, %v10174
      %v10267 = vadd.f32 %v10023, %v10176
      %v10268 = vadd.f32 %v10024, %v10179
      %v10269 = vadd.f32 %v10025, %v10181
      %v10270 = vadd.f32 %v10026, %v10184
      %v10271 = vadd.f32 %v10027, %v10186
      %v10272 = vadd.f32 %v10028, %v10189
      %v10273 = vadd.f32 %v10029, %v10191
      %v10274 = vadd.f32 %v10030, %v10194
      %v10275 = vadd.f32 %v10031, %v10196
      %v10276 = vadd.f32 %v10032, %v10199
      %v10277 = vadd.f32 %v10033, %v10201
      %v10278 = vadd.f32 %v10034, %v10204
      %v10279 = vadd.f32 %v10035, %v10206
      %v10280 = vadd.f32 %v10036, %v10209
      %v10281 = vadd.f32 %v10037, %v10211
      %v10282 = vadd.f32 %v10038, %v10214
      %v10283 = vadd.f32 %v10039, %v10216
      %v10284 = vadd.f32 %v10040, %v10219
      %v10285 = vadd.f32 %v10041, %v10221
      %v10286 = vlaneseq
      %v10287 = vshrl.u32 %v10286, 7
      %v10288 = vsub.s32 3, %v10287
      %v10289 = vrot.slane %v531, %v10288
      %v10290 = vmul.f32 %v477, %v10289
      %v10291 = vmul.f32 %v478, %v10289
      %v10292 = vmul.f32 %v479, %v10289
      %v10293 = vmul.f32 %v480, %v10289
      %v10294 = vmul.f32 %v481, %v10289
      %v10295 = vmul.f32 %v482, %v10289
      %v10296 = vmul.f32 %v483, %v10289
      %v10297 = vmul.f32 %v484, %v10289
      %v10298 = vmul.f32 %v485, %v10289
      %v10299 = vmul.f32 %v486, %v10289
      %v10300 = vmul.f32 %v487, %v10289
      %v10301 = vmul.f32 %v488, %v10289
      %v10302 = vmul.f32 %v489, %v10289
      %v10303 = vmul.f32 %v490, %v10289
      %v10304 = vmul.f32 %v491, %v10289
      %v10305 = vmul.f32 %v492, %v10289
      %v10306 = vmul.f32 %v493, %v10289
      %v10307 = vmul.f32 %v494, %v10289
      %v10308 = vmul.f32 %v495, %v10289
      %v10309 = vmul.f32 %v496, %v10289
      %v10310 = vmul.f32 %v497, %v10289
      %v10311 = vmul.f32 %v498, %v10289
      %v10312 = vmul.f32 %v499, %v10289
      %v10313 = vmul.f32 %v500, %v10289
      %v10314 = vmul.f32 %v501, %v10289
      %v10315 = vmul.f32 %v502, %v10289
      %v10316 = vmul.f32 %v503, %v10289
      %v10317 = vmul.f32 %v504, %v10289
      %v10318 = vmul.f32 %v505, %v10289
      %v10319 = vmul.f32 %v506, %v10289
      %v10320 = vmul.f32 %v507, %v10289
      %v10321 = vmul.f32 %v508, %v10289
      %v10322 = vmul.f32 %v509, %v10289
      %v10323 = vmul.f32 %v510, %v10289
      %v10324 = vmul.f32 %v511, %v10289
      %v10325 = vmul.f32 %v512, %v10289
      %v10326 = vmul.f32 %v513, %v10289
      %v10327 = vmul.f32 %v514, %v10289
      %v10328 = vmul.f32 %v515, %v10289
      %v10329 = vmul.f32 %v516, %v10289
      %v10330 = vmul.f32 %v517, %v10289
      %v10331 = vmul.f32 %v518, %v10289
      %v10332 = vmul.f32 %v519, %v10289
      %v10333 = vmul.f32 %v520, %v10289
      %v10334 = vmul.f32 %v521, %v10289
      %v10335 = vmul.f32 %v522, %v10289
      %v10336 = vmul.f32 %v523, %v10289
      %v10337 = vmul.f32 %v524, %v10289
      %v10386 = vrot.slane %v10290, 3
      %v10387 = vrot.slane %v10291, 3
      %v10388 = vsel %vm1190, %v10386, %v10387
      %v10389 = vrot.slane %v10292, 3
      %v10390 = vsel %vm1190, %v10387, %v10389
      %v10391 = vrot.slane %v10293, 3
      %v10392 = vrot.slane %v10294, 3
      %v10393 = vsel %vm1190, %v10391, %v10392
      %v10394 = vrot.slane %v10295, 3
      %v10395 = vsel %vm1190, %v10392, %v10394
      %v10396 = vrot.slane %v10296, 3
      %v10397 = vrot.slane %v10297, 3
      %v10398 = vsel %vm1190, %v10396, %v10397
      %v10399 = vrot.slane %v10298, 3
      %v10400 = vsel %vm1190, %v10397, %v10399
      %v10401 = vrot.slane %v10299, 3
      %v10402 = vrot.slane %v10300, 3
      %v10403 = vsel %vm1190, %v10401, %v10402
      %v10404 = vrot.slane %v10301, 3
      %v10405 = vsel %vm1190, %v10402, %v10404
      %v10406 = vrot.slane %v10302, 3
      %v10407 = vrot.slane %v10303, 3
      %v10408 = vsel %vm1190, %v10406, %v10407
      %v10409 = vrot.slane %v10304, 3
      %v10410 = vsel %vm1190, %v10407, %v10409
      %v10411 = vrot.slane %v10305, 3
      %v10412 = vrot.slane %v10306, 3
      %v10413 = vsel %vm1190, %v10411, %v10412
      %v10414 = vrot.slane %v10307, 3
      %v10415 = vsel %vm1190, %v10412, %v10414
      %v10416 = vrot.slane %v10308, 3
      %v10417 = vrot.slane %v10309, 3
      %v10418 = vsel %vm1190, %v10416, %v10417
      %v10419 = vrot.slane %v10310, 3
      %v10420 = vsel %vm1190, %v10417, %v10419
      %v10421 = vrot.slane %v10311, 3
      %v10422 = vrot.slane %v10312, 3
      %v10423 = vsel %vm1190, %v10421, %v10422
      %v10424 = vrot.slane %v10313, 3
      %v10425 = vsel %vm1190, %v10422, %v10424
      %v10426 = vrot.slane %v10314, 3
      %v10427 = vrot.slane %v10315, 3
      %v10428 = vsel %vm1190, %v10426, %v10427
      %v10429 = vrot.slane %v10316, 3
      %v10430 = vsel %vm1190, %v10427, %v10429
      %v10431 = vrot.slane %v10317, 3
      %v10432 = vrot.slane %v10318, 3
      %v10433 = vsel %vm1190, %v10431, %v10432
      %v10434 = vrot.slane %v10319, 3
      %v10435 = vsel %vm1190, %v10432, %v10434
      %v10436 = vrot.slane %v10320, 3
      %v10437 = vrot.slane %v10321, 3
      %v10438 = vsel %vm1190, %v10436, %v10437
      %v10439 = vrot.slane %v10322, 3
      %v10440 = vsel %vm1190, %v10437, %v10439
      %v10441 = vrot.slane %v10323, 3
      %v10442 = vrot.slane %v10324, 3
      %v10443 = vsel %vm1190, %v10441, %v10442
      %v10444 = vrot.slane %v10325, 3
      %v10445 = vsel %vm1190, %v10442, %v10444
      %v10446 = vrot.slane %v10326, 3
      %v10447 = vrot.slane %v10327, 3
      %v10448 = vsel %vm1190, %v10446, %v10447
      %v10449 = vrot.slane %v10328, 3
      %v10450 = vsel %vm1190, %v10447, %v10449
      %v10451 = vrot.slane %v10329, 3
      %v10452 = vrot.slane %v10330, 3
      %v10453 = vsel %vm1190, %v10451, %v10452
      %v10454 = vrot.slane %v10331, 3
      %v10455 = vsel %vm1190, %v10452, %v10454
      %v10456 = vrot.slane %v10332, 3
      %v10457 = vrot.slane %v10333, 3
      %v10458 = vsel %vm1190, %v10456, %v10457
      %v10459 = vrot.slane %v10334, 3
      %v10460 = vsel %vm1190, %v10457, %v10459
      %v10461 = vrot.slane %v10335, 3
      %v10462 = vrot.slane %v10336, 3
      %v10463 = vsel %vm1190, %v10461, %v10462
      %v10464 = vrot.slane %v10337, 3
      %v10465 = vsel %vm1190, %v10462, %v10464
      %v10498 = vadd.f32 %v10254, %v10388
      %v10499 = vadd.f32 %v10255, %v10390
      %v10500 = vadd.f32 %v10256, %v10393
      %v10501 = vadd.f32 %v10257, %v10395
      %v10502 = vadd.f32 %v10258, %v10398
      %v10503 = vadd.f32 %v10259, %v10400
      %v10504 = vadd.f32 %v10260, %v10403
      %v10505 = vadd.f32 %v10261, %v10405
      %v10506 = vadd.f32 %v10262, %v10408
      %v10507 = vadd.f32 %v10263, %v10410
      %v10508 = vadd.f32 %v10264, %v10413
      %v10509 = vadd.f32 %v10265, %v10415
      %v10510 = vadd.f32 %v10266, %v10418
      %v10511 = vadd.f32 %v10267, %v10420
      %v10512 = vadd.f32 %v10268, %v10423
      %v10513 = vadd.f32 %v10269, %v10425
      %v10514 = vadd.f32 %v10270, %v10428
      %v10515 = vadd.f32 %v10271, %v10430
      %v10516 = vadd.f32 %v10272, %v10433
      %v10517 = vadd.f32 %v10273, %v10435
      %v10518 = vadd.f32 %v10274, %v10438
      %v10519 = vadd.f32 %v10275, %v10440
      %v10520 = vadd.f32 %v10276, %v10443
      %v10521 = vadd.f32 %v10277, %v10445
      %v10522 = vadd.f32 %v10278, %v10448
      %v10523 = vadd.f32 %v10279, %v10450
      %v10524 = vadd.f32 %v10280, %v10453
      %v10525 = vadd.f32 %v10281, %v10455
      %v10526 = vadd.f32 %v10282, %v10458
      %v10527 = vadd.f32 %v10283, %v10460
      %v10528 = vadd.f32 %v10284, %v10463
      %v10529 = vadd.f32 %v10285, %v10465
      %v10530 = vlaneseq
      %v10531 = vshrl.u32 %v10530, 7
      %v10532 = vsub.s32 4, %v10531
      %v10533 = vrot.slane %v531, %v10532
      %v10534 = vmul.f32 %v477, %v10533
      %v10535 = vmul.f32 %v478, %v10533
      %v10536 = vmul.f32 %v479, %v10533
      %v10537 = vmul.f32 %v480, %v10533
      %v10538 = vmul.f32 %v481, %v10533
      %v10539 = vmul.f32 %v482, %v10533
      %v10540 = vmul.f32 %v483, %v10533
      %v10541 = vmul.f32 %v484, %v10533
      %v10542 = vmul.f32 %v485, %v10533
      %v10543 = vmul.f32 %v486, %v10533
      %v10544 = vmul.f32 %v487, %v10533
      %v10545 = vmul.f32 %v488, %v10533
      %v10546 = vmul.f32 %v489, %v10533
      %v10547 = vmul.f32 %v490, %v10533
      %v10548 = vmul.f32 %v491, %v10533
      %v10549 = vmul.f32 %v492, %v10533
      %v10550 = vmul.f32 %v493, %v10533
      %v10551 = vmul.f32 %v494, %v10533
      %v10552 = vmul.f32 %v495, %v10533
      %v10553 = vmul.f32 %v496, %v10533
      %v10554 = vmul.f32 %v497, %v10533
      %v10555 = vmul.f32 %v498, %v10533
      %v10556 = vmul.f32 %v499, %v10533
      %v10557 = vmul.f32 %v500, %v10533
      %v10558 = vmul.f32 %v501, %v10533
      %v10559 = vmul.f32 %v502, %v10533
      %v10560 = vmul.f32 %v503, %v10533
      %v10561 = vmul.f32 %v504, %v10533
      %v10562 = vmul.f32 %v505, %v10533
      %v10563 = vmul.f32 %v506, %v10533
      %v10564 = vmul.f32 %v507, %v10533
      %v10565 = vmul.f32 %v508, %v10533
      %v10566 = vmul.f32 %v509, %v10533
      %v10567 = vmul.f32 %v510, %v10533
      %v10568 = vmul.f32 %v511, %v10533
      %v10569 = vmul.f32 %v512, %v10533
      %v10570 = vmul.f32 %v513, %v10533
      %v10571 = vmul.f32 %v514, %v10533
      %v10572 = vmul.f32 %v515, %v10533
      %v10573 = vmul.f32 %v516, %v10533
      %v10574 = vmul.f32 %v517, %v10533
      %v10575 = vmul.f32 %v518, %v10533
      %v10576 = vmul.f32 %v519, %v10533
      %v10577 = vmul.f32 %v520, %v10533
      %v10578 = vmul.f32 %v521, %v10533
      %v10579 = vmul.f32 %v522, %v10533
      %v10580 = vmul.f32 %v523, %v10533
      %v10581 = vmul.f32 %v524, %v10533
      %v10630 = vrot.slane %v10534, 4
      %v10631 = vrot.slane %v10535, 4
      %v10632 = vsel %vm1435, %v10630, %v10631
      %v10633 = vrot.slane %v10536, 4
      %v10634 = vsel %vm1435, %v10631, %v10633
      %v10635 = vrot.slane %v10537, 4
      %v10636 = vrot.slane %v10538, 4
      %v10637 = vsel %vm1435, %v10635, %v10636
      %v10638 = vrot.slane %v10539, 4
      %v10639 = vsel %vm1435, %v10636, %v10638
      %v10640 = vrot.slane %v10540, 4
      %v10641 = vrot.slane %v10541, 4
      %v10642 = vsel %vm1435, %v10640, %v10641
      %v10643 = vrot.slane %v10542, 4
      %v10644 = vsel %vm1435, %v10641, %v10643
      %v10645 = vrot.slane %v10543, 4
      %v10646 = vrot.slane %v10544, 4
      %v10647 = vsel %vm1435, %v10645, %v10646
      %v10648 = vrot.slane %v10545, 4
      %v10649 = vsel %vm1435, %v10646, %v10648
      %v10650 = vrot.slane %v10546, 4
      %v10651 = vrot.slane %v10547, 4
      %v10652 = vsel %vm1435, %v10650, %v10651
      %v10653 = vrot.slane %v10548, 4
      %v10654 = vsel %vm1435, %v10651, %v10653
      %v10655 = vrot.slane %v10549, 4
      %v10656 = vrot.slane %v10550, 4
      %v10657 = vsel %vm1435, %v10655, %v10656
      %v10658 = vrot.slane %v10551, 4
      %v10659 = vsel %vm1435, %v10656, %v10658
      %v10660 = vrot.slane %v10552, 4
      %v10661 = vrot.slane %v10553, 4
      %v10662 = vsel %vm1435, %v10660, %v10661
      %v10663 = vrot.slane %v10554, 4
      %v10664 = vsel %vm1435, %v10661, %v10663
      %v10665 = vrot.slane %v10555, 4
      %v10666 = vrot.slane %v10556, 4
      %v10667 = vsel %vm1435, %v10665, %v10666
      %v10668 = vrot.slane %v10557, 4
      %v10669 = vsel %vm1435, %v10666, %v10668
      %v10670 = vrot.slane %v10558, 4
      %v10671 = vrot.slane %v10559, 4
      %v10672 = vsel %vm1435, %v10670, %v10671
      %v10673 = vrot.slane %v10560, 4
      %v10674 = vsel %vm1435, %v10671, %v10673
      %v10675 = vrot.slane %v10561, 4
      %v10676 = vrot.slane %v10562, 4
      %v10677 = vsel %vm1435, %v10675, %v10676
      %v10678 = vrot.slane %v10563, 4
      %v10679 = vsel %vm1435, %v10676, %v10678
      %v10680 = vrot.slane %v10564, 4
      %v10681 = vrot.slane %v10565, 4
      %v10682 = vsel %vm1435, %v10680, %v10681
      %v10683 = vrot.slane %v10566, 4
      %v10684 = vsel %vm1435, %v10681, %v10683
      %v10685 = vrot.slane %v10567, 4
      %v10686 = vrot.slane %v10568, 4
      %v10687 = vsel %vm1435, %v10685, %v10686
      %v10688 = vrot.slane %v10569, 4
      %v10689 = vsel %vm1435, %v10686, %v10688
      %v10690 = vrot.slane %v10570, 4
      %v10691 = vrot.slane %v10571, 4
      %v10692 = vsel %vm1435, %v10690, %v10691
      %v10693 = vrot.slane %v10572, 4
      %v10694 = vsel %vm1435, %v10691, %v10693
      %v10695 = vrot.slane %v10573, 4
      %v10696 = vrot.slane %v10574, 4
      %v10697 = vsel %vm1435, %v10695, %v10696
      %v10698 = vrot.slane %v10575, 4
      %v10699 = vsel %vm1435, %v10696, %v10698
      %v10700 = vrot.slane %v10576, 4
      %v10701 = vrot.slane %v10577, 4
      %v10702 = vsel %vm1435, %v10700, %v10701
      %v10703 = vrot.slane %v10578, 4
      %v10704 = vsel %vm1435, %v10701, %v10703
      %v10705 = vrot.slane %v10579, 4
      %v10706 = vrot.slane %v10580, 4
      %v10707 = vsel %vm1435, %v10705, %v10706
      %v10708 = vrot.slane %v10581, 4
      %v10709 = vsel %vm1435, %v10706, %v10708
      %v10742 = vadd.f32 %v10498, %v10632
      %v10743 = vadd.f32 %v10499, %v10634
      %v10744 = vadd.f32 %v10500, %v10637
      %v10745 = vadd.f32 %v10501, %v10639
      %v10746 = vadd.f32 %v10502, %v10642
      %v10747 = vadd.f32 %v10503, %v10644
      %v10748 = vadd.f32 %v10504, %v10647
      %v10749 = vadd.f32 %v10505, %v10649
      %v10750 = vadd.f32 %v10506, %v10652
      %v10751 = vadd.f32 %v10507, %v10654
      %v10752 = vadd.f32 %v10508, %v10657
      %v10753 = vadd.f32 %v10509, %v10659
      %v10754 = vadd.f32 %v10510, %v10662
      %v10755 = vadd.f32 %v10511, %v10664
      %v10756 = vadd.f32 %v10512, %v10667
      %v10757 = vadd.f32 %v10513, %v10669
      %v10758 = vadd.f32 %v10514, %v10672
      %v10759 = vadd.f32 %v10515, %v10674
      %v10760 = vadd.f32 %v10516, %v10677
      %v10761 = vadd.f32 %v10517, %v10679
      %v10762 = vadd.f32 %v10518, %v10682
      %v10763 = vadd.f32 %v10519, %v10684
      %v10764 = vadd.f32 %v10520, %v10687
      %v10765 = vadd.f32 %v10521, %v10689
      %v10766 = vadd.f32 %v10522, %v10692
      %v10767 = vadd.f32 %v10523, %v10694
      %v10768 = vadd.f32 %v10524, %v10697
      %v10769 = vadd.f32 %v10525, %v10699
      %v10770 = vadd.f32 %v10526, %v10702
      %v10771 = vadd.f32 %v10527, %v10704
      %v10772 = vadd.f32 %v10528, %v10707
      %v10773 = vadd.f32 %v10529, %v10709
      %v10774 = vlaneseq
      %v10775 = vshrl.u32 %v10774, 7
      %v10776 = vsub.s32 5, %v10775
      %v10777 = vrot.slane %v531, %v10776
      %v10778 = vmul.f32 %v477, %v10777
      %v10779 = vmul.f32 %v478, %v10777
      %v10780 = vmul.f32 %v479, %v10777
      %v10781 = vmul.f32 %v480, %v10777
      %v10782 = vmul.f32 %v481, %v10777
      %v10783 = vmul.f32 %v482, %v10777
      %v10784 = vmul.f32 %v483, %v10777
      %v10785 = vmul.f32 %v484, %v10777
      %v10786 = vmul.f32 %v485, %v10777
      %v10787 = vmul.f32 %v486, %v10777
      %v10788 = vmul.f32 %v487, %v10777
      %v10789 = vmul.f32 %v488, %v10777
      %v10790 = vmul.f32 %v489, %v10777
      %v10791 = vmul.f32 %v490, %v10777
      %v10792 = vmul.f32 %v491, %v10777
      %v10793 = vmul.f32 %v492, %v10777
      %v10794 = vmul.f32 %v493, %v10777
      %v10795 = vmul.f32 %v494, %v10777
      %v10796 = vmul.f32 %v495, %v10777
      %v10797 = vmul.f32 %v496, %v10777
      %v10798 = vmul.f32 %v497, %v10777
      %v10799 = vmul.f32 %v498, %v10777
      %v10800 = vmul.f32 %v499, %v10777
      %v10801 = vmul.f32 %v500, %v10777
      %v10802 = vmul.f32 %v501, %v10777
      %v10803 = vmul.f32 %v502, %v10777
      %v10804 = vmul.f32 %v503, %v10777
      %v10805 = vmul.f32 %v504, %v10777
      %v10806 = vmul.f32 %v505, %v10777
      %v10807 = vmul.f32 %v506, %v10777
      %v10808 = vmul.f32 %v507, %v10777
      %v10809 = vmul.f32 %v508, %v10777
      %v10810 = vmul.f32 %v509, %v10777
      %v10811 = vmul.f32 %v510, %v10777
      %v10812 = vmul.f32 %v511, %v10777
      %v10813 = vmul.f32 %v512, %v10777
      %v10814 = vmul.f32 %v513, %v10777
      %v10815 = vmul.f32 %v514, %v10777
      %v10816 = vmul.f32 %v515, %v10777
      %v10817 = vmul.f32 %v516, %v10777
      %v10818 = vmul.f32 %v517, %v10777
      %v10819 = vmul.f32 %v518, %v10777
      %v10820 = vmul.f32 %v519, %v10777
      %v10821 = vmul.f32 %v520, %v10777
      %v10822 = vmul.f32 %v521, %v10777
      %v10823 = vmul.f32 %v522, %v10777
      %v10824 = vmul.f32 %v523, %v10777
      %v10825 = vmul.f32 %v524, %v10777
      %v10874 = vrot.slane %v10778, 5
      %v10875 = vrot.slane %v10779, 5
      %v10876 = vsel %vm1680, %v10874, %v10875
      %v10877 = vrot.slane %v10780, 5
      %v10878 = vsel %vm1680, %v10875, %v10877
      %v10879 = vrot.slane %v10781, 5
      %v10880 = vrot.slane %v10782, 5
      %v10881 = vsel %vm1680, %v10879, %v10880
      %v10882 = vrot.slane %v10783, 5
      %v10883 = vsel %vm1680, %v10880, %v10882
      %v10884 = vrot.slane %v10784, 5
      %v10885 = vrot.slane %v10785, 5
      %v10886 = vsel %vm1680, %v10884, %v10885
      %v10887 = vrot.slane %v10786, 5
      %v10888 = vsel %vm1680, %v10885, %v10887
      %v10889 = vrot.slane %v10787, 5
      %v10890 = vrot.slane %v10788, 5
      %v10891 = vsel %vm1680, %v10889, %v10890
      %v10892 = vrot.slane %v10789, 5
      %v10893 = vsel %vm1680, %v10890, %v10892
      %v10894 = vrot.slane %v10790, 5
      %v10895 = vrot.slane %v10791, 5
      %v10896 = vsel %vm1680, %v10894, %v10895
      %v10897 = vrot.slane %v10792, 5
      %v10898 = vsel %vm1680, %v10895, %v10897
      %v10899 = vrot.slane %v10793, 5
      %v10900 = vrot.slane %v10794, 5
      %v10901 = vsel %vm1680, %v10899, %v10900
      %v10902 = vrot.slane %v10795, 5
      %v10903 = vsel %vm1680, %v10900, %v10902
      %v10904 = vrot.slane %v10796, 5
      %v10905 = vrot.slane %v10797, 5
      %v10906 = vsel %vm1680, %v10904, %v10905
      %v10907 = vrot.slane %v10798, 5
      %v10908 = vsel %vm1680, %v10905, %v10907
      %v10909 = vrot.slane %v10799, 5
      %v10910 = vrot.slane %v10800, 5
      %v10911 = vsel %vm1680, %v10909, %v10910
      %v10912 = vrot.slane %v10801, 5
      %v10913 = vsel %vm1680, %v10910, %v10912
      %v10914 = vrot.slane %v10802, 5
      %v10915 = vrot.slane %v10803, 5
      %v10916 = vsel %vm1680, %v10914, %v10915
      %v10917 = vrot.slane %v10804, 5
      %v10918 = vsel %vm1680, %v10915, %v10917
      %v10919 = vrot.slane %v10805, 5
      %v10920 = vrot.slane %v10806, 5
      %v10921 = vsel %vm1680, %v10919, %v10920
      %v10922 = vrot.slane %v10807, 5
      %v10923 = vsel %vm1680, %v10920, %v10922
      %v10924 = vrot.slane %v10808, 5
      %v10925 = vrot.slane %v10809, 5
      %v10926 = vsel %vm1680, %v10924, %v10925
      %v10927 = vrot.slane %v10810, 5
      %v10928 = vsel %vm1680, %v10925, %v10927
      %v10929 = vrot.slane %v10811, 5
      %v10930 = vrot.slane %v10812, 5
      %v10931 = vsel %vm1680, %v10929, %v10930
      %v10932 = vrot.slane %v10813, 5
      %v10933 = vsel %vm1680, %v10930, %v10932
      %v10934 = vrot.slane %v10814, 5
      %v10935 = vrot.slane %v10815, 5
      %v10936 = vsel %vm1680, %v10934, %v10935
      %v10937 = vrot.slane %v10816, 5
      %v10938 = vsel %vm1680, %v10935, %v10937
      %v10939 = vrot.slane %v10817, 5
      %v10940 = vrot.slane %v10818, 5
      %v10941 = vsel %vm1680, %v10939, %v10940
      %v10942 = vrot.slane %v10819, 5
      %v10943 = vsel %vm1680, %v10940, %v10942
      %v10944 = vrot.slane %v10820, 5
      %v10945 = vrot.slane %v10821, 5
      %v10946 = vsel %vm1680, %v10944, %v10945
      %v10947 = vrot.slane %v10822, 5
      %v10948 = vsel %vm1680, %v10945, %v10947
      %v10949 = vrot.slane %v10823, 5
      %v10950 = vrot.slane %v10824, 5
      %v10951 = vsel %vm1680, %v10949, %v10950
      %v10952 = vrot.slane %v10825, 5
      %v10953 = vsel %vm1680, %v10950, %v10952
      %v10986 = vadd.f32 %v10742, %v10876
      %v10987 = vadd.f32 %v10743, %v10878
      %v10988 = vadd.f32 %v10744, %v10881
      %v10989 = vadd.f32 %v10745, %v10883
      %v10990 = vadd.f32 %v10746, %v10886
      %v10991 = vadd.f32 %v10747, %v10888
      %v10992 = vadd.f32 %v10748, %v10891
      %v10993 = vadd.f32 %v10749, %v10893
      %v10994 = vadd.f32 %v10750, %v10896
      %v10995 = vadd.f32 %v10751, %v10898
      %v10996 = vadd.f32 %v10752, %v10901
      %v10997 = vadd.f32 %v10753, %v10903
      %v10998 = vadd.f32 %v10754, %v10906
      %v10999 = vadd.f32 %v10755, %v10908
      %v11000 = vadd.f32 %v10756, %v10911
      %v11001 = vadd.f32 %v10757, %v10913
      %v11002 = vadd.f32 %v10758, %v10916
      %v11003 = vadd.f32 %v10759, %v10918
      %v11004 = vadd.f32 %v10760, %v10921
      %v11005 = vadd.f32 %v10761, %v10923
      %v11006 = vadd.f32 %v10762, %v10926
      %v11007 = vadd.f32 %v10763, %v10928
      %v11008 = vadd.f32 %v10764, %v10931
      %v11009 = vadd.f32 %v10765, %v10933
      %v11010 = vadd.f32 %v10766, %v10936
      %v11011 = vadd.f32 %v10767, %v10938
      %v11012 = vadd.f32 %v10768, %v10941
      %v11013 = vadd.f32 %v10769, %v10943
      %v11014 = vadd.f32 %v10770, %v10946
      %v11015 = vadd.f32 %v10771, %v10948
      %v11016 = vadd.f32 %v10772, %v10951
      %v11017 = vadd.f32 %v10773, %v10953
      %v11018 = vlaneseq
      %v11019 = vshrl.u32 %v11018, 7
      %v11020 = vsub.s32 6, %v11019
      %v11021 = vrot.slane %v531, %v11020
      %v11022 = vmul.f32 %v477, %v11021
      %v11023 = vmul.f32 %v478, %v11021
      %v11024 = vmul.f32 %v479, %v11021
      %v11025 = vmul.f32 %v480, %v11021
      %v11026 = vmul.f32 %v481, %v11021
      %v11027 = vmul.f32 %v482, %v11021
      %v11028 = vmul.f32 %v483, %v11021
      %v11029 = vmul.f32 %v484, %v11021
      %v11030 = vmul.f32 %v485, %v11021
      %v11031 = vmul.f32 %v486, %v11021
      %v11032 = vmul.f32 %v487, %v11021
      %v11033 = vmul.f32 %v488, %v11021
      %v11034 = vmul.f32 %v489, %v11021
      %v11035 = vmul.f32 %v490, %v11021
      %v11036 = vmul.f32 %v491, %v11021
      %v11037 = vmul.f32 %v492, %v11021
      %v11038 = vmul.f32 %v493, %v11021
      %v11039 = vmul.f32 %v494, %v11021
      %v11040 = vmul.f32 %v495, %v11021
      %v11041 = vmul.f32 %v496, %v11021
      %v11042 = vmul.f32 %v497, %v11021
      %v11043 = vmul.f32 %v498, %v11021
      %v11044 = vmul.f32 %v499, %v11021
      %v11045 = vmul.f32 %v500, %v11021
      %v11046 = vmul.f32 %v501, %v11021
      %v11047 = vmul.f32 %v502, %v11021
      %v11048 = vmul.f32 %v503, %v11021
      %v11049 = vmul.f32 %v504, %v11021
      %v11050 = vmul.f32 %v505, %v11021
      %v11051 = vmul.f32 %v506, %v11021
      %v11052 = vmul.f32 %v507, %v11021
      %v11053 = vmul.f32 %v508, %v11021
      %v11054 = vmul.f32 %v509, %v11021
      %v11055 = vmul.f32 %v510, %v11021
      %v11056 = vmul.f32 %v511, %v11021
      %v11057 = vmul.f32 %v512, %v11021
      %v11058 = vmul.f32 %v513, %v11021
      %v11059 = vmul.f32 %v514, %v11021
      %v11060 = vmul.f32 %v515, %v11021
      %v11061 = vmul.f32 %v516, %v11021
      %v11062 = vmul.f32 %v517, %v11021
      %v11063 = vmul.f32 %v518, %v11021
      %v11064 = vmul.f32 %v519, %v11021
      %v11065 = vmul.f32 %v520, %v11021
      %v11066 = vmul.f32 %v521, %v11021
      %v11067 = vmul.f32 %v522, %v11021
      %v11068 = vmul.f32 %v523, %v11021
      %v11069 = vmul.f32 %v524, %v11021
      %v11118 = vrot.slane %v11022, 6
      %v11119 = vrot.slane %v11023, 6
      %v11120 = vsel %vm1925, %v11118, %v11119
      %v11121 = vrot.slane %v11024, 6
      %v11122 = vsel %vm1925, %v11119, %v11121
      %v11123 = vrot.slane %v11025, 6
      %v11124 = vrot.slane %v11026, 6
      %v11125 = vsel %vm1925, %v11123, %v11124
      %v11126 = vrot.slane %v11027, 6
      %v11127 = vsel %vm1925, %v11124, %v11126
      %v11128 = vrot.slane %v11028, 6
      %v11129 = vrot.slane %v11029, 6
      %v11130 = vsel %vm1925, %v11128, %v11129
      %v11131 = vrot.slane %v11030, 6
      %v11132 = vsel %vm1925, %v11129, %v11131
      %v11133 = vrot.slane %v11031, 6
      %v11134 = vrot.slane %v11032, 6
      %v11135 = vsel %vm1925, %v11133, %v11134
      %v11136 = vrot.slane %v11033, 6
      %v11137 = vsel %vm1925, %v11134, %v11136
      %v11138 = vrot.slane %v11034, 6
      %v11139 = vrot.slane %v11035, 6
      %v11140 = vsel %vm1925, %v11138, %v11139
      %v11141 = vrot.slane %v11036, 6
      %v11142 = vsel %vm1925, %v11139, %v11141
      %v11143 = vrot.slane %v11037, 6
      %v11144 = vrot.slane %v11038, 6
      %v11145 = vsel %vm1925, %v11143, %v11144
      %v11146 = vrot.slane %v11039, 6
      %v11147 = vsel %vm1925, %v11144, %v11146
      %v11148 = vrot.slane %v11040, 6
      %v11149 = vrot.slane %v11041, 6
      %v11150 = vsel %vm1925, %v11148, %v11149
      %v11151 = vrot.slane %v11042, 6
      %v11152 = vsel %vm1925, %v11149, %v11151
      %v11153 = vrot.slane %v11043, 6
      %v11154 = vrot.slane %v11044, 6
      %v11155 = vsel %vm1925, %v11153, %v11154
      %v11156 = vrot.slane %v11045, 6
      %v11157 = vsel %vm1925, %v11154, %v11156
      %v11158 = vrot.slane %v11046, 6
      %v11159 = vrot.slane %v11047, 6
      %v11160 = vsel %vm1925, %v11158, %v11159
      %v11161 = vrot.slane %v11048, 6
      %v11162 = vsel %vm1925, %v11159, %v11161
      %v11163 = vrot.slane %v11049, 6
      %v11164 = vrot.slane %v11050, 6
      %v11165 = vsel %vm1925, %v11163, %v11164
      %v11166 = vrot.slane %v11051, 6
      %v11167 = vsel %vm1925, %v11164, %v11166
      %v11168 = vrot.slane %v11052, 6
      %v11169 = vrot.slane %v11053, 6
      %v11170 = vsel %vm1925, %v11168, %v11169
      %v11171 = vrot.slane %v11054, 6
      %v11172 = vsel %vm1925, %v11169, %v11171
      %v11173 = vrot.slane %v11055, 6
      %v11174 = vrot.slane %v11056, 6
      %v11175 = vsel %vm1925, %v11173, %v11174
      %v11176 = vrot.slane %v11057, 6
      %v11177 = vsel %vm1925, %v11174, %v11176
      %v11178 = vrot.slane %v11058, 6
      %v11179 = vrot.slane %v11059, 6
      %v11180 = vsel %vm1925, %v11178, %v11179
      %v11181 = vrot.slane %v11060, 6
      %v11182 = vsel %vm1925, %v11179, %v11181
      %v11183 = vrot.slane %v11061, 6
      %v11184 = vrot.slane %v11062, 6
      %v11185 = vsel %vm1925, %v11183, %v11184
      %v11186 = vrot.slane %v11063, 6
      %v11187 = vsel %vm1925, %v11184, %v11186
      %v11188 = vrot.slane %v11064, 6
      %v11189 = vrot.slane %v11065, 6
      %v11190 = vsel %vm1925, %v11188, %v11189
      %v11191 = vrot.slane %v11066, 6
      %v11192 = vsel %vm1925, %v11189, %v11191
      %v11193 = vrot.slane %v11067, 6
      %v11194 = vrot.slane %v11068, 6
      %v11195 = vsel %vm1925, %v11193, %v11194
      %v11196 = vrot.slane %v11069, 6
      %v11197 = vsel %vm1925, %v11194, %v11196
      %v11230 = vadd.f32 %v10986, %v11120
      %v11231 = vadd.f32 %v10987, %v11122
      %v11232 = vadd.f32 %v10988, %v11125
      %v11233 = vadd.f32 %v10989, %v11127
      %v11234 = vadd.f32 %v10990, %v11130
      %v11235 = vadd.f32 %v10991, %v11132
      %v11236 = vadd.f32 %v10992, %v11135
      %v11237 = vadd.f32 %v10993, %v11137
      %v11238 = vadd.f32 %v10994, %v11140
      %v11239 = vadd.f32 %v10995, %v11142
      %v11240 = vadd.f32 %v10996, %v11145
      %v11241 = vadd.f32 %v10997, %v11147
      %v11242 = vadd.f32 %v10998, %v11150
      %v11243 = vadd.f32 %v10999, %v11152
      %v11244 = vadd.f32 %v11000, %v11155
      %v11245 = vadd.f32 %v11001, %v11157
      %v11246 = vadd.f32 %v11002, %v11160
      %v11247 = vadd.f32 %v11003, %v11162
      %v11248 = vadd.f32 %v11004, %v11165
      %v11249 = vadd.f32 %v11005, %v11167
      %v11250 = vadd.f32 %v11006, %v11170
      %v11251 = vadd.f32 %v11007, %v11172
      %v11252 = vadd.f32 %v11008, %v11175
      %v11253 = vadd.f32 %v11009, %v11177
      %v11254 = vadd.f32 %v11010, %v11180
      %v11255 = vadd.f32 %v11011, %v11182
      %v11256 = vadd.f32 %v11012, %v11185
      %v11257 = vadd.f32 %v11013, %v11187
      %v11258 = vadd.f32 %v11014, %v11190
      %v11259 = vadd.f32 %v11015, %v11192
      %v11260 = vadd.f32 %v11016, %v11195
      %v11261 = vadd.f32 %v11017, %v11197
      %v11262 = vld [vmem:[%s2] sm:$0x1]
      %v11264 = vlaneseq
      %v11265 = vshrl.u32 %v11264, 7
      %v11266 = vsub.s32 0, %v11265
      %v11267 = vrot.slane %v11262, %v11266
      %v11269 = vmul.f32 %v11230, %v11267
      %v11270 = vmul.f32 %v11231, %v11267
      %v11271 = vmul.f32 %v11232, %v11267
      %v11272 = vmul.f32 %v11233, %v11267
      %v11273 = vmul.f32 %v11234, %v11267
      %v11274 = vmul.f32 %v11235, %v11267
      %v11275 = vmul.f32 %v11236, %v11267
      %v11276 = vmul.f32 %v11237, %v11267
      %v11277 = vmul.f32 %v11238, %v11267
      %v11278 = vmul.f32 %v11239, %v11267
      %v11279 = vmul.f32 %v11240, %v11267
      %v11280 = vmul.f32 %v11241, %v11267
      %v11281 = vmul.f32 %v11242, %v11267
      %v11282 = vmul.f32 %v11243, %v11267
      %v11283 = vmul.f32 %v11244, %v11267
      %v11284 = vmul.f32 %v11245, %v11267
      %v11285 = vmul.f32 %v11246, %v11267
      %v11286 = vmul.f32 %v11247, %v11267
      %v11287 = vmul.f32 %v11248, %v11267
      %v11288 = vmul.f32 %v11249, %v11267
      %v11289 = vmul.f32 %v11250, %v11267
      %v11290 = vmul.f32 %v11251, %v11267
      %v11291 = vmul.f32 %v11252, %v11267
      %v11292 = vmul.f32 %v11253, %v11267
      %v11293 = vmul.f32 %v11254, %v11267
      %v11294 = vmul.f32 %v11255, %v11267
      %v11295 = vmul.f32 %v11256, %v11267
      %v11296 = vmul.f32 %v11257, %v11267
      %v11297 = vmul.f32 %v11258, %v11267
      %v11298 = vmul.f32 %v11259, %v11267
      %v11299 = vmul.f32 %v11260, %v11267
      %v11300 = vmul.f32 %v11261, %v11267
      %v11301 = vld [vmem:[%s3] sm:$0x1]
      %v11303 = vlaneseq
      %v11304 = vshrl.u32 %v11303, 7
      %v11305 = vsub.s32 0, %v11304
      %v11306 = vrot.slane %v11301, %v11305
      %v11308 = vadd.f32 %v11269, %v11306
      %v11309 = vadd.f32 %v11270, %v11306
      %v11310 = vadd.f32 %v11271, %v11306
      %v11311 = vadd.f32 %v11272, %v11306
      %v11312 = vadd.f32 %v11273, %v11306
      %v11313 = vadd.f32 %v11274, %v11306
      %v11314 = vadd.f32 %v11275, %v11306
      %v11315 = vadd.f32 %v11276, %v11306
      %v11316 = vadd.f32 %v11277, %v11306
      %v11317 = vadd.f32 %v11278, %v11306
      %v11318 = vadd.f32 %v11279, %v11306
      %v11319 = vadd.f32 %v11280, %v11306
      %v11320 = vadd.f32 %v11281, %v11306
      %v11321 = vadd.f32 %v11282, %v11306
      %v11322 = vadd.f32 %v11283, %v11306
      %v11323 = vadd.f32 %v11284, %v11306
      %v11324 = vadd.f32 %v11285, %v11306
      %v11325 = vadd.f32 %v11286, %v11306
      %v11326 = vadd.f32 %v11287, %v11306
      %v11327 = vadd.f32 %v11288, %v11306
      %v11328 = vadd.f32 %v11289, %v11306
      %v11329 = vadd.f32 %v11290, %v11306
      %v11330 = vadd.f32 %v11291, %v11306
      %v11331 = vadd.f32 %v11292, %v11306
      %v11332 = vadd.f32 %v11293, %v11306
      %v11333 = vadd.f32 %v11294, %v11306
      %v11334 = vadd.f32 %v11295, %v11306
      %v11335 = vadd.f32 %v11296, %v11306
      %v11336 = vadd.f32 %v11297, %v11306
      %v11337 = vadd.f32 %v11298, %v11306
      %v11338 = vadd.f32 %v11299, %v11306
      %v11339 = vadd.f32 %v11300, %v11306
      %11340 = vst.msk [vmem:[%s197] sm:$0xff] %vm198, %v11308
      %11341 = vst.msk [vmem:[%s197 + $0x8] sm:$0xff] %vm198, %v11309
      %11342 = vst.msk [vmem:[%s197 + $0x10] sm:$0xff] %vm198, %v11310
      %11343 = vst.msk [vmem:[%s197 + $0x18] sm:$0xff] %vm198, %v11311
      %11344 = vst.msk [vmem:[%s197 + $0x20] sm:$0xff] %vm198, %v11312
      %11345 = vst.msk [vmem:[%s197 + $0x28] sm:$0xff] %vm198, %v11313
      %11346 = vst.msk [vmem:[%s197 + $0x30] sm:$0xff] %vm198, %v11314
      %11347 = vst.msk [vmem:[%s197 + $0x38] sm:$0xff] %vm198, %v11315
      %11348 = vst.msk [vmem:[%s197 + $0x40] sm:$0xff] %vm198, %v11316
      %11349 = vst.msk [vmem:[%s197 + $0x48] sm:$0xff] %vm198, %v11317
      %11350 = vst.msk [vmem:[%s197 + $0x50] sm:$0xff] %vm198, %v11318
      %11351 = vst.msk [vmem:[%s197 + $0x58] sm:$0xff] %vm198, %v11319
      %11352 = vst.msk [vmem:[%s197 + $0x60] sm:$0xff] %vm198, %v11320
      %11353 = vst.msk [vmem:[%s197 + $0x68] sm:$0xff] %vm198, %v11321
      %11354 = vst.msk [vmem:[%s197 + $0x70] sm:$0xff] %vm198, %v11322
      %11355 = vst.msk [vmem:[%s197 + $0x78] sm:$0xff] %vm198, %v11323
      %11356 = vst.msk [vmem:[%s197 + $0x80] sm:$0xff] %vm198, %v11324
      %11357 = vst.msk [vmem:[%s197 + $0x88] sm:$0xff] %vm198, %v11325
      %11358 = vst.msk [vmem:[%s197 + $0x90] sm:$0xff] %vm198, %v11326
      %11359 = vst.msk [vmem:[%s197 + $0x98] sm:$0xff] %vm198, %v11327
      %11360 = vst.msk [vmem:[%s197 + $0xa0] sm:$0xff] %vm198, %v11328
      %11361 = vst.msk [vmem:[%s197 + $0xa8] sm:$0xff] %vm198, %v11329
      %11362 = vst.msk [vmem:[%s197 + $0xb0] sm:$0xff] %vm198, %v11330
      %11363 = vst.msk [vmem:[%s197 + $0xb8] sm:$0xff] %vm198, %v11331
      %11364 = vst.msk [vmem:[%s197 + $0xc0] sm:$0xff] %vm198, %v11332
      %11365 = vst.msk [vmem:[%s197 + $0xc8] sm:$0xff] %vm198, %v11333
      %11366 = vst.msk [vmem:[%s197 + $0xd0] sm:$0xff] %vm198, %v11334
      %11367 = vst.msk [vmem:[%s197 + $0xd8] sm:$0xff] %vm198, %v11335
      %11368 = vst.msk [vmem:[%s197 + $0xe0] sm:$0xff] %vm198, %v11336
      %11369 = vst.msk [vmem:[%s197 + $0xe8] sm:$0xff] %vm198, %v11337
      %11370 = vst.msk [vmem:[%s197 + $0xf0] sm:$0xff] %vm198, %v11338
      %11371 = vst.msk [vmem:[%s197 + $0xf8] sm:$0xff] %vm198, %v11339
      %p11372 = scmp.lt.s32.totalorder %s15, 1
      %s11373 = scalar_select %p11372, %s15, 1
      %s11374 = smul.addr %s11373, 32
      %s11375 = smul.addr %s11374, 8
      %s11376 = scalar_lea.vmem %s4, %s11375
      // Predicated region
      $region37: #{sepconv_spike_forward.4} parent=35 // pred_check
        %p11377 = pneg %p122
      $region38: #{sepconv_spike_forward.4} parent=35 // pred_check_branch
        %11379 = sbr.rel (%p11377) target = $region40
      $region39: #{sepconv_spike_forward.4} parent=35 // pred_region
        _
      $region40: #{sepconv_spike_forward.4} parent=35 // pred_fallthru
        _
    $region36: #{sepconv_spike_forward.4} parent=5 // pred_fallthru
      _
    %p11380 = scmp.le.s32.totalorder 2, %s10
    // Predicated region
    $region41: #{sepconv_spike_forward.4} parent=5 // pred_check
      %p11381 = pneg %p11380
    $region42: #{sepconv_spike_forward.4} parent=5 // pred_check_branch
      %11383 = sbr.rel (%p11381) target = $region44
    $region43: #{sepconv_spike_forward.4} parent=5 // pred_region
      %s11384 = ssub.s32 %s10, 2
      // Predicated region
      $region45: #{sepconv_spike_forward.4} parent=43 // pred_check
        %p11385 = pneg %p128
      $region46: #{sepconv_spike_forward.4} parent=43 // pred_check_branch
        %11387 = sbr.rel (%p11385) target = $region48
      $region47: #{sepconv_spike_forward.4} parent=43 // pred_region
        %p11388 = scmp.lt.s32.totalorder %s16, 1
        %s11389 = scalar_select %p11388, %s16, 1
        %s11390 = smul.addr %s11389, 32
        %s11391 = smul.addr %s11390, 8
        %s11392 = scalar_lea.vmem %s4, %s11391
      $region48: #{sepconv_spike_forward.4} parent=43 // pred_fallthru
        _
    $region44: #{sepconv_spike_forward.4} parent=5 // pred_fallthru
      _
  $region6: #{sepconv_spike_forward.4} parent=0 // loop_footer
    %s14 = sadd.s32 1, %s10
  $region7: #{sepconv_spike_forward.4} parent=0 // loop_footer_branch
    %9 = sbr.rel target = $region3
  $region8: #{sepconv_spike_forward.4} parent=0 // loop_exit
    _

</llo_original>
